<compile_context>
chip_gen: v6e
topology: v6e:2x2x1
jax: 0.10.0
libtpu: 0.0.40
codegen_flags: <defaults>
</compile_context>

<pallas_src>
import functools

import jax
import jax.numpy as jnp
from jax.experimental import pallas as pl
from jax.experimental.pallas import tpu as pltpu


def _round_up(x, m):
    return ((x + m - 1) // m) * m


# ------------------------------ kernel bodies --------------------------------

def _bneck_main(x, mp, mc, w1, b1, w2, b2, w3, b3, *, Wp, Pp):
    """Main branch of BottleneckSparse on one (C, Pp) CR tile.

    conv1(1x1)+bias+ReLU -> mask multiply (once) -> 3x3 MASConv via 9
    lane-rolled full-width windows contracted in a single K=9*width MXU
    matmul -> *mc + bias + ReLU -> conv3(1x1)+bias.
    Returns the f32 pre-residual output (Cout, Pp).
    """
    h1 = jnp.maximum(jnp.dot(w1, x, preferred_element_type=jnp.float32) + b1, 0.0)
    h1m = h1 * mp                                                # (width, Pp) f32
    wins = []
    for ky in range(3):
        for kx in range(3):
            d = (ky - 1) * Wp + (kx - 1)                         # tap lane offset
            w_tap = h1m if d == 0 else pltpu.roll(h1m, (-d) % Pp, 1)
            wins.append(w_tap.astype(jnp.bfloat16))              # bf16 before gather
    x2 = jnp.concatenate(wins, axis=0)                           # (9*width, Pp) bf16
    h2 = jnp.dot(w2, x2, preferred_element_type=jnp.float32) * mc + b2
    h2 = jnp.maximum(h2, 0.0).astype(jnp.bfloat16)
    return jnp.dot(w3, h2, preferred_element_type=jnp.float32) + b3


def _expand_kernel(x_ref, mp_ref, mc_ref, w1_ref, b1_ref, w2_ref, b2_ref,
                   w3_ref, b3_ref, we_ref, be_ref, o_ref, *, Wp, Pp):
    """Single BottleneckSparse with a 1x1 expand on the residual (cin != cout)."""
    x = x_ref[...]                                               # (Cin, Pp) bf16
    main = _bneck_main(x, mp_ref[...], mc_ref[...], w1_ref[...], b1_ref[...],
                       w2_ref[...], b2_ref[...], w3_ref[...], b3_ref[...],
                       Wp=Wp, Pp=Pp)
    ident = jnp.dot(we_ref[...], x, preferred_element_type=jnp.float32) + be_ref[...]
    o_ref[...] = jnp.maximum(main + ident, 0.0).astype(o_ref.dtype)


def _stack_kernel(x_ref, mp_ref, mc_ref, w1_ref, b1_ref, w2_ref, b2_ref,
                  w3_ref, b3_ref, o_ref, act_ref, *, Wp, Pp, n_layers):
    """Fused stack of identical BottleneckSparse layers (cin == cout).

    grid = (N, n_layers); the activation is carried across the 'arbitrary'
    layer axis in an f32 VMEM scratch (residual chain accumulates in f32) and
    written back to HBM exactly once, after the last layer.
    """
    l = pl.program_id(1)

    @pl.when(l == 0)
    def _():
        act_ref[...] = x_ref[...].astype(jnp.float32)

    x = act_ref[...]                                             # (C, Pp) f32
    main = _bneck_main(x.astype(jnp.bfloat16), mp_ref[...], mc_ref[...],
                       w1_ref[...], b1_ref[...], w2_ref[...], b2_ref[...],
                       w3_ref[...], b3_ref[...], Wp=Wp, Pp=Pp)
    out = jnp.maximum(main + x, 0.0)
    act_ref[...] = out

    @pl.when(l == n_layers - 1)
    def _():
        o_ref[...] = out.astype(o_ref.dtype)


def _pool_kernel(x00, x01, x10, x11, m00, m01, m10, m11, mc_ref, w_ref, b_ref,
                 o_ref, *, Wc, Pp):
    """MASPool's stride-2 MASConv computed directly from 2x2-parity sub-grids
    (flattened with the NEXT scale's padded row width Wc) and stored straight
    into the next scale's padded flat layout: no stride-1 work, no wrapper
    re-embedding, one dense unmasked store."""
    xs = ((x00, x01), (x10, x11))
    ms = ((m00, m01), (m10, m11))
    xm = [[xs[py][px][...].astype(jnp.float32) * ms[py][px][...]
           for px in range(2)] for py in range(2)]
    wins = []
    for ky in range(3):
        for kx in range(3):
            d = (ky // 2 - 1) * Wc + (kx // 2 - 1)
            src = xm[ky % 2][kx % 2]
            w_tap = src if d == 0 else pltpu.roll(src, (-d) % Pp, 1)
            wins.append(w_tap.astype(jnp.bfloat16))
    x2 = jnp.concatenate(wins, axis=0)                           # (9*C, Pp) bf16
    acc = jnp.dot(w_ref[...], x2, preferred_element_type=jnp.float32)
    o_ref[...] = (acc * mc_ref[...] + b_ref[...]).astype(o_ref.dtype)


# ------------------------- pallas_call builders (cached) ---------------------

@functools.lru_cache(maxsize=None)
def _build_expand(N, Cin, Cout, width, Wp, Pp):
    def dspec(c):
        return pl.BlockSpec((None, c, Pp), lambda n: (n, 0, 0))

    def wspec(r, c):
        return pl.BlockSpec((r, c), lambda n: (0, 0))

    in_specs = [dspec(Cin), dspec(1), dspec(1),
                wspec(width, Cin), wspec(width, 1),
                wspec(width, 9 * width), wspec(width, 1),
                wspec(Cout, width), wspec(Cout, 1),
                wspec(Cout, Cin), wspec(Cout, 1)]
    return pl.pallas_call(
        functools.partial(_expand_kernel, Wp=Wp, Pp=Pp),
        out_shape=jax.ShapeDtypeStruct((N, Cout, Pp), jnp.bfloat16),
        grid=(N,),
        in_specs=in_specs,
        out_specs=pl.BlockSpec((None, Cout, Pp), lambda n: (n, 0, 0)),
        compiler_params=pltpu.CompilerParams(dimension_semantics=("parallel",)),
    )


@functools.lru_cache(maxsize=None)
def _build_stack(N, L, C, width, Wp, Pp):
    def dspec(c):
        return pl.BlockSpec((None, c, Pp), lambda n, l: (n, 0, 0))

    def wspec(r, c):
        return pl.BlockSpec((None, r, c), lambda n, l: (l, 0, 0))

    in_specs = [dspec(C), dspec(1), dspec(1),
                wspec(width, C), wspec(width, 1),
                wspec(width, 9 * width), wspec(width, 1),
                wspec(C, width), wspec(C, 1)]
    return pl.pallas_call(
        functools.partial(_stack_kernel, Wp=Wp, Pp=Pp, n_layers=L),
        out_shape=jax.ShapeDtypeStruct((N, C, Pp), jnp.bfloat16),
        grid=(N, L),
        in_specs=in_specs,
        out_specs=pl.BlockSpec((None, C, Pp), lambda n, l: (n, 0, 0)),
        scratch_shapes=[pltpu.VMEM((C, Pp), jnp.float32)],
        compiler_params=pltpu.CompilerParams(
            dimension_semantics=("parallel", "arbitrary")),
    )


@functools.lru_cache(maxsize=None)
def _build_pool(N, C, Wc, Pp):
    def dspec(c):
        return pl.BlockSpec((None, c, Pp), lambda n: (n, 0, 0))

    def wspec(r, c):
        return pl.BlockSpec((r, c), lambda n: (0, 0))

    in_specs = ([dspec(C)] * 4 + [dspec(1)] * 4 +
                [dspec(1), wspec(C, 9 * C), wspec(C, 1)])
    return pl.pallas_call(
        functools.partial(_pool_kernel, Wc=Wc, Pp=Pp),
        out_shape=jax.ShapeDtypeStruct((N, C, Pp), jnp.bfloat16),
        grid=(N,),
        in_specs=in_specs,
        out_specs=pl.BlockSpec((None, C, Pp), lambda n: (n, 0, 0)),
        compiler_params=pltpu.CompilerParams(dimension_semantics=("parallel",)),
    )


# ------------------------- layout + mask bookkeeping -------------------------

def _flat_pad(x4, Pp):
    N, C, Hq, Wq = x4.shape
    xf = x4.reshape(N, C, Hq * Wq)
    return jnp.pad(xf, ((0, 0), (0, 0), (0, Pp - Hq * Wq)))


def _to_padded_flat(x_nchw, c_pad):
    N, C, H, W = x_nchw.shape
    Pp = _round_up((H + 2) * (W + 2), 128)
    xp = jnp.pad(x_nchw.astype(jnp.bfloat16),
                 ((0, 0), (0, c_pad - C), (1, 1), (1, 1)))
    return _flat_pad(xp, Pp)


def _from_padded_flat(x_flat, H, W):
    N, C, _ = x_flat.shape
    x = x_flat[:, :, :(H + 2) * (W + 2)].reshape(N, C, H + 2, W + 2)
    return x[:, :, 1:H + 1, 1:W + 1].astype(jnp.float32)


# TODO(synk): mask bookkeeping (3x3 / stride-2 mask counts, 2x2 max-pool,
# parity splits) is tiny single-channel glue; kept in plain JAX.
def _mask_prep_fine(m, Pp):
    """Padded mask + ring-masked reciprocal 3x3 mask count (stride 1)."""
    N, _, H, W = m.shape
    mp4 = jnp.pad(m, ((0, 0), (0, 0), (1, 1), (1, 1)))
    cnt = sum(mp4[:, :, ky:ky + H, kx:kx + W]
              for ky in range(3) for kx in range(3))
    inv = 1.0 / jnp.maximum(cnt, 1e-5)
    inv4 = jnp.pad(inv, ((0, 0), (0, 0), (1, 1), (1, 1)))        # zero on ring
    return _flat_pad(mp4, Pp), _flat_pad(inv4, Pp)


def _mask_prep_pool(m, Pp_out):
    """Stride-2 ring-masked reciprocal mask count, mask parity sub-grids
    (flattened with the next scale's row width) and the 2x2 max-pooled mask."""
    N, _, H, W = m.shape
    Ho, Wo = H // 2, W // 2
    mp4 = jnp.pad(m, ((0, 0), (0, 0), (1, 1), (1, 1)))
    cnt2 = sum(mp4[:, :, ky:ky + H:2, kx:kx + W:2]
               for ky in range(3) for kx in range(3))            # (N,1,Ho,Wo)
    inv2 = 1.0 / jnp.maximum(cnt2, 1e-5)
    inv2 = jnp.pad(inv2, ((0, 0), (0, 0), (1, 1), (1, 1)))       # zero on ring
    mc2 = _flat_pad(inv2, Pp_out)
    msub = []
    for py in range(2):
        for px in range(2):
            s = mp4[:, :, py::2, px::2]                          # (N,1,Ho+1,Wo+1)
            s = jnp.pad(s, ((0, 0), (0, 0), (0, 0), (0, 1)))     # row width -> Wo+2
            msub.append(_flat_pad(s, Pp_out))
    m_next = m.reshape(N, 1, Ho, 2, Wo, 2).max(axis=(3, 5))
    return mc2, msub, m_next


def _parity_split(x_flat, H, W, Pp_out):
    """2x2-parity sub-grids of a fine-scale padded flat image, flattened with
    the coarse scale's padded row width Wc = W//2 + 2."""
    N, C, _ = x_flat.shape
    Hp, Wp = H + 2, W + 2
    x4 = x_flat[:, :, :Hp * Wp].reshape(N, C, Hp, Wp)
    subs = []
    for py in range(2):
        for px in range(2):
            s = x4[:, :, py::2, px::2]                           # (N,C,H//2+1,W//2+1)
            s = jnp.pad(s, ((0, 0), (0, 0), (0, 0), (0, 1)))
            subs.append(_flat_pad(s, Pp_out))
    return subs


# ------------------------------- module forward ------------------------------

def _pad_cin(w, cin):
    return w if w.shape[1] == cin else jnp.pad(w, ((0, 0), (0, cin - w.shape[1])))


def resmod_fwd(p, x_flat, m, H, W):
    N, Cin, _ = x_flat.shape
    Ho, Wo = H // 2, W // 2
    Pp = _round_up((H + 2) * (W + 2), 128)
    Wc = Wo + 2
    Pp_out = _round_up((Ho + 2) * Wc, 128)

    # per-resolution mask bookkeeping, shared by every layer at that resolution
    mp, mc1 = _mask_prep_fine(m, Pp)
    mc2, msub, m_next = _mask_prep_pool(m, Pp_out)
    mp_n, mc1_n = _mask_prep_fine(m_next, Pp_out)

    # expand bottleneck (fused conv1 + MASConv3x3 + conv3 + expanded residual)
    ep = p['expand']
    width = ep['w1T'].shape[0]
    Cout = ep['w3T'].shape[0]
    if 'weT' in ep:
        x_e = _build_expand(N, Cin, Cout, width, W + 2, Pp)(
            x_flat, mp, mc1,
            _pad_cin(ep['w1T'], Cin), ep['b1'], ep['w2T'], ep['b2'],
            ep['w3T'], ep['b3'], _pad_cin(ep['weT'], Cin), ep['be'])
    else:  # cin == cout: plain residual, reuse the stacked kernel with L=1
        x_e = _build_stack(N, 1, Cout, width, W + 2, Pp)(
            x_flat, mp, mc1, ep['w1T'][None], ep['b1'][None], ep['w2T'][None],
            ep['b2'][None], ep['w3T'][None], ep['b3'][None])

    # MASPool (stride-2 MASConv) -> written directly in the next scale's layout
    xsub = _parity_split(x_e, H, W, Pp_out)
    pp = p['pool']
    x_p = _build_pool(N, Cout, Wc, Pp_out)(*xsub, *msub, mc2, pp['wT'], pp['b'])

    # fused rep-layer stack: ONE pallas_call, activation VMEM-resident (f32)
    lp = p['layers']
    L = lp['w1T'].shape[0]
    x_out = _build_stack(N, L, Cout, lp['w1T'].shape[1], Wo + 2, Pp_out)(
        x_p, mp_n, mc1_n, lp['w1T'], lp['b1'], lp['w2T'], lp['b2'],
        lp['w3T'], lp['b3'])
    return x_out, m_next


def encoder_fwd(params, x1, m1, x2, m2):
    N, _, H, W = x1.shape
    xs = [_to_padded_flat(x1, _round_up(x1.shape[1], 8)),
          _to_padded_flat(x2, _round_up(x2.shape[1], 8))]
    ms = [m1, m2]
    endpoints = ([], [])
    h, w = H, W
    for p1, p2 in zip(params['path1'], params['path2']):
        for i, pp in enumerate((p1, p2)):
            xs[i], ms[i] = resmod_fwd(pp, xs[i], ms[i], h, w)
        h, w = h // 2, w // 2
        for i in range(2):
            endpoints[i].append((_from_padded_flat(xs[i], h, w), ms[i]))
    return endpoints[0], endpoints[1]


# --------------------------------- param init --------------------------------

def _init_1x1(key, cin, cout):
    k1, k2 = jax.random.split(key)
    w = jax.random.normal(k1, (cin, cout), jnp.float32) / jnp.sqrt(float(cin))
    b = 0.01 * jax.random.normal(k2, (cout,), jnp.float32)
    return w.T.astype(jnp.bfloat16), b.reshape(cout, 1)


def _init_mas(key, cin, cout):
    k1, k2 = jax.random.split(key)
    # kaiming-normal, fan_out: std = sqrt(2 / (cout * 3 * 3))
    w = jax.random.normal(k1, (3, 3, cin, cout), jnp.float32) * jnp.sqrt(2.0 / (cout * 9))
    b = 0.01 * jax.random.normal(k2, (cout,), jnp.float32)
    # [co, (ky*3 + kx)*cin + ci] -- matches the in-kernel tap/channel concat order
    wT = jnp.transpose(w, (3, 0, 1, 2)).reshape(cout, 9 * cin)
    return wT.astype(jnp.bfloat16), b.reshape(cout, 1)


def init_bottleneck_params(key, cin, cout):
    width = int(cout * 0.5)
    ks = jax.random.split(key, 4)
    w1T, b1 = _init_1x1(ks[0], cin, width)
    w2T, b2 = _init_mas(ks[1], width, width)
    w3T, b3 = _init_1x1(ks[2], width, cout)
    p = {'w1T': w1T, 'b1': b1, 'w2T': w2T, 'b2': b2, 'w3T': w3T, 'b3': b3}
    if cin != cout:
        p['weT'], p['be'] = _init_1x1(ks[3], cin, cout)
    return p


def init_resmod_params(key, cin, cout, reps=5):
    ks = jax.random.split(key, reps + 2)
    layers = [init_bottleneck_params(ks[2 + i], cout, cout) for i in range(reps)]
    stacked = {k: jnp.stack([lp[k] for lp in layers]) for k in layers[0]}
    wpT, bp = _init_mas(ks[1], cout, cout)
    return {'expand': init_bottleneck_params(ks[0], cin, cout),
            'pool': {'wT': wpT, 'b': bp},
            'layers': stacked}


def init_encoder_params(key, cin1, cin2, scales, base_width):
    params = {'path1': [], 'path2': []}
    for s in range(scales):
        in1 = cin1 if s == 0 else base_width * s
        in2 = cin2 if s == 0 else base_width * s
        out = base_width * (s + 1)
        key, k1, k2 = jax.random.split(key, 3)
        params['path1'].append(init_resmod_params(k1, in1, out))
        params['path2'].append(init_resmod_params(k2, in2, out))
    return params


# ------------------------------------ main ------------------------------------

if __name__ == "__main__":
    N, H, W = 2, 16, 16
    cin1, cin2 = 2, 3
    scales, base_width = 2, 32      # width = 16 / 32: full bf16 sublane tiles

    key = jax.random.PRNGKey(0)
    kx1, km1, kx2, km2, kp = jax.random.split(key, 5)
    x1 = jax.random.normal(kx1, (N, cin1, H, W), jnp.float32)   # NCHW, like PyTorch
    x2 = jax.random.normal(kx2, (N, cin2, H, W), jnp.float32)
    m1 = (jax.random.uniform(km1, (N, 1, H, W)) > 0.3).astype(jnp.float32)
    m2 = (jax.random.uniform(km2, (N, 1, H, W)) > 0.3).astype(jnp.float32)

    params = init_encoder_params(kp, cin1, cin2, scales, base_width)

    e1, e2 = jax.jit(encoder_fwd)(params, x1, m1, x2, m2)
    jax.block_until_ready((e1, e2))

    for s in range(scales):
        hc, cc = H // (2 ** (s + 1)), base_width * (s + 1)
        for eps in (e1, e2):
            xe, me = eps[s]
            assert xe.shape == (N, cc, hc, hc), xe.shape
            assert me.shape == (N, 1, hc, hc), me.shape
            assert bool(jnp.isfinite(xe).all()), "non-finite activations"

    print("KERNEL_OK")
</pallas_src>

<mosaic_0001>
module attributes {stable_mosaic.version = 11 : i64} {
  func.func @_expand_kernel(%arg0: i32, %arg1: memref<1x8x384xbf16, #tpu.memory_space<vmem>>, %arg2: memref<1x1x384xf32, #tpu.memory_space<vmem>>, %arg3: memref<1x1x384xf32, #tpu.memory_space<vmem>>, %arg4: memref<16x8xbf16, #tpu.memory_space<vmem>>, %arg5: memref<16x1xf32, #tpu.memory_space<vmem>>, %arg6: memref<16x144xbf16, #tpu.memory_space<vmem>>, %arg7: memref<16x1xf32, #tpu.memory_space<vmem>>, %arg8: memref<32x16xbf16, #tpu.memory_space<vmem>>, %arg9: memref<32x1xf32, #tpu.memory_space<vmem>>, %arg10: memref<32x8xbf16, #tpu.memory_space<vmem>>, %arg11: memref<32x1xf32, #tpu.memory_space<vmem>>, %arg12: memref<1x32x384xbf16, #tpu.memory_space<vmem>>) attributes {dimension_semantics = [#tpu.dimension_semantics<parallel>], iteration_bounds = array<i64: 2>, scalar_prefetch = 0 : i64, scratch_operands = 0 : i64, tpu.core_type = #tpu.core_type<tc>, window_params = [{transform_indices = @transform_0, window_bounds = array<i64: 1, 8, 384>}, {transform_indices = @transform_1, window_bounds = array<i64: 1, 1, 384>}, {transform_indices = @transform_2, window_bounds = array<i64: 1, 1, 384>}, {pipeline_mode = #tpu.pipeline_mode<synchronous>, transform_indices = @transform_3, window_bounds = array<i64: 16, 8>}, {pipeline_mode = #tpu.pipeline_mode<synchronous>, transform_indices = @transform_4, window_bounds = array<i64: 16, 1>}, {pipeline_mode = #tpu.pipeline_mode<synchronous>, transform_indices = @transform_5, window_bounds = array<i64: 16, 144>}, {pipeline_mode = #tpu.pipeline_mode<synchronous>, transform_indices = @transform_6, window_bounds = array<i64: 16, 1>}, {pipeline_mode = #tpu.pipeline_mode<synchronous>, transform_indices = @transform_7, window_bounds = array<i64: 32, 16>}, {pipeline_mode = #tpu.pipeline_mode<synchronous>, transform_indices = @transform_8, window_bounds = array<i64: 32, 1>}, {pipeline_mode = #tpu.pipeline_mode<synchronous>, transform_indices = @transform_9, window_bounds = array<i64: 32, 8>}, {pipeline_mode = #tpu.pipeline_mode<synchronous>, transform_indices = @transform_10, window_bounds = array<i64: 32, 1>}, {transform_indices = @transform_11, window_bounds = array<i64: 1, 32, 384>}]} {
    %c0 = arith.constant 0 : index
    %c0_0 = arith.constant 0 : index
    %c0_1 = arith.constant 0 : index
    %0 = vector.load %arg1[%c0, %c0_0, %c0_1] : memref<1x8x384xbf16, #tpu.memory_space<vmem>>, vector<1x8x384xbf16>
    %1 = vector.shape_cast %0 : vector<1x8x384xbf16> to vector<8x384xbf16>
    %c0_2 = arith.constant 0 : index
    %c0_3 = arith.constant 0 : index
    %c0_4 = arith.constant 0 : index
    %2 = vector.load %arg2[%c0_2, %c0_3, %c0_4] : memref<1x1x384xf32, #tpu.memory_space<vmem>>, vector<1x1x384xf32>
    %3 = vector.shape_cast %2 : vector<1x1x384xf32> to vector<1x384xf32>
    %c0_5 = arith.constant 0 : index
    %c0_6 = arith.constant 0 : index
    %c0_7 = arith.constant 0 : index
    %4 = vector.load %arg3[%c0_5, %c0_6, %c0_7] : memref<1x1x384xf32, #tpu.memory_space<vmem>>, vector<1x1x384xf32>
    %5 = vector.shape_cast %4 : vector<1x1x384xf32> to vector<1x384xf32>
    %c0_8 = arith.constant 0 : index
    %c0_9 = arith.constant 0 : index
    %6 = vector.load %arg4[%c0_8, %c0_9] : memref<16x8xbf16, #tpu.memory_space<vmem>>, vector<16x8xbf16>
    %c0_10 = arith.constant 0 : index
    %c0_11 = arith.constant 0 : index
    %7 = vector.load %arg5[%c0_10, %c0_11] : memref<16x1xf32, #tpu.memory_space<vmem>>, vector<16x1xf32>
    %c0_12 = arith.constant 0 : index
    %c0_13 = arith.constant 0 : index
    %8 = vector.load %arg6[%c0_12, %c0_13] : memref<16x144xbf16, #tpu.memory_space<vmem>>, vector<16x144xbf16>
    %c0_14 = arith.constant 0 : index
    %c0_15 = arith.constant 0 : index
    %9 = vector.load %arg7[%c0_14, %c0_15] : memref<16x1xf32, #tpu.memory_space<vmem>>, vector<16x1xf32>
    %c0_16 = arith.constant 0 : index
    %c0_17 = arith.constant 0 : index
    %10 = vector.load %arg8[%c0_16, %c0_17] : memref<32x16xbf16, #tpu.memory_space<vmem>>, vector<32x16xbf16>
    %c0_18 = arith.constant 0 : index
    %c0_19 = arith.constant 0 : index
    %11 = vector.load %arg9[%c0_18, %c0_19] : memref<32x1xf32, #tpu.memory_space<vmem>>, vector<32x1xf32>
    %cst = arith.constant dense<0.000000e+00> : vector<16x384xf32>
    %12 = tpu.matmul %6, %1, %cst {dimension_numbers = #tpu.dot_dimension_numbers<[1], [0], [0], [1], [0, 0, 1, 1], [], []>} : vector<16x8xbf16>, vector<8x384xbf16>, vector<16x384xf32> -> vector<16x384xf32>
    %13 = vector.broadcast %7 : vector<16x1xf32> to vector<16x384xf32>
    %14 = arith.addf %12, %13 : vector<16x384xf32>
    %cst_20 = arith.constant 0.000000e+00 : f32
    %15 = vector.broadcast %cst_20 : f32 to vector<16x384xf32>
    %16 = arith.maximumf %14, %15 : vector<16x384xf32>
    %17 = vector.broadcast %3 : vector<1x384xf32> to vector<16x384xf32>
    %18 = arith.mulf %16, %17 : vector<16x384xf32>
    %c19_i32 = arith.constant 19 : i32
    %19 = tpu.dynamic_rotate %18 by %c19_i32 dim 1 : vector<16x384xf32>, i32 -> vector<16x384xf32>
    %20 = arith.truncf %19 : vector<16x384xf32> to vector<16x384xbf16>
    %c18_i32 = arith.constant 18 : i32
    %21 = tpu.dynamic_rotate %18 by %c18_i32 dim 1 : vector<16x384xf32>, i32 -> vector<16x384xf32>
    %22 = arith.truncf %21 : vector<16x384xf32> to vector<16x384xbf16>
    %c17_i32 = arith.constant 17 : i32
    %23 = tpu.dynamic_rotate %18 by %c17_i32 dim 1 : vector<16x384xf32>, i32 -> vector<16x384xf32>
    %24 = arith.truncf %23 : vector<16x384xf32> to vector<16x384xbf16>
    %c1_i32 = arith.constant 1 : i32
    %25 = tpu.dynamic_rotate %18 by %c1_i32 dim 1 : vector<16x384xf32>, i32 -> vector<16x384xf32>
    %26 = arith.truncf %25 : vector<16x384xf32> to vector<16x384xbf16>
    %27 = arith.truncf %18 : vector<16x384xf32> to vector<16x384xbf16>
    %c383_i32 = arith.constant 383 : i32
    %28 = tpu.dynamic_rotate %18 by %c383_i32 dim 1 : vector<16x384xf32>, i32 -> vector<16x384xf32>
    %29 = arith.truncf %28 : vector<16x384xf32> to vector<16x384xbf16>
    %c367_i32 = arith.constant 367 : i32
    %30 = tpu.dynamic_rotate %18 by %c367_i32 dim 1 : vector<16x384xf32>, i32 -> vector<16x384xf32>
    %31 = arith.truncf %30 : vector<16x384xf32> to vector<16x384xbf16>
    %c366_i32 = arith.constant 366 : i32
    %32 = tpu.dynamic_rotate %18 by %c366_i32 dim 1 : vector<16x384xf32>, i32 -> vector<16x384xf32>
    %33 = arith.truncf %32 : vector<16x384xf32> to vector<16x384xbf16>
    %c365_i32 = arith.constant 365 : i32
    %34 = tpu.dynamic_rotate %18 by %c365_i32 dim 1 : vector<16x384xf32>, i32 -> vector<16x384xf32>
    %35 = arith.truncf %34 : vector<16x384xf32> to vector<16x384xbf16>
    %36 = tpu.concatenate %20, %22, %24, %26, %27, %29, %31, %33, %35 in 0 : vector<16x384xbf16>, vector<16x384xbf16>, vector<16x384xbf16>, vector<16x384xbf16>, vector<16x384xbf16>, vector<16x384xbf16>, vector<16x384xbf16>, vector<16x384xbf16>, vector<16x384xbf16> -> vector<144x384xbf16>
    %cst_21 = arith.constant dense<0.000000e+00> : vector<16x384xf32>
    %37 = tpu.matmul %8, %36, %cst_21 {dimension_numbers = #tpu.dot_dimension_numbers<[1], [0], [0], [1], [0, 0, 1, 1], [], []>} : vector<16x144xbf16>, vector<144x384xbf16>, vector<16x384xf32> -> vector<16x384xf32>
    %38 = vector.broadcast %5 : vector<1x384xf32> to vector<16x384xf32>
    %39 = arith.mulf %37, %38 : vector<16x384xf32>
    %40 = vector.broadcast %9 : vector<16x1xf32> to vector<16x384xf32>
    %41 = arith.addf %39, %40 : vector<16x384xf32>
    %cst_22 = arith.constant 0.000000e+00 : f32
    %42 = vector.broadcast %cst_22 : f32 to vector<16x384xf32>
    %43 = arith.maximumf %41, %42 : vector<16x384xf32>
    %44 = arith.truncf %43 : vector<16x384xf32> to vector<16x384xbf16>
    %cst_23 = arith.constant dense<0.000000e+00> : vector<32x384xf32>
    %45 = tpu.matmul %10, %44, %cst_23 {dimension_numbers = #tpu.dot_dimension_numbers<[1], [0], [0], [1], [0, 0, 1, 1], [], []>} : vector<32x16xbf16>, vector<16x384xbf16>, vector<32x384xf32> -> vector<32x384xf32>
    %46 = vector.broadcast %11 : vector<32x1xf32> to vector<32x384xf32>
    %47 = arith.addf %45, %46 : vector<32x384xf32>
    %c0_24 = arith.constant 0 : index
    %c0_25 = arith.constant 0 : index
    %48 = vector.load %arg10[%c0_24, %c0_25] : memref<32x8xbf16, #tpu.memory_space<vmem>>, vector<32x8xbf16>
    %cst_26 = arith.constant dense<0.000000e+00> : vector<32x384xf32>
    %49 = tpu.matmul %48, %1, %cst_26 {dimension_numbers = #tpu.dot_dimension_numbers<[1], [0], [0], [1], [0, 0, 1, 1], [], []>} : vector<32x8xbf16>, vector<8x384xbf16>, vector<32x384xf32> -> vector<32x384xf32>
    %c0_27 = arith.constant 0 : index
    %c0_28 = arith.constant 0 : index
    %50 = vector.load %arg11[%c0_27, %c0_28] : memref<32x1xf32, #tpu.memory_space<vmem>>, vector<32x1xf32>
    %51 = vector.broadcast %50 : vector<32x1xf32> to vector<32x384xf32>
    %52 = arith.addf %49, %51 : vector<32x384xf32>
    %53 = arith.addf %47, %52 : vector<32x384xf32>
    %cst_29 = arith.constant 0.000000e+00 : f32
    %54 = vector.broadcast %cst_29 : f32 to vector<32x384xf32>
    %55 = arith.maximumf %53, %54 : vector<32x384xf32>
    %56 = arith.truncf %55 : vector<32x384xf32> to vector<32x384xbf16>
    %c0_30 = arith.constant 0 : index
    %c0_31 = arith.constant 0 : index
    %c0_32 = arith.constant 0 : index
    %57 = vector.load %arg12[%c0_30, %c0_31, %c0_32] : memref<1x32x384xbf16, #tpu.memory_space<vmem>>, vector<1x32x384xbf16>
    %58 = vector.shape_cast %57 : vector<1x32x384xbf16> to vector<32x384xbf16>
    %59 = vector.shape_cast %56 : vector<32x384xbf16> to vector<1x32x384xbf16>
    tpu.vector_store %arg12[%c0_30, %c0_31, %c0_32], %59 {strides = array<i32>} : memref<1x32x384xbf16, #tpu.memory_space<vmem>>, vector<1x32x384xbf16>,
    return
  }
  func.func @transform_0(%arg0: i32) -> (i32, i32, i32) {
    %c0_i32 = arith.constant 0 : i32
    %c0_i32_0 = arith.constant 0 : i32
    %c0_i32_1 = arith.constant 0 : i32
    return %arg0, %c0_i32, %c0_i32_0 : i32, i32, i32
  }
  func.func @transform_1(%arg0: i32) -> (i32, i32, i32) {
    %c0_i32 = arith.constant 0 : i32
    %c0_i32_0 = arith.constant 0 : i32
    %c0_i32_1 = arith.constant 0 : i32
    return %arg0, %c0_i32, %c0_i32_0 : i32, i32, i32
  }
  func.func @transform_2(%arg0: i32) -> (i32, i32, i32) {
    %c0_i32 = arith.constant 0 : i32
    %c0_i32_0 = arith.constant 0 : i32
    %c0_i32_1 = arith.constant 0 : i32
    return %arg0, %c0_i32, %c0_i32_0 : i32, i32, i32
  }
  func.func @transform_3(%arg0: i32) -> (i32, i32) {
    %c0_i32 = arith.constant 0 : i32
    %c0_i32_0 = arith.constant 0 : i32
    %c0_i32_1 = arith.constant 0 : i32
    return %c0_i32, %c0_i32_0 : i32, i32
  }
  func.func @transform_4(%arg0: i32) -> (i32, i32) {
    %c0_i32 = arith.constant 0 : i32
    %c0_i32_0 = arith.constant 0 : i32
    %c0_i32_1 = arith.constant 0 : i32
    return %c0_i32, %c0_i32_0 : i32, i32
  }
  func.func @transform_5(%arg0: i32) -> (i32, i32) {
    %c0_i32 = arith.constant 0 : i32
    %c0_i32_0 = arith.constant 0 : i32
    %c0_i32_1 = arith.constant 0 : i32
    return %c0_i32, %c0_i32_0 : i32, i32
  }
  func.func @transform_6(%arg0: i32) -> (i32, i32) {
    %c0_i32 = arith.constant 0 : i32
    %c0_i32_0 = arith.constant 0 : i32
    %c0_i32_1 = arith.constant 0 : i32
    return %c0_i32, %c0_i32_0 : i32, i32
  }
  func.func @transform_7(%arg0: i32) -> (i32, i32) {
    %c0_i32 = arith.constant 0 : i32
    %c0_i32_0 = arith.constant 0 : i32
    %c0_i32_1 = arith.constant 0 : i32
    return %c0_i32, %c0_i32_0 : i32, i32
  }
  func.func @transform_8(%arg0: i32) -> (i32, i32) {
    %c0_i32 = arith.constant 0 : i32
    %c0_i32_0 = arith.constant 0 : i32
    %c0_i32_1 = arith.constant 0 : i32
    return %c0_i32, %c0_i32_0 : i32, i32
  }
  func.func @transform_9(%arg0: i32) -> (i32, i32) {
    %c0_i32 = arith.constant 0 : i32
    %c0_i32_0 = arith.constant 0 : i32
    %c0_i32_1 = arith.constant 0 : i32
    return %c0_i32, %c0_i32_0 : i32, i32
  }
  func.func @transform_10(%arg0: i32) -> (i32, i32) {
    %c0_i32 = arith.constant 0 : i32
    %c0_i32_0 = arith.constant 0 : i32
    %c0_i32_1 = arith.constant 0 : i32
    return %c0_i32, %c0_i32_0 : i32, i32
  }
  func.func @transform_11(%arg0: i32) -> (i32, i32, i32) {
    %c0_i32 = arith.constant 0 : i32
    %c0_i32_0 = arith.constant 0 : i32
    %c0_i32_1 = arith.constant 0 : i32
    return %arg0, %c0_i32, %c0_i32_0 : i32, i32, i32
  }
}

module attributes {stable_mosaic.version = 11 : i64} {
  func.func @_pool_kernel(%arg0: i32, %arg1: memref<1x32x128xbf16, #tpu.memory_space<vmem>>, %arg2: memref<1x32x128xbf16, #tpu.memory_space<vmem>>, %arg3: memref<1x32x128xbf16, #tpu.memory_space<vmem>>, %arg4: memref<1x32x128xbf16, #tpu.memory_space<vmem>>, %arg5: memref<1x1x128xf32, #tpu.memory_space<vmem>>, %arg6: memref<1x1x128xf32, #tpu.memory_space<vmem>>, %arg7: memref<1x1x128xf32, #tpu.memory_space<vmem>>, %arg8: memref<1x1x128xf32, #tpu.memory_space<vmem>>, %arg9: memref<1x1x128xf32, #tpu.memory_space<vmem>>, %arg10: memref<32x288xbf16, #tpu.memory_space<vmem>>, %arg11: memref<32x1xf32, #tpu.memory_space<vmem>>, %arg12: memref<1x32x128xbf16, #tpu.memory_space<vmem>>) attributes {dimension_semantics = [#tpu.dimension_semantics<parallel>], iteration_bounds = array<i64: 2>, scalar_prefetch = 0 : i64, scratch_operands = 0 : i64, tpu.core_type = #tpu.core_type<tc>, window_params = [{transform_indices = @transform_0, window_bounds = array<i64: 1, 32, 128>}, {transform_indices = @transform_1, window_bounds = array<i64: 1, 32, 128>}, {transform_indices = @transform_2, window_bounds = array<i64: 1, 32, 128>}, {transform_indices = @transform_3, window_bounds = array<i64: 1, 32, 128>}, {transform_indices = @transform_4, window_bounds = array<i64: 1, 1, 128>}, {transform_indices = @transform_5, window_bounds = array<i64: 1, 1, 128>}, {transform_indices = @transform_6, window_bounds = array<i64: 1, 1, 128>}, {transform_indices = @transform_7, window_bounds = array<i64: 1, 1, 128>}, {transform_indices = @transform_8, window_bounds = array<i64: 1, 1, 128>}, {pipeline_mode = #tpu.pipeline_mode<synchronous>, transform_indices = @transform_9, window_bounds = array<i64: 32, 288>}, {pipeline_mode = #tpu.pipeline_mode<synchronous>, transform_indices = @transform_10, window_bounds = array<i64: 32, 1>}, {transform_indices = @transform_11, window_bounds = array<i64: 1, 32, 128>}]} {
    %c0 = arith.constant 0 : index
    %c0_0 = arith.constant 0 : index
    %c0_1 = arith.constant 0 : index
    %0 = vector.load %arg1[%c0, %c0_0, %c0_1] : memref<1x32x128xbf16, #tpu.memory_space<vmem>>, vector<1x32x128xbf16>
    %1 = vector.shape_cast %0 : vector<1x32x128xbf16> to vector<32x128xbf16>
    %2 = arith.extf %1 : vector<32x128xbf16> to vector<32x128xf32>
    %c0_2 = arith.constant 0 : index
    %c0_3 = arith.constant 0 : index
    %c0_4 = arith.constant 0 : index
    %3 = vector.load %arg5[%c0_2, %c0_3, %c0_4] : memref<1x1x128xf32, #tpu.memory_space<vmem>>, vector<1x1x128xf32>
    %4 = vector.shape_cast %3 : vector<1x1x128xf32> to vector<1x128xf32>
    %5 = vector.broadcast %4 : vector<1x128xf32> to vector<32x128xf32>
    %6 = arith.mulf %2, %5 : vector<32x128xf32>
    %c0_5 = arith.constant 0 : index
    %c0_6 = arith.constant 0 : index
    %c0_7 = arith.constant 0 : index
    %7 = vector.load %arg2[%c0_5, %c0_6, %c0_7] : memref<1x32x128xbf16, #tpu.memory_space<vmem>>, vector<1x32x128xbf16>
    %8 = vector.shape_cast %7 : vector<1x32x128xbf16> to vector<32x128xbf16>
    %9 = arith.extf %8 : vector<32x128xbf16> to vector<32x128xf32>
    %c0_8 = arith.constant 0 : index
    %c0_9 = arith.constant 0 : index
    %c0_10 = arith.constant 0 : index
    %10 = vector.load %arg6[%c0_8, %c0_9, %c0_10] : memref<1x1x128xf32, #tpu.memory_space<vmem>>, vector<1x1x128xf32>
    %11 = vector.shape_cast %10 : vector<1x1x128xf32> to vector<1x128xf32>
    %12 = vector.broadcast %11 : vector<1x128xf32> to vector<32x128xf32>
    %13 = arith.mulf %9, %12 : vector<32x128xf32>
    %c0_11 = arith.constant 0 : index
    %c0_12 = arith.constant 0 : index
    %c0_13 = arith.constant 0 : index
    %14 = vector.load %arg3[%c0_11, %c0_12, %c0_13] : memref<1x32x128xbf16, #tpu.memory_space<vmem>>, vector<1x32x128xbf16>
    %15 = vector.shape_cast %14 : vector<1x32x128xbf16> to vector<32x128xbf16>
    %16 = arith.extf %15 : vector<32x128xbf16> to vector<32x128xf32>
    %c0_14 = arith.constant 0 : index
    %c0_15 = arith.constant 0 : index
    %c0_16 = arith.constant 0 : index
    %17 = vector.load %arg7[%c0_14, %c0_15, %c0_16] : memref<1x1x128xf32, #tpu.memory_space<vmem>>, vector<1x1x128xf32>
    %18 = vector.shape_cast %17 : vector<1x1x128xf32> to vector<1x128xf32>
    %19 = vector.broadcast %18 : vector<1x128xf32> to vector<32x128xf32>
    %20 = arith.mulf %16, %19 : vector<32x128xf32>
    %c0_17 = arith.constant 0 : index
    %c0_18 = arith.constant 0 : index
    %c0_19 = arith.constant 0 : index
    %21 = vector.load %arg4[%c0_17, %c0_18, %c0_19] : memref<1x32x128xbf16, #tpu.memory_space<vmem>>, vector<1x32x128xbf16>
    %22 = vector.shape_cast %21 : vector<1x32x128xbf16> to vector<32x128xbf16>
    %23 = arith.extf %22 : vector<32x128xbf16> to vector<32x128xf32>
    %c0_20 = arith.constant 0 : index
    %c0_21 = arith.constant 0 : index
    %c0_22 = arith.constant 0 : index
    %24 = vector.load %arg8[%c0_20, %c0_21, %c0_22] : memref<1x1x128xf32, #tpu.memory_space<vmem>>, vector<1x1x128xf32>
    %25 = vector.shape_cast %24 : vector<1x1x128xf32> to vector<1x128xf32>
    %26 = vector.broadcast %25 : vector<1x128xf32> to vector<32x128xf32>
    %27 = arith.mulf %23, %26 : vector<32x128xf32>
    %c11_i32 = arith.constant 11 : i32
    %28 = tpu.dynamic_rotate %6 by %c11_i32 dim 1 : vector<32x128xf32>, i32 -> vector<32x128xf32>
    %29 = arith.truncf %28 : vector<32x128xf32> to vector<32x128xbf16>
    %c11_i32_23 = arith.constant 11 : i32
    %30 = tpu.dynamic_rotate %13 by %c11_i32_23 dim 1 : vector<32x128xf32>, i32 -> vector<32x128xf32>
    %31 = arith.truncf %30 : vector<32x128xf32> to vector<32x128xbf16>
    %c10_i32 = arith.constant 10 : i32
    %32 = tpu.dynamic_rotate %6 by %c10_i32 dim 1 : vector<32x128xf32>, i32 -> vector<32x128xf32>
    %33 = arith.truncf %32 : vector<32x128xf32> to vector<32x128xbf16>
    %c11_i32_24 = arith.constant 11 : i32
    %34 = tpu.dynamic_rotate %20 by %c11_i32_24 dim 1 : vector<32x128xf32>, i32 -> vector<32x128xf32>
    %35 = arith.truncf %34 : vector<32x128xf32> to vector<32x128xbf16>
    %c11_i32_25 = arith.constant 11 : i32
    %36 = tpu.dynamic_rotate %27 by %c11_i32_25 dim 1 : vector<32x128xf32>, i32 -> vector<32x128xf32>
    %37 = arith.truncf %36 : vector<32x128xf32> to vector<32x128xbf16>
    %c10_i32_26 = arith.constant 10 : i32
    %38 = tpu.dynamic_rotate %20 by %c10_i32_26 dim 1 : vector<32x128xf32>, i32 -> vector<32x128xf32>
    %39 = arith.truncf %38 : vector<32x128xf32> to vector<32x128xbf16>
    %c1_i32 = arith.constant 1 : i32
    %40 = tpu.dynamic_rotate %6 by %c1_i32 dim 1 : vector<32x128xf32>, i32 -> vector<32x128xf32>
    %41 = arith.truncf %40 : vector<32x128xf32> to vector<32x128xbf16>
    %c1_i32_27 = arith.constant 1 : i32
    %42 = tpu.dynamic_rotate %13 by %c1_i32_27 dim 1 : vector<32x128xf32>, i32 -> vector<32x128xf32>
    %43 = arith.truncf %42 : vector<32x128xf32> to vector<32x128xbf16>
    %44 = arith.truncf %6 : vector<32x128xf32> to vector<32x128xbf16>
    %45 = tpu.concatenate %29, %31, %33, %35, %37, %39, %41, %43, %44 in 0 : vector<32x128xbf16>, vector<32x128xbf16>, vector<32x128xbf16>, vector<32x128xbf16>, vector<32x128xbf16>, vector<32x128xbf16>, vector<32x128xbf16>, vector<32x128xbf16>, vector<32x128xbf16> -> vector<288x128xbf16>
    %c0_28 = arith.constant 0 : index
    %c0_29 = arith.constant 0 : index
    %46 = vector.load %arg10[%c0_28, %c0_29] : memref<32x288xbf16, #tpu.memory_space<vmem>>, vector<32x288xbf16>
    %cst = arith.constant dense<0.000000e+00> : vector<32x128xf32>
    %47 = tpu.matmul %46, %45, %cst {dimension_numbers = #tpu.dot_dimension_numbers<[1], [0], [0], [1], [0, 0, 1, 1], [], []>} : vector<32x288xbf16>, vector<288x128xbf16>, vector<32x128xf32> -> vector<32x128xf32>
    %c0_30 = arith.constant 0 : index
    %c0_31 = arith.constant 0 : index
    %c0_32 = arith.constant 0 : index
    %48 = vector.load %arg9[%c0_30, %c0_31, %c0_32] : memref<1x1x128xf32, #tpu.memory_space<vmem>>, vector<1x1x128xf32>
    %49 = vector.shape_cast %48 : vector<1x1x128xf32> to vector<1x128xf32>
    %50 = vector.broadcast %49 : vector<1x128xf32> to vector<32x128xf32>
    %51 = arith.mulf %47, %50 : vector<32x128xf32>
    %c0_33 = arith.constant 0 : index
    %c0_34 = arith.constant 0 : index
    %52 = vector.load %arg11[%c0_33, %c0_34] : memref<32x1xf32, #tpu.memory_space<vmem>>, vector<32x1xf32>
    %53 = vector.broadcast %52 : vector<32x1xf32> to vector<32x128xf32>
    %54 = arith.addf %51, %53 : vector<32x128xf32>
    %55 = arith.truncf %54 : vector<32x128xf32> to vector<32x128xbf16>
    %c0_35 = arith.constant 0 : index
    %c0_36 = arith.constant 0 : index
    %c0_37 = arith.constant 0 : index
    %56 = vector.load %arg12[%c0_35, %c0_36, %c0_37] : memref<1x32x128xbf16, #tpu.memory_space<vmem>>, vector<1x32x128xbf16>
    %57 = vector.shape_cast %56 : vector<1x32x128xbf16> to vector<32x128xbf16>
    %58 = vector.shape_cast %55 : vector<32x128xbf16> to vector<1x32x128xbf16>
    tpu.vector_store %arg12[%c0_35, %c0_36, %c0_37], %58 {strides = array<i32>} : memref<1x32x128xbf16, #tpu.memory_space<vmem>>, vector<1x32x128xbf16>,
    return
  }
  func.func @transform_0(%arg0: i32) -> (i32, i32, i32) {
    %c0_i32 = arith.constant 0 : i32
    %c0_i32_0 = arith.constant 0 : i32
    %c0_i32_1 = arith.constant 0 : i32
    return %arg0, %c0_i32, %c0_i32_0 : i32, i32, i32
  }
  func.func @transform_1(%arg0: i32) -> (i32, i32, i32) {
    %c0_i32 = arith.constant 0 : i32
    %c0_i32_0 = arith.constant 0 : i32
    %c0_i32_1 = arith.constant 0 : i32
    return %arg0, %c0_i32, %c0_i32_0 : i32, i32, i32
  }
  func.func @transform_2(%arg0: i32) -> (i32, i32, i32) {
    %c0_i32 = arith.constant 0 : i32
    %c0_i32_0 = arith.constant 0 : i32
    %c0_i32_1 = arith.constant 0 : i32
    return %arg0, %c0_i32, %c0_i32_0 : i32, i32, i32
  }
  func.func @transform_3(%arg0: i32) -> (i32, i32, i32) {
    %c0_i32 = arith.constant 0 : i32
    %c0_i32_0 = arith.constant 0 : i32
    %c0_i32_1 = arith.constant 0 : i32
    return %arg0, %c0_i32, %c0_i32_0 : i32, i32, i32
  }
  func.func @transform_4(%arg0: i32) -> (i32, i32, i32) {
    %c0_i32 = arith.constant 0 : i32
    %c0_i32_0 = arith.constant 0 : i32
    %c0_i32_1 = arith.constant 0 : i32
    return %arg0, %c0_i32, %c0_i32_0 : i32, i32, i32
  }
  func.func @transform_5(%arg0: i32) -> (i32, i32, i32) {
    %c0_i32 = arith.constant 0 : i32
    %c0_i32_0 = arith.constant 0 : i32
    %c0_i32_1 = arith.constant 0 : i32
    return %arg0, %c0_i32, %c0_i32_0 : i32, i32, i32
  }
  func.func @transform_6(%arg0: i32) -> (i32, i32, i32) {
    %c0_i32 = arith.constant 0 : i32
    %c0_i32_0 = arith.constant 0 : i32
    %c0_i32_1 = arith.constant 0 : i32
    return %arg0, %c0_i32, %c0_i32_0 : i32, i32, i32
  }
  func.func @transform_7(%arg0: i32) -> (i32, i32, i32) {
    %c0_i32 = arith.constant 0 : i32
    %c0_i32_0 = arith.constant 0 : i32
    %c0_i32_1 = arith.constant 0 : i32
    return %arg0, %c0_i32, %c0_i32_0 : i32, i32, i32
  }
  func.func @transform_8(%arg0: i32) -> (i32, i32, i32) {
    %c0_i32 = arith.constant 0 : i32
    %c0_i32_0 = arith.constant 0 : i32
    %c0_i32_1 = arith.constant 0 : i32
    return %arg0, %c0_i32, %c0_i32_0 : i32, i32, i32
  }
  func.func @transform_9(%arg0: i32) -> (i32, i32) {
    %c0_i32 = arith.constant 0 : i32
    %c0_i32_0 = arith.constant 0 : i32
    %c0_i32_1 = arith.constant 0 : i32
    return %c0_i32, %c0_i32_0 : i32, i32
  }
  func.func @transform_10(%arg0: i32) -> (i32, i32) {
    %c0_i32 = arith.constant 0 : i32
    %c0_i32_0 = arith.constant 0 : i32
    %c0_i32_1 = arith.constant 0 : i32
    return %c0_i32, %c0_i32_0 : i32, i32
  }
  func.func @transform_11(%arg0: i32) -> (i32, i32, i32) {
    %c0_i32 = arith.constant 0 : i32
    %c0_i32_0 = arith.constant 0 : i32
    %c0_i32_1 = arith.constant 0 : i32
    return %arg0, %c0_i32, %c0_i32_0 : i32, i32, i32
  }
}

module attributes {stable_mosaic.version = 11 : i64} {
  func.func @_stack_kernel(%arg0: i32, %arg1: i32, %arg2: memref<1x32x128xbf16, #tpu.memory_space<vmem>>, %arg3: memref<1x1x128xf32, #tpu.memory_space<vmem>>, %arg4: memref<1x1x128xf32, #tpu.memory_space<vmem>>, %arg5: memref<1x16x32xbf16, #tpu.memory_space<vmem>>, %arg6: memref<1x16x1xf32, #tpu.memory_space<vmem>>, %arg7: memref<1x16x144xbf16, #tpu.memory_space<vmem>>, %arg8: memref<1x16x1xf32, #tpu.memory_space<vmem>>, %arg9: memref<1x32x16xbf16, #tpu.memory_space<vmem>>, %arg10: memref<1x32x1xf32, #tpu.memory_space<vmem>>, %arg11: memref<1x32x128xbf16, #tpu.memory_space<vmem>>, %arg12: memref<32x128xf32, #tpu.memory_space<vmem>>) attributes {dimension_semantics = [#tpu.dimension_semantics<parallel>, #tpu.dimension_semantics<arbitrary>], iteration_bounds = array<i64: 2, 5>, scalar_prefetch = 0 : i64, scratch_operands = 1 : i64, tpu.core_type = #tpu.core_type<tc>, window_params = [{transform_indices = @transform_0, window_bounds = array<i64: 1, 32, 128>}, {transform_indices = @transform_1, window_bounds = array<i64: 1, 1, 128>}, {transform_indices = @transform_2, window_bounds = array<i64: 1, 1, 128>}, {transform_indices = @transform_3, window_bounds = array<i64: 1, 16, 32>}, {transform_indices = @transform_4, window_bounds = array<i64: 1, 16, 1>}, {transform_indices = @transform_5, window_bounds = array<i64: 1, 16, 144>}, {transform_indices = @transform_6, window_bounds = array<i64: 1, 16, 1>}, {transform_indices = @transform_7, window_bounds = array<i64: 1, 32, 16>}, {transform_indices = @transform_8, window_bounds = array<i64: 1, 32, 1>}, {transform_indices = @transform_9, window_bounds = array<i64: 1, 32, 128>}]} {
    %c0_i32 = arith.constant 0 : i32
    %0 = arith.cmpi eq, %arg1, %c0_i32 : i32
    %1 = arith.extui %0 : i1 to i32
    %c0_i32_0 = arith.constant 0 : i32
    %2 = arith.cmpi ne, %1, %c0_i32_0 : i32
    scf.if %2 {
      %c0_34 = arith.constant 0 : index
      %c0_35 = arith.constant 0 : index
      %c0_36 = arith.constant 0 : index
      %64 = vector.load %arg2[%c0_34, %c0_35, %c0_36] : memref<1x32x128xbf16, #tpu.memory_space<vmem>>, vector<1x32x128xbf16>
      %65 = vector.shape_cast %64 : vector<1x32x128xbf16> to vector<32x128xbf16>
      %66 = arith.extf %65 : vector<32x128xbf16> to vector<32x128xf32>
      %c0_37 = arith.constant 0 : index
      %c0_38 = arith.constant 0 : index
      %67 = vector.load %arg12[%c0_37, %c0_38] : memref<32x128xf32, #tpu.memory_space<vmem>>, vector<32x128xf32>
      tpu.vector_store %arg12[%c0_37, %c0_38], %66 {strides = array<i32>} : memref<32x128xf32, #tpu.memory_space<vmem>>, vector<32x128xf32>,
    } else {
    }
    %c0 = arith.constant 0 : index
    %c0_1 = arith.constant 0 : index
    %3 = vector.load %arg12[%c0, %c0_1] : memref<32x128xf32, #tpu.memory_space<vmem>>, vector<32x128xf32>
    %4 = arith.truncf %3 : vector<32x128xf32> to vector<32x128xbf16>
    %c0_2 = arith.constant 0 : index
    %c0_3 = arith.constant 0 : index
    %c0_4 = arith.constant 0 : index
    %5 = vector.load %arg3[%c0_2, %c0_3, %c0_4] : memref<1x1x128xf32, #tpu.memory_space<vmem>>, vector<1x1x128xf32>
    %6 = vector.shape_cast %5 : vector<1x1x128xf32> to vector<1x128xf32>
    %c0_5 = arith.constant 0 : index
    %c0_6 = arith.constant 0 : index
    %c0_7 = arith.constant 0 : index
    %7 = vector.load %arg4[%c0_5, %c0_6, %c0_7] : memref<1x1x128xf32, #tpu.memory_space<vmem>>, vector<1x1x128xf32>
    %8 = vector.shape_cast %7 : vector<1x1x128xf32> to vector<1x128xf32>
    %c0_8 = arith.constant 0 : index
    %c0_9 = arith.constant 0 : index
    %c0_10 = arith.constant 0 : index
    %9 = vector.load %arg5[%c0_8, %c0_9, %c0_10] : memref<1x16x32xbf16, #tpu.memory_space<vmem>>, vector<1x16x32xbf16>
    %10 = vector.shape_cast %9 : vector<1x16x32xbf16> to vector<16x32xbf16>
    %c0_11 = arith.constant 0 : index
    %c0_12 = arith.constant 0 : index
    %c0_13 = arith.constant 0 : index
    %11 = vector.load %arg6[%c0_11, %c0_12, %c0_13] : memref<1x16x1xf32, #tpu.memory_space<vmem>>, vector<1x16x1xf32>
    %12 = vector.shape_cast %11 : vector<1x16x1xf32> to vector<16x1xf32>
    %c0_14 = arith.constant 0 : index
    %c0_15 = arith.constant 0 : index
    %c0_16 = arith.constant 0 : index
    %13 = vector.load %arg7[%c0_14, %c0_15, %c0_16] : memref<1x16x144xbf16, #tpu.memory_space<vmem>>, vector<1x16x144xbf16>
    %14 = vector.shape_cast %13 : vector<1x16x144xbf16> to vector<16x144xbf16>
    %c0_17 = arith.constant 0 : index
    %c0_18 = arith.constant 0 : index
    %c0_19 = arith.constant 0 : index
    %15 = vector.load %arg8[%c0_17, %c0_18, %c0_19] : memref<1x16x1xf32, #tpu.memory_space<vmem>>, vector<1x16x1xf32>
    %16 = vector.shape_cast %15 : vector<1x16x1xf32> to vector<16x1xf32>
    %c0_20 = arith.constant 0 : index
    %c0_21 = arith.constant 0 : index
    %c0_22 = arith.constant 0 : index
    %17 = vector.load %arg9[%c0_20, %c0_21, %c0_22] : memref<1x32x16xbf16, #tpu.memory_space<vmem>>, vector<1x32x16xbf16>
    %18 = vector.shape_cast %17 : vector<1x32x16xbf16> to vector<32x16xbf16>
    %c0_23 = arith.constant 0 : index
    %c0_24 = arith.constant 0 : index
    %c0_25 = arith.constant 0 : index
    %19 = vector.load %arg10[%c0_23, %c0_24, %c0_25] : memref<1x32x1xf32, #tpu.memory_space<vmem>>, vector<1x32x1xf32>
    %20 = vector.shape_cast %19 : vector<1x32x1xf32> to vector<32x1xf32>
    %cst = arith.constant dense<0.000000e+00> : vector<16x128xf32>
    %21 = tpu.matmul %10, %4, %cst {dimension_numbers = #tpu.dot_dimension_numbers<[1], [0], [0], [1], [0, 0, 1, 1], [], []>} : vector<16x32xbf16>, vector<32x128xbf16>, vector<16x128xf32> -> vector<16x128xf32>
    %22 = vector.broadcast %12 : vector<16x1xf32> to vector<16x128xf32>
    %23 = arith.addf %21, %22 : vector<16x128xf32>
    %cst_26 = arith.constant 0.000000e+00 : f32
    %24 = vector.broadcast %cst_26 : f32 to vector<16x128xf32>
    %25 = arith.maximumf %23, %24 : vector<16x128xf32>
    %26 = vector.broadcast %6 : vector<1x128xf32> to vector<16x128xf32>
    %27 = arith.mulf %25, %26 : vector<16x128xf32>
    %c11_i32 = arith.constant 11 : i32
    %28 = tpu.dynamic_rotate %27 by %c11_i32 dim 1 : vector<16x128xf32>, i32 -> vector<16x128xf32>
    %29 = arith.truncf %28 : vector<16x128xf32> to vector<16x128xbf16>
    %c10_i32 = arith.constant 10 : i32
    %30 = tpu.dynamic_rotate %27 by %c10_i32 dim 1 : vector<16x128xf32>, i32 -> vector<16x128xf32>
    %31 = arith.truncf %30 : vector<16x128xf32> to vector<16x128xbf16>
    %c9_i32 = arith.constant 9 : i32
    %32 = tpu.dynamic_rotate %27 by %c9_i32 dim 1 : vector<16x128xf32>, i32 -> vector<16x128xf32>
    %33 = arith.truncf %32 : vector<16x128xf32> to vector<16x128xbf16>
    %c1_i32 = arith.constant 1 : i32
    %34 = tpu.dynamic_rotate %27 by %c1_i32 dim 1 : vector<16x128xf32>, i32 -> vector<16x128xf32>
    %35 = arith.truncf %34 : vector<16x128xf32> to vector<16x128xbf16>
    %36 = arith.truncf %27 : vector<16x128xf32> to vector<16x128xbf16>
    %c127_i32 = arith.constant 127 : i32
    %37 = tpu.dynamic_rotate %27 by %c127_i32 dim 1 : vector<16x128xf32>, i32 -> vector<16x128xf32>
    %38 = arith.truncf %37 : vector<16x128xf32> to vector<16x128xbf16>
    %c119_i32 = arith.constant 119 : i32
    %39 = tpu.dynamic_rotate %27 by %c119_i32 dim 1 : vector<16x128xf32>, i32 -> vector<16x128xf32>
    %40 = arith.truncf %39 : vector<16x128xf32> to vector<16x128xbf16>
    %c118_i32 = arith.constant 118 : i32
    %41 = tpu.dynamic_rotate %27 by %c118_i32 dim 1 : vector<16x128xf32>, i32 -> vector<16x128xf32>
    %42 = arith.truncf %41 : vector<16x128xf32> to vector<16x128xbf16>
    %c117_i32 = arith.constant 117 : i32
    %43 = tpu.dynamic_rotate %27 by %c117_i32 dim 1 : vector<16x128xf32>, i32 -> vector<16x128xf32>
    %44 = arith.truncf %43 : vector<16x128xf32> to vector<16x128xbf16>
    %45 = tpu.concatenate %29, %31, %33, %35, %36, %38, %40, %42, %44 in 0 : vector<16x128xbf16>, vector<16x128xbf16>, vector<16x128xbf16>, vector<16x128xbf16>, vector<16x128xbf16>, vector<16x128xbf16>, vector<16x128xbf16>, vector<16x128xbf16>, vector<16x128xbf16> -> vector<144x128xbf16>
    %cst_27 = arith.constant dense<0.000000e+00> : vector<16x128xf32>
    %46 = tpu.matmul %14, %45, %cst_27 {dimension_numbers = #tpu.dot_dimension_numbers<[1], [0], [0], [1], [0, 0, 1, 1], [], []>} : vector<16x144xbf16>, vector<144x128xbf16>, vector<16x128xf32> -> vector<16x128xf32>
    %47 = vector.broadcast %8 : vector<1x128xf32> to vector<16x128xf32>
    %48 = arith.mulf %46, %47 : vector<16x128xf32>
    %49 = vector.broadcast %16 : vector<16x1xf32> to vector<16x128xf32>
    %50 = arith.addf %48, %49 : vector<16x128xf32>
    %cst_28 = arith.constant 0.000000e+00 : f32
    %51 = vector.broadcast %cst_28 : f32 to vector<16x128xf32>
    %52 = arith.maximumf %50, %51 : vector<16x128xf32>
    %53 = arith.truncf %52 : vector<16x128xf32> to vector<16x128xbf16>
    %cst_29 = arith.constant dense<0.000000e+00> : vector<32x128xf32>
    %54 = tpu.matmul %18, %53, %cst_29 {dimension_numbers = #tpu.dot_dimension_numbers<[1], [0], [0], [1], [0, 0, 1, 1], [], []>} : vector<32x16xbf16>, vector<16x128xbf16>, vector<32x128xf32> -> vector<32x128xf32>
    %55 = vector.broadcast %20 : vector<32x1xf32> to vector<32x128xf32>
    %56 = arith.addf %54, %55 : vector<32x128xf32>
    %57 = arith.addf %56, %3 : vector<32x128xf32>
    %cst_30 = arith.constant 0.000000e+00 : f32
    %58 = vector.broadcast %cst_30 : f32 to vector<32x128xf32>
    %59 = arith.maximumf %57, %58 : vector<32x128xf32>
    %c0_31 = arith.constant 0 : index
    %c0_32 = arith.constant 0 : index
    %60 = vector.load %arg12[%c0_31, %c0_32] : memref<32x128xf32, #tpu.memory_space<vmem>>, vector<32x128xf32>
    tpu.vector_store %arg12[%c0_31, %c0_32], %59 {strides = array<i32>} : memref<32x128xf32, #tpu.memory_space<vmem>>, vector<32x128xf32>,
    %c4_i32 = arith.constant 4 : i32
    %61 = arith.cmpi eq, %arg1, %c4_i32 : i32
    %62 = arith.extui %61 : i1 to i32
    %c0_i32_33 = arith.constant 0 : i32
    %63 = arith.cmpi ne, %62, %c0_i32_33 : i32
    scf.if %63 {
      %64 = arith.truncf %59 : vector<32x128xf32> to vector<32x128xbf16>
      %c0_34 = arith.constant 0 : index
      %c0_35 = arith.constant 0 : index
      %c0_36 = arith.constant 0 : index
      %65 = vector.load %arg11[%c0_34, %c0_35, %c0_36] : memref<1x32x128xbf16, #tpu.memory_space<vmem>>, vector<1x32x128xbf16>
      %66 = vector.shape_cast %65 : vector<1x32x128xbf16> to vector<32x128xbf16>
      %67 = vector.shape_cast %64 : vector<32x128xbf16> to vector<1x32x128xbf16>
      tpu.vector_store %arg11[%c0_34, %c0_35, %c0_36], %67 {strides = array<i32>} : memref<1x32x128xbf16, #tpu.memory_space<vmem>>, vector<1x32x128xbf16>,
    } else {
    }
    return
  }
  func.func @transform_0(%arg0: i32, %arg1: i32) -> (i32, i32, i32) {
    %c0_i32 = arith.constant 0 : i32
    %c0_i32_0 = arith.constant 0 : i32
    %c0_i32_1 = arith.constant 0 : i32
    return %arg0, %c0_i32, %c0_i32_0 : i32, i32, i32
  }
  func.func @transform_1(%arg0: i32, %arg1: i32) -> (i32, i32, i32) {
    %c0_i32 = arith.constant 0 : i32
    %c0_i32_0 = arith.constant 0 : i32
    %c0_i32_1 = arith.constant 0 : i32
    return %arg0, %c0_i32, %c0_i32_0 : i32, i32, i32
  }
  func.func @transform_2(%arg0: i32, %arg1: i32) -> (i32, i32, i32) {
    %c0_i32 = arith.constant 0 : i32
    %c0_i32_0 = arith.constant 0 : i32
    %c0_i32_1 = arith.constant 0 : i32
    return %arg0, %c0_i32, %c0_i32_0 : i32, i32, i32
  }
  func.func @transform_3(%arg0: i32, %arg1: i32) -> (i32, i32, i32) {
    %c0_i32 = arith.constant 0 : i32
    %c0_i32_0 = arith.constant 0 : i32
    %c0_i32_1 = arith.constant 0 : i32
    return %arg1, %c0_i32, %c0_i32_0 : i32, i32, i32
  }
  func.func @transform_4(%arg0: i32, %arg1: i32) -> (i32, i32, i32) {
    %c0_i32 = arith.constant 0 : i32
    %c0_i32_0 = arith.constant 0 : i32
    %c0_i32_1 = arith.constant 0 : i32
    return %arg1, %c0_i32, %c0_i32_0 : i32, i32, i32
  }
  func.func @transform_5(%arg0: i32, %arg1: i32) -> (i32, i32, i32) {
    %c0_i32 = arith.constant 0 : i32
    %c0_i32_0 = arith.constant 0 : i32
    %c0_i32_1 = arith.constant 0 : i32
    return %arg1, %c0_i32, %c0_i32_0 : i32, i32, i32
  }
  func.func @transform_6(%arg0: i32, %arg1: i32) -> (i32, i32, i32) {
    %c0_i32 = arith.constant 0 : i32
    %c0_i32_0 = arith.constant 0 : i32
    %c0_i32_1 = arith.constant 0 : i32
    return %arg1, %c0_i32, %c0_i32_0 : i32, i32, i32
  }
  func.func @transform_7(%arg0: i32, %arg1: i32) -> (i32, i32, i32) {
    %c0_i32 = arith.constant 0 : i32
    %c0_i32_0 = arith.constant 0 : i32
    %c0_i32_1 = arith.constant 0 : i32
    return %arg1, %c0_i32, %c0_i32_0 : i32, i32, i32
  }
  func.func @transform_8(%arg0: i32, %arg1: i32) -> (i32, i32, i32) {
    %c0_i32 = arith.constant 0 : i32
    %c0_i32_0 = arith.constant 0 : i32
    %c0_i32_1 = arith.constant 0 : i32
    return %arg1, %c0_i32, %c0_i32_0 : i32, i32, i32
  }
  func.func @transform_9(%arg0: i32, %arg1: i32) -> (i32, i32, i32) {
    %c0_i32 = arith.constant 0 : i32
    %c0_i32_0 = arith.constant 0 : i32
    %c0_i32_1 = arith.constant 0 : i32
    return %arg0, %c0_i32, %c0_i32_0 : i32, i32, i32
  }
}

module attributes {stable_mosaic.version = 11 : i64} {
  func.func @_expand_kernel(%arg0: i32, %arg1: memref<1x32x128xbf16, #tpu.memory_space<vmem>>, %arg2: memref<1x1x128xf32, #tpu.memory_space<vmem>>, %arg3: memref<1x1x128xf32, #tpu.memory_space<vmem>>, %arg4: memref<32x32xbf16, #tpu.memory_space<vmem>>, %arg5: memref<32x1xf32, #tpu.memory_space<vmem>>, %arg6: memref<32x288xbf16, #tpu.memory_space<vmem>>, %arg7: memref<32x1xf32, #tpu.memory_space<vmem>>, %arg8: memref<64x32xbf16, #tpu.memory_space<vmem>>, %arg9: memref<64x1xf32, #tpu.memory_space<vmem>>, %arg10: memref<64x32xbf16, #tpu.memory_space<vmem>>, %arg11: memref<64x1xf32, #tpu.memory_space<vmem>>, %arg12: memref<1x64x128xbf16, #tpu.memory_space<vmem>>) attributes {dimension_semantics = [#tpu.dimension_semantics<parallel>], iteration_bounds = array<i64: 2>, scalar_prefetch = 0 : i64, scratch_operands = 0 : i64, tpu.core_type = #tpu.core_type<tc>, window_params = [{transform_indices = @transform_0, window_bounds = array<i64: 1, 32, 128>}, {transform_indices = @transform_1, window_bounds = array<i64: 1, 1, 128>}, {transform_indices = @transform_2, window_bounds = array<i64: 1, 1, 128>}, {pipeline_mode = #tpu.pipeline_mode<synchronous>, transform_indices = @transform_3, window_bounds = array<i64: 32, 32>}, {pipeline_mode = #tpu.pipeline_mode<synchronous>, transform_indices = @transform_4, window_bounds = array<i64: 32, 1>}, {pipeline_mode = #tpu.pipeline_mode<synchronous>, transform_indices = @transform_5, window_bounds = array<i64: 32, 288>}, {pipeline_mode = #tpu.pipeline_mode<synchronous>, transform_indices = @transform_6, window_bounds = array<i64: 32, 1>}, {pipeline_mode = #tpu.pipeline_mode<synchronous>, transform_indices = @transform_7, window_bounds = array<i64: 64, 32>}, {pipeline_mode = #tpu.pipeline_mode<synchronous>, transform_indices = @transform_8, window_bounds = array<i64: 64, 1>}, {pipeline_mode = #tpu.pipeline_mode<synchronous>, transform_indices = @transform_9, window_bounds = array<i64: 64, 32>}, {pipeline_mode = #tpu.pipeline_mode<synchronous>, transform_indices = @transform_10, window_bounds = array<i64: 64, 1>}, {transform_indices = @transform_11, window_bounds = array<i64: 1, 64, 128>}]} {
    %c0 = arith.constant 0 : index
    %c0_0 = arith.constant 0 : index
    %c0_1 = arith.constant 0 : index
    %0 = vector.load %arg1[%c0, %c0_0, %c0_1] : memref<1x32x128xbf16, #tpu.memory_space<vmem>>, vector<1x32x128xbf16>
    %1 = vector.shape_cast %0 : vector<1x32x128xbf16> to vector<32x128xbf16>
    %c0_2 = arith.constant 0 : index
    %c0_3 = arith.constant 0 : index
    %c0_4 = arith.constant 0 : index
    %2 = vector.load %arg2[%c0_2, %c0_3, %c0_4] : memref<1x1x128xf32, #tpu.memory_space<vmem>>, vector<1x1x128xf32>
    %3 = vector.shape_cast %2 : vector<1x1x128xf32> to vector<1x128xf32>
    %c0_5 = arith.constant 0 : index
    %c0_6 = arith.constant 0 : index
    %c0_7 = arith.constant 0 : index
    %4 = vector.load %arg3[%c0_5, %c0_6, %c0_7] : memref<1x1x128xf32, #tpu.memory_space<vmem>>, vector<1x1x128xf32>
    %5 = vector.shape_cast %4 : vector<1x1x128xf32> to vector<1x128xf32>
    %c0_8 = arith.constant 0 : index
    %c0_9 = arith.constant 0 : index
    %6 = vector.load %arg4[%c0_8, %c0_9] : memref<32x32xbf16, #tpu.memory_space<vmem>>, vector<32x32xbf16>
    %c0_10 = arith.constant 0 : index
    %c0_11 = arith.constant 0 : index
    %7 = vector.load %arg5[%c0_10, %c0_11] : memref<32x1xf32, #tpu.memory_space<vmem>>, vector<32x1xf32>
    %c0_12 = arith.constant 0 : index
    %c0_13 = arith.constant 0 : index
    %8 = vector.load %arg6[%c0_12, %c0_13] : memref<32x288xbf16, #tpu.memory_space<vmem>>, vector<32x288xbf16>
    %c0_14 = arith.constant 0 : index
    %c0_15 = arith.constant 0 : index
    %9 = vector.load %arg7[%c0_14, %c0_15] : memref<32x1xf32, #tpu.memory_space<vmem>>, vector<32x1xf32>
    %c0_16 = arith.constant 0 : index
    %c0_17 = arith.constant 0 : index
    %10 = vector.load %arg8[%c0_16, %c0_17] : memref<64x32xbf16, #tpu.memory_space<vmem>>, vector<64x32xbf16>
    %c0_18 = arith.constant 0 : index
    %c0_19 = arith.constant 0 : index
    %11 = vector.load %arg9[%c0_18, %c0_19] : memref<64x1xf32, #tpu.memory_space<vmem>>, vector<64x1xf32>
    %cst = arith.constant dense<0.000000e+00> : vector<32x128xf32>
    %12 = tpu.matmul %6, %1, %cst {dimension_numbers = #tpu.dot_dimension_numbers<[1], [0], [0], [1], [0, 0, 1, 1], [], []>} : vector<32x32xbf16>, vector<32x128xbf16>, vector<32x128xf32> -> vector<32x128xf32>
    %13 = vector.broadcast %7 : vector<32x1xf32> to vector<32x128xf32>
    %14 = arith.addf %12, %13 : vector<32x128xf32>
    %cst_20 = arith.constant 0.000000e+00 : f32
    %15 = vector.broadcast %cst_20 : f32 to vector<32x128xf32>
    %16 = arith.maximumf %14, %15 : vector<32x128xf32>
    %17 = vector.broadcast %3 : vector<1x128xf32> to vector<32x128xf32>
    %18 = arith.mulf %16, %17 : vector<32x128xf32>
    %c11_i32 = arith.constant 11 : i32
    %19 = tpu.dynamic_rotate %18 by %c11_i32 dim 1 : vector<32x128xf32>, i32 -> vector<32x128xf32>
    %20 = arith.truncf %19 : vector<32x128xf32> to vector<32x128xbf16>
    %c10_i32 = arith.constant 10 : i32
    %21 = tpu.dynamic_rotate %18 by %c10_i32 dim 1 : vector<32x128xf32>, i32 -> vector<32x128xf32>
    %22 = arith.truncf %21 : vector<32x128xf32> to vector<32x128xbf16>
    %c9_i32 = arith.constant 9 : i32
    %23 = tpu.dynamic_rotate %18 by %c9_i32 dim 1 : vector<32x128xf32>, i32 -> vector<32x128xf32>
    %24 = arith.truncf %23 : vector<32x128xf32> to vector<32x128xbf16>
    %c1_i32 = arith.constant 1 : i32
    %25 = tpu.dynamic_rotate %18 by %c1_i32 dim 1 : vector<32x128xf32>, i32 -> vector<32x128xf32>
    %26 = arith.truncf %25 : vector<32x128xf32> to vector<32x128xbf16>
    %27 = arith.truncf %18 : vector<32x128xf32> to vector<32x128xbf16>
    %c127_i32 = arith.constant 127 : i32
    %28 = tpu.dynamic_rotate %18 by %c127_i32 dim 1 : vector<32x128xf32>, i32 -> vector<32x128xf32>
    %29 = arith.truncf %28 : vector<32x128xf32> to vector<32x128xbf16>
    %c119_i32 = arith.constant 119 : i32
    %30 = tpu.dynamic_rotate %18 by %c119_i32 dim 1 : vector<32x128xf32>, i32 -> vector<32x128xf32>
    %31 = arith.truncf %30 : vector<32x128xf32> to vector<32x128xbf16>
    %c118_i32 = arith.constant 118 : i32
    %32 = tpu.dynamic_rotate %18 by %c118_i32 dim 1 : vector<32x128xf32>, i32 -> vector<32x128xf32>
    %33 = arith.truncf %32 : vector<32x128xf32> to vector<32x128xbf16>
    %c117_i32 = arith.constant 117 : i32
    %34 = tpu.dynamic_rotate %18 by %c117_i32 dim 1 : vector<32x128xf32>, i32 -> vector<32x128xf32>
    %35 = arith.truncf %34 : vector<32x128xf32> to vector<32x128xbf16>
    %36 = tpu.concatenate %20, %22, %24, %26, %27, %29, %31, %33, %35 in 0 : vector<32x128xbf16>, vector<32x128xbf16>, vector<32x128xbf16>, vector<32x128xbf16>, vector<32x128xbf16>, vector<32x128xbf16>, vector<32x128xbf16>, vector<32x128xbf16>, vector<32x128xbf16> -> vector<288x128xbf16>
    %cst_21 = arith.constant dense<0.000000e+00> : vector<32x128xf32>
    %37 = tpu.matmul %8, %36, %cst_21 {dimension_numbers = #tpu.dot_dimension_numbers<[1], [0], [0], [1], [0, 0, 1, 1], [], []>} : vector<32x288xbf16>, vector<288x128xbf16>, vector<32x128xf32> -> vector<32x128xf32>
    %38 = vector.broadcast %5 : vector<1x128xf32> to vector<32x128xf32>
    %39 = arith.mulf %37, %38 : vector<32x128xf32>
    %40 = vector.broadcast %9 : vector<32x1xf32> to vector<32x128xf32>
    %41 = arith.addf %39, %40 : vector<32x128xf32>
    %cst_22 = arith.constant 0.000000e+00 : f32
    %42 = vector.broadcast %cst_22 : f32 to vector<32x128xf32>
    %43 = arith.maximumf %41, %42 : vector<32x128xf32>
    %44 = arith.truncf %43 : vector<32x128xf32> to vector<32x128xbf16>
    %cst_23 = arith.constant dense<0.000000e+00> : vector<64x128xf32>
    %45 = tpu.matmul %10, %44, %cst_23 {dimension_numbers = #tpu.dot_dimension_numbers<[1], [0], [0], [1], [0, 0, 1, 1], [], []>} : vector<64x32xbf16>, vector<32x128xbf16>, vector<64x128xf32> -> vector<64x128xf32>
    %46 = vector.broadcast %11 : vector<64x1xf32> to vector<64x128xf32>
    %47 = arith.addf %45, %46 : vector<64x128xf32>
    %c0_24 = arith.constant 0 : index
    %c0_25 = arith.constant 0 : index
    %48 = vector.load %arg10[%c0_24, %c0_25] : memref<64x32xbf16, #tpu.memory_space<vmem>>, vector<64x32xbf16>
    %cst_26 = arith.constant dense<0.000000e+00> : vector<64x128xf32>
    %49 = tpu.matmul %48, %1, %cst_26 {dimension_numbers = #tpu.dot_dimension_numbers<[1], [0], [0], [1], [0, 0, 1, 1], [], []>} : vector<64x32xbf16>, vector<32x128xbf16>, vector<64x128xf32> -> vector<64x128xf32>
    %c0_27 = arith.constant 0 : index
    %c0_28 = arith.constant 0 : index
    %50 = vector.load %arg11[%c0_27, %c0_28] : memref<64x1xf32, #tpu.memory_space<vmem>>, vector<64x1xf32>
    %51 = vector.broadcast %50 : vector<64x1xf32> to vector<64x128xf32>
    %52 = arith.addf %49, %51 : vector<64x128xf32>
    %53 = arith.addf %47, %52 : vector<64x128xf32>
    %cst_29 = arith.constant 0.000000e+00 : f32
    %54 = vector.broadcast %cst_29 : f32 to vector<64x128xf32>
    %55 = arith.maximumf %53, %54 : vector<64x128xf32>
    %56 = arith.truncf %55 : vector<64x128xf32> to vector<64x128xbf16>
    %c0_30 = arith.constant 0 : index
    %c0_31 = arith.constant 0 : index
    %c0_32 = arith.constant 0 : index
    %57 = vector.load %arg12[%c0_30, %c0_31, %c0_32] : memref<1x64x128xbf16, #tpu.memory_space<vmem>>, vector<1x64x128xbf16>
    %58 = vector.shape_cast %57 : vector<1x64x128xbf16> to vector<64x128xbf16>
    %59 = vector.shape_cast %56 : vector<64x128xbf16> to vector<1x64x128xbf16>
    tpu.vector_store %arg12[%c0_30, %c0_31, %c0_32], %59 {strides = array<i32>} : memref<1x64x128xbf16, #tpu.memory_space<vmem>>, vector<1x64x128xbf16>,
    return
  }
  func.func @transform_0(%arg0: i32) -> (i32, i32, i32) {
    %c0_i32 = arith.constant 0 : i32
    %c0_i32_0 = arith.constant 0 : i32
    %c0_i32_1 = arith.constant 0 : i32
    return %arg0, %c0_i32, %c0_i32_0 : i32, i32, i32
  }
  func.func @transform_1(%arg0: i32) -> (i32, i32, i32) {
    %c0_i32 = arith.constant 0 : i32
    %c0_i32_0 = arith.constant 0 : i32
    %c0_i32_1 = arith.constant 0 : i32
    return %arg0, %c0_i32, %c0_i32_0 : i32, i32, i32
  }
  func.func @transform_2(%arg0: i32) -> (i32, i32, i32) {
    %c0_i32 = arith.constant 0 : i32
    %c0_i32_0 = arith.constant 0 : i32
    %c0_i32_1 = arith.constant 0 : i32
    return %arg0, %c0_i32, %c0_i32_0 : i32, i32, i32
  }
  func.func @transform_3(%arg0: i32) -> (i32, i32) {
    %c0_i32 = arith.constant 0 : i32
    %c0_i32_0 = arith.constant 0 : i32
    %c0_i32_1 = arith.constant 0 : i32
    return %c0_i32, %c0_i32_0 : i32, i32
  }
  func.func @transform_4(%arg0: i32) -> (i32, i32) {
    %c0_i32 = arith.constant 0 : i32
    %c0_i32_0 = arith.constant 0 : i32
    %c0_i32_1 = arith.constant 0 : i32
    return %c0_i32, %c0_i32_0 : i32, i32
  }
  func.func @transform_5(%arg0: i32) -> (i32, i32) {
    %c0_i32 = arith.constant 0 : i32
    %c0_i32_0 = arith.constant 0 : i32
    %c0_i32_1 = arith.constant 0 : i32
    return %c0_i32, %c0_i32_0 : i32, i32
  }
  func.func @transform_6(%arg0: i32) -> (i32, i32) {
    %c0_i32 = arith.constant 0 : i32
    %c0_i32_0 = arith.constant 0 : i32
    %c0_i32_1 = arith.constant 0 : i32
    return %c0_i32, %c0_i32_0 : i32, i32
  }
  func.func @transform_7(%arg0: i32) -> (i32, i32) {
    %c0_i32 = arith.constant 0 : i32
    %c0_i32_0 = arith.constant 0 : i32
    %c0_i32_1 = arith.constant 0 : i32
    return %c0_i32, %c0_i32_0 : i32, i32
  }
  func.func @transform_8(%arg0: i32) -> (i32, i32) {
    %c0_i32 = arith.constant 0 : i32
    %c0_i32_0 = arith.constant 0 : i32
    %c0_i32_1 = arith.constant 0 : i32
    return %c0_i32, %c0_i32_0 : i32, i32
  }
  func.func @transform_9(%arg0: i32) -> (i32, i32) {
    %c0_i32 = arith.constant 0 : i32
    %c0_i32_0 = arith.constant 0 : i32
    %c0_i32_1 = arith.constant 0 : i32
    return %c0_i32, %c0_i32_0 : i32, i32
  }
  func.func @transform_10(%arg0: i32) -> (i32, i32) {
    %c0_i32 = arith.constant 0 : i32
    %c0_i32_0 = arith.constant 0 : i32
    %c0_i32_1 = arith.constant 0 : i32
    return %c0_i32, %c0_i32_0 : i32, i32
  }
  func.func @transform_11(%arg0: i32) -> (i32, i32, i32) {
    %c0_i32 = arith.constant 0 : i32
    %c0_i32_0 = arith.constant 0 : i32
    %c0_i32_1 = arith.constant 0 : i32
    return %arg0, %c0_i32, %c0_i32_0 : i32, i32, i32
  }
}

module attributes {stable_mosaic.version = 11 : i64} {
  func.func @_pool_kernel(%arg0: i32, %arg1: memref<1x64x128xbf16, #tpu.memory_space<vmem>>, %arg2: memref<1x64x128xbf16, #tpu.memory_space<vmem>>, %arg3: memref<1x64x128xbf16, #tpu.memory_space<vmem>>, %arg4: memref<1x64x128xbf16, #tpu.memory_space<vmem>>, %arg5: memref<1x1x128xf32, #tpu.memory_space<vmem>>, %arg6: memref<1x1x128xf32, #tpu.memory_space<vmem>>, %arg7: memref<1x1x128xf32, #tpu.memory_space<vmem>>, %arg8: memref<1x1x128xf32, #tpu.memory_space<vmem>>, %arg9: memref<1x1x128xf32, #tpu.memory_space<vmem>>, %arg10: memref<64x576xbf16, #tpu.memory_space<vmem>>, %arg11: memref<64x1xf32, #tpu.memory_space<vmem>>, %arg12: memref<1x64x128xbf16, #tpu.memory_space<vmem>>) attributes {dimension_semantics = [#tpu.dimension_semantics<parallel>], iteration_bounds = array<i64: 2>, scalar_prefetch = 0 : i64, scratch_operands = 0 : i64, tpu.core_type = #tpu.core_type<tc>, window_params = [{transform_indices = @transform_0, window_bounds = array<i64: 1, 64, 128>}, {transform_indices = @transform_1, window_bounds = array<i64: 1, 64, 128>}, {transform_indices = @transform_2, window_bounds = array<i64: 1, 64, 128>}, {transform_indices = @transform_3, window_bounds = array<i64: 1, 64, 128>}, {transform_indices = @transform_4, window_bounds = array<i64: 1, 1, 128>}, {transform_indices = @transform_5, window_bounds = array<i64: 1, 1, 128>}, {transform_indices = @transform_6, window_bounds = array<i64: 1, 1, 128>}, {transform_indices = @transform_7, window_bounds = array<i64: 1, 1, 128>}, {transform_indices = @transform_8, window_bounds = array<i64: 1, 1, 128>}, {pipeline_mode = #tpu.pipeline_mode<synchronous>, transform_indices = @transform_9, window_bounds = array<i64: 64, 576>}, {pipeline_mode = #tpu.pipeline_mode<synchronous>, transform_indices = @transform_10, window_bounds = array<i64: 64, 1>}, {transform_indices = @transform_11, window_bounds = array<i64: 1, 64, 128>}]} {
    %c0 = arith.constant 0 : index
    %c0_0 = arith.constant 0 : index
    %c0_1 = arith.constant 0 : index
    %0 = vector.load %arg1[%c0, %c0_0, %c0_1] : memref<1x64x128xbf16, #tpu.memory_space<vmem>>, vector<1x64x128xbf16>
    %1 = vector.shape_cast %0 : vector<1x64x128xbf16> to vector<64x128xbf16>
    %2 = arith.extf %1 : vector<64x128xbf16> to vector<64x128xf32>
    %c0_2 = arith.constant 0 : index
    %c0_3 = arith.constant 0 : index
    %c0_4 = arith.constant 0 : index
    %3 = vector.load %arg5[%c0_2, %c0_3, %c0_4] : memref<1x1x128xf32, #tpu.memory_space<vmem>>, vector<1x1x128xf32>
    %4 = vector.shape_cast %3 : vector<1x1x128xf32> to vector<1x128xf32>
    %5 = vector.broadcast %4 : vector<1x128xf32> to vector<64x128xf32>
    %6 = arith.mulf %2, %5 : vector<64x128xf32>
    %c0_5 = arith.constant 0 : index
    %c0_6 = arith.constant 0 : index
    %c0_7 = arith.constant 0 : index
    %7 = vector.load %arg2[%c0_5, %c0_6, %c0_7] : memref<1x64x128xbf16, #tpu.memory_space<vmem>>, vector<1x64x128xbf16>
    %8 = vector.shape_cast %7 : vector<1x64x128xbf16> to vector<64x128xbf16>
    %9 = arith.extf %8 : vector<64x128xbf16> to vector<64x128xf32>
    %c0_8 = arith.constant 0 : index
    %c0_9 = arith.constant 0 : index
    %c0_10 = arith.constant 0 : index
    %10 = vector.load %arg6[%c0_8, %c0_9, %c0_10] : memref<1x1x128xf32, #tpu.memory_space<vmem>>, vector<1x1x128xf32>
    %11 = vector.shape_cast %10 : vector<1x1x128xf32> to vector<1x128xf32>
    %12 = vector.broadcast %11 : vector<1x128xf32> to vector<64x128xf32>
    %13 = arith.mulf %9, %12 : vector<64x128xf32>
    %c0_11 = arith.constant 0 : index
    %c0_12 = arith.constant 0 : index
    %c0_13 = arith.constant 0 : index
    %14 = vector.load %arg3[%c0_11, %c0_12, %c0_13] : memref<1x64x128xbf16, #tpu.memory_space<vmem>>, vector<1x64x128xbf16>
    %15 = vector.shape_cast %14 : vector<1x64x128xbf16> to vector<64x128xbf16>
    %16 = arith.extf %15 : vector<64x128xbf16> to vector<64x128xf32>
    %c0_14 = arith.constant 0 : index
    %c0_15 = arith.constant 0 : index
    %c0_16 = arith.constant 0 : index
    %17 = vector.load %arg7[%c0_14, %c0_15, %c0_16] : memref<1x1x128xf32, #tpu.memory_space<vmem>>, vector<1x1x128xf32>
    %18 = vector.shape_cast %17 : vector<1x1x128xf32> to vector<1x128xf32>
    %19 = vector.broadcast %18 : vector<1x128xf32> to vector<64x128xf32>
    %20 = arith.mulf %16, %19 : vector<64x128xf32>
    %c0_17 = arith.constant 0 : index
    %c0_18 = arith.constant 0 : index
    %c0_19 = arith.constant 0 : index
    %21 = vector.load %arg4[%c0_17, %c0_18, %c0_19] : memref<1x64x128xbf16, #tpu.memory_space<vmem>>, vector<1x64x128xbf16>
    %22 = vector.shape_cast %21 : vector<1x64x128xbf16> to vector<64x128xbf16>
    %23 = arith.extf %22 : vector<64x128xbf16> to vector<64x128xf32>
    %c0_20 = arith.constant 0 : index
    %c0_21 = arith.constant 0 : index
    %c0_22 = arith.constant 0 : index
    %24 = vector.load %arg8[%c0_20, %c0_21, %c0_22] : memref<1x1x128xf32, #tpu.memory_space<vmem>>, vector<1x1x128xf32>
    %25 = vector.shape_cast %24 : vector<1x1x128xf32> to vector<1x128xf32>
    %26 = vector.broadcast %25 : vector<1x128xf32> to vector<64x128xf32>
    %27 = arith.mulf %23, %26 : vector<64x128xf32>
    %c7_i32 = arith.constant 7 : i32
    %28 = tpu.dynamic_rotate %6 by %c7_i32 dim 1 : vector<64x128xf32>, i32 -> vector<64x128xf32>
    %29 = arith.truncf %28 : vector<64x128xf32> to vector<64x128xbf16>
    %c7_i32_23 = arith.constant 7 : i32
    %30 = tpu.dynamic_rotate %13 by %c7_i32_23 dim 1 : vector<64x128xf32>, i32 -> vector<64x128xf32>
    %31 = arith.truncf %30 : vector<64x128xf32> to vector<64x128xbf16>
    %c6_i32 = arith.constant 6 : i32
    %32 = tpu.dynamic_rotate %6 by %c6_i32 dim 1 : vector<64x128xf32>, i32 -> vector<64x128xf32>
    %33 = arith.truncf %32 : vector<64x128xf32> to vector<64x128xbf16>
    %c7_i32_24 = arith.constant 7 : i32
    %34 = tpu.dynamic_rotate %20 by %c7_i32_24 dim 1 : vector<64x128xf32>, i32 -> vector<64x128xf32>
    %35 = arith.truncf %34 : vector<64x128xf32> to vector<64x128xbf16>
    %c7_i32_25 = arith.constant 7 : i32
    %36 = tpu.dynamic_rotate %27 by %c7_i32_25 dim 1 : vector<64x128xf32>, i32 -> vector<64x128xf32>
    %37 = arith.truncf %36 : vector<64x128xf32> to vector<64x128xbf16>
    %c6_i32_26 = arith.constant 6 : i32
    %38 = tpu.dynamic_rotate %20 by %c6_i32_26 dim 1 : vector<64x128xf32>, i32 -> vector<64x128xf32>
    %39 = arith.truncf %38 : vector<64x128xf32> to vector<64x128xbf16>
    %c1_i32 = arith.constant 1 : i32
    %40 = tpu.dynamic_rotate %6 by %c1_i32 dim 1 : vector<64x128xf32>, i32 -> vector<64x128xf32>
    %41 = arith.truncf %40 : vector<64x128xf32> to vector<64x128xbf16>
    %c1_i32_27 = arith.constant 1 : i32
    %42 = tpu.dynamic_rotate %13 by %c1_i32_27 dim 1 : vector<64x128xf32>, i32 -> vector<64x128xf32>
    %43 = arith.truncf %42 : vector<64x128xf32> to vector<64x128xbf16>
    %44 = arith.truncf %6 : vector<64x128xf32> to vector<64x128xbf16>
    %45 = tpu.concatenate %29, %31, %33, %35, %37, %39, %41, %43, %44 in 0 : vector<64x128xbf16>, vector<64x128xbf16>, vector<64x128xbf16>, vector<64x128xbf16>, vector<64x128xbf16>, vector<64x128xbf16>, vector<64x128xbf16>, vector<64x128xbf16>, vector<64x128xbf16> -> vector<576x128xbf16>
    %c0_28 = arith.constant 0 : index
    %c0_29 = arith.constant 0 : index
    %46 = vector.load %arg10[%c0_28, %c0_29] : memref<64x576xbf16, #tpu.memory_space<vmem>>, vector<64x576xbf16>
    %cst = arith.constant dense<0.000000e+00> : vector<64x128xf32>
    %47 = tpu.matmul %46, %45, %cst {dimension_numbers = #tpu.dot_dimension_numbers<[1], [0], [0], [1], [0, 0, 1, 1], [], []>} : vector<64x576xbf16>, vector<576x128xbf16>, vector<64x128xf32> -> vector<64x128xf32>
    %c0_30 = arith.constant 0 : index
    %c0_31 = arith.constant 0 : index
    %c0_32 = arith.constant 0 : index
    %48 = vector.load %arg9[%c0_30, %c0_31, %c0_32] : memref<1x1x128xf32, #tpu.memory_space<vmem>>, vector<1x1x128xf32>
    %49 = vector.shape_cast %48 : vector<1x1x128xf32> to vector<1x128xf32>
    %50 = vector.broadcast %49 : vector<1x128xf32> to vector<64x128xf32>
    %51 = arith.mulf %47, %50 : vector<64x128xf32>
    %c0_33 = arith.constant 0 : index
    %c0_34 = arith.constant 0 : index
    %52 = vector.load %arg11[%c0_33, %c0_34] : memref<64x1xf32, #tpu.memory_space<vmem>>, vector<64x1xf32>
    %53 = vector.broadcast %52 : vector<64x1xf32> to vector<64x128xf32>
    %54 = arith.addf %51, %53 : vector<64x128xf32>
    %55 = arith.truncf %54 : vector<64x128xf32> to vector<64x128xbf16>
    %c0_35 = arith.constant 0 : index
    %c0_36 = arith.constant 0 : index
    %c0_37 = arith.constant 0 : index
    %56 = vector.load %arg12[%c0_35, %c0_36, %c0_37] : memref<1x64x128xbf16, #tpu.memory_space<vmem>>, vector<1x64x128xbf16>
    %57 = vector.shape_cast %56 : vector<1x64x128xbf16> to vector<64x128xbf16>
    %58 = vector.shape_cast %55 : vector<64x128xbf16> to vector<1x64x128xbf16>
    tpu.vector_store %arg12[%c0_35, %c0_36, %c0_37], %58 {strides = array<i32>} : memref<1x64x128xbf16, #tpu.memory_space<vmem>>, vector<1x64x128xbf16>,
    return
  }
  func.func @transform_0(%arg0: i32) -> (i32, i32, i32) {
    %c0_i32 = arith.constant 0 : i32
    %c0_i32_0 = arith.constant 0 : i32
    %c0_i32_1 = arith.constant 0 : i32
    return %arg0, %c0_i32, %c0_i32_0 : i32, i32, i32
  }
  func.func @transform_1(%arg0: i32) -> (i32, i32, i32) {
    %c0_i32 = arith.constant 0 : i32
    %c0_i32_0 = arith.constant 0 : i32
    %c0_i32_1 = arith.constant 0 : i32
    return %arg0, %c0_i32, %c0_i32_0 : i32, i32, i32
  }
  func.func @transform_2(%arg0: i32) -> (i32, i32, i32) {
    %c0_i32 = arith.constant 0 : i32
    %c0_i32_0 = arith.constant 0 : i32
    %c0_i32_1 = arith.constant 0 : i32
    return %arg0, %c0_i32, %c0_i32_0 : i32, i32, i32
  }
  func.func @transform_3(%arg0: i32) -> (i32, i32, i32) {
    %c0_i32 = arith.constant 0 : i32
    %c0_i32_0 = arith.constant 0 : i32
    %c0_i32_1 = arith.constant 0 : i32
    return %arg0, %c0_i32, %c0_i32_0 : i32, i32, i32
  }
  func.func @transform_4(%arg0: i32) -> (i32, i32, i32) {
    %c0_i32 = arith.constant 0 : i32
    %c0_i32_0 = arith.constant 0 : i32
    %c0_i32_1 = arith.constant 0 : i32
    return %arg0, %c0_i32, %c0_i32_0 : i32, i32, i32
  }
  func.func @transform_5(%arg0: i32) -> (i32, i32, i32) {
    %c0_i32 = arith.constant 0 : i32
    %c0_i32_0 = arith.constant 0 : i32
    %c0_i32_1 = arith.constant 0 : i32
    return %arg0, %c0_i32, %c0_i32_0 : i32, i32, i32
  }
  func.func @transform_6(%arg0: i32) -> (i32, i32, i32) {
    %c0_i32 = arith.constant 0 : i32
    %c0_i32_0 = arith.constant 0 : i32
    %c0_i32_1 = arith.constant 0 : i32
    return %arg0, %c0_i32, %c0_i32_0 : i32, i32, i32
  }
  func.func @transform_7(%arg0: i32) -> (i32, i32, i32) {
    %c0_i32 = arith.constant 0 : i32
    %c0_i32_0 = arith.constant 0 : i32
    %c0_i32_1 = arith.constant 0 : i32
    return %arg0, %c0_i32, %c0_i32_0 : i32, i32, i32
  }
  func.func @transform_8(%arg0: i32) -> (i32, i32, i32) {
    %c0_i32 = arith.constant 0 : i32
    %c0_i32_0 = arith.constant 0 : i32
    %c0_i32_1 = arith.constant 0 : i32
    return %arg0, %c0_i32, %c0_i32_0 : i32, i32, i32
  }
  func.func @transform_9(%arg0: i32) -> (i32, i32) {
    %c0_i32 = arith.constant 0 : i32
    %c0_i32_0 = arith.constant 0 : i32
    %c0_i32_1 = arith.constant 0 : i32
    return %c0_i32, %c0_i32_0 : i32, i32
  }
  func.func @transform_10(%arg0: i32) -> (i32, i32) {
    %c0_i32 = arith.constant 0 : i32
    %c0_i32_0 = arith.constant 0 : i32
    %c0_i32_1 = arith.constant 0 : i32
    return %c0_i32, %c0_i32_0 : i32, i32
  }
  func.func @transform_11(%arg0: i32) -> (i32, i32, i32) {
    %c0_i32 = arith.constant 0 : i32
    %c0_i32_0 = arith.constant 0 : i32
    %c0_i32_1 = arith.constant 0 : i32
    return %arg0, %c0_i32, %c0_i32_0 : i32, i32, i32
  }
}

module attributes {stable_mosaic.version = 11 : i64} {
  func.func @_stack_kernel(%arg0: i32, %arg1: i32, %arg2: memref<1x64x128xbf16, #tpu.memory_space<vmem>>, %arg3: memref<1x1x128xf32, #tpu.memory_space<vmem>>, %arg4: memref<1x1x128xf32, #tpu.memory_space<vmem>>, %arg5: memref<1x32x64xbf16, #tpu.memory_space<vmem>>, %arg6: memref<1x32x1xf32, #tpu.memory_space<vmem>>, %arg7: memref<1x32x288xbf16, #tpu.memory_space<vmem>>, %arg8: memref<1x32x1xf32, #tpu.memory_space<vmem>>, %arg9: memref<1x64x32xbf16, #tpu.memory_space<vmem>>, %arg10: memref<1x64x1xf32, #tpu.memory_space<vmem>>, %arg11: memref<1x64x128xbf16, #tpu.memory_space<vmem>>, %arg12: memref<64x128xf32, #tpu.memory_space<vmem>>) attributes {dimension_semantics = [#tpu.dimension_semantics<parallel>, #tpu.dimension_semantics<arbitrary>], iteration_bounds = array<i64: 2, 5>, scalar_prefetch = 0 : i64, scratch_operands = 1 : i64, tpu.core_type = #tpu.core_type<tc>, window_params = [{transform_indices = @transform_0, window_bounds = array<i64: 1, 64, 128>}, {transform_indices = @transform_1, window_bounds = array<i64: 1, 1, 128>}, {transform_indices = @transform_2, window_bounds = array<i64: 1, 1, 128>}, {transform_indices = @transform_3, window_bounds = array<i64: 1, 32, 64>}, {transform_indices = @transform_4, window_bounds = array<i64: 1, 32, 1>}, {transform_indices = @transform_5, window_bounds = array<i64: 1, 32, 288>}, {transform_indices = @transform_6, window_bounds = array<i64: 1, 32, 1>}, {transform_indices = @transform_7, window_bounds = array<i64: 1, 64, 32>}, {transform_indices = @transform_8, window_bounds = array<i64: 1, 64, 1>}, {transform_indices = @transform_9, window_bounds = array<i64: 1, 64, 128>}]} {
    %c0_i32 = arith.constant 0 : i32
    %0 = arith.cmpi eq, %arg1, %c0_i32 : i32
    %1 = arith.extui %0 : i1 to i32
    %c0_i32_0 = arith.constant 0 : i32
    %2 = arith.cmpi ne, %1, %c0_i32_0 : i32
    scf.if %2 {
      %c0_34 = arith.constant 0 : index
      %c0_35 = arith.constant 0 : index
      %c0_36 = arith.constant 0 : index
      %64 = vector.load %arg2[%c0_34, %c0_35, %c0_36] : memref<1x64x128xbf16, #tpu.memory_space<vmem>>, vector<1x64x128xbf16>
      %65 = vector.shape_cast %64 : vector<1x64x128xbf16> to vector<64x128xbf16>
      %66 = arith.extf %65 : vector<64x128xbf16> to vector<64x128xf32>
      %c0_37 = arith.constant 0 : index
      %c0_38 = arith.constant 0 : index
      %67 = vector.load %arg12[%c0_37, %c0_38] : memref<64x128xf32, #tpu.memory_space<vmem>>, vector<64x128xf32>
      tpu.vector_store %arg12[%c0_37, %c0_38], %66 {strides = array<i32>} : memref<64x128xf32, #tpu.memory_space<vmem>>, vector<64x128xf32>,
    } else {
    }
    %c0 = arith.constant 0 : index
    %c0_1 = arith.constant 0 : index
    %3 = vector.load %arg12[%c0, %c0_1] : memref<64x128xf32, #tpu.memory_space<vmem>>, vector<64x128xf32>
    %4 = arith.truncf %3 : vector<64x128xf32> to vector<64x128xbf16>
    %c0_2 = arith.constant 0 : index
    %c0_3 = arith.constant 0 : index
    %c0_4 = arith.constant 0 : index
    %5 = vector.load %arg3[%c0_2, %c0_3, %c0_4] : memref<1x1x128xf32, #tpu.memory_space<vmem>>, vector<1x1x128xf32>
    %6 = vector.shape_cast %5 : vector<1x1x128xf32> to vector<1x128xf32>
    %c0_5 = arith.constant 0 : index
    %c0_6 = arith.constant 0 : index
    %c0_7 = arith.constant 0 : index
    %7 = vector.load %arg4[%c0_5, %c0_6, %c0_7] : memref<1x1x128xf32, #tpu.memory_space<vmem>>, vector<1x1x128xf32>
    %8 = vector.shape_cast %7 : vector<1x1x128xf32> to vector<1x128xf32>
    %c0_8 = arith.constant 0 : index
    %c0_9 = arith.constant 0 : index
    %c0_10 = arith.constant 0 : index
    %9 = vector.load %arg5[%c0_8, %c0_9, %c0_10] : memref<1x32x64xbf16, #tpu.memory_space<vmem>>, vector<1x32x64xbf16>
    %10 = vector.shape_cast %9 : vector<1x32x64xbf16> to vector<32x64xbf16>
    %c0_11 = arith.constant 0 : index
    %c0_12 = arith.constant 0 : index
    %c0_13 = arith.constant 0 : index
    %11 = vector.load %arg6[%c0_11, %c0_12, %c0_13] : memref<1x32x1xf32, #tpu.memory_space<vmem>>, vector<1x32x1xf32>
    %12 = vector.shape_cast %11 : vector<1x32x1xf32> to vector<32x1xf32>
    %c0_14 = arith.constant 0 : index
    %c0_15 = arith.constant 0 : index
    %c0_16 = arith.constant 0 : index
    %13 = vector.load %arg7[%c0_14, %c0_15, %c0_16] : memref<1x32x288xbf16, #tpu.memory_space<vmem>>, vector<1x32x288xbf16>
    %14 = vector.shape_cast %13 : vector<1x32x288xbf16> to vector<32x288xbf16>
    %c0_17 = arith.constant 0 : index
    %c0_18 = arith.constant 0 : index
    %c0_19 = arith.constant 0 : index
    %15 = vector.load %arg8[%c0_17, %c0_18, %c0_19] : memref<1x32x1xf32, #tpu.memory_space<vmem>>, vector<1x32x1xf32>
    %16 = vector.shape_cast %15 : vector<1x32x1xf32> to vector<32x1xf32>
    %c0_20 = arith.constant 0 : index
    %c0_21 = arith.constant 0 : index
    %c0_22 = arith.constant 0 : index
    %17 = vector.load %arg9[%c0_20, %c0_21, %c0_22] : memref<1x64x32xbf16, #tpu.memory_space<vmem>>, vector<1x64x32xbf16>
    %18 = vector.shape_cast %17 : vector<1x64x32xbf16> to vector<64x32xbf16>
    %c0_23 = arith.constant 0 : index
    %c0_24 = arith.constant 0 : index
    %c0_25 = arith.constant 0 : index
    %19 = vector.load %arg10[%c0_23, %c0_24, %c0_25] : memref<1x64x1xf32, #tpu.memory_space<vmem>>, vector<1x64x1xf32>
    %20 = vector.shape_cast %19 : vector<1x64x1xf32> to vector<64x1xf32>
    %cst = arith.constant dense<0.000000e+00> : vector<32x128xf32>
    %21 = tpu.matmul %10, %4, %cst {dimension_numbers = #tpu.dot_dimension_numbers<[1], [0], [0], [1], [0, 0, 1, 1], [], []>} : vector<32x64xbf16>, vector<64x128xbf16>, vector<32x128xf32> -> vector<32x128xf32>
    %22 = vector.broadcast %12 : vector<32x1xf32> to vector<32x128xf32>
    %23 = arith.addf %21, %22 : vector<32x128xf32>
    %cst_26 = arith.constant 0.000000e+00 : f32
    %24 = vector.broadcast %cst_26 : f32 to vector<32x128xf32>
    %25 = arith.maximumf %23, %24 : vector<32x128xf32>
    %26 = vector.broadcast %6 : vector<1x128xf32> to vector<32x128xf32>
    %27 = arith.mulf %25, %26 : vector<32x128xf32>
    %c7_i32 = arith.constant 7 : i32
    %28 = tpu.dynamic_rotate %27 by %c7_i32 dim 1 : vector<32x128xf32>, i32 -> vector<32x128xf32>
    %29 = arith.truncf %28 : vector<32x128xf32> to vector<32x128xbf16>
    %c6_i32 = arith.constant 6 : i32
    %30 = tpu.dynamic_rotate %27 by %c6_i32 dim 1 : vector<32x128xf32>, i32 -> vector<32x128xf32>
    %31 = arith.truncf %30 : vector<32x128xf32> to vector<32x128xbf16>
    %c5_i32 = arith.constant 5 : i32
    %32 = tpu.dynamic_rotate %27 by %c5_i32 dim 1 : vector<32x128xf32>, i32 -> vector<32x128xf32>
    %33 = arith.truncf %32 : vector<32x128xf32> to vector<32x128xbf16>
    %c1_i32 = arith.constant 1 : i32
    %34 = tpu.dynamic_rotate %27 by %c1_i32 dim 1 : vector<32x128xf32>, i32 -> vector<32x128xf32>
    %35 = arith.truncf %34 : vector<32x128xf32> to vector<32x128xbf16>
    %36 = arith.truncf %27 : vector<32x128xf32> to vector<32x128xbf16>
    %c127_i32 = arith.constant 127 : i32
    %37 = tpu.dynamic_rotate %27 by %c127_i32 dim 1 : vector<32x128xf32>, i32 -> vector<32x128xf32>
    %38 = arith.truncf %37 : vector<32x128xf32> to vector<32x128xbf16>
    %c123_i32 = arith.constant 123 : i32
    %39 = tpu.dynamic_rotate %27 by %c123_i32 dim 1 : vector<32x128xf32>, i32 -> vector<32x128xf32>
    %40 = arith.truncf %39 : vector<32x128xf32> to vector<32x128xbf16>
    %c122_i32 = arith.constant 122 : i32
    %41 = tpu.dynamic_rotate %27 by %c122_i32 dim 1 : vector<32x128xf32>, i32 -> vector<32x128xf32>
    %42 = arith.truncf %41 : vector<32x128xf32> to vector<32x128xbf16>
    %c121_i32 = arith.constant 121 : i32
    %43 = tpu.dynamic_rotate %27 by %c121_i32 dim 1 : vector<32x128xf32>, i32 -> vector<32x128xf32>
    %44 = arith.truncf %43 : vector<32x128xf32> to vector<32x128xbf16>
    %45 = tpu.concatenate %29, %31, %33, %35, %36, %38, %40, %42, %44 in 0 : vector<32x128xbf16>, vector<32x128xbf16>, vector<32x128xbf16>, vector<32x128xbf16>, vector<32x128xbf16>, vector<32x128xbf16>, vector<32x128xbf16>, vector<32x128xbf16>, vector<32x128xbf16> -> vector<288x128xbf16>
    %cst_27 = arith.constant dense<0.000000e+00> : vector<32x128xf32>
    %46 = tpu.matmul %14, %45, %cst_27 {dimension_numbers = #tpu.dot_dimension_numbers<[1], [0], [0], [1], [0, 0, 1, 1], [], []>} : vector<32x288xbf16>, vector<288x128xbf16>, vector<32x128xf32> -> vector<32x128xf32>
    %47 = vector.broadcast %8 : vector<1x128xf32> to vector<32x128xf32>
    %48 = arith.mulf %46, %47 : vector<32x128xf32>
    %49 = vector.broadcast %16 : vector<32x1xf32> to vector<32x128xf32>
    %50 = arith.addf %48, %49 : vector<32x128xf32>
    %cst_28 = arith.constant 0.000000e+00 : f32
    %51 = vector.broadcast %cst_28 : f32 to vector<32x128xf32>
    %52 = arith.maximumf %50, %51 : vector<32x128xf32>
    %53 = arith.truncf %52 : vector<32x128xf32> to vector<32x128xbf16>
    %cst_29 = arith.constant dense<0.000000e+00> : vector<64x128xf32>
    %54 = tpu.matmul %18, %53, %cst_29 {dimension_numbers = #tpu.dot_dimension_numbers<[1], [0], [0], [1], [0, 0, 1, 1], [], []>} : vector<64x32xbf16>, vector<32x128xbf16>, vector<64x128xf32> -> vector<64x128xf32>
    %55 = vector.broadcast %20 : vector<64x1xf32> to vector<64x128xf32>
    %56 = arith.addf %54, %55 : vector<64x128xf32>
    %57 = arith.addf %56, %3 : vector<64x128xf32>
    %cst_30 = arith.constant 0.000000e+00 : f32
    %58 = vector.broadcast %cst_30 : f32 to vector<64x128xf32>
    %59 = arith.maximumf %57, %58 : vector<64x128xf32>
    %c0_31 = arith.constant 0 : index
    %c0_32 = arith.constant 0 : index
    %60 = vector.load %arg12[%c0_31, %c0_32] : memref<64x128xf32, #tpu.memory_space<vmem>>, vector<64x128xf32>
    tpu.vector_store %arg12[%c0_31, %c0_32], %59 {strides = array<i32>} : memref<64x128xf32, #tpu.memory_space<vmem>>, vector<64x128xf32>,
    %c4_i32 = arith.constant 4 : i32
    %61 = arith.cmpi eq, %arg1, %c4_i32 : i32
    %62 = arith.extui %61 : i1 to i32
    %c0_i32_33 = arith.constant 0 : i32
    %63 = arith.cmpi ne, %62, %c0_i32_33 : i32
    scf.if %63 {
      %64 = arith.truncf %59 : vector<64x128xf32> to vector<64x128xbf16>
      %c0_34 = arith.constant 0 : index
      %c0_35 = arith.constant 0 : index
      %c0_36 = arith.constant 0 : index
      %65 = vector.load %arg11[%c0_34, %c0_35, %c0_36] : memref<1x64x128xbf16, #tpu.memory_space<vmem>>, vector<1x64x128xbf16>
      %66 = vector.shape_cast %65 : vector<1x64x128xbf16> to vector<64x128xbf16>
      %67 = vector.shape_cast %64 : vector<64x128xbf16> to vector<1x64x128xbf16>
      tpu.vector_store %arg11[%c0_34, %c0_35, %c0_36], %67 {strides = array<i32>} : memref<1x64x128xbf16, #tpu.memory_space<vmem>>, vector<1x64x128xbf16>,
    } else {
    }
    return
  }
  func.func @transform_0(%arg0: i32, %arg1: i32) -> (i32, i32, i32) {
    %c0_i32 = arith.constant 0 : i32
    %c0_i32_0 = arith.constant 0 : i32
    %c0_i32_1 = arith.constant 0 : i32
    return %arg0, %c0_i32, %c0_i32_0 : i32, i32, i32
  }
  func.func @transform_1(%arg0: i32, %arg1: i32) -> (i32, i32, i32) {
    %c0_i32 = arith.constant 0 : i32
    %c0_i32_0 = arith.constant 0 : i32
    %c0_i32_1 = arith.constant 0 : i32
    return %arg0, %c0_i32, %c0_i32_0 : i32, i32, i32
  }
  func.func @transform_2(%arg0: i32, %arg1: i32) -> (i32, i32, i32) {
    %c0_i32 = arith.constant 0 : i32
    %c0_i32_0 = arith.constant 0 : i32
    %c0_i32_1 = arith.constant 0 : i32
    return %arg0, %c0_i32, %c0_i32_0 : i32, i32, i32
  }
  func.func @transform_3(%arg0: i32, %arg1: i32) -> (i32, i32, i32) {
    %c0_i32 = arith.constant 0 : i32
    %c0_i32_0 = arith.constant 0 : i32
    %c0_i32_1 = arith.constant 0 : i32
    return %arg1, %c0_i32, %c0_i32_0 : i32, i32, i32
  }
  func.func @transform_4(%arg0: i32, %arg1: i32) -> (i32, i32, i32) {
    %c0_i32 = arith.constant 0 : i32
    %c0_i32_0 = arith.constant 0 : i32
    %c0_i32_1 = arith.constant 0 : i32
    return %arg1, %c0_i32, %c0_i32_0 : i32, i32, i32
  }
  func.func @transform_5(%arg0: i32, %arg1: i32) -> (i32, i32, i32) {
    %c0_i32 = arith.constant 0 : i32
    %c0_i32_0 = arith.constant 0 : i32
    %c0_i32_1 = arith.constant 0 : i32
    return %arg1, %c0_i32, %c0_i32_0 : i32, i32, i32
  }
  func.func @transform_6(%arg0: i32, %arg1: i32) -> (i32, i32, i32) {
    %c0_i32 = arith.constant 0 : i32
    %c0_i32_0 = arith.constant 0 : i32
    %c0_i32_1 = arith.constant 0 : i32
    return %arg1, %c0_i32, %c0_i32_0 : i32, i32, i32
  }
  func.func @transform_7(%arg0: i32, %arg1: i32) -> (i32, i32, i32) {
    %c0_i32 = arith.constant 0 : i32
    %c0_i32_0 = arith.constant 0 : i32
    %c0_i32_1 = arith.constant 0 : i32
    return %arg1, %c0_i32, %c0_i32_0 : i32, i32, i32
  }
  func.func @transform_8(%arg0: i32, %arg1: i32) -> (i32, i32, i32) {
    %c0_i32 = arith.constant 0 : i32
    %c0_i32_0 = arith.constant 0 : i32
    %c0_i32_1 = arith.constant 0 : i32
    return %arg1, %c0_i32, %c0_i32_0 : i32, i32, i32
  }
  func.func @transform_9(%arg0: i32, %arg1: i32) -> (i32, i32, i32) {
    %c0_i32 = arith.constant 0 : i32
    %c0_i32_0 = arith.constant 0 : i32
    %c0_i32_1 = arith.constant 0 : i32
    return %arg0, %c0_i32, %c0_i32_0 : i32, i32, i32
  }
}

</mosaic_0001>

<llo_original>
// kernel: encoder_fwd.15
$region0: #{encoder_fwd.15}
  #allocation0 [shape = 'u32[]', space=smem, size = 0x4, offset = 0x4, fixed_abs, tag = 'smem constant byte address 0x4 - core index']
  #allocation1 [shape = 'u32[144,128]{1,0:T(1,128)}', space=vmem, size = 0x12000, scoped, tag = 'internal scratch']
  %s0 = inlined_call_operand.vmem [shape: bf16[2,8,384], index: 0, kind: input, shape index: {}]
  %s1 = inlined_call_operand.vmem [shape: f32[2,1,384], index: 1, kind: input, shape index: {}]
  %s2 = inlined_call_operand.vmem [shape: f32[2,1,384], index: 2, kind: input, shape index: {}]
  %s3 = inlined_call_operand.vmem [shape: bf16[16,8], index: 3, kind: input, shape index: {}]
  %s4 = inlined_call_operand.vmem [shape: f32[16,1], index: 4, kind: input, shape index: {}]
  %s5 = inlined_call_operand.vmem [shape: bf16[16,144], index: 5, kind: input, shape index: {}]
  %s6 = inlined_call_operand.vmem [shape: f32[16,1], index: 6, kind: input, shape index: {}]
  %s7 = inlined_call_operand.vmem [shape: bf16[32,16], index: 7, kind: input, shape index: {}]
  %s8 = inlined_call_operand.vmem [shape: f32[32,1], index: 8, kind: input, shape index: {}]
  %s9 = inlined_call_operand.vmem [shape: bf16[32,8], index: 9, kind: input, shape index: {}]
  %s10 = inlined_call_operand.vmem [shape: f32[32,1], index: 10, kind: input, shape index: {}]
  %s11 = inlined_call_operand.vmem [shape: bf16[2,32,384], index: 11, kind: output, shape index: {}]
  %s12 = sld [smem:[#allocation0]]
  $region77: #{encoder_fwd.15} parent=0
    _
  %s14 = ssub.s32 1, %s12
  %s15 = scalar_select 0, %s14, %s12
  loop: start=0, step=1, limit=4
  $region2: #{encoder_fwd.15} parent=0 // loop_pre_header
    _
  $region3: #{encoder_fwd.15} parent=0 // loop_header
    %s17 = sphi 0, %s21
    %p18 = scmp.ge.s32.totalorder %s17, 4
    %s27 = sphi 0, %s29
    %s30 = sphi 0, %s27
    %s31 = sphi 0, %s30
    %s47 = sphi 0, %s31
    %s53 = sphi 0, %s55
    %s56 = sphi 0, %s53
    %s57 = sphi 0, %s56
    %s73 = sphi 0, %s57
    %s79 = sphi 0, %s81
    %s82 = sphi 0, %s79
    %s83 = sphi 0, %s82
    %s99 = sphi 0, %s83
    %s103 = sphi 0, %s103
    %s105 = sphi 0, %s103
    %s106 = sphi 0, %s105
    %s120 = sphi 0, %s106
    %s124 = sphi 0, %s124
    %s126 = sphi 0, %s124
    %s127 = sphi 0, %s126
    %s141 = sphi 0, %s127
    %s145 = sphi 0, %s145
    %s147 = sphi 0, %s145
    %s148 = sphi 0, %s147
    %s162 = sphi 0, %s148
    %s166 = sphi 0, %s166
    %s168 = sphi 0, %s166
    %s169 = sphi 0, %s168
    %s183 = sphi 0, %s169
    %s187 = sphi 0, %s187
    %s189 = sphi 0, %s187
    %s190 = sphi 0, %s189
    %s204 = sphi 0, %s190
    %s208 = sphi 0, %s208
    %s210 = sphi 0, %s208
    %s211 = sphi 0, %s210
    %s225 = sphi 0, %s211
    %s229 = sphi 0, %s229
    %s231 = sphi 0, %s229
    %s232 = sphi 0, %s231
    %s246 = sphi 0, %s232
    %s250 = sphi 0, %s250
    %s252 = sphi 0, %s250
    %s253 = sphi 0, %s252
    %s267 = sphi 0, %s253
    %s273 = sphi 0, %s275
    %s276 = sphi 0, %s273
    %s277 = sphi 0, %s276
    %s293 = sphi 0, %s277
  $region4: #{encoder_fwd.15} parent=0 // loop_header_branch
    %20 = sbr.rel (%p18) target = $region8
  $region5: #{encoder_fwd.15} parent=0 // loop_body
    %s22 = ssub.s32 %s17, 1
    %s23 = ssub.s32 %s17, 2
    %s24 = sadd.s32 %s17, 1
    %s25 = ssub.s32 %s17, %s24
    %p26 = scmp.eq.s32.totalorder %s25, 0
    %s28 = sadd.s32 %s27, 1
    %s29 = scalar_select %p26, %s27, %s28
    %p32 = pneg %p26
    %p33 = scmp.eq.s32.totalorder %s17, 1
    %p34 = por %p32, %p33
    %p35 = scmp.ne.s32.totalorder %s27, %s30
    %p36 = scmp.eq.s32.totalorder %s17, 0
    %p37 = por %p35, %p36
    %p38 = scmp.ne.s32.totalorder %s27, %s30
    %p39 = scmp.eq.s32.totalorder %s22, 1
    %p40 = por %p38, %p39
    %p41 = scmp.ne.s32.totalorder %s30, %s31
    %p42 = scmp.eq.s32.totalorder %s22, 0
    %p43 = por %p41, %p42
    %p44 = scmp.ne.s32.totalorder %s30, %s31
    %p45 = scmp.eq.s32.totalorder %s23, 1
    %p46 = por %p44, %p45
    %p48 = scmp.ne.s32.totalorder %s31, %s47
    %p49 = scmp.eq.s32.totalorder %s23, 0
    %p50 = por %p48, %p49
    %s51 = ssub.s32 %s17, %s24
    %p52 = scmp.eq.s32.totalorder %s51, 0
    %s54 = sadd.s32 %s53, 1
    %s55 = scalar_select %p52, %s53, %s54
    %p58 = pneg %p52
    %p59 = scmp.eq.s32.totalorder %s17, 1
    %p60 = por %p58, %p59
    %p61 = scmp.ne.s32.totalorder %s53, %s56
    %p62 = scmp.eq.s32.totalorder %s17, 0
    %p63 = por %p61, %p62
    %p64 = scmp.ne.s32.totalorder %s53, %s56
    %p65 = scmp.eq.s32.totalorder %s22, 1
    %p66 = por %p64, %p65
    %p67 = scmp.ne.s32.totalorder %s56, %s57
    %p68 = scmp.eq.s32.totalorder %s22, 0
    %p69 = por %p67, %p68
    %p70 = scmp.ne.s32.totalorder %s56, %s57
    %p71 = scmp.eq.s32.totalorder %s23, 1
    %p72 = por %p70, %p71
    %p74 = scmp.ne.s32.totalorder %s57, %s73
    %p75 = scmp.eq.s32.totalorder %s23, 0
    %p76 = por %p74, %p75
    %s77 = ssub.s32 %s17, %s24
    %p78 = scmp.eq.s32.totalorder %s77, 0
    %s80 = sadd.s32 %s79, 1
    %s81 = scalar_select %p78, %s79, %s80
    %p84 = pneg %p78
    %p85 = scmp.eq.s32.totalorder %s17, 1
    %p86 = por %p84, %p85
    %p87 = scmp.ne.s32.totalorder %s79, %s82
    %p88 = scmp.eq.s32.totalorder %s17, 0
    %p89 = por %p87, %p88
    %p90 = scmp.ne.s32.totalorder %s79, %s82
    %p91 = scmp.eq.s32.totalorder %s22, 1
    %p92 = por %p90, %p91
    %p93 = scmp.ne.s32.totalorder %s82, %s83
    %p94 = scmp.eq.s32.totalorder %s22, 0
    %p95 = por %p93, %p94
    %p96 = scmp.ne.s32.totalorder %s82, %s83
    %p97 = scmp.eq.s32.totalorder %s23, 1
    %p98 = por %p96, %p97
    %p100 = scmp.ne.s32.totalorder %s83, %s99
    %p101 = scmp.eq.s32.totalorder %s23, 0
    %p102 = por %p100, %p101
    %s104 = sadd.s32 %s103, 1
    %p107 = scmp.eq.s32.totalorder %s17, 1
    %p108 = scmp.ne.s32.totalorder %s103, %s105
    %p109 = scmp.eq.s32.totalorder %s17, 0
    %p110 = por %p108, %p109
    %p111 = scmp.ne.s32.totalorder %s103, %s105
    %p112 = scmp.eq.s32.totalorder %s22, 1
    %p113 = por %p111, %p112
    %p114 = scmp.ne.s32.totalorder %s105, %s106
    %p115 = scmp.eq.s32.totalorder %s22, 0
    %p116 = por %p114, %p115
    %p117 = scmp.ne.s32.totalorder %s105, %s106
    %p118 = scmp.eq.s32.totalorder %s23, 1
    %p119 = por %p117, %p118
    %p121 = scmp.ne.s32.totalorder %s106, %s120
    %p122 = scmp.eq.s32.totalorder %s23, 0
    %p123 = por %p121, %p122
    %s125 = sadd.s32 %s124, 1
    %p128 = scmp.eq.s32.totalorder %s17, 1
    %p129 = scmp.ne.s32.totalorder %s124, %s126
    %p130 = scmp.eq.s32.totalorder %s17, 0
    %p131 = por %p129, %p130
    %p132 = scmp.ne.s32.totalorder %s124, %s126
    %p133 = scmp.eq.s32.totalorder %s22, 1
    %p134 = por %p132, %p133
    %p135 = scmp.ne.s32.totalorder %s126, %s127
    %p136 = scmp.eq.s32.totalorder %s22, 0
    %p137 = por %p135, %p136
    %p138 = scmp.ne.s32.totalorder %s126, %s127
    %p139 = scmp.eq.s32.totalorder %s23, 1
    %p140 = por %p138, %p139
    %p142 = scmp.ne.s32.totalorder %s127, %s141
    %p143 = scmp.eq.s32.totalorder %s23, 0
    %p144 = por %p142, %p143
    %s146 = sadd.s32 %s145, 1
    %p149 = scmp.eq.s32.totalorder %s17, 1
    %p150 = scmp.ne.s32.totalorder %s145, %s147
    %p151 = scmp.eq.s32.totalorder %s17, 0
    %p152 = por %p150, %p151
    %p153 = scmp.ne.s32.totalorder %s145, %s147
    %p154 = scmp.eq.s32.totalorder %s22, 1
    %p155 = por %p153, %p154
    %p156 = scmp.ne.s32.totalorder %s147, %s148
    %p157 = scmp.eq.s32.totalorder %s22, 0
    %p158 = por %p156, %p157
    %p159 = scmp.ne.s32.totalorder %s147, %s148
    %p160 = scmp.eq.s32.totalorder %s23, 1
    %p161 = por %p159, %p160
    %p163 = scmp.ne.s32.totalorder %s148, %s162
    %p164 = scmp.eq.s32.totalorder %s23, 0
    %p165 = por %p163, %p164
    %s167 = sadd.s32 %s166, 1
    %p170 = scmp.eq.s32.totalorder %s17, 1
    %p171 = scmp.ne.s32.totalorder %s166, %s168
    %p172 = scmp.eq.s32.totalorder %s17, 0
    %p173 = por %p171, %p172
    %p174 = scmp.ne.s32.totalorder %s166, %s168
    %p175 = scmp.eq.s32.totalorder %s22, 1
    %p176 = por %p174, %p175
    %p177 = scmp.ne.s32.totalorder %s168, %s169
    %p178 = scmp.eq.s32.totalorder %s22, 0
    %p179 = por %p177, %p178
    %p180 = scmp.ne.s32.totalorder %s168, %s169
    %p181 = scmp.eq.s32.totalorder %s23, 1
    %p182 = por %p180, %p181
    %p184 = scmp.ne.s32.totalorder %s169, %s183
    %p185 = scmp.eq.s32.totalorder %s23, 0
    %p186 = por %p184, %p185
    %s188 = sadd.s32 %s187, 1
    %p191 = scmp.eq.s32.totalorder %s17, 1
    %p192 = scmp.ne.s32.totalorder %s187, %s189
    %p193 = scmp.eq.s32.totalorder %s17, 0
    %p194 = por %p192, %p193
    %p195 = scmp.ne.s32.totalorder %s187, %s189
    %p196 = scmp.eq.s32.totalorder %s22, 1
    %p197 = por %p195, %p196
    %p198 = scmp.ne.s32.totalorder %s189, %s190
    %p199 = scmp.eq.s32.totalorder %s22, 0
    %p200 = por %p198, %p199
    %p201 = scmp.ne.s32.totalorder %s189, %s190
    %p202 = scmp.eq.s32.totalorder %s23, 1
    %p203 = por %p201, %p202
    %p205 = scmp.ne.s32.totalorder %s190, %s204
    %p206 = scmp.eq.s32.totalorder %s23, 0
    %p207 = por %p205, %p206
    %s209 = sadd.s32 %s208, 1
    %p212 = scmp.eq.s32.totalorder %s17, 1
    %p213 = scmp.ne.s32.totalorder %s208, %s210
    %p214 = scmp.eq.s32.totalorder %s17, 0
    %p215 = por %p213, %p214
    %p216 = scmp.ne.s32.totalorder %s208, %s210
    %p217 = scmp.eq.s32.totalorder %s22, 1
    %p218 = por %p216, %p217
    %p219 = scmp.ne.s32.totalorder %s210, %s211
    %p220 = scmp.eq.s32.totalorder %s22, 0
    %p221 = por %p219, %p220
    %p222 = scmp.ne.s32.totalorder %s210, %s211
    %p223 = scmp.eq.s32.totalorder %s23, 1
    %p224 = por %p222, %p223
    %p226 = scmp.ne.s32.totalorder %s211, %s225
    %p227 = scmp.eq.s32.totalorder %s23, 0
    %p228 = por %p226, %p227
    %s230 = sadd.s32 %s229, 1
    %p233 = scmp.eq.s32.totalorder %s17, 1
    %p234 = scmp.ne.s32.totalorder %s229, %s231
    %p235 = scmp.eq.s32.totalorder %s17, 0
    %p236 = por %p234, %p235
    %p237 = scmp.ne.s32.totalorder %s229, %s231
    %p238 = scmp.eq.s32.totalorder %s22, 1
    %p239 = por %p237, %p238
    %p240 = scmp.ne.s32.totalorder %s231, %s232
    %p241 = scmp.eq.s32.totalorder %s22, 0
    %p242 = por %p240, %p241
    %p243 = scmp.ne.s32.totalorder %s231, %s232
    %p244 = scmp.eq.s32.totalorder %s23, 1
    %p245 = por %p243, %p244
    %p247 = scmp.ne.s32.totalorder %s232, %s246
    %p248 = scmp.eq.s32.totalorder %s23, 0
    %p249 = por %p247, %p248
    %s251 = sadd.s32 %s250, 1
    %p254 = scmp.eq.s32.totalorder %s17, 1
    %p255 = scmp.ne.s32.totalorder %s250, %s252
    %p256 = scmp.eq.s32.totalorder %s17, 0
    %p257 = por %p255, %p256
    %p258 = scmp.ne.s32.totalorder %s250, %s252
    %p259 = scmp.eq.s32.totalorder %s22, 1
    %p260 = por %p258, %p259
    %p261 = scmp.ne.s32.totalorder %s252, %s253
    %p262 = scmp.eq.s32.totalorder %s22, 0
    %p263 = por %p261, %p262
    %p264 = scmp.ne.s32.totalorder %s252, %s253
    %p265 = scmp.eq.s32.totalorder %s23, 1
    %p266 = por %p264, %p265
    %p268 = scmp.ne.s32.totalorder %s253, %s267
    %p269 = scmp.eq.s32.totalorder %s23, 0
    %p270 = por %p268, %p269
    %s271 = ssub.s32 %s17, %s24
    %p272 = scmp.eq.s32.totalorder %s271, 0
    %s274 = sadd.s32 %s273, 1
    %s275 = scalar_select %p272, %s273, %s274
    %p278 = pneg %p272
    %p279 = scmp.eq.s32.totalorder %s17, 1
    %p280 = por %p278, %p279
    %p281 = scmp.ne.s32.totalorder %s273, %s276
    %p282 = scmp.eq.s32.totalorder %s17, 0
    %p283 = por %p281, %p282
    %p284 = scmp.ne.s32.totalorder %s273, %s276
    %p285 = scmp.eq.s32.totalorder %s22, 1
    %p286 = por %p284, %p285
    %p287 = scmp.ne.s32.totalorder %s276, %s277
    %p288 = scmp.eq.s32.totalorder %s22, 0
    %p289 = por %p287, %p288
    %p290 = scmp.ne.s32.totalorder %s276, %s277
    %p291 = scmp.eq.s32.totalorder %s23, 1
    %p292 = por %p290, %p291
    %p294 = scmp.ne.s32.totalorder %s277, %s293
    %p295 = scmp.eq.s32.totalorder %s23, 0
    %p296 = por %p294, %p295
    %p297 = scmp.le.s32.totalorder 1, %s17
    %p298 = scmp.lt.s32.totalorder %s17, 3
    %p299 = pnand %p297, %p298
    %p300 = pneg %p299
    // Predicated region
    $region9: #{encoder_fwd.15} parent=5 // pred_check
      _
    $region10: #{encoder_fwd.15} parent=5 // pred_check_branch
      %302 = sbr.rel (%p299) target = $region12
    $region11: #{encoder_fwd.15} parent=5 // pred_region
      %s303 = ssub.s32 %s17, 1
      // Predicated region
      $region13: #{encoder_fwd.15} parent=11 // pred_check
        %p304 = pneg %p116
      $region14: #{encoder_fwd.15} parent=11 // pred_check_branch
        %306 = sbr.rel (%p304) target = $region16
      $region15: #{encoder_fwd.15} parent=11 // pred_region
        _
      $region16: #{encoder_fwd.15} parent=11 // pred_fallthru
        _
      // Predicated region
      $region17: #{encoder_fwd.15} parent=11 // pred_check
        %p307 = pneg %p137
      $region18: #{encoder_fwd.15} parent=11 // pred_check_branch
        %309 = sbr.rel (%p307) target = $region20
      $region19: #{encoder_fwd.15} parent=11 // pred_region
        _
      $region20: #{encoder_fwd.15} parent=11 // pred_fallthru
        _
      // Predicated region
      $region21: #{encoder_fwd.15} parent=11 // pred_check
        %p310 = pneg %p158
      $region22: #{encoder_fwd.15} parent=11 // pred_check_branch
        %312 = sbr.rel (%p310) target = $region24
      $region23: #{encoder_fwd.15} parent=11 // pred_region
        _
      $region24: #{encoder_fwd.15} parent=11 // pred_fallthru
        _
      // Predicated region
      $region25: #{encoder_fwd.15} parent=11 // pred_check
        %p313 = pneg %p179
      $region26: #{encoder_fwd.15} parent=11 // pred_check_branch
        %315 = sbr.rel (%p313) target = $region28
      $region27: #{encoder_fwd.15} parent=11 // pred_region
        _
      $region28: #{encoder_fwd.15} parent=11 // pred_fallthru
        _
      // Predicated region
      $region29: #{encoder_fwd.15} parent=11 // pred_check
        %p316 = pneg %p200
      $region30: #{encoder_fwd.15} parent=11 // pred_check_branch
        %318 = sbr.rel (%p316) target = $region32
      $region31: #{encoder_fwd.15} parent=11 // pred_region
        _
      $region32: #{encoder_fwd.15} parent=11 // pred_fallthru
        _
      // Predicated region
      $region33: #{encoder_fwd.15} parent=11 // pred_check
        %p319 = pneg %p221
      $region34: #{encoder_fwd.15} parent=11 // pred_check_branch
        %321 = sbr.rel (%p319) target = $region36
      $region35: #{encoder_fwd.15} parent=11 // pred_region
        _
      $region36: #{encoder_fwd.15} parent=11 // pred_fallthru
        _
      // Predicated region
      $region37: #{encoder_fwd.15} parent=11 // pred_check
        %p322 = pneg %p242
      $region38: #{encoder_fwd.15} parent=11 // pred_check_branch
        %324 = sbr.rel (%p322) target = $region40
      $region39: #{encoder_fwd.15} parent=11 // pred_region
        _
      $region40: #{encoder_fwd.15} parent=11 // pred_fallthru
        _
      // Predicated region
      $region41: #{encoder_fwd.15} parent=11 // pred_check
        %p325 = pneg %p263
      $region42: #{encoder_fwd.15} parent=11 // pred_check_branch
        %327 = sbr.rel (%p325) target = $region44
      $region43: #{encoder_fwd.15} parent=11 // pred_region
        _
      $region44: #{encoder_fwd.15} parent=11 // pred_fallthru
        _
    $region12: #{encoder_fwd.15} parent=5 // pred_fallthru
      _
    %p328 = scmp.lt.s32.totalorder %s17, 2
    // Predicated region
    $region45: #{encoder_fwd.15} parent=5 // pred_check
      %p329 = pneg %p328
    $region46: #{encoder_fwd.15} parent=5 // pred_check_branch
      %331 = sbr.rel (%p329) target = $region48
    $region47: #{encoder_fwd.15} parent=5 // pred_region
      // Predicated region
      $region49: #{encoder_fwd.15} parent=47 // pred_check
        %p332 = pneg %p37
      $region50: #{encoder_fwd.15} parent=47 // pred_check_branch
        %334 = sbr.rel (%p332) target = $region52
      $region51: #{encoder_fwd.15} parent=47 // pred_region
        %p335 = scmp.lt.s32.totalorder %s17, 1
        %s336 = scalar_select %p335, %s17, 1
        %s337 = smul.addr %s336, 3
        %s338 = smul.addr %s337, 4
        %s339 = scalar_lea.vmem %s0, %s338
      $region52: #{encoder_fwd.15} parent=47 // pred_fallthru
        _
      // Predicated region
      $region53: #{encoder_fwd.15} parent=47 // pred_check
        %p340 = pneg %p63
      $region54: #{encoder_fwd.15} parent=47 // pred_check_branch
        %342 = sbr.rel (%p340) target = $region56
      $region55: #{encoder_fwd.15} parent=47 // pred_region
        %p343 = scmp.lt.s32.totalorder %s17, 1
        %s344 = scalar_select %p343, %s17, 1
        %s345 = smul.addr %s344, 3
        %s346 = scalar_lea.vmem %s1, %s345
      $region56: #{encoder_fwd.15} parent=47 // pred_fallthru
        _
      // Predicated region
      $region57: #{encoder_fwd.15} parent=47 // pred_check
        %p347 = pneg %p89
      $region58: #{encoder_fwd.15} parent=47 // pred_check_branch
        %349 = sbr.rel (%p347) target = $region60
      $region59: #{encoder_fwd.15} parent=47 // pred_region
        %p350 = scmp.lt.s32.totalorder %s17, 1
        %s351 = scalar_select %p350, %s17, 1
        %s352 = smul.addr %s351, 3
        %s353 = scalar_lea.vmem %s2, %s352
      $region60: #{encoder_fwd.15} parent=47 // pred_fallthru
        _
    $region48: #{encoder_fwd.15} parent=5 // pred_fallthru
      _
    %p354 = scmp.le.s32.totalorder 1, %s17
    %p355 = scmp.lt.s32.totalorder %s17, 3
    %p356 = pnand %p354, %p355
    %p357 = pneg %p356
    // Predicated region
    $region61: #{encoder_fwd.15} parent=5 // pred_check
      _
    $region62: #{encoder_fwd.15} parent=5 // pred_check_branch
      %359 = sbr.rel (%p356) target = $region64
    $region63: #{encoder_fwd.15} parent=5 // pred_region
      %s360 = ssub.s32 %s17, 1
      %p361 = scmp.lt.s32.totalorder %s22, 1
      %s362 = scalar_select %p361, %s22, 1
      %s363 = smul.addr %s362, 3
      %s364 = smul.addr %s363, 4
      %s365 = scalar_lea.vmem %s0, %s364
      %p366 = pneg %p43
      %p367 = pneg %p40
      %p368 = scmp.lt.s32.totalorder %s22, 1
      %s369 = scalar_select %p368, %s22, 1
      %s370 = smul.addr %s369, 3
      %s371 = scalar_lea.vmem %s1, %s370
      %p372 = pneg %p69
      %p373 = pneg %p66
      %p374 = scmp.lt.s32.totalorder %s22, 1
      %s375 = scalar_select %p374, %s22, 1
      %s376 = smul.addr %s375, 3
      %s377 = scalar_lea.vmem %s2, %s376
      %p378 = pneg %p95
      %p379 = pneg %p92
      %p380 = pneg %p116
      %p381 = pneg %p113
      %p382 = pneg %p137
      %p383 = pneg %p134
      %p384 = pneg %p158
      %p385 = pneg %p155
      %p386 = pneg %p179
      %p387 = pneg %p176
      %p388 = pneg %p200
      %p389 = pneg %p197
      %p390 = pneg %p221
      %p391 = pneg %p218
      %p392 = pneg %p242
      %p393 = pneg %p239
      %p394 = pneg %p263
      %p395 = pneg %p260
      %p396 = pneg %p289
      %p397 = pneg %p286
      %p398 = scmp.lt.s32.totalorder %s22, 1
      %s399 = scalar_select %p398, %s22, 1
      %s400 = smul.addr %s399, 12
      %s401 = smul.addr %s400, 4
      %s402 = scalar_lea.vmem %s11, %s401
      %p403 = scmp.lt.s32.totalorder %s22, 1
      %s404 = scalar_select %p403, %s22, 1
      %s405 = smul.addr %s404, 3
      %s406 = smul.addr %s405, 4
      %s407 = scalar_lea.vmem %s0, %s406
      %p408 = scmp.lt.s32.totalorder %s22, 1
      %s409 = scalar_select %p408, %s22, 1
      %s410 = smul.addr %s409, 3
      %s411 = scalar_lea.vmem %s1, %s410
      %p412 = scmp.lt.s32.totalorder %s22, 1
      %s413 = scalar_select %p412, %s22, 1
      %s414 = smul.addr %s413, 3
      %s415 = scalar_lea.vmem %s2, %s414
      %p416 = scmp.lt.s32.totalorder %s22, 1
      %s417 = scalar_select %p416, %s22, 1
      %s418 = smul.addr %s417, 12
      %s419 = smul.addr %s418, 4
      %s420 = scalar_lea.vmem %s11, %s419
      %v422 = vld [vmem:[%s407] sm:$0xff]
      %v423 = vld [vmem:[%s407 + $0x8] sm:$0xf]
      %v424 = vld [vmem:[%s411] sm:$0x7]
      %v425 = vld [vmem:[%s415] sm:$0x7]
      %v426 = vld [vmem:[%s3] sm:$0xf]
      %v427 = vld [vmem:[%s3 + $0x4] sm:$0xf]
      %v428 = vld [vmem:[%s4] sm:$0xff]
      %v429 = vld [vmem:[%s4 + $0x8] sm:$0xff]
      %v430 = vld [vmem:[%s5] sm:$0xff]
      %v431 = vld [vmem:[%s5 + $0x8] sm:$0xff]
      %v432 = vld [vmem:[%s6] sm:$0xff]
      %v433 = vld [vmem:[%s6 + $0x8] sm:$0xff]
      %v434 = vld [vmem:[%s7] sm:$0xf]
      %v435 = vld [vmem:[%s7 + $0x4] sm:$0xf]
      %v436 = vld [vmem:[%s7 + $0x8] sm:$0xf]
      %v437 = vld [vmem:[%s7 + $0xc] sm:$0xf]
      %v438 = vld [vmem:[%s8] sm:$0xff]
      %v439 = vld [vmem:[%s8 + $0x8] sm:$0xff]
      %v440 = vld [vmem:[%s8 + $0x10] sm:$0xff]
      %v441 = vld [vmem:[%s8 + $0x18] sm:$0xff]
      %443 = vset.pattern.permute.xlu0 0
      %444 = vperm.xlu0 %443, %v428
      %v445 = vpop.permute.xlu0 %444
      %448 = vset.pattern.permute.xlu0 0
      %449 = vperm.xlu0 %448, %v429
      %v450 = vpop.permute.xlu0 %449
      %v454 = vunpack.c.l.b16 %v426
      %v455 = vunpack.c.l.b16 %v427
      %v456 = vpack.c.b16 %v455, %v454
      %v459 = vunpack.c.l.b16 %v422
      %v460 = vunpack.c.h.b16 %v422
      %v461 = vunpack.c.l.b16 %v423
      %v462 = vpack.c.b16 %v459, %v459
      %v463 = vpack.c.b16 %v460, %v460
      %v464 = vpack.c.b16 %v461, %v461
      %vm465 = vcmask 64512
      %v467 = vsel %vm465, %v456, 0
      %vm469 = vcmask 1043456
      %v471 = vsel %vm469, %v462, 0
      %v474 = vsel %vm469, %v463, 0
      %v477 = vsel %vm469, %v464, 0
      %479 = vmatprep.subr.bf16.mxu0 0
      %480 = vmatpush1.bf16.msra.mxu0 0
      %481 = vmatprep.subr.bf16.mxu0 0
      %482 = vmatpush1.bf16.msra.mxu0 0
      %483 = vmatprep.subr.bf16.mxu0 0
      %484 = vmatpush1.bf16.msra.mxu0 0
      %485 = vmatprep.subr.bf16.mxu0 0
      %486 = vmatpush1.bf16.msra.mxu0 0
      %487 = vmatprep.subr.bf16.mxu0 0
      %488 = vmatpush1.bf16.msra.mxu0 0
      %489 = vmatprep.subr.bf16.mxu0 0
      %490 = vmatpush1.bf16.msra.mxu0 0
      %491 = vmatprep.subr.bf16.mxu0 0
      %492 = vmatpush1.bf16.msra.mxu0 0
      %493 = vmatprep.subr.bf16.mxu0 %v474
      %494 = vmatpush1.bf16.msra.mxu0 %v471
      %495 = vmatprep.subr.bf16.mxu0 0
      %496 = vmatpush2.bf16.msra.mxu0 0
      %497 = vmatprep.subr.bf16.mxu0 0
      %498 = vmatpush2.bf16.msra.mxu0 0
      %499 = vmatprep.subr.bf16.mxu0 0
      %500 = vmatpush2.bf16.msra.mxu0 0
      %501 = vmatprep.subr.bf16.mxu0 0
      %502 = vmatpush2.bf16.msra.mxu0 0
      %503 = vmatprep.subr.bf16.mxu0 0
      %504 = vmatpush2.bf16.msra.mxu0 0
      %505 = vmatprep.subr.bf16.mxu0 0
      %506 = vmatpush2.bf16.msra.mxu0 0
      %507 = vmatprep.subr.bf16.mxu0 0
      %508 = vmatpush2.bf16.msra.mxu0 0
      %509 = vmatprep.subr.bf16.mxu0 0
      %510 = vmatpush2.bf16.msra.mxu0 0
      %511 = vmatprep.mubr.bf16.mxu0 0
      %512 = vmatmul.mubr.bf16.gmra.mxu0 %v467
      %v513 = vpop.f32.mrf.mxu0
      %v514 = vadd.f32 %v445, %v513
      %v515 = vpop.f32.mrf.mxu0
      %v516 = vadd.f32 %v445, %v515
      %v517 = vpop.f32.mrf.mxu0
      %v518 = vadd.f32 %v450, %v517
      %v519 = vpop.f32.mrf.mxu0
      %v520 = vadd.f32 %v450, %v519
      %521 = vdwg.mxu0
      %522 = vmatprep.subr.bf16.mxu0 0
      %523 = vmatpush1.bf16.msra.mxu0 0
      %524 = vmatprep.subr.bf16.mxu0 0
      %525 = vmatpush1.bf16.msra.mxu0 0
      %526 = vmatprep.subr.bf16.mxu0 0
      %527 = vmatpush1.bf16.msra.mxu0 0
      %528 = vmatprep.subr.bf16.mxu0 0
      %529 = vmatpush1.bf16.msra.mxu0 0
      %530 = vmatprep.subr.bf16.mxu0 0
      %531 = vmatpush1.bf16.msra.mxu0 0
      %532 = vmatprep.subr.bf16.mxu0 0
      %533 = vmatpush1.bf16.msra.mxu0 0
      %534 = vmatprep.subr.bf16.mxu0 0
      %535 = vmatpush1.bf16.msra.mxu0 0
      %536 = vmatprep.subr.bf16.mxu0 0
      %537 = vmatpush1.bf16.msra.mxu0 %v477
      %538 = vmatprep.subr.bf16.mxu0 0
      %539 = vmatpush2.bf16.msra.mxu0 0
      %540 = vmatprep.subr.bf16.mxu0 0
      %541 = vmatpush2.bf16.msra.mxu0 0
      %542 = vmatprep.subr.bf16.mxu0 0
      %543 = vmatpush2.bf16.msra.mxu0 0
      %544 = vmatprep.subr.bf16.mxu0 0
      %545 = vmatpush2.bf16.msra.mxu0 0
      %546 = vmatprep.subr.bf16.mxu0 0
      %547 = vmatpush2.bf16.msra.mxu0 0
      %548 = vmatprep.subr.bf16.mxu0 0
      %549 = vmatpush2.bf16.msra.mxu0 0
      %550 = vmatprep.subr.bf16.mxu0 0
      %551 = vmatpush2.bf16.msra.mxu0 0
      %552 = vmatprep.subr.bf16.mxu0 0
      %553 = vmatpush2.bf16.msra.mxu0 0
      %554 = vmatprep.mubr.bf16.mxu0 0
      %555 = vmatmul.mubr.bf16.gmra.mxu0 %v467
      %v556 = vpop.f32.mrf.mxu0
      %v557 = vadd.f32 %v445, %v556
      %v558 = vpop.f32.mrf.mxu0
      %v559 = vpop.f32.mrf.mxu0
      %v560 = vadd.f32 %v450, %v559
      %v561 = vpop.f32.mrf.mxu0
      %562 = vdwg.mxu0
      %v563 = vmax.f32 %v514, 0.0
      %v564 = vmax.f32 %v516, 0.0
      %v565 = vmax.f32 %v557, 0.0
      %v566 = vmax.f32 %v518, 0.0
      %v567 = vmax.f32 %v520, 0.0
      %v568 = vmax.f32 %v560, 0.0
      %v570 = vlaneseq
      %v571 = vshrl.u32 %v570, 7
      %v572 = vsub.s32 0, %v571
      %v573 = vrot.slane %v424, %v572
      %v574 = vlaneseq
      %v575 = vshrl.u32 %v574, 7
      %v576 = vsub.s32 1, %v575
      %v577 = vrot.slane %v424, %v576
      %v578 = vlaneseq
      %v579 = vshrl.u32 %v578, 7
      %v580 = vsub.s32 2, %v579
      %v581 = vrot.slane %v424, %v580
      %v585 = vmul.f32 %v563, %v573
      %v586 = vmul.f32 %v564, %v577
      %v587 = vmul.f32 %v565, %v581
      %v588 = vmul.f32 %v566, %v573
      %v589 = vmul.f32 %v567, %v577
      %v590 = vmul.f32 %v568, %v581
      %591 = vrot.lane.b32.xlu0 %v585, 19
      %v592 = vpop.permute.xlu0 %591
      %593 = vrot.lane.b32.xlu0 %v588, 19
      %v594 = vpop.permute.xlu0 %593
      %595 = vrot.lane.b32.xlu0 %v586, 19
      %v596 = vpop.permute.xlu0 %595
      %597 = vrot.lane.b32.xlu0 %v589, 19
      %v598 = vpop.permute.xlu0 %597
      %599 = vrot.lane.b32.xlu0 %v587, 19
      %v600 = vpop.permute.xlu0 %599
      %601 = vrot.lane.b32.xlu0 %v590, 19
      %v602 = vpop.permute.xlu0 %601
      %v603 = vlaneseq
      %v604 = vand.u32 %v603, 127
      %vm605 = vcmp.lt.s32.totalorder %v604, 19
      %v606 = vsel %vm605, %v596, %v600
      %v607 = vsel %vm605, %v598, %v602
      %v608 = vsel %vm605, %v592, %v596
      %v609 = vsel %vm605, %v594, %v598
      %v610 = vsel %vm605, %v600, %v592
      %v611 = vsel %vm605, %v602, %v594
      %v612 = vpack.c.bf16 %v611, %v610
      %v613 = vpack.c.bf16 %v609, %v608
      %v614 = vpack.c.bf16 %v607, %v606
      %615 = vrot.lane.b32.xlu0 %v585, 18
      %v616 = vpop.permute.xlu0 %615
      %617 = vrot.lane.b32.xlu0 %v588, 18
      %v618 = vpop.permute.xlu0 %617
      %619 = vrot.lane.b32.xlu0 %v586, 18
      %v620 = vpop.permute.xlu0 %619
      %621 = vrot.lane.b32.xlu0 %v589, 18
      %v622 = vpop.permute.xlu0 %621
      %623 = vrot.lane.b32.xlu0 %v587, 18
      %v624 = vpop.permute.xlu0 %623
      %625 = vrot.lane.b32.xlu0 %v590, 18
      %v626 = vpop.permute.xlu0 %625
      %vm627 = vcmp.lt.s32.totalorder %v604, 18
      %v628 = vsel %vm627, %v620, %v624
      %v629 = vsel %vm627, %v622, %v626
      %v630 = vsel %vm627, %v616, %v620
      %v631 = vsel %vm627, %v618, %v622
      %v632 = vsel %vm627, %v624, %v616
      %v633 = vsel %vm627, %v626, %v618
      %v634 = vpack.c.bf16 %v633, %v632
      %v635 = vpack.c.bf16 %v631, %v630
      %v636 = vpack.c.bf16 %v629, %v628
      %637 = vrot.lane.b32.xlu0 %v585, 17
      %v638 = vpop.permute.xlu0 %637
      %639 = vrot.lane.b32.xlu0 %v588, 17
      %v640 = vpop.permute.xlu0 %639
      %641 = vrot.lane.b32.xlu0 %v586, 17
      %v642 = vpop.permute.xlu0 %641
      %643 = vrot.lane.b32.xlu0 %v589, 17
      %v644 = vpop.permute.xlu0 %643
      %645 = vrot.lane.b32.xlu0 %v587, 17
      %v646 = vpop.permute.xlu0 %645
      %647 = vrot.lane.b32.xlu0 %v590, 17
      %v648 = vpop.permute.xlu0 %647
      %vm649 = vcmp.lt.s32.totalorder %v604, 17
      %v650 = vsel %vm649, %v642, %v646
      %v651 = vsel %vm649, %v644, %v648
      %v652 = vsel %vm649, %v638, %v642
      %v653 = vsel %vm649, %v640, %v644
      %v654 = vsel %vm649, %v646, %v638
      %v655 = vsel %vm649, %v648, %v640
      %v656 = vpack.c.bf16 %v655, %v654
      %v657 = vpack.c.bf16 %v653, %v652
      %v658 = vpack.c.bf16 %v651, %v650
      %659 = vrot.lane.b32.xlu0 %v585, 1
      %v660 = vpop.permute.xlu0 %659
      %661 = vrot.lane.b32.xlu0 %v588, 1
      %v662 = vpop.permute.xlu0 %661
      %663 = vrot.lane.b32.xlu0 %v586, 1
      %v664 = vpop.permute.xlu0 %663
      %665 = vrot.lane.b32.xlu0 %v589, 1
      %v666 = vpop.permute.xlu0 %665
      %667 = vrot.lane.b32.xlu0 %v587, 1
      %v668 = vpop.permute.xlu0 %667
      %669 = vrot.lane.b32.xlu0 %v590, 1
      %v670 = vpop.permute.xlu0 %669
      %vm671 = vcmp.lt.s32.totalorder %v604, 1
      %v672 = vsel %vm671, %v664, %v668
      %v673 = vsel %vm671, %v666, %v670
      %v674 = vsel %vm671, %v660, %v664
      %v675 = vsel %vm671, %v662, %v666
      %v676 = vsel %vm671, %v668, %v660
      %v677 = vsel %vm671, %v670, %v662
      %v678 = vpack.c.bf16 %v677, %v676
      %v679 = vpack.c.bf16 %v675, %v674
      %v680 = vpack.c.bf16 %v673, %v672
      %v681 = vpack.c.bf16 %v588, %v585
      %v682 = vpack.c.bf16 %v589, %v586
      %v683 = vpack.c.bf16 %v590, %v587
      %684 = vrot.lane.b32.xlu0 %v585, 127
      %v685 = vpop.permute.xlu0 %684
      %686 = vrot.lane.b32.xlu0 %v588, 127
      %v687 = vpop.permute.xlu0 %686
      %688 = vrot.lane.b32.xlu0 %v586, 127
      %v689 = vpop.permute.xlu0 %688
      %690 = vrot.lane.b32.xlu0 %v589, 127
      %v691 = vpop.permute.xlu0 %690
      %692 = vrot.lane.b32.xlu0 %v587, 127
      %v693 = vpop.permute.xlu0 %692
      %694 = vrot.lane.b32.xlu0 %v590, 127
      %v695 = vpop.permute.xlu0 %694
      %vm696 = vcmp.lt.s32.totalorder %v604, 127
      %v697 = vsel %vm696, %v689, %v693
      %v698 = vsel %vm696, %v691, %v695
      %v699 = vsel %vm696, %v685, %v689
      %v700 = vsel %vm696, %v687, %v691
      %v701 = vsel %vm696, %v693, %v685
      %v702 = vsel %vm696, %v695, %v687
      %v703 = vpack.c.bf16 %v700, %v699
      %v704 = vpack.c.bf16 %v698, %v697
      %v705 = vpack.c.bf16 %v702, %v701
      %706 = vrot.lane.b32.xlu0 %v585, 111
      %v707 = vpop.permute.xlu0 %706
      %708 = vrot.lane.b32.xlu0 %v588, 111
      %v709 = vpop.permute.xlu0 %708
      %710 = vrot.lane.b32.xlu0 %v586, 111
      %v711 = vpop.permute.xlu0 %710
      %712 = vrot.lane.b32.xlu0 %v589, 111
      %v713 = vpop.permute.xlu0 %712
      %714 = vrot.lane.b32.xlu0 %v587, 111
      %v715 = vpop.permute.xlu0 %714
      %716 = vrot.lane.b32.xlu0 %v590, 111
      %v717 = vpop.permute.xlu0 %716
      %vm718 = vcmp.lt.s32.totalorder %v604, 111
      %v719 = vsel %vm718, %v711, %v715
      %v720 = vsel %vm718, %v713, %v717
      %v721 = vsel %vm718, %v707, %v711
      %v722 = vsel %vm718, %v709, %v713
      %v723 = vsel %vm718, %v715, %v707
      %v724 = vsel %vm718, %v717, %v709
      %v725 = vpack.c.bf16 %v722, %v721
      %v726 = vpack.c.bf16 %v720, %v719
      %v727 = vpack.c.bf16 %v724, %v723
      %728 = vrot.lane.b32.xlu0 %v585, 110
      %v729 = vpop.permute.xlu0 %728
      %730 = vrot.lane.b32.xlu0 %v588, 110
      %v731 = vpop.permute.xlu0 %730
      %732 = vrot.lane.b32.xlu0 %v586, 110
      %v733 = vpop.permute.xlu0 %732
      %734 = vrot.lane.b32.xlu0 %v589, 110
      %v735 = vpop.permute.xlu0 %734
      %736 = vrot.lane.b32.xlu0 %v587, 110
      %v737 = vpop.permute.xlu0 %736
      %738 = vrot.lane.b32.xlu0 %v590, 110
      %v739 = vpop.permute.xlu0 %738
      %vm740 = vcmp.lt.s32.totalorder %v604, 110
      %v741 = vsel %vm740, %v733, %v737
      %v742 = vsel %vm740, %v735, %v739
      %v743 = vsel %vm740, %v729, %v733
      %v744 = vsel %vm740, %v731, %v735
      %v745 = vsel %vm740, %v737, %v729
      %v746 = vsel %vm740, %v739, %v731
      %v747 = vpack.c.bf16 %v744, %v743
      %v748 = vpack.c.bf16 %v742, %v741
      %v749 = vpack.c.bf16 %v746, %v745
      %750 = vrot.lane.b32.xlu0 %v585, 109
      %v751 = vpop.permute.xlu0 %750
      %752 = vrot.lane.b32.xlu0 %v588, 109
      %v753 = vpop.permute.xlu0 %752
      %754 = vrot.lane.b32.xlu0 %v586, 109
      %v755 = vpop.permute.xlu0 %754
      %756 = vrot.lane.b32.xlu0 %v589, 109
      %v757 = vpop.permute.xlu0 %756
      %758 = vrot.lane.b32.xlu0 %v587, 109
      %v759 = vpop.permute.xlu0 %758
      %760 = vrot.lane.b32.xlu0 %v590, 109
      %v761 = vpop.permute.xlu0 %760
      %vm762 = vcmp.lt.s32.totalorder %v604, 109
      %v763 = vsel %vm762, %v755, %v759
      %v764 = vsel %vm762, %v757, %v761
      %v765 = vsel %vm762, %v751, %v755
      %v766 = vsel %vm762, %v753, %v757
      %v767 = vsel %vm762, %v759, %v751
      %v768 = vsel %vm762, %v761, %v753
      %v769 = vpack.c.bf16 %v766, %v765
      %v770 = vpack.c.bf16 %v764, %v763
      %v771 = vpack.c.bf16 %v768, %v767
      %v774 = vunpack.c.l.b16 %v430
      %v775 = vunpack.c.h.b16 %v430
      %v776 = vunpack.c.l.b16 %v431
      %v777 = vunpack.c.h.b16 %v431
      %v778 = vpack.c.b16 %v776, %v774
      %v779 = vpack.c.b16 %v777, %v775
      %vm781 = vcmask 130048
      %v783 = vsel %vm781, %v779, 0
      %785 = vmatprep.subr.bf16.mxu0 %v748
      %786 = vmatpush1.bf16.msra.mxu0 %v747
      %787 = vmatprep.subr.bf16.mxu0 %v726
      %788 = vmatpush1.bf16.msra.mxu0 %v725
      %789 = vmatprep.subr.bf16.mxu0 %v704
      %790 = vmatpush1.bf16.msra.mxu0 %v703
      %791 = vmatprep.subr.bf16.mxu0 %v682
      %792 = vmatpush1.bf16.msra.mxu0 %v681
      %793 = vmatprep.subr.bf16.mxu0 %v679
      %794 = vmatpush1.bf16.msra.mxu0 %v678
      %795 = vmatprep.subr.bf16.mxu0 %v657
      %796 = vmatpush1.bf16.msra.mxu0 %v656
      %797 = vmatprep.subr.bf16.mxu0 %v635
      %798 = vmatpush1.bf16.msra.mxu0 %v634
      %799 = vmatprep.subr.bf16.mxu0 %v613
      %800 = vmatpush1.bf16.msra.mxu0 %v612
      %801 = vmatprep.subr.bf16.mxu0 0
      %802 = vmatpush2.bf16.msra.mxu0 0
      %803 = vmatprep.subr.bf16.mxu0 0
      %804 = vmatpush2.bf16.msra.mxu0 0
      %805 = vmatprep.subr.bf16.mxu0 0
      %806 = vmatpush2.bf16.msra.mxu0 0
      %807 = vmatprep.subr.bf16.mxu0 0
      %808 = vmatpush2.bf16.msra.mxu0 0
      %809 = vmatprep.subr.bf16.mxu0 0
      %810 = vmatpush2.bf16.msra.mxu0 0
      %811 = vmatprep.subr.bf16.mxu0 0
      %812 = vmatpush2.bf16.msra.mxu0 0
      %813 = vmatprep.subr.bf16.mxu0 0
      %814 = vmatpush2.bf16.msra.mxu0 0
      %815 = vmatprep.subr.bf16.mxu0 %v770
      %816 = vmatpush2.bf16.msra.mxu0 %v769
      %817 = vmatprep.mubr.bf16.mxu0 %v783
      %818 = vmatmul.mubr.bf16.gmra.mxu0 %v778
      %v819 = vpop.f32.mrf.mxu0
      %v820 = vadd.f32 0.0, %v819
      %v821 = vpop.f32.mrf.mxu0
      %v822 = vadd.f32 0.0, %v821
      %v823 = vpop.f32.mrf.mxu0
      %v824 = vadd.f32 0.0, %v823
      %v825 = vpop.f32.mrf.mxu0
      %v826 = vadd.f32 0.0, %v825
      %827 = vdwg.mxu0
      %828 = vmatprep.subr.bf16.mxu0 0
      %829 = vmatpush1.bf16.msra.mxu0 %v749
      %830 = vmatprep.subr.bf16.mxu0 0
      %831 = vmatpush1.bf16.msra.mxu0 %v727
      %832 = vmatprep.subr.bf16.mxu0 0
      %833 = vmatpush1.bf16.msra.mxu0 %v705
      %834 = vmatprep.subr.bf16.mxu0 0
      %835 = vmatpush1.bf16.msra.mxu0 %v683
      %836 = vmatprep.subr.bf16.mxu0 0
      %837 = vmatpush1.bf16.msra.mxu0 %v680
      %838 = vmatprep.subr.bf16.mxu0 0
      %839 = vmatpush1.bf16.msra.mxu0 %v658
      %840 = vmatprep.subr.bf16.mxu0 0
      %841 = vmatpush1.bf16.msra.mxu0 %v636
      %842 = vmatprep.subr.bf16.mxu0 0
      %843 = vmatpush1.bf16.msra.mxu0 %v614
      %844 = vmatprep.subr.bf16.mxu0 0
      %845 = vmatpush2.bf16.msra.mxu0 0
      %846 = vmatprep.subr.bf16.mxu0 0
      %847 = vmatpush2.bf16.msra.mxu0 0
      %848 = vmatprep.subr.bf16.mxu0 0
      %849 = vmatpush2.bf16.msra.mxu0 0
      %850 = vmatprep.subr.bf16.mxu0 0
      %851 = vmatpush2.bf16.msra.mxu0 0
      %852 = vmatprep.subr.bf16.mxu0 0
      %853 = vmatpush2.bf16.msra.mxu0 0
      %854 = vmatprep.subr.bf16.mxu0 0
      %855 = vmatpush2.bf16.msra.mxu0 0
      %856 = vmatprep.subr.bf16.mxu0 0
      %857 = vmatpush2.bf16.msra.mxu0 0
      %858 = vmatprep.subr.bf16.mxu0 0
      %859 = vmatpush2.bf16.msra.mxu0 %v771
      %860 = vmatprep.mubr.bf16.mxu0 %v783
      %861 = vmatmul.mubr.bf16.gmra.mxu0 %v778
      %v862 = vpop.f32.mrf.mxu0
      %v863 = vadd.f32 0.0, %v862
      %v864 = vpop.f32.mrf.mxu0
      %v865 = vpop.f32.mrf.mxu0
      %v866 = vadd.f32 0.0, %v865
      %v867 = vpop.f32.mrf.mxu0
      %868 = vdwg.mxu0
      %v870 = vlaneseq
      %v871 = vshrl.u32 %v870, 7
      %v872 = vsub.s32 0, %v871
      %v873 = vrot.slane %v425, %v872
      %v874 = vlaneseq
      %v875 = vshrl.u32 %v874, 7
      %v876 = vsub.s32 1, %v875
      %v877 = vrot.slane %v425, %v876
      %v878 = vlaneseq
      %v879 = vshrl.u32 %v878, 7
      %v880 = vsub.s32 2, %v879
      %v881 = vrot.slane %v425, %v880
      %v885 = vmul.f32 %v820, %v873
      %v886 = vmul.f32 %v822, %v877
      %v887 = vmul.f32 %v863, %v881
      %v888 = vmul.f32 %v824, %v873
      %v889 = vmul.f32 %v826, %v877
      %v890 = vmul.f32 %v866, %v881
      %892 = vset.pattern.permute.xlu0 0
      %893 = vperm.xlu0 %892, %v432
      %v894 = vpop.permute.xlu0 %893
      %897 = vset.pattern.permute.xlu0 0
      %898 = vperm.xlu0 %897, %v433
      %v899 = vpop.permute.xlu0 %898
      %v901 = vadd.f32 %v885, %v894
      %v902 = vadd.f32 %v886, %v894
      %v903 = vadd.f32 %v887, %v894
      %v904 = vadd.f32 %v888, %v899
      %v905 = vadd.f32 %v889, %v899
      %v906 = vadd.f32 %v890, %v899
      %v907 = vmax.f32 %v901, 0.0
      %v908 = vmax.f32 %v902, 0.0
      %v909 = vmax.f32 %v903, 0.0
      %v910 = vmax.f32 %v904, 0.0
      %v911 = vmax.f32 %v905, 0.0
      %v912 = vmax.f32 %v906, 0.0
      %v913 = vpack.c.bf16 %v910, %v907
      %v914 = vpack.c.bf16 %v911, %v908
      %v915 = vpack.c.bf16 %v912, %v909
      %917 = vset.pattern.permute.xlu0 0
      %918 = vperm.xlu0 %917, %v438
      %v919 = vpop.permute.xlu0 %918
      %922 = vset.pattern.permute.xlu0 0
      %923 = vperm.xlu0 %922, %v439
      %v924 = vpop.permute.xlu0 %923
      %927 = vset.pattern.permute.xlu0 0
      %928 = vperm.xlu0 %927, %v440
      %v929 = vpop.permute.xlu0 %928
      %932 = vset.pattern.permute.xlu0 0
      %933 = vperm.xlu0 %932, %v441
      %v934 = vpop.permute.xlu0 %933
      %v940 = vunpack.c.l.b16 %v434
      %v941 = vunpack.c.l.b16 %v435
      %v942 = vunpack.c.l.b16 %v436
      %v943 = vunpack.c.l.b16 %v437
      %v944 = vpack.c.b16 %v941, %v940
      %v945 = vpack.c.b16 %v943, %v942
      %v947 = vsel %vm781, %v944, 0
      %v950 = vsel %vm781, %v945, 0
      %952 = vmatprep.subr.bf16.mxu0 0
      %953 = vmatpush1.bf16.msra.mxu0 0
      %954 = vmatprep.subr.bf16.mxu0 0
      %955 = vmatpush1.bf16.msra.mxu0 0
      %956 = vmatprep.subr.bf16.mxu0 0
      %957 = vmatpush1.bf16.msra.mxu0 0
      %958 = vmatprep.subr.bf16.mxu0 0
      %959 = vmatpush1.bf16.msra.mxu0 0
      %960 = vmatprep.subr.bf16.mxu0 0
      %961 = vmatpush1.bf16.msra.mxu0 0
      %962 = vmatprep.subr.bf16.mxu0 0
      %963 = vmatpush1.bf16.msra.mxu0 0
      %964 = vmatprep.subr.bf16.mxu0 0
      %965 = vmatpush1.bf16.msra.mxu0 0
      %966 = vmatprep.subr.bf16.mxu0 %v914
      %967 = vmatpush1.bf16.msra.mxu0 %v913
      %968 = vmatprep.subr.bf16.mxu0 0
      %969 = vmatpush2.bf16.msra.mxu0 0
      %970 = vmatprep.subr.bf16.mxu0 0
      %971 = vmatpush2.bf16.msra.mxu0 0
      %972 = vmatprep.subr.bf16.mxu0 0
      %973 = vmatpush2.bf16.msra.mxu0 0
      %974 = vmatprep.subr.bf16.mxu0 0
      %975 = vmatpush2.bf16.msra.mxu0 0
      %976 = vmatprep.subr.bf16.mxu0 0
      %977 = vmatpush2.bf16.msra.mxu0 0
      %978 = vmatprep.subr.bf16.mxu0 0
      %979 = vmatpush2.bf16.msra.mxu0 0
      %980 = vmatprep.subr.bf16.mxu0 0
      %981 = vmatpush2.bf16.msra.mxu0 0
      %982 = vmatprep.subr.bf16.mxu0 0
      %983 = vmatpush2.bf16.msra.mxu0 0
      %984 = vmatprep.mubr.bf16.mxu0 0
      %985 = vmatmul.mubr.bf16.gmra.mxu0 %v947
      %v986 = vpop.f32.mrf.mxu0
      %v987 = vadd.f32 %v919, %v986
      %v988 = vpop.f32.mrf.mxu0
      %v989 = vadd.f32 %v919, %v988
      %v990 = vpop.f32.mrf.mxu0
      %v991 = vadd.f32 %v924, %v990
      %v992 = vpop.f32.mrf.mxu0
      %v993 = vadd.f32 %v924, %v992
      %994 = vmatprep.mubr.bf16.mxu0 0
      %995 = vmatmul.mubr.bf16.gmra.mxu0 %v950
      %v996 = vpop.f32.mrf.mxu0
      %v997 = vadd.f32 %v929, %v996
      %v998 = vpop.f32.mrf.mxu0
      %v999 = vadd.f32 %v929, %v998
      %v1000 = vpop.f32.mrf.mxu0
      %v1001 = vadd.f32 %v934, %v1000
      %v1002 = vpop.f32.mrf.mxu0
      %v1003 = vadd.f32 %v934, %v1002
      %1004 = vdwg.mxu0
      %1005 = vmatprep.subr.bf16.mxu0 0
      %1006 = vmatpush1.bf16.msra.mxu0 0
      %1007 = vmatprep.subr.bf16.mxu0 0
      %1008 = vmatpush1.bf16.msra.mxu0 0
      %1009 = vmatprep.subr.bf16.mxu0 0
      %1010 = vmatpush1.bf16.msra.mxu0 0
      %1011 = vmatprep.subr.bf16.mxu0 0
      %1012 = vmatpush1.bf16.msra.mxu0 0
      %1013 = vmatprep.subr.bf16.mxu0 0
      %1014 = vmatpush1.bf16.msra.mxu0 0
      %1015 = vmatprep.subr.bf16.mxu0 0
      %1016 = vmatpush1.bf16.msra.mxu0 0
      %1017 = vmatprep.subr.bf16.mxu0 0
      %1018 = vmatpush1.bf16.msra.mxu0 0
      %1019 = vmatprep.subr.bf16.mxu0 0
      %1020 = vmatpush1.bf16.msra.mxu0 %v915
      %1021 = vmatprep.subr.bf16.mxu0 0
      %1022 = vmatpush2.bf16.msra.mxu0 0
      %1023 = vmatprep.subr.bf16.mxu0 0
      %1024 = vmatpush2.bf16.msra.mxu0 0
      %1025 = vmatprep.subr.bf16.mxu0 0
      %1026 = vmatpush2.bf16.msra.mxu0 0
      %1027 = vmatprep.subr.bf16.mxu0 0
      %1028 = vmatpush2.bf16.msra.mxu0 0
      %1029 = vmatprep.subr.bf16.mxu0 0
      %1030 = vmatpush2.bf16.msra.mxu0 0
      %1031 = vmatprep.subr.bf16.mxu0 0
      %1032 = vmatpush2.bf16.msra.mxu0 0
      %1033 = vmatprep.subr.bf16.mxu0 0
      %1034 = vmatpush2.bf16.msra.mxu0 0
      %1035 = vmatprep.subr.bf16.mxu0 0
      %1036 = vmatpush2.bf16.msra.mxu0 0
      %1037 = vmatprep.mubr.bf16.mxu0 0
      %1038 = vmatmul.mubr.bf16.gmra.mxu0 %v947
      %v1039 = vpop.f32.mrf.mxu0
      %v1040 = vadd.f32 %v919, %v1039
      %v1041 = vpop.f32.mrf.mxu0
      %v1042 = vpop.f32.mrf.mxu0
      %v1043 = vadd.f32 %v924, %v1042
      %v1044 = vpop.f32.mrf.mxu0
      %1045 = vmatprep.mubr.bf16.mxu0 0
      %1046 = vmatmul.mubr.bf16.gmra.mxu0 %v950
      %v1047 = vpop.f32.mrf.mxu0
      %v1048 = vadd.f32 %v929, %v1047
      %v1049 = vpop.f32.mrf.mxu0
      %v1050 = vpop.f32.mrf.mxu0
      %v1051 = vadd.f32 %v934, %v1050
      %v1052 = vpop.f32.mrf.mxu0
      %1053 = vdwg.mxu0
      %v1054 = vld [vmem:[%s9] sm:$0xf]
      %v1055 = vld [vmem:[%s9 + $0x4] sm:$0xf]
      %v1056 = vld [vmem:[%s9 + $0x8] sm:$0xf]
      %v1057 = vld [vmem:[%s9 + $0xc] sm:$0xf]
      %v1058 = vld [vmem:[%s10] sm:$0xff]
      %v1059 = vld [vmem:[%s10 + $0x8] sm:$0xff]
      %v1060 = vld [vmem:[%s10 + $0x10] sm:$0xff]
      %v1061 = vld [vmem:[%s10 + $0x18] sm:$0xff]
      %1063 = vset.pattern.permute.xlu0 0
      %1064 = vperm.xlu0 %1063, %v1058
      %v1065 = vpop.permute.xlu0 %1064
      %1068 = vset.pattern.permute.xlu0 0
      %1069 = vperm.xlu0 %1068, %v1059
      %v1070 = vpop.permute.xlu0 %1069
      %1073 = vset.pattern.permute.xlu0 0
      %1074 = vperm.xlu0 %1073, %v1060
      %v1075 = vpop.permute.xlu0 %1074
      %1078 = vset.pattern.permute.xlu0 0
      %1079 = vperm.xlu0 %1078, %v1061
      %v1080 = vpop.permute.xlu0 %1079
      %v1086 = vunpack.c.l.b16 %v1054
      %v1087 = vunpack.c.l.b16 %v1055
      %v1088 = vunpack.c.l.b16 %v1056
      %v1089 = vunpack.c.l.b16 %v1057
      %v1090 = vpack.c.b16 %v1087, %v1086
      %v1091 = vpack.c.b16 %v1089, %v1088
      %v1093 = vsel %vm465, %v1090, 0
      %v1096 = vsel %vm465, %v1091, 0
      %1098 = vmatprep.subr.bf16.mxu0 0
      %1099 = vmatpush1.bf16.msra.mxu0 0
      %1100 = vmatprep.subr.bf16.mxu0 0
      %1101 = vmatpush1.bf16.msra.mxu0 0
      %1102 = vmatprep.subr.bf16.mxu0 0
      %1103 = vmatpush1.bf16.msra.mxu0 0
      %1104 = vmatprep.subr.bf16.mxu0 0
      %1105 = vmatpush1.bf16.msra.mxu0 0
      %1106 = vmatprep.subr.bf16.mxu0 0
      %1107 = vmatpush1.bf16.msra.mxu0 0
      %1108 = vmatprep.subr.bf16.mxu0 0
      %1109 = vmatpush1.bf16.msra.mxu0 0
      %1110 = vmatprep.subr.bf16.mxu0 0
      %1111 = vmatpush1.bf16.msra.mxu0 0
      %1112 = vmatprep.subr.bf16.mxu0 %v474
      %1113 = vmatpush1.bf16.msra.mxu0 %v471
      %1114 = vmatprep.subr.bf16.mxu0 0
      %1115 = vmatpush2.bf16.msra.mxu0 0
      %1116 = vmatprep.subr.bf16.mxu0 0
      %1117 = vmatpush2.bf16.msra.mxu0 0
      %1118 = vmatprep.subr.bf16.mxu0 0
      %1119 = vmatpush2.bf16.msra.mxu0 0
      %1120 = vmatprep.subr.bf16.mxu0 0
      %1121 = vmatpush2.bf16.msra.mxu0 0
      %1122 = vmatprep.subr.bf16.mxu0 0
      %1123 = vmatpush2.bf16.msra.mxu0 0
      %1124 = vmatprep.subr.bf16.mxu0 0
      %1125 = vmatpush2.bf16.msra.mxu0 0
      %1126 = vmatprep.subr.bf16.mxu0 0
      %1127 = vmatpush2.bf16.msra.mxu0 0
      %1128 = vmatprep.subr.bf16.mxu0 0
      %1129 = vmatpush2.bf16.msra.mxu0 0
      %1130 = vmatprep.mubr.bf16.mxu0 0
      %1131 = vmatmul.mubr.bf16.gmra.mxu0 %v1093
      %v1132 = vpop.f32.mrf.mxu0
      %v1133 = vadd.f32 %v1065, %v1132
      %v1134 = vpop.f32.mrf.mxu0
      %v1135 = vadd.f32 %v1065, %v1134
      %v1136 = vpop.f32.mrf.mxu0
      %v1137 = vadd.f32 %v1070, %v1136
      %v1138 = vpop.f32.mrf.mxu0
      %v1139 = vadd.f32 %v1070, %v1138
      %1140 = vmatprep.mubr.bf16.mxu0 0
      %1141 = vmatmul.mubr.bf16.gmra.mxu0 %v1096
      %v1142 = vpop.f32.mrf.mxu0
      %v1143 = vadd.f32 %v1075, %v1142
      %v1144 = vpop.f32.mrf.mxu0
      %v1145 = vadd.f32 %v1075, %v1144
      %v1146 = vpop.f32.mrf.mxu0
      %v1147 = vadd.f32 %v1080, %v1146
      %v1148 = vpop.f32.mrf.mxu0
      %v1149 = vadd.f32 %v1080, %v1148
      %1150 = vdwg.mxu0
      %1151 = vmatprep.subr.bf16.mxu0 0
      %1152 = vmatpush1.bf16.msra.mxu0 0
      %1153 = vmatprep.subr.bf16.mxu0 0
      %1154 = vmatpush1.bf16.msra.mxu0 0
      %1155 = vmatprep.subr.bf16.mxu0 0
      %1156 = vmatpush1.bf16.msra.mxu0 0
      %1157 = vmatprep.subr.bf16.mxu0 0
      %1158 = vmatpush1.bf16.msra.mxu0 0
      %1159 = vmatprep.subr.bf16.mxu0 0
      %1160 = vmatpush1.bf16.msra.mxu0 0
      %1161 = vmatprep.subr.bf16.mxu0 0
      %1162 = vmatpush1.bf16.msra.mxu0 0
      %1163 = vmatprep.subr.bf16.mxu0 0
      %1164 = vmatpush1.bf16.msra.mxu0 0
      %1165 = vmatprep.subr.bf16.mxu0 0
      %1166 = vmatpush1.bf16.msra.mxu0 %v477
      %1167 = vmatprep.subr.bf16.mxu0 0
      %1168 = vmatpush2.bf16.msra.mxu0 0
      %1169 = vmatprep.subr.bf16.mxu0 0
      %1170 = vmatpush2.bf16.msra.mxu0 0
      %1171 = vmatprep.subr.bf16.mxu0 0
      %1172 = vmatpush2.bf16.msra.mxu0 0
      %1173 = vmatprep.subr.bf16.mxu0 0
      %1174 = vmatpush2.bf16.msra.mxu0 0
      %1175 = vmatprep.subr.bf16.mxu0 0
      %1176 = vmatpush2.bf16.msra.mxu0 0
      %1177 = vmatprep.subr.bf16.mxu0 0
      %1178 = vmatpush2.bf16.msra.mxu0 0
      %1179 = vmatprep.subr.bf16.mxu0 0
      %1180 = vmatpush2.bf16.msra.mxu0 0
      %1181 = vmatprep.subr.bf16.mxu0 0
      %1182 = vmatpush2.bf16.msra.mxu0 0
      %1183 = vmatprep.mubr.bf16.mxu0 0
      %1184 = vmatmul.mubr.bf16.gmra.mxu0 %v1093
      %v1185 = vpop.f32.mrf.mxu0
      %v1186 = vadd.f32 %v1065, %v1185
      %v1187 = vpop.f32.mrf.mxu0
      %v1188 = vpop.f32.mrf.mxu0
      %v1189 = vadd.f32 %v1070, %v1188
      %v1190 = vpop.f32.mrf.mxu0
      %1191 = vmatprep.mubr.bf16.mxu0 0
      %1192 = vmatmul.mubr.bf16.gmra.mxu0 %v1096
      %v1193 = vpop.f32.mrf.mxu0
      %v1194 = vadd.f32 %v1075, %v1193
      %v1195 = vpop.f32.mrf.mxu0
      %v1196 = vpop.f32.mrf.mxu0
      %v1197 = vadd.f32 %v1080, %v1196
      %v1198 = vpop.f32.mrf.mxu0
      %1199 = vdwg.mxu0
      %v1200 = vadd.f32 %v987, %v1133
      %v1201 = vadd.f32 %v989, %v1135
      %v1202 = vadd.f32 %v1040, %v1186
      %v1203 = vadd.f32 %v991, %v1137
      %v1204 = vadd.f32 %v993, %v1139
      %v1205 = vadd.f32 %v1043, %v1189
      %v1206 = vadd.f32 %v997, %v1143
      %v1207 = vadd.f32 %v999, %v1145
      %v1208 = vadd.f32 %v1048, %v1194
      %v1209 = vadd.f32 %v1001, %v1147
      %v1210 = vadd.f32 %v1003, %v1149
      %v1211 = vadd.f32 %v1051, %v1197
      %v1212 = vmax.f32 %v1200, 0.0
      %v1213 = vmax.f32 %v1201, 0.0
      %v1214 = vmax.f32 %v1202, 0.0
      %v1215 = vmax.f32 %v1203, 0.0
      %v1216 = vmax.f32 %v1204, 0.0
      %v1217 = vmax.f32 %v1205, 0.0
      %v1218 = vmax.f32 %v1206, 0.0
      %v1219 = vmax.f32 %v1207, 0.0
      %v1220 = vmax.f32 %v1208, 0.0
      %v1221 = vmax.f32 %v1209, 0.0
      %v1222 = vmax.f32 %v1210, 0.0
      %v1223 = vmax.f32 %v1211, 0.0
      %v1224 = vpack.c.bf16 %v1215, %v1212
      %v1225 = vpack.c.bf16 %v1216, %v1213
      %v1226 = vpack.c.bf16 %v1217, %v1214
      %v1227 = vpack.c.bf16 %v1221, %v1218
      %v1228 = vpack.c.bf16 %v1222, %v1219
      %v1229 = vpack.c.bf16 %v1223, %v1220
      %v1236 = vunpack.c.l.b16 %v1224
      %v1237 = vunpack.c.l.b16 %v1225
      %v1238 = vunpack.c.l.b16 %v1226
      %v1239 = vunpack.c.h.b16 %v1224
      %v1240 = vunpack.c.h.b16 %v1225
      %v1241 = vunpack.c.h.b16 %v1226
      %v1242 = vunpack.c.l.b16 %v1227
      %v1243 = vunpack.c.l.b16 %v1228
      %v1244 = vunpack.c.l.b16 %v1229
      %v1245 = vunpack.c.h.b16 %v1227
      %v1246 = vunpack.c.h.b16 %v1228
      %v1247 = vunpack.c.h.b16 %v1229
      %v1248 = vpack.c.b16 %v1237, %v1236
      %v1249 = vpack.c.b16 %v1238, %v1238
      %v1250 = vpack.c.b16 %v1240, %v1239
      %v1251 = vpack.c.b16 %v1241, %v1241
      %v1252 = vpack.c.b16 %v1243, %v1242
      %v1253 = vpack.c.b16 %v1244, %v1244
      %v1254 = vpack.c.b16 %v1246, %v1245
      %v1255 = vpack.c.b16 %v1247, %v1247
      %1264 = vst [vmem:[%s420] sm:$0xff] %v1248
      %1265 = vst [vmem:[%s420 + $0x8] sm:$0xf] %v1249
      %1266 = vst [vmem:[%s420 + $0xc] sm:$0xff] %v1250
      %1267 = vst [vmem:[%s420 + $0x14] sm:$0xf] %v1251
      %1268 = vst [vmem:[%s420 + $0x18] sm:$0xff] %v1252
      %1269 = vst [vmem:[%s420 + $0x20] sm:$0xf] %v1253
      %1270 = vst [vmem:[%s420 + $0x24] sm:$0xff] %v1254
      %1271 = vst [vmem:[%s420 + $0x2c] sm:$0xf] %v1255
      %p1272 = scmp.lt.s32.totalorder %s22, 1
      %s1273 = scalar_select %p1272, %s22, 1
      %s1274 = smul.addr %s1273, 12
      %s1275 = smul.addr %s1274, 4
      %s1276 = scalar_lea.vmem %s11, %s1275
      // Predicated region
      $region65: #{encoder_fwd.15} parent=63 // pred_check
        %p1277 = pneg %p286
      $region66: #{encoder_fwd.15} parent=63 // pred_check_branch
        %1279 = sbr.rel (%p1277) target = $region68
      $region67: #{encoder_fwd.15} parent=63 // pred_region
        _
      $region68: #{encoder_fwd.15} parent=63 // pred_fallthru
        _
    $region64: #{encoder_fwd.15} parent=5 // pred_fallthru
      _
    %p1280 = scmp.le.s32.totalorder 2, %s17
    // Predicated region
    $region69: #{encoder_fwd.15} parent=5 // pred_check
      %p1281 = pneg %p1280
    $region70: #{encoder_fwd.15} parent=5 // pred_check_branch
      %1283 = sbr.rel (%p1281) target = $region72
    $region71: #{encoder_fwd.15} parent=5 // pred_region
      %s1284 = ssub.s32 %s17, 2
      // Predicated region
      $region73: #{encoder_fwd.15} parent=71 // pred_check
        %p1285 = pneg %p292
      $region74: #{encoder_fwd.15} parent=71 // pred_check_branch
        %1287 = sbr.rel (%p1285) target = $region76
      $region75: #{encoder_fwd.15} parent=71 // pred_region
        %p1288 = scmp.lt.s32.totalorder %s23, 1
        %s1289 = scalar_select %p1288, %s23, 1
        %s1290 = smul.addr %s1289, 12
        %s1291 = smul.addr %s1290, 4
        %s1292 = scalar_lea.vmem %s11, %s1291
      $region76: #{encoder_fwd.15} parent=71 // pred_fallthru
        _
    $region72: #{encoder_fwd.15} parent=5 // pred_fallthru
      _
  $region6: #{encoder_fwd.15} parent=0 // loop_footer
    %s21 = sadd.s32 1, %s17
  $region7: #{encoder_fwd.15} parent=0 // loop_footer_branch
    %16 = sbr.rel target = $region3
  $region8: #{encoder_fwd.15} parent=0 // loop_exit
    _

// kernel: encoder_fwd.16
$region0: #{encoder_fwd.16}
  #allocation0 [shape = 'u32[]', space=smem, size = 0x4, offset = 0x4, fixed_abs, tag = 'smem constant byte address 0x4 - core index']
  #allocation1 [shape = 'u32[144,128]{1,0:T(1,128)}', space=vmem, size = 0x12000, scoped, tag = 'internal scratch']
  %s0 = inlined_call_operand.vmem [shape: bf16[2,32,128], index: 0, kind: input, shape index: {}]
  %s1 = inlined_call_operand.vmem [shape: bf16[2,32,128], index: 1, kind: input, shape index: {}]
  %s2 = inlined_call_operand.vmem [shape: bf16[2,32,128], index: 2, kind: input, shape index: {}]
  %s3 = inlined_call_operand.vmem [shape: bf16[2,32,128], index: 3, kind: input, shape index: {}]
  %s4 = inlined_call_operand.vmem [shape: f32[2,1,128], index: 4, kind: input, shape index: {}]
  %s5 = inlined_call_operand.vmem [shape: f32[2,1,128], index: 5, kind: input, shape index: {}]
  %s6 = inlined_call_operand.vmem [shape: f32[2,1,128], index: 6, kind: input, shape index: {}]
  %s7 = inlined_call_operand.vmem [shape: f32[2,1,128], index: 7, kind: input, shape index: {}]
  %s8 = inlined_call_operand.vmem [shape: f32[2,1,128], index: 8, kind: input, shape index: {}]
  %s9 = inlined_call_operand.vmem [shape: bf16[32,288], index: 9, kind: input, shape index: {}]
  %s10 = inlined_call_operand.vmem [shape: f32[32,1], index: 10, kind: input, shape index: {}]
  %s11 = inlined_call_operand.vmem [shape: bf16[2,32,128], index: 11, kind: output, shape index: {}]
  %s12 = sld [smem:[#allocation0]]
  $region77: #{encoder_fwd.16} parent=0
    _
  %s14 = ssub.s32 1, %s12
  %s15 = scalar_select 0, %s14, %s12
  loop: start=0, step=1, limit=4
  $region2: #{encoder_fwd.16} parent=0 // loop_pre_header
    _
  $region3: #{encoder_fwd.16} parent=0 // loop_header
    %s17 = sphi 0, %s21
    %p18 = scmp.ge.s32.totalorder %s17, 4
    %s27 = sphi 0, %s29
    %s30 = sphi 0, %s27
    %s31 = sphi 0, %s30
    %s47 = sphi 0, %s31
    %s53 = sphi 0, %s55
    %s56 = sphi 0, %s53
    %s57 = sphi 0, %s56
    %s73 = sphi 0, %s57
    %s79 = sphi 0, %s81
    %s82 = sphi 0, %s79
    %s83 = sphi 0, %s82
    %s99 = sphi 0, %s83
    %s105 = sphi 0, %s107
    %s108 = sphi 0, %s105
    %s109 = sphi 0, %s108
    %s125 = sphi 0, %s109
    %s131 = sphi 0, %s133
    %s134 = sphi 0, %s131
    %s135 = sphi 0, %s134
    %s151 = sphi 0, %s135
    %s157 = sphi 0, %s159
    %s160 = sphi 0, %s157
    %s161 = sphi 0, %s160
    %s177 = sphi 0, %s161
    %s183 = sphi 0, %s185
    %s186 = sphi 0, %s183
    %s187 = sphi 0, %s186
    %s203 = sphi 0, %s187
    %s209 = sphi 0, %s211
    %s212 = sphi 0, %s209
    %s213 = sphi 0, %s212
    %s229 = sphi 0, %s213
    %s235 = sphi 0, %s237
    %s238 = sphi 0, %s235
    %s239 = sphi 0, %s238
    %s255 = sphi 0, %s239
    %s259 = sphi 0, %s259
    %s261 = sphi 0, %s259
    %s262 = sphi 0, %s261
    %s276 = sphi 0, %s262
    %s280 = sphi 0, %s280
    %s282 = sphi 0, %s280
    %s283 = sphi 0, %s282
    %s297 = sphi 0, %s283
    %s303 = sphi 0, %s305
    %s306 = sphi 0, %s303
    %s307 = sphi 0, %s306
    %s323 = sphi 0, %s307
  $region4: #{encoder_fwd.16} parent=0 // loop_header_branch
    %20 = sbr.rel (%p18) target = $region8
  $region5: #{encoder_fwd.16} parent=0 // loop_body
    %s22 = ssub.s32 %s17, 1
    %s23 = ssub.s32 %s17, 2
    %s24 = sadd.s32 %s17, 1
    %s25 = ssub.s32 %s17, %s24
    %p26 = scmp.eq.s32.totalorder %s25, 0
    %s28 = sadd.s32 %s27, 1
    %s29 = scalar_select %p26, %s27, %s28
    %p32 = pneg %p26
    %p33 = scmp.eq.s32.totalorder %s17, 1
    %p34 = por %p32, %p33
    %p35 = scmp.ne.s32.totalorder %s27, %s30
    %p36 = scmp.eq.s32.totalorder %s17, 0
    %p37 = por %p35, %p36
    %p38 = scmp.ne.s32.totalorder %s27, %s30
    %p39 = scmp.eq.s32.totalorder %s22, 1
    %p40 = por %p38, %p39
    %p41 = scmp.ne.s32.totalorder %s30, %s31
    %p42 = scmp.eq.s32.totalorder %s22, 0
    %p43 = por %p41, %p42
    %p44 = scmp.ne.s32.totalorder %s30, %s31
    %p45 = scmp.eq.s32.totalorder %s23, 1
    %p46 = por %p44, %p45
    %p48 = scmp.ne.s32.totalorder %s31, %s47
    %p49 = scmp.eq.s32.totalorder %s23, 0
    %p50 = por %p48, %p49
    %s51 = ssub.s32 %s17, %s24
    %p52 = scmp.eq.s32.totalorder %s51, 0
    %s54 = sadd.s32 %s53, 1
    %s55 = scalar_select %p52, %s53, %s54
    %p58 = pneg %p52
    %p59 = scmp.eq.s32.totalorder %s17, 1
    %p60 = por %p58, %p59
    %p61 = scmp.ne.s32.totalorder %s53, %s56
    %p62 = scmp.eq.s32.totalorder %s17, 0
    %p63 = por %p61, %p62
    %p64 = scmp.ne.s32.totalorder %s53, %s56
    %p65 = scmp.eq.s32.totalorder %s22, 1
    %p66 = por %p64, %p65
    %p67 = scmp.ne.s32.totalorder %s56, %s57
    %p68 = scmp.eq.s32.totalorder %s22, 0
    %p69 = por %p67, %p68
    %p70 = scmp.ne.s32.totalorder %s56, %s57
    %p71 = scmp.eq.s32.totalorder %s23, 1
    %p72 = por %p70, %p71
    %p74 = scmp.ne.s32.totalorder %s57, %s73
    %p75 = scmp.eq.s32.totalorder %s23, 0
    %p76 = por %p74, %p75
    %s77 = ssub.s32 %s17, %s24
    %p78 = scmp.eq.s32.totalorder %s77, 0
    %s80 = sadd.s32 %s79, 1
    %s81 = scalar_select %p78, %s79, %s80
    %p84 = pneg %p78
    %p85 = scmp.eq.s32.totalorder %s17, 1
    %p86 = por %p84, %p85
    %p87 = scmp.ne.s32.totalorder %s79, %s82
    %p88 = scmp.eq.s32.totalorder %s17, 0
    %p89 = por %p87, %p88
    %p90 = scmp.ne.s32.totalorder %s79, %s82
    %p91 = scmp.eq.s32.totalorder %s22, 1
    %p92 = por %p90, %p91
    %p93 = scmp.ne.s32.totalorder %s82, %s83
    %p94 = scmp.eq.s32.totalorder %s22, 0
    %p95 = por %p93, %p94
    %p96 = scmp.ne.s32.totalorder %s82, %s83
    %p97 = scmp.eq.s32.totalorder %s23, 1
    %p98 = por %p96, %p97
    %p100 = scmp.ne.s32.totalorder %s83, %s99
    %p101 = scmp.eq.s32.totalorder %s23, 0
    %p102 = por %p100, %p101
    %s103 = ssub.s32 %s17, %s24
    %p104 = scmp.eq.s32.totalorder %s103, 0
    %s106 = sadd.s32 %s105, 1
    %s107 = scalar_select %p104, %s105, %s106
    %p110 = pneg %p104
    %p111 = scmp.eq.s32.totalorder %s17, 1
    %p112 = por %p110, %p111
    %p113 = scmp.ne.s32.totalorder %s105, %s108
    %p114 = scmp.eq.s32.totalorder %s17, 0
    %p115 = por %p113, %p114
    %p116 = scmp.ne.s32.totalorder %s105, %s108
    %p117 = scmp.eq.s32.totalorder %s22, 1
    %p118 = por %p116, %p117
    %p119 = scmp.ne.s32.totalorder %s108, %s109
    %p120 = scmp.eq.s32.totalorder %s22, 0
    %p121 = por %p119, %p120
    %p122 = scmp.ne.s32.totalorder %s108, %s109
    %p123 = scmp.eq.s32.totalorder %s23, 1
    %p124 = por %p122, %p123
    %p126 = scmp.ne.s32.totalorder %s109, %s125
    %p127 = scmp.eq.s32.totalorder %s23, 0
    %p128 = por %p126, %p127
    %s129 = ssub.s32 %s17, %s24
    %p130 = scmp.eq.s32.totalorder %s129, 0
    %s132 = sadd.s32 %s131, 1
    %s133 = scalar_select %p130, %s131, %s132
    %p136 = pneg %p130
    %p137 = scmp.eq.s32.totalorder %s17, 1
    %p138 = por %p136, %p137
    %p139 = scmp.ne.s32.totalorder %s131, %s134
    %p140 = scmp.eq.s32.totalorder %s17, 0
    %p141 = por %p139, %p140
    %p142 = scmp.ne.s32.totalorder %s131, %s134
    %p143 = scmp.eq.s32.totalorder %s22, 1
    %p144 = por %p142, %p143
    %p145 = scmp.ne.s32.totalorder %s134, %s135
    %p146 = scmp.eq.s32.totalorder %s22, 0
    %p147 = por %p145, %p146
    %p148 = scmp.ne.s32.totalorder %s134, %s135
    %p149 = scmp.eq.s32.totalorder %s23, 1
    %p150 = por %p148, %p149
    %p152 = scmp.ne.s32.totalorder %s135, %s151
    %p153 = scmp.eq.s32.totalorder %s23, 0
    %p154 = por %p152, %p153
    %s155 = ssub.s32 %s17, %s24
    %p156 = scmp.eq.s32.totalorder %s155, 0
    %s158 = sadd.s32 %s157, 1
    %s159 = scalar_select %p156, %s157, %s158
    %p162 = pneg %p156
    %p163 = scmp.eq.s32.totalorder %s17, 1
    %p164 = por %p162, %p163
    %p165 = scmp.ne.s32.totalorder %s157, %s160
    %p166 = scmp.eq.s32.totalorder %s17, 0
    %p167 = por %p165, %p166
    %p168 = scmp.ne.s32.totalorder %s157, %s160
    %p169 = scmp.eq.s32.totalorder %s22, 1
    %p170 = por %p168, %p169
    %p171 = scmp.ne.s32.totalorder %s160, %s161
    %p172 = scmp.eq.s32.totalorder %s22, 0
    %p173 = por %p171, %p172
    %p174 = scmp.ne.s32.totalorder %s160, %s161
    %p175 = scmp.eq.s32.totalorder %s23, 1
    %p176 = por %p174, %p175
    %p178 = scmp.ne.s32.totalorder %s161, %s177
    %p179 = scmp.eq.s32.totalorder %s23, 0
    %p180 = por %p178, %p179
    %s181 = ssub.s32 %s17, %s24
    %p182 = scmp.eq.s32.totalorder %s181, 0
    %s184 = sadd.s32 %s183, 1
    %s185 = scalar_select %p182, %s183, %s184
    %p188 = pneg %p182
    %p189 = scmp.eq.s32.totalorder %s17, 1
    %p190 = por %p188, %p189
    %p191 = scmp.ne.s32.totalorder %s183, %s186
    %p192 = scmp.eq.s32.totalorder %s17, 0
    %p193 = por %p191, %p192
    %p194 = scmp.ne.s32.totalorder %s183, %s186
    %p195 = scmp.eq.s32.totalorder %s22, 1
    %p196 = por %p194, %p195
    %p197 = scmp.ne.s32.totalorder %s186, %s187
    %p198 = scmp.eq.s32.totalorder %s22, 0
    %p199 = por %p197, %p198
    %p200 = scmp.ne.s32.totalorder %s186, %s187
    %p201 = scmp.eq.s32.totalorder %s23, 1
    %p202 = por %p200, %p201
    %p204 = scmp.ne.s32.totalorder %s187, %s203
    %p205 = scmp.eq.s32.totalorder %s23, 0
    %p206 = por %p204, %p205
    %s207 = ssub.s32 %s17, %s24
    %p208 = scmp.eq.s32.totalorder %s207, 0
    %s210 = sadd.s32 %s209, 1
    %s211 = scalar_select %p208, %s209, %s210
    %p214 = pneg %p208
    %p215 = scmp.eq.s32.totalorder %s17, 1
    %p216 = por %p214, %p215
    %p217 = scmp.ne.s32.totalorder %s209, %s212
    %p218 = scmp.eq.s32.totalorder %s17, 0
    %p219 = por %p217, %p218
    %p220 = scmp.ne.s32.totalorder %s209, %s212
    %p221 = scmp.eq.s32.totalorder %s22, 1
    %p222 = por %p220, %p221
    %p223 = scmp.ne.s32.totalorder %s212, %s213
    %p224 = scmp.eq.s32.totalorder %s22, 0
    %p225 = por %p223, %p224
    %p226 = scmp.ne.s32.totalorder %s212, %s213
    %p227 = scmp.eq.s32.totalorder %s23, 1
    %p228 = por %p226, %p227
    %p230 = scmp.ne.s32.totalorder %s213, %s229
    %p231 = scmp.eq.s32.totalorder %s23, 0
    %p232 = por %p230, %p231
    %s233 = ssub.s32 %s17, %s24
    %p234 = scmp.eq.s32.totalorder %s233, 0
    %s236 = sadd.s32 %s235, 1
    %s237 = scalar_select %p234, %s235, %s236
    %p240 = pneg %p234
    %p241 = scmp.eq.s32.totalorder %s17, 1
    %p242 = por %p240, %p241
    %p243 = scmp.ne.s32.totalorder %s235, %s238
    %p244 = scmp.eq.s32.totalorder %s17, 0
    %p245 = por %p243, %p244
    %p246 = scmp.ne.s32.totalorder %s235, %s238
    %p247 = scmp.eq.s32.totalorder %s22, 1
    %p248 = por %p246, %p247
    %p249 = scmp.ne.s32.totalorder %s238, %s239
    %p250 = scmp.eq.s32.totalorder %s22, 0
    %p251 = por %p249, %p250
    %p252 = scmp.ne.s32.totalorder %s238, %s239
    %p253 = scmp.eq.s32.totalorder %s23, 1
    %p254 = por %p252, %p253
    %p256 = scmp.ne.s32.totalorder %s239, %s255
    %p257 = scmp.eq.s32.totalorder %s23, 0
    %p258 = por %p256, %p257
    %s260 = sadd.s32 %s259, 1
    %p263 = scmp.eq.s32.totalorder %s17, 1
    %p264 = scmp.ne.s32.totalorder %s259, %s261
    %p265 = scmp.eq.s32.totalorder %s17, 0
    %p266 = por %p264, %p265
    %p267 = scmp.ne.s32.totalorder %s259, %s261
    %p268 = scmp.eq.s32.totalorder %s22, 1
    %p269 = por %p267, %p268
    %p270 = scmp.ne.s32.totalorder %s261, %s262
    %p271 = scmp.eq.s32.totalorder %s22, 0
    %p272 = por %p270, %p271
    %p273 = scmp.ne.s32.totalorder %s261, %s262
    %p274 = scmp.eq.s32.totalorder %s23, 1
    %p275 = por %p273, %p274
    %p277 = scmp.ne.s32.totalorder %s262, %s276
    %p278 = scmp.eq.s32.totalorder %s23, 0
    %p279 = por %p277, %p278
    %s281 = sadd.s32 %s280, 1
    %p284 = scmp.eq.s32.totalorder %s17, 1
    %p285 = scmp.ne.s32.totalorder %s280, %s282
    %p286 = scmp.eq.s32.totalorder %s17, 0
    %p287 = por %p285, %p286
    %p288 = scmp.ne.s32.totalorder %s280, %s282
    %p289 = scmp.eq.s32.totalorder %s22, 1
    %p290 = por %p288, %p289
    %p291 = scmp.ne.s32.totalorder %s282, %s283
    %p292 = scmp.eq.s32.totalorder %s22, 0
    %p293 = por %p291, %p292
    %p294 = scmp.ne.s32.totalorder %s282, %s283
    %p295 = scmp.eq.s32.totalorder %s23, 1
    %p296 = por %p294, %p295
    %p298 = scmp.ne.s32.totalorder %s283, %s297
    %p299 = scmp.eq.s32.totalorder %s23, 0
    %p300 = por %p298, %p299
    %s301 = ssub.s32 %s17, %s24
    %p302 = scmp.eq.s32.totalorder %s301, 0
    %s304 = sadd.s32 %s303, 1
    %s305 = scalar_select %p302, %s303, %s304
    %p308 = pneg %p302
    %p309 = scmp.eq.s32.totalorder %s17, 1
    %p310 = por %p308, %p309
    %p311 = scmp.ne.s32.totalorder %s303, %s306
    %p312 = scmp.eq.s32.totalorder %s17, 0
    %p313 = por %p311, %p312
    %p314 = scmp.ne.s32.totalorder %s303, %s306
    %p315 = scmp.eq.s32.totalorder %s22, 1
    %p316 = por %p314, %p315
    %p317 = scmp.ne.s32.totalorder %s306, %s307
    %p318 = scmp.eq.s32.totalorder %s22, 0
    %p319 = por %p317, %p318
    %p320 = scmp.ne.s32.totalorder %s306, %s307
    %p321 = scmp.eq.s32.totalorder %s23, 1
    %p322 = por %p320, %p321
    %p324 = scmp.ne.s32.totalorder %s307, %s323
    %p325 = scmp.eq.s32.totalorder %s23, 0
    %p326 = por %p324, %p325
    %p327 = scmp.le.s32.totalorder 1, %s17
    %p328 = scmp.lt.s32.totalorder %s17, 3
    %p329 = pnand %p327, %p328
    %p330 = pneg %p329
    // Predicated region
    $region9: #{encoder_fwd.16} parent=5 // pred_check
      _
    $region10: #{encoder_fwd.16} parent=5 // pred_check_branch
      %332 = sbr.rel (%p329) target = $region12
    $region11: #{encoder_fwd.16} parent=5 // pred_region
      %s333 = ssub.s32 %s17, 1
      // Predicated region
      $region13: #{encoder_fwd.16} parent=11 // pred_check
        %p334 = pneg %p272
      $region14: #{encoder_fwd.16} parent=11 // pred_check_branch
        %336 = sbr.rel (%p334) target = $region16
      $region15: #{encoder_fwd.16} parent=11 // pred_region
        _
      $region16: #{encoder_fwd.16} parent=11 // pred_fallthru
        _
      // Predicated region
      $region17: #{encoder_fwd.16} parent=11 // pred_check
        %p337 = pneg %p293
      $region18: #{encoder_fwd.16} parent=11 // pred_check_branch
        %339 = sbr.rel (%p337) target = $region20
      $region19: #{encoder_fwd.16} parent=11 // pred_region
        _
      $region20: #{encoder_fwd.16} parent=11 // pred_fallthru
        _
    $region12: #{encoder_fwd.16} parent=5 // pred_fallthru
      _
    %p340 = scmp.lt.s32.totalorder %s17, 2
    // Predicated region
    $region21: #{encoder_fwd.16} parent=5 // pred_check
      %p341 = pneg %p340
    $region22: #{encoder_fwd.16} parent=5 // pred_check_branch
      %343 = sbr.rel (%p341) target = $region24
    $region23: #{encoder_fwd.16} parent=5 // pred_region
      // Predicated region
      $region25: #{encoder_fwd.16} parent=23 // pred_check
        %p344 = pneg %p37
      $region26: #{encoder_fwd.16} parent=23 // pred_check_branch
        %346 = sbr.rel (%p344) target = $region28
      $region27: #{encoder_fwd.16} parent=23 // pred_region
        %p347 = scmp.lt.s32.totalorder %s17, 1
        %s348 = scalar_select %p347, %s17, 1
        %s349 = smul.addr %s348, 4
        %s350 = smul.addr %s349, 4
        %s351 = scalar_lea.vmem %s0, %s350
      $region28: #{encoder_fwd.16} parent=23 // pred_fallthru
        _
      // Predicated region
      $region29: #{encoder_fwd.16} parent=23 // pred_check
        %p352 = pneg %p63
      $region30: #{encoder_fwd.16} parent=23 // pred_check_branch
        %354 = sbr.rel (%p352) target = $region32
      $region31: #{encoder_fwd.16} parent=23 // pred_region
        %p355 = scmp.lt.s32.totalorder %s17, 1
        %s356 = scalar_select %p355, %s17, 1
        %s357 = smul.addr %s356, 4
        %s358 = smul.addr %s357, 4
        %s359 = scalar_lea.vmem %s1, %s358
      $region32: #{encoder_fwd.16} parent=23 // pred_fallthru
        _
      // Predicated region
      $region33: #{encoder_fwd.16} parent=23 // pred_check
        %p360 = pneg %p89
      $region34: #{encoder_fwd.16} parent=23 // pred_check_branch
        %362 = sbr.rel (%p360) target = $region36
      $region35: #{encoder_fwd.16} parent=23 // pred_region
        %p363 = scmp.lt.s32.totalorder %s17, 1
        %s364 = scalar_select %p363, %s17, 1
        %s365 = smul.addr %s364, 4
        %s366 = smul.addr %s365, 4
        %s367 = scalar_lea.vmem %s2, %s366
      $region36: #{encoder_fwd.16} parent=23 // pred_fallthru
        _
      // Predicated region
      $region37: #{encoder_fwd.16} parent=23 // pred_check
        %p368 = pneg %p115
      $region38: #{encoder_fwd.16} parent=23 // pred_check_branch
        %370 = sbr.rel (%p368) target = $region40
      $region39: #{encoder_fwd.16} parent=23 // pred_region
        %p371 = scmp.lt.s32.totalorder %s17, 1
        %s372 = scalar_select %p371, %s17, 1
        %s373 = smul.addr %s372, 4
        %s374 = smul.addr %s373, 4
        %s375 = scalar_lea.vmem %s3, %s374
      $region40: #{encoder_fwd.16} parent=23 // pred_fallthru
        _
      // Predicated region
      $region41: #{encoder_fwd.16} parent=23 // pred_check
        %p376 = pneg %p141
      $region42: #{encoder_fwd.16} parent=23 // pred_check_branch
        %378 = sbr.rel (%p376) target = $region44
      $region43: #{encoder_fwd.16} parent=23 // pred_region
        %p379 = scmp.lt.s32.totalorder %s17, 1
        %s380 = scalar_select %p379, %s17, 1
        %s381 = scalar_lea.vmem %s4, %s380
      $region44: #{encoder_fwd.16} parent=23 // pred_fallthru
        _
      // Predicated region
      $region45: #{encoder_fwd.16} parent=23 // pred_check
        %p382 = pneg %p167
      $region46: #{encoder_fwd.16} parent=23 // pred_check_branch
        %384 = sbr.rel (%p382) target = $region48
      $region47: #{encoder_fwd.16} parent=23 // pred_region
        %p385 = scmp.lt.s32.totalorder %s17, 1
        %s386 = scalar_select %p385, %s17, 1
        %s387 = scalar_lea.vmem %s5, %s386
      $region48: #{encoder_fwd.16} parent=23 // pred_fallthru
        _
      // Predicated region
      $region49: #{encoder_fwd.16} parent=23 // pred_check
        %p388 = pneg %p193
      $region50: #{encoder_fwd.16} parent=23 // pred_check_branch
        %390 = sbr.rel (%p388) target = $region52
      $region51: #{encoder_fwd.16} parent=23 // pred_region
        %p391 = scmp.lt.s32.totalorder %s17, 1
        %s392 = scalar_select %p391, %s17, 1
        %s393 = scalar_lea.vmem %s6, %s392
      $region52: #{encoder_fwd.16} parent=23 // pred_fallthru
        _
      // Predicated region
      $region53: #{encoder_fwd.16} parent=23 // pred_check
        %p394 = pneg %p219
      $region54: #{encoder_fwd.16} parent=23 // pred_check_branch
        %396 = sbr.rel (%p394) target = $region56
      $region55: #{encoder_fwd.16} parent=23 // pred_region
        %p397 = scmp.lt.s32.totalorder %s17, 1
        %s398 = scalar_select %p397, %s17, 1
        %s399 = scalar_lea.vmem %s7, %s398
      $region56: #{encoder_fwd.16} parent=23 // pred_fallthru
        _
      // Predicated region
      $region57: #{encoder_fwd.16} parent=23 // pred_check
        %p400 = pneg %p245
      $region58: #{encoder_fwd.16} parent=23 // pred_check_branch
        %402 = sbr.rel (%p400) target = $region60
      $region59: #{encoder_fwd.16} parent=23 // pred_region
        %p403 = scmp.lt.s32.totalorder %s17, 1
        %s404 = scalar_select %p403, %s17, 1
        %s405 = scalar_lea.vmem %s8, %s404
      $region60: #{encoder_fwd.16} parent=23 // pred_fallthru
        _
    $region24: #{encoder_fwd.16} parent=5 // pred_fallthru
      _
    %p406 = scmp.le.s32.totalorder 1, %s17
    %p407 = scmp.lt.s32.totalorder %s17, 3
    %p408 = pnand %p406, %p407
    %p409 = pneg %p408
    // Predicated region
    $region61: #{encoder_fwd.16} parent=5 // pred_check
      _
    $region62: #{encoder_fwd.16} parent=5 // pred_check_branch
      %411 = sbr.rel (%p408) target = $region64
    $region63: #{encoder_fwd.16} parent=5 // pred_region
      %s412 = ssub.s32 %s17, 1
      %p413 = scmp.lt.s32.totalorder %s22, 1
      %s414 = scalar_select %p413, %s22, 1
      %s415 = smul.addr %s414, 4
      %s416 = smul.addr %s415, 4
      %s417 = scalar_lea.vmem %s0, %s416
      %p418 = pneg %p43
      %p419 = pneg %p40
      %p420 = scmp.lt.s32.totalorder %s22, 1
      %s421 = scalar_select %p420, %s22, 1
      %s422 = smul.addr %s421, 4
      %s423 = smul.addr %s422, 4
      %s424 = scalar_lea.vmem %s1, %s423
      %p425 = pneg %p69
      %p426 = pneg %p66
      %p427 = scmp.lt.s32.totalorder %s22, 1
      %s428 = scalar_select %p427, %s22, 1
      %s429 = smul.addr %s428, 4
      %s430 = smul.addr %s429, 4
      %s431 = scalar_lea.vmem %s2, %s430
      %p432 = pneg %p95
      %p433 = pneg %p92
      %p434 = scmp.lt.s32.totalorder %s22, 1
      %s435 = scalar_select %p434, %s22, 1
      %s436 = smul.addr %s435, 4
      %s437 = smul.addr %s436, 4
      %s438 = scalar_lea.vmem %s3, %s437
      %p439 = pneg %p121
      %p440 = pneg %p118
      %p441 = scmp.lt.s32.totalorder %s22, 1
      %s442 = scalar_select %p441, %s22, 1
      %s443 = scalar_lea.vmem %s4, %s442
      %p444 = pneg %p147
      %p445 = pneg %p144
      %p446 = scmp.lt.s32.totalorder %s22, 1
      %s447 = scalar_select %p446, %s22, 1
      %s448 = scalar_lea.vmem %s5, %s447
      %p449 = pneg %p173
      %p450 = pneg %p170
      %p451 = scmp.lt.s32.totalorder %s22, 1
      %s452 = scalar_select %p451, %s22, 1
      %s453 = scalar_lea.vmem %s6, %s452
      %p454 = pneg %p199
      %p455 = pneg %p196
      %p456 = scmp.lt.s32.totalorder %s22, 1
      %s457 = scalar_select %p456, %s22, 1
      %s458 = scalar_lea.vmem %s7, %s457
      %p459 = pneg %p225
      %p460 = pneg %p222
      %p461 = scmp.lt.s32.totalorder %s22, 1
      %s462 = scalar_select %p461, %s22, 1
      %s463 = scalar_lea.vmem %s8, %s462
      %p464 = pneg %p251
      %p465 = pneg %p248
      %p466 = pneg %p272
      %p467 = pneg %p269
      %p468 = pneg %p293
      %p469 = pneg %p290
      %p470 = pneg %p319
      %p471 = pneg %p316
      %p472 = scmp.lt.s32.totalorder %s22, 1
      %s473 = scalar_select %p472, %s22, 1
      %s474 = smul.addr %s473, 4
      %s475 = smul.addr %s474, 4
      %s476 = scalar_lea.vmem %s11, %s475
      %p477 = scmp.lt.s32.totalorder %s22, 1
      %s478 = scalar_select %p477, %s22, 1
      %s479 = smul.addr %s478, 4
      %s480 = smul.addr %s479, 4
      %s481 = scalar_lea.vmem %s0, %s480
      %p482 = scmp.lt.s32.totalorder %s22, 1
      %s483 = scalar_select %p482, %s22, 1
      %s484 = smul.addr %s483, 4
      %s485 = smul.addr %s484, 4
      %s486 = scalar_lea.vmem %s1, %s485
      %p487 = scmp.lt.s32.totalorder %s22, 1
      %s488 = scalar_select %p487, %s22, 1
      %s489 = smul.addr %s488, 4
      %s490 = smul.addr %s489, 4
      %s491 = scalar_lea.vmem %s2, %s490
      %p492 = scmp.lt.s32.totalorder %s22, 1
      %s493 = scalar_select %p492, %s22, 1
      %s494 = smul.addr %s493, 4
      %s495 = smul.addr %s494, 4
      %s496 = scalar_lea.vmem %s3, %s495
      %p497 = scmp.lt.s32.totalorder %s22, 1
      %s498 = scalar_select %p497, %s22, 1
      %s499 = scalar_lea.vmem %s4, %s498
      %p500 = scmp.lt.s32.totalorder %s22, 1
      %s501 = scalar_select %p500, %s22, 1
      %s502 = scalar_lea.vmem %s5, %s501
      %p503 = scmp.lt.s32.totalorder %s22, 1
      %s504 = scalar_select %p503, %s22, 1
      %s505 = scalar_lea.vmem %s6, %s504
      %p506 = scmp.lt.s32.totalorder %s22, 1
      %s507 = scalar_select %p506, %s22, 1
      %s508 = scalar_lea.vmem %s7, %s507
      %p509 = scmp.lt.s32.totalorder %s22, 1
      %s510 = scalar_select %p509, %s22, 1
      %s511 = scalar_lea.vmem %s8, %s510
      %p512 = scmp.lt.s32.totalorder %s22, 1
      %s513 = scalar_select %p512, %s22, 1
      %s514 = smul.addr %s513, 4
      %s515 = smul.addr %s514, 4
      %s516 = scalar_lea.vmem %s11, %s515
      %v518 = vld [vmem:[%s481] sm:$0xf]
      %v519 = vld [vmem:[%s481 + $0x4] sm:$0xf]
      %v520 = vld [vmem:[%s481 + $0x8] sm:$0xf]
      %v521 = vld [vmem:[%s481 + $0xc] sm:$0xf]
      %v522 = vunpack.c.l.bf16 %v518
      %v523 = vunpack.c.l.bf16 %v519
      %v524 = vunpack.c.l.bf16 %v520
      %v525 = vunpack.c.l.bf16 %v521
      %v526 = vld [vmem:[%s499] sm:$0x1]
      %v528 = vlaneseq
      %v529 = vshrl.u32 %v528, 7
      %v530 = vsub.s32 0, %v529
      %v531 = vrot.slane %v526, %v530
      %v533 = vmul.f32 %v522, %v531
      %v534 = vmul.f32 %v523, %v531
      %v535 = vmul.f32 %v524, %v531
      %v536 = vmul.f32 %v525, %v531
      %v537 = vld [vmem:[%s486] sm:$0xf]
      %v538 = vld [vmem:[%s486 + $0x4] sm:$0xf]
      %v539 = vld [vmem:[%s486 + $0x8] sm:$0xf]
      %v540 = vld [vmem:[%s486 + $0xc] sm:$0xf]
      %v541 = vunpack.c.l.bf16 %v537
      %v542 = vunpack.c.l.bf16 %v538
      %v543 = vunpack.c.l.bf16 %v539
      %v544 = vunpack.c.l.bf16 %v540
      %v545 = vld [vmem:[%s502] sm:$0x1]
      %v547 = vlaneseq
      %v548 = vshrl.u32 %v547, 7
      %v549 = vsub.s32 0, %v548
      %v550 = vrot.slane %v545, %v549
      %v552 = vmul.f32 %v541, %v550
      %v553 = vmul.f32 %v542, %v550
      %v554 = vmul.f32 %v543, %v550
      %v555 = vmul.f32 %v544, %v550
      %v556 = vld [vmem:[%s491] sm:$0xf]
      %v557 = vld [vmem:[%s491 + $0x4] sm:$0xf]
      %v558 = vld [vmem:[%s491 + $0x8] sm:$0xf]
      %v559 = vld [vmem:[%s491 + $0xc] sm:$0xf]
      %v560 = vunpack.c.l.bf16 %v556
      %v561 = vunpack.c.l.bf16 %v557
      %v562 = vunpack.c.l.bf16 %v558
      %v563 = vunpack.c.l.bf16 %v559
      %v564 = vld [vmem:[%s505] sm:$0x1]
      %v566 = vlaneseq
      %v567 = vshrl.u32 %v566, 7
      %v568 = vsub.s32 0, %v567
      %v569 = vrot.slane %v564, %v568
      %v571 = vmul.f32 %v560, %v569
      %v572 = vmul.f32 %v561, %v569
      %v573 = vmul.f32 %v562, %v569
      %v574 = vmul.f32 %v563, %v569
      %v575 = vld [vmem:[%s496] sm:$0xf]
      %v576 = vld [vmem:[%s496 + $0x4] sm:$0xf]
      %v577 = vld [vmem:[%s496 + $0x8] sm:$0xf]
      %v578 = vld [vmem:[%s496 + $0xc] sm:$0xf]
      %v579 = vunpack.c.l.bf16 %v575
      %v580 = vunpack.c.l.bf16 %v576
      %v581 = vunpack.c.l.bf16 %v577
      %v582 = vunpack.c.l.bf16 %v578
      %v583 = vld [vmem:[%s508] sm:$0x1]
      %v585 = vlaneseq
      %v586 = vshrl.u32 %v585, 7
      %v587 = vsub.s32 0, %v586
      %v588 = vrot.slane %v583, %v587
      %v590 = vmul.f32 %v579, %v588
      %v591 = vmul.f32 %v580, %v588
      %v592 = vmul.f32 %v581, %v588
      %v593 = vmul.f32 %v582, %v588
      %594 = vrot.lane.b32.xlu0 %v533, 11
      %v595 = vpop.permute.xlu0 %594
      %596 = vrot.lane.b32.xlu0 %v534, 11
      %v597 = vpop.permute.xlu0 %596
      %598 = vrot.lane.b32.xlu0 %v535, 11
      %v599 = vpop.permute.xlu0 %598
      %600 = vrot.lane.b32.xlu0 %v536, 11
      %v601 = vpop.permute.xlu0 %600
      %v602 = vpack.c.bf16 %v597, %v595
      %v603 = vpack.c.bf16 %v601, %v599
      %604 = vrot.lane.b32.xlu0 %v552, 11
      %v605 = vpop.permute.xlu0 %604
      %606 = vrot.lane.b32.xlu0 %v553, 11
      %v607 = vpop.permute.xlu0 %606
      %608 = vrot.lane.b32.xlu0 %v554, 11
      %v609 = vpop.permute.xlu0 %608
      %610 = vrot.lane.b32.xlu0 %v555, 11
      %v611 = vpop.permute.xlu0 %610
      %v612 = vpack.c.bf16 %v607, %v605
      %v613 = vpack.c.bf16 %v611, %v609
      %614 = vrot.lane.b32.xlu0 %v533, 10
      %v615 = vpop.permute.xlu0 %614
      %616 = vrot.lane.b32.xlu0 %v534, 10
      %v617 = vpop.permute.xlu0 %616
      %618 = vrot.lane.b32.xlu0 %v535, 10
      %v619 = vpop.permute.xlu0 %618
      %620 = vrot.lane.b32.xlu0 %v536, 10
      %v621 = vpop.permute.xlu0 %620
      %v622 = vpack.c.bf16 %v617, %v615
      %v623 = vpack.c.bf16 %v621, %v619
      %624 = vrot.lane.b32.xlu0 %v571, 11
      %v625 = vpop.permute.xlu0 %624
      %626 = vrot.lane.b32.xlu0 %v572, 11
      %v627 = vpop.permute.xlu0 %626
      %628 = vrot.lane.b32.xlu0 %v573, 11
      %v629 = vpop.permute.xlu0 %628
      %630 = vrot.lane.b32.xlu0 %v574, 11
      %v631 = vpop.permute.xlu0 %630
      %v632 = vpack.c.bf16 %v627, %v625
      %v633 = vpack.c.bf16 %v631, %v629
      %634 = vrot.lane.b32.xlu0 %v590, 11
      %v635 = vpop.permute.xlu0 %634
      %636 = vrot.lane.b32.xlu0 %v591, 11
      %v637 = vpop.permute.xlu0 %636
      %638 = vrot.lane.b32.xlu0 %v592, 11
      %v639 = vpop.permute.xlu0 %638
      %640 = vrot.lane.b32.xlu0 %v593, 11
      %v641 = vpop.permute.xlu0 %640
      %v642 = vpack.c.bf16 %v637, %v635
      %v643 = vpack.c.bf16 %v641, %v639
      %644 = vrot.lane.b32.xlu0 %v571, 10
      %v645 = vpop.permute.xlu0 %644
      %646 = vrot.lane.b32.xlu0 %v572, 10
      %v647 = vpop.permute.xlu0 %646
      %648 = vrot.lane.b32.xlu0 %v573, 10
      %v649 = vpop.permute.xlu0 %648
      %650 = vrot.lane.b32.xlu0 %v574, 10
      %v651 = vpop.permute.xlu0 %650
      %v652 = vpack.c.bf16 %v647, %v645
      %v653 = vpack.c.bf16 %v651, %v649
      %654 = vrot.lane.b32.xlu0 %v533, 1
      %v655 = vpop.permute.xlu0 %654
      %656 = vrot.lane.b32.xlu0 %v534, 1
      %v657 = vpop.permute.xlu0 %656
      %658 = vrot.lane.b32.xlu0 %v535, 1
      %v659 = vpop.permute.xlu0 %658
      %660 = vrot.lane.b32.xlu0 %v536, 1
      %v661 = vpop.permute.xlu0 %660
      %v662 = vpack.c.bf16 %v657, %v655
      %v663 = vpack.c.bf16 %v661, %v659
      %664 = vrot.lane.b32.xlu0 %v552, 1
      %v665 = vpop.permute.xlu0 %664
      %666 = vrot.lane.b32.xlu0 %v553, 1
      %v667 = vpop.permute.xlu0 %666
      %668 = vrot.lane.b32.xlu0 %v554, 1
      %v669 = vpop.permute.xlu0 %668
      %670 = vrot.lane.b32.xlu0 %v555, 1
      %v671 = vpop.permute.xlu0 %670
      %v672 = vpack.c.bf16 %v667, %v665
      %v673 = vpack.c.bf16 %v671, %v669
      %v674 = vpack.c.bf16 %v534, %v533
      %v675 = vpack.c.bf16 %v536, %v535
      %v676 = vld [vmem:[%s9] sm:$0xff]
      %v677 = vld [vmem:[%s9 + $0x8] sm:$0xf]
      %v678 = vld [vmem:[%s9 + $0xc] sm:$0xff]
      %v679 = vld [vmem:[%s9 + $0x14] sm:$0xf]
      %v680 = vld [vmem:[%s9 + $0x18] sm:$0xff]
      %v681 = vld [vmem:[%s9 + $0x20] sm:$0xf]
      %v682 = vld [vmem:[%s9 + $0x24] sm:$0xff]
      %v683 = vld [vmem:[%s9 + $0x2c] sm:$0xf]
      %v692 = vunpack.c.l.b16 %v676
      %v693 = vunpack.c.h.b16 %v676
      %v694 = vunpack.c.l.b16 %v677
      %v695 = vunpack.c.l.b16 %v678
      %v696 = vunpack.c.h.b16 %v678
      %v697 = vunpack.c.l.b16 %v679
      %v698 = vunpack.c.l.b16 %v680
      %v699 = vunpack.c.h.b16 %v680
      %v700 = vunpack.c.l.b16 %v681
      %v701 = vunpack.c.l.b16 %v682
      %v702 = vunpack.c.h.b16 %v682
      %v703 = vunpack.c.l.b16 %v683
      %v704 = vpack.c.b16 %v695, %v692
      %v705 = vpack.c.b16 %v696, %v693
      %v706 = vpack.c.b16 %v697, %v694
      %v707 = vpack.c.b16 %v701, %v698
      %v708 = vpack.c.b16 %v702, %v699
      %v709 = vpack.c.b16 %v703, %v700
      %vm714 = vcmask 261120
      %v716 = vsel %vm714, %v706, 0
      %v719 = vsel %vm714, %v709, 0
      %721 = vmatprep.subr.bf16.mxu0 0
      %722 = vmatpush1.bf16.msra.mxu0 %v633
      %723 = vmatprep.subr.bf16.mxu0 0
      %724 = vmatpush1.bf16.msra.mxu0 %v632
      %725 = vmatprep.subr.bf16.mxu0 0
      %726 = vmatpush1.bf16.msra.mxu0 %v623
      %727 = vmatprep.subr.bf16.mxu0 0
      %728 = vmatpush1.bf16.msra.mxu0 %v622
      %729 = vmatprep.subr.bf16.mxu0 0
      %730 = vmatpush1.bf16.msra.mxu0 %v613
      %731 = vmatprep.subr.bf16.mxu0 0
      %732 = vmatpush1.bf16.msra.mxu0 %v612
      %733 = vmatprep.subr.bf16.mxu0 0
      %734 = vmatpush1.bf16.msra.mxu0 %v603
      %735 = vmatprep.subr.bf16.mxu0 0
      %736 = vmatpush1.bf16.msra.mxu0 %v602
      %737 = vmatprep.subr.bf16.mxu0 0
      %738 = vmatpush2.bf16.msra.mxu0 %v673
      %739 = vmatprep.subr.bf16.mxu0 0
      %740 = vmatpush2.bf16.msra.mxu0 %v672
      %741 = vmatprep.subr.bf16.mxu0 0
      %742 = vmatpush2.bf16.msra.mxu0 %v663
      %743 = vmatprep.subr.bf16.mxu0 0
      %744 = vmatpush2.bf16.msra.mxu0 %v662
      %745 = vmatprep.subr.bf16.mxu0 0
      %746 = vmatpush2.bf16.msra.mxu0 %v653
      %747 = vmatprep.subr.bf16.mxu0 0
      %748 = vmatpush2.bf16.msra.mxu0 %v652
      %749 = vmatprep.subr.bf16.mxu0 0
      %750 = vmatpush2.bf16.msra.mxu0 %v643
      %751 = vmatprep.subr.bf16.mxu0 0
      %752 = vmatpush2.bf16.msra.mxu0 %v642
      %753 = vmatprep.mubr.bf16.mxu0 %v705
      %754 = vmatmul.mubr.bf16.gmra.mxu0 %v704
      %v755 = vpop.f32.mrf.mxu0
      %v756 = vadd.f32 0.0, %v755
      %v757 = vpop.f32.mrf.mxu0
      %v758 = vpop.f32.mrf.mxu0
      %v759 = vadd.f32 0.0, %v758
      %v760 = vpop.f32.mrf.mxu0
      %761 = vmatprep.mubr.bf16.mxu0 %v708
      %762 = vmatmul.mubr.bf16.gmra.mxu0 %v707
      %v763 = vpop.f32.mrf.mxu0
      %v764 = vadd.f32 0.0, %v763
      %v765 = vpop.f32.mrf.mxu0
      %v766 = vpop.f32.mrf.mxu0
      %v767 = vadd.f32 0.0, %v766
      %v768 = vpop.f32.mrf.mxu0
      %769 = vdwg.mxu0
      %770 = vmatprep.subr.bf16.mxu0 0
      %771 = vmatpush1.bf16.msra.mxu0 0
      %772 = vmatprep.subr.bf16.mxu0 0
      %773 = vmatpush1.bf16.msra.mxu0 0
      %774 = vmatprep.subr.bf16.mxu0 0
      %775 = vmatpush1.bf16.msra.mxu0 0
      %776 = vmatprep.subr.bf16.mxu0 0
      %777 = vmatpush1.bf16.msra.mxu0 0
      %778 = vmatprep.subr.bf16.mxu0 0
      %779 = vmatpush1.bf16.msra.mxu0 0
      %780 = vmatprep.subr.bf16.mxu0 0
      %781 = vmatpush1.bf16.msra.mxu0 0
      %782 = vmatprep.subr.bf16.mxu0 0
      %783 = vmatpush1.bf16.msra.mxu0 %v675
      %784 = vmatprep.subr.bf16.mxu0 0
      %785 = vmatpush1.bf16.msra.mxu0 %v674
      %786 = vmatprep.subr.bf16.mxu0 0
      %787 = vmatpush2.bf16.msra.mxu0 0
      %788 = vmatprep.subr.bf16.mxu0 0
      %789 = vmatpush2.bf16.msra.mxu0 0
      %790 = vmatprep.subr.bf16.mxu0 0
      %791 = vmatpush2.bf16.msra.mxu0 0
      %792 = vmatprep.subr.bf16.mxu0 0
      %793 = vmatpush2.bf16.msra.mxu0 0
      %794 = vmatprep.subr.bf16.mxu0 0
      %795 = vmatpush2.bf16.msra.mxu0 0
      %796 = vmatprep.subr.bf16.mxu0 0
      %797 = vmatpush2.bf16.msra.mxu0 0
      %798 = vmatprep.subr.bf16.mxu0 0
      %799 = vmatpush2.bf16.msra.mxu0 0
      %800 = vmatprep.subr.bf16.mxu0 0
      %801 = vmatpush2.bf16.msra.mxu0 0
      %802 = vmatprep.mubr.bf16.mxu0 0
      %803 = vmatmul.mubr.bf16.gmra.mxu0 %v716
      %v804 = vpop.f32.mrf.mxu0
      %v805 = vadd.f32 %v756, %v804
      %v806 = vpop.f32.mrf.mxu0
      %v807 = vpop.f32.mrf.mxu0
      %v808 = vadd.f32 %v759, %v807
      %v809 = vpop.f32.mrf.mxu0
      %810 = vmatprep.mubr.bf16.mxu0 0
      %811 = vmatmul.mubr.bf16.gmra.mxu0 %v719
      %v812 = vpop.f32.mrf.mxu0
      %v813 = vadd.f32 %v764, %v812
      %v814 = vpop.f32.mrf.mxu0
      %v815 = vpop.f32.mrf.mxu0
      %v816 = vadd.f32 %v767, %v815
      %v817 = vpop.f32.mrf.mxu0
      %818 = vdwg.mxu0
      %v819 = vld [vmem:[%s511] sm:$0x1]
      %v821 = vlaneseq
      %v822 = vshrl.u32 %v821, 7
      %v823 = vsub.s32 0, %v822
      %v824 = vrot.slane %v819, %v823
      %v826 = vmul.f32 %v805, %v824
      %v827 = vmul.f32 %v808, %v824
      %v828 = vmul.f32 %v813, %v824
      %v829 = vmul.f32 %v816, %v824
      %v830 = vld [vmem:[%s10] sm:$0xff]
      %v831 = vld [vmem:[%s10 + $0x8] sm:$0xff]
      %v832 = vld [vmem:[%s10 + $0x10] sm:$0xff]
      %v833 = vld [vmem:[%s10 + $0x18] sm:$0xff]
      %835 = vset.pattern.permute.xlu0 0
      %836 = vperm.xlu0 %835, %v830
      %v837 = vpop.permute.xlu0 %836
      %840 = vset.pattern.permute.xlu0 0
      %841 = vperm.xlu0 %840, %v831
      %v842 = vpop.permute.xlu0 %841
      %845 = vset.pattern.permute.xlu0 0
      %846 = vperm.xlu0 %845, %v832
      %v847 = vpop.permute.xlu0 %846
      %850 = vset.pattern.permute.xlu0 0
      %851 = vperm.xlu0 %850, %v833
      %v852 = vpop.permute.xlu0 %851
      %v854 = vadd.f32 %v826, %v837
      %v855 = vadd.f32 %v827, %v842
      %v856 = vadd.f32 %v828, %v847
      %v857 = vadd.f32 %v829, %v852
      %v858 = vpack.c.bf16 %v855, %v854
      %v859 = vpack.c.bf16 %v857, %v856
      %v862 = vunpack.c.l.b16 %v858
      %v863 = vunpack.c.h.b16 %v858
      %v864 = vunpack.c.l.b16 %v859
      %v865 = vunpack.c.h.b16 %v859
      %v866 = vpack.c.b16 %v862, %v862
      %v867 = vpack.c.b16 %v863, %v863
      %v868 = vpack.c.b16 %v864, %v864
      %v869 = vpack.c.b16 %v865, %v865
      %874 = vst [vmem:[%s516] sm:$0xf] %v866
      %875 = vst [vmem:[%s516 + $0x4] sm:$0xf] %v867
      %876 = vst [vmem:[%s516 + $0x8] sm:$0xf] %v868
      %877 = vst [vmem:[%s516 + $0xc] sm:$0xf] %v869
      %p878 = scmp.lt.s32.totalorder %s22, 1
      %s879 = scalar_select %p878, %s22, 1
      %s880 = smul.addr %s879, 4
      %s881 = smul.addr %s880, 4
      %s882 = scalar_lea.vmem %s11, %s881
      // Predicated region
      $region65: #{encoder_fwd.16} parent=63 // pred_check
        %p883 = pneg %p316
      $region66: #{encoder_fwd.16} parent=63 // pred_check_branch
        %885 = sbr.rel (%p883) target = $region68
      $region67: #{encoder_fwd.16} parent=63 // pred_region
        _
      $region68: #{encoder_fwd.16} parent=63 // pred_fallthru
        _
    $region64: #{encoder_fwd.16} parent=5 // pred_fallthru
      _
    %p886 = scmp.le.s32.totalorder 2, %s17
    // Predicated region
    $region69: #{encoder_fwd.16} parent=5 // pred_check
      %p887 = pneg %p886
    $region70: #{encoder_fwd.16} parent=5 // pred_check_branch
      %889 = sbr.rel (%p887) target = $region72
    $region71: #{encoder_fwd.16} parent=5 // pred_region
      %s890 = ssub.s32 %s17, 2
      // Predicated region
      $region73: #{encoder_fwd.16} parent=71 // pred_check
        %p891 = pneg %p322
      $region74: #{encoder_fwd.16} parent=71 // pred_check_branch
        %893 = sbr.rel (%p891) target = $region76
      $region75: #{encoder_fwd.16} parent=71 // pred_region
        %p894 = scmp.lt.s32.totalorder %s23, 1
        %s895 = scalar_select %p894, %s23, 1
        %s896 = smul.addr %s895, 4
        %s897 = smul.addr %s896, 4
        %s898 = scalar_lea.vmem %s11, %s897
      $region76: #{encoder_fwd.16} parent=71 // pred_fallthru
        _
    $region72: #{encoder_fwd.16} parent=5 // pred_fallthru
      _
  $region6: #{encoder_fwd.16} parent=0 // loop_footer
    %s21 = sadd.s32 1, %s17
  $region7: #{encoder_fwd.16} parent=0 // loop_footer_branch
    %16 = sbr.rel target = $region3
  $region8: #{encoder_fwd.16} parent=0 // loop_exit
    _

// kernel: encoder_fwd.17
$region0: #{encoder_fwd.17}
  #allocation0 [shape = 'u32[]', space=smem, size = 0x4, offset = 0x4, fixed_abs, tag = 'smem constant byte address 0x4 - core index']
  #allocation1 [shape = 'u32[144,128]{1,0:T(1,128)}', space=vmem, size = 0x12000, scoped, tag = 'internal scratch']
  #allocation2 [shape = 'f32[32,128]{1,0:T(8,128)}', space=vmem, size = 0x4000, scoped, tag = 'scratch operand']
  %s0 = inlined_call_operand.vmem [shape: bf16[2,32,128], index: 0, kind: input, shape index: {}]
  %s1 = inlined_call_operand.vmem [shape: f32[2,1,128], index: 1, kind: input, shape index: {}]
  %s2 = inlined_call_operand.vmem [shape: f32[2,1,128], index: 2, kind: input, shape index: {}]
  %s3 = inlined_call_operand.vmem [shape: bf16[5,16,32], index: 3, kind: input, shape index: {}]
  %s4 = inlined_call_operand.vmem [shape: f32[5,16,1], index: 4, kind: input, shape index: {}]
  %s5 = inlined_call_operand.vmem [shape: bf16[5,16,144], index: 5, kind: input, shape index: {}]
  %s6 = inlined_call_operand.vmem [shape: f32[5,16,1], index: 6, kind: input, shape index: {}]
  %s7 = inlined_call_operand.vmem [shape: bf16[5,32,16], index: 7, kind: input, shape index: {}]
  %s8 = inlined_call_operand.vmem [shape: f32[5,32,1], index: 8, kind: input, shape index: {}]
  %s9 = inlined_call_operand.vmem [shape: bf16[2,32,128], index: 9, kind: output, shape index: {}]
  %s10 = sld [smem:[#allocation0]]
  $region77: #{encoder_fwd.17} parent=0
    _
  %s12 = ssub.s32 1, %s10
  %s13 = scalar_select 0, %s12, %s10
  loop: start=0, step=1, limit=12
  $region2: #{encoder_fwd.17} parent=0 // loop_pre_header
    _
  $region3: #{encoder_fwd.17} parent=0 // loop_header
    %s15 = sphi 0, %s19
    %p16 = scmp.ge.s32.totalorder %s15, 12
    %s22 = sphi 0, %s34
    %s23 = sphi 0, %s30
    %s24 = sphi 0, %s22
    %s25 = sphi 0, %s23
    %s26 = sphi 0, %s24
    %s27 = sphi 0, %s25
    %s37 = sphi 0, %s39
    %s40 = sphi 0, %s37
    %s41 = sphi 0, %s40
    %s57 = sphi 0, %s41
    %s63 = sphi 0, %s65
    %s66 = sphi 0, %s63
    %s67 = sphi 0, %s66
    %s83 = sphi 0, %s67
    %s89 = sphi 0, %s91
    %s92 = sphi 0, %s89
    %s93 = sphi 0, %s92
    %s109 = sphi 0, %s93
    %s115 = sphi 0, %s117
    %s118 = sphi 0, %s115
    %s119 = sphi 0, %s118
    %s135 = sphi 0, %s119
    %s141 = sphi 0, %s143
    %s144 = sphi 0, %s141
    %s145 = sphi 0, %s144
    %s161 = sphi 0, %s145
    %s167 = sphi 0, %s169
    %s170 = sphi 0, %s167
    %s171 = sphi 0, %s170
    %s187 = sphi 0, %s171
    %s193 = sphi 0, %s195
    %s196 = sphi 0, %s193
    %s197 = sphi 0, %s196
    %s213 = sphi 0, %s197
    %s219 = sphi 0, %s221
    %s222 = sphi 0, %s219
    %s223 = sphi 0, %s222
    %s239 = sphi 0, %s223
    %s245 = sphi 0, %s247
    %s248 = sphi 0, %s245
    %s249 = sphi 0, %s248
    %s265 = sphi 0, %s249
    %s271 = sphi 0, %s273
    %s274 = sphi 0, %s271
    %s275 = sphi 0, %s274
    %s291 = sphi 0, %s275
  $region4: #{encoder_fwd.17} parent=0 // loop_header_branch
    %18 = sbr.rel (%p16) target = $region8
  $region5: #{encoder_fwd.17} parent=0 // loop_body
    %s20 = ssub.s32 %s15, 1
    %s21 = ssub.s32 %s15, 2
    %s28 = sadd.s32 1, %s23
    %p29 = scmp.ge.s32.totalorder %s28, 5
    %s30 = scalar_select %p29, 0, %s28
    %s31 = sadd.s32 1, %s22
    %s32 = scalar_select %p29, %s31, %s22
    %p33 = scmp.ge.s32.totalorder %s32, 2
    %s34 = scalar_select %p33, 0, %s32
    %s35 = ssub.s32 %s22, %s34
    %p36 = scmp.eq.s32.totalorder %s35, 0
    %s38 = sadd.s32 %s37, 1
    %s39 = scalar_select %p36, %s37, %s38
    %p42 = pneg %p36
    %p43 = scmp.eq.s32.totalorder %s15, 9
    %p44 = por %p42, %p43
    %p45 = scmp.ne.s32.totalorder %s37, %s40
    %p46 = scmp.eq.s32.totalorder %s15, 0
    %p47 = por %p45, %p46
    %p48 = scmp.ne.s32.totalorder %s37, %s40
    %p49 = scmp.eq.s32.totalorder %s20, 9
    %p50 = por %p48, %p49
    %p51 = scmp.ne.s32.totalorder %s40, %s41
    %p52 = scmp.eq.s32.totalorder %s20, 0
    %p53 = por %p51, %p52
    %p54 = scmp.ne.s32.totalorder %s40, %s41
    %p55 = scmp.eq.s32.totalorder %s21, 9
    %p56 = por %p54, %p55
    %p58 = scmp.ne.s32.totalorder %s41, %s57
    %p59 = scmp.eq.s32.totalorder %s21, 0
    %p60 = por %p58, %p59
    %s61 = ssub.s32 %s22, %s34
    %p62 = scmp.eq.s32.totalorder %s61, 0
    %s64 = sadd.s32 %s63, 1
    %s65 = scalar_select %p62, %s63, %s64
    %p68 = pneg %p62
    %p69 = scmp.eq.s32.totalorder %s15, 9
    %p70 = por %p68, %p69
    %p71 = scmp.ne.s32.totalorder %s63, %s66
    %p72 = scmp.eq.s32.totalorder %s15, 0
    %p73 = por %p71, %p72
    %p74 = scmp.ne.s32.totalorder %s63, %s66
    %p75 = scmp.eq.s32.totalorder %s20, 9
    %p76 = por %p74, %p75
    %p77 = scmp.ne.s32.totalorder %s66, %s67
    %p78 = scmp.eq.s32.totalorder %s20, 0
    %p79 = por %p77, %p78
    %p80 = scmp.ne.s32.totalorder %s66, %s67
    %p81 = scmp.eq.s32.totalorder %s21, 9
    %p82 = por %p80, %p81
    %p84 = scmp.ne.s32.totalorder %s67, %s83
    %p85 = scmp.eq.s32.totalorder %s21, 0
    %p86 = por %p84, %p85
    %s87 = ssub.s32 %s22, %s34
    %p88 = scmp.eq.s32.totalorder %s87, 0
    %s90 = sadd.s32 %s89, 1
    %s91 = scalar_select %p88, %s89, %s90
    %p94 = pneg %p88
    %p95 = scmp.eq.s32.totalorder %s15, 9
    %p96 = por %p94, %p95
    %p97 = scmp.ne.s32.totalorder %s89, %s92
    %p98 = scmp.eq.s32.totalorder %s15, 0
    %p99 = por %p97, %p98
    %p100 = scmp.ne.s32.totalorder %s89, %s92
    %p101 = scmp.eq.s32.totalorder %s20, 9
    %p102 = por %p100, %p101
    %p103 = scmp.ne.s32.totalorder %s92, %s93
    %p104 = scmp.eq.s32.totalorder %s20, 0
    %p105 = por %p103, %p104
    %p106 = scmp.ne.s32.totalorder %s92, %s93
    %p107 = scmp.eq.s32.totalorder %s21, 9
    %p108 = por %p106, %p107
    %p110 = scmp.ne.s32.totalorder %s93, %s109
    %p111 = scmp.eq.s32.totalorder %s21, 0
    %p112 = por %p110, %p111
    %s113 = ssub.s32 %s23, %s30
    %p114 = scmp.eq.s32.totalorder %s113, 0
    %s116 = sadd.s32 %s115, 1
    %s117 = scalar_select %p114, %s115, %s116
    %p120 = pneg %p114
    %p121 = scmp.eq.s32.totalorder %s15, 9
    %p122 = por %p120, %p121
    %p123 = scmp.ne.s32.totalorder %s115, %s118
    %p124 = scmp.eq.s32.totalorder %s15, 0
    %p125 = por %p123, %p124
    %p126 = scmp.ne.s32.totalorder %s115, %s118
    %p127 = scmp.eq.s32.totalorder %s20, 9
    %p128 = por %p126, %p127
    %p129 = scmp.ne.s32.totalorder %s118, %s119
    %p130 = scmp.eq.s32.totalorder %s20, 0
    %p131 = por %p129, %p130
    %p132 = scmp.ne.s32.totalorder %s118, %s119
    %p133 = scmp.eq.s32.totalorder %s21, 9
    %p134 = por %p132, %p133
    %p136 = scmp.ne.s32.totalorder %s119, %s135
    %p137 = scmp.eq.s32.totalorder %s21, 0
    %p138 = por %p136, %p137
    %s139 = ssub.s32 %s23, %s30
    %p140 = scmp.eq.s32.totalorder %s139, 0
    %s142 = sadd.s32 %s141, 1
    %s143 = scalar_select %p140, %s141, %s142
    %p146 = pneg %p140
    %p147 = scmp.eq.s32.totalorder %s15, 9
    %p148 = por %p146, %p147
    %p149 = scmp.ne.s32.totalorder %s141, %s144
    %p150 = scmp.eq.s32.totalorder %s15, 0
    %p151 = por %p149, %p150
    %p152 = scmp.ne.s32.totalorder %s141, %s144
    %p153 = scmp.eq.s32.totalorder %s20, 9
    %p154 = por %p152, %p153
    %p155 = scmp.ne.s32.totalorder %s144, %s145
    %p156 = scmp.eq.s32.totalorder %s20, 0
    %p157 = por %p155, %p156
    %p158 = scmp.ne.s32.totalorder %s144, %s145
    %p159 = scmp.eq.s32.totalorder %s21, 9
    %p160 = por %p158, %p159
    %p162 = scmp.ne.s32.totalorder %s145, %s161
    %p163 = scmp.eq.s32.totalorder %s21, 0
    %p164 = por %p162, %p163
    %s165 = ssub.s32 %s23, %s30
    %p166 = scmp.eq.s32.totalorder %s165, 0
    %s168 = sadd.s32 %s167, 1
    %s169 = scalar_select %p166, %s167, %s168
    %p172 = pneg %p166
    %p173 = scmp.eq.s32.totalorder %s15, 9
    %p174 = por %p172, %p173
    %p175 = scmp.ne.s32.totalorder %s167, %s170
    %p176 = scmp.eq.s32.totalorder %s15, 0
    %p177 = por %p175, %p176
    %p178 = scmp.ne.s32.totalorder %s167, %s170
    %p179 = scmp.eq.s32.totalorder %s20, 9
    %p180 = por %p178, %p179
    %p181 = scmp.ne.s32.totalorder %s170, %s171
    %p182 = scmp.eq.s32.totalorder %s20, 0
    %p183 = por %p181, %p182
    %p184 = scmp.ne.s32.totalorder %s170, %s171
    %p185 = scmp.eq.s32.totalorder %s21, 9
    %p186 = por %p184, %p185
    %p188 = scmp.ne.s32.totalorder %s171, %s187
    %p189 = scmp.eq.s32.totalorder %s21, 0
    %p190 = por %p188, %p189
    %s191 = ssub.s32 %s23, %s30
    %p192 = scmp.eq.s32.totalorder %s191, 0
    %s194 = sadd.s32 %s193, 1
    %s195 = scalar_select %p192, %s193, %s194
    %p198 = pneg %p192
    %p199 = scmp.eq.s32.totalorder %s15, 9
    %p200 = por %p198, %p199
    %p201 = scmp.ne.s32.totalorder %s193, %s196
    %p202 = scmp.eq.s32.totalorder %s15, 0
    %p203 = por %p201, %p202
    %p204 = scmp.ne.s32.totalorder %s193, %s196
    %p205 = scmp.eq.s32.totalorder %s20, 9
    %p206 = por %p204, %p205
    %p207 = scmp.ne.s32.totalorder %s196, %s197
    %p208 = scmp.eq.s32.totalorder %s20, 0
    %p209 = por %p207, %p208
    %p210 = scmp.ne.s32.totalorder %s196, %s197
    %p211 = scmp.eq.s32.totalorder %s21, 9
    %p212 = por %p210, %p211
    %p214 = scmp.ne.s32.totalorder %s197, %s213
    %p215 = scmp.eq.s32.totalorder %s21, 0
    %p216 = por %p214, %p215
    %s217 = ssub.s32 %s23, %s30
    %p218 = scmp.eq.s32.totalorder %s217, 0
    %s220 = sadd.s32 %s219, 1
    %s221 = scalar_select %p218, %s219, %s220
    %p224 = pneg %p218
    %p225 = scmp.eq.s32.totalorder %s15, 9
    %p226 = por %p224, %p225
    %p227 = scmp.ne.s32.totalorder %s219, %s222
    %p228 = scmp.eq.s32.totalorder %s15, 0
    %p229 = por %p227, %p228
    %p230 = scmp.ne.s32.totalorder %s219, %s222
    %p231 = scmp.eq.s32.totalorder %s20, 9
    %p232 = por %p230, %p231
    %p233 = scmp.ne.s32.totalorder %s222, %s223
    %p234 = scmp.eq.s32.totalorder %s20, 0
    %p235 = por %p233, %p234
    %p236 = scmp.ne.s32.totalorder %s222, %s223
    %p237 = scmp.eq.s32.totalorder %s21, 9
    %p238 = por %p236, %p237
    %p240 = scmp.ne.s32.totalorder %s223, %s239
    %p241 = scmp.eq.s32.totalorder %s21, 0
    %p242 = por %p240, %p241
    %s243 = ssub.s32 %s23, %s30
    %p244 = scmp.eq.s32.totalorder %s243, 0
    %s246 = sadd.s32 %s245, 1
    %s247 = scalar_select %p244, %s245, %s246
    %p250 = pneg %p244
    %p251 = scmp.eq.s32.totalorder %s15, 9
    %p252 = por %p250, %p251
    %p253 = scmp.ne.s32.totalorder %s245, %s248
    %p254 = scmp.eq.s32.totalorder %s15, 0
    %p255 = por %p253, %p254
    %p256 = scmp.ne.s32.totalorder %s245, %s248
    %p257 = scmp.eq.s32.totalorder %s20, 9
    %p258 = por %p256, %p257
    %p259 = scmp.ne.s32.totalorder %s248, %s249
    %p260 = scmp.eq.s32.totalorder %s20, 0
    %p261 = por %p259, %p260
    %p262 = scmp.ne.s32.totalorder %s248, %s249
    %p263 = scmp.eq.s32.totalorder %s21, 9
    %p264 = por %p262, %p263
    %p266 = scmp.ne.s32.totalorder %s249, %s265
    %p267 = scmp.eq.s32.totalorder %s21, 0
    %p268 = por %p266, %p267
    %s269 = ssub.s32 %s22, %s34
    %p270 = scmp.eq.s32.totalorder %s269, 0
    %s272 = sadd.s32 %s271, 1
    %s273 = scalar_select %p270, %s271, %s272
    %p276 = pneg %p270
    %p277 = scmp.eq.s32.totalorder %s15, 9
    %p278 = por %p276, %p277
    %p279 = scmp.ne.s32.totalorder %s271, %s274
    %p280 = scmp.eq.s32.totalorder %s15, 0
    %p281 = por %p279, %p280
    %p282 = scmp.ne.s32.totalorder %s271, %s274
    %p283 = scmp.eq.s32.totalorder %s20, 9
    %p284 = por %p282, %p283
    %p285 = scmp.ne.s32.totalorder %s274, %s275
    %p286 = scmp.eq.s32.totalorder %s20, 0
    %p287 = por %p285, %p286
    %p288 = scmp.ne.s32.totalorder %s274, %s275
    %p289 = scmp.eq.s32.totalorder %s21, 9
    %p290 = por %p288, %p289
    %p292 = scmp.ne.s32.totalorder %s275, %s291
    %p293 = scmp.eq.s32.totalorder %s21, 0
    %p294 = por %p292, %p293
    %p295 = scmp.le.s32.totalorder 1, %s15
    %p296 = scmp.lt.s32.totalorder %s15, 11
    %p297 = pnand %p295, %p296
    %p298 = pneg %p297
    // Predicated region
    $region9: #{encoder_fwd.17} parent=5 // pred_check
      _
    $region10: #{encoder_fwd.17} parent=5 // pred_check_branch
      %300 = sbr.rel (%p297) target = $region12
    $region11: #{encoder_fwd.17} parent=5 // pred_region
      %s301 = ssub.s32 %s15, 1
    $region12: #{encoder_fwd.17} parent=5 // pred_fallthru
      _
    %p302 = scmp.lt.s32.totalorder %s15, 10
    // Predicated region
    $region13: #{encoder_fwd.17} parent=5 // pred_check
      %p303 = pneg %p302
    $region14: #{encoder_fwd.17} parent=5 // pred_check_branch
      %305 = sbr.rel (%p303) target = $region16
    $region15: #{encoder_fwd.17} parent=5 // pred_region
      // Predicated region
      $region17: #{encoder_fwd.17} parent=15 // pred_check
        %p306 = pneg %p47
      $region18: #{encoder_fwd.17} parent=15 // pred_check_branch
        %308 = sbr.rel (%p306) target = $region20
      $region19: #{encoder_fwd.17} parent=15 // pred_region
        %p309 = scmp.lt.s32.totalorder %s22, 1
        %s310 = scalar_select %p309, %s22, 1
        %s311 = smul.addr %s310, 4
        %s312 = smul.addr %s311, 4
        %s313 = scalar_lea.vmem %s0, %s312
      $region20: #{encoder_fwd.17} parent=15 // pred_fallthru
        _
      // Predicated region
      $region21: #{encoder_fwd.17} parent=15 // pred_check
        %p314 = pneg %p73
      $region22: #{encoder_fwd.17} parent=15 // pred_check_branch
        %316 = sbr.rel (%p314) target = $region24
      $region23: #{encoder_fwd.17} parent=15 // pred_region
        %p317 = scmp.lt.s32.totalorder %s22, 1
        %s318 = scalar_select %p317, %s22, 1
        %s319 = scalar_lea.vmem %s1, %s318
      $region24: #{encoder_fwd.17} parent=15 // pred_fallthru
        _
      // Predicated region
      $region25: #{encoder_fwd.17} parent=15 // pred_check
        %p320 = pneg %p99
      $region26: #{encoder_fwd.17} parent=15 // pred_check_branch
        %322 = sbr.rel (%p320) target = $region28
      $region27: #{encoder_fwd.17} parent=15 // pred_region
        %p323 = scmp.lt.s32.totalorder %s22, 1
        %s324 = scalar_select %p323, %s22, 1
        %s325 = scalar_lea.vmem %s2, %s324
      $region28: #{encoder_fwd.17} parent=15 // pred_fallthru
        _
      // Predicated region
      $region29: #{encoder_fwd.17} parent=15 // pred_check
        %p326 = pneg %p125
      $region30: #{encoder_fwd.17} parent=15 // pred_check_branch
        %328 = sbr.rel (%p326) target = $region32
      $region31: #{encoder_fwd.17} parent=15 // pred_region
        %p329 = scmp.lt.s32.totalorder %s23, 4
        %s330 = scalar_select %p329, %s23, 4
        %s331 = smul.addr %s330, 2
        %s332 = smul.addr %s331, 4
        %s333 = scalar_lea.vmem %s3, %s332
      $region32: #{encoder_fwd.17} parent=15 // pred_fallthru
        _
      // Predicated region
      $region33: #{encoder_fwd.17} parent=15 // pred_check
        %p334 = pneg %p151
      $region34: #{encoder_fwd.17} parent=15 // pred_check_branch
        %336 = sbr.rel (%p334) target = $region36
      $region35: #{encoder_fwd.17} parent=15 // pred_region
        %p337 = scmp.lt.s32.totalorder %s23, 4
        %s338 = scalar_select %p337, %s23, 4
        %s339 = smul.addr %s338, 2
        %s340 = smul.addr %s339, 8
        %s341 = scalar_lea.vmem %s4, %s340
      $region36: #{encoder_fwd.17} parent=15 // pred_fallthru
        _
      // Predicated region
      $region37: #{encoder_fwd.17} parent=15 // pred_check
        %p342 = pneg %p177
      $region38: #{encoder_fwd.17} parent=15 // pred_check_branch
        %344 = sbr.rel (%p342) target = $region40
      $region39: #{encoder_fwd.17} parent=15 // pred_region
        %p345 = scmp.lt.s32.totalorder %s23, 4
        %s346 = scalar_select %p345, %s23, 4
        %s347 = smul.addr %s346, 4
        %s348 = smul.addr %s347, 4
        %s349 = scalar_lea.vmem %s5, %s348
      $region40: #{encoder_fwd.17} parent=15 // pred_fallthru
        _
      // Predicated region
      $region41: #{encoder_fwd.17} parent=15 // pred_check
        %p350 = pneg %p203
      $region42: #{encoder_fwd.17} parent=15 // pred_check_branch
        %352 = sbr.rel (%p350) target = $region44
      $region43: #{encoder_fwd.17} parent=15 // pred_region
        %p353 = scmp.lt.s32.totalorder %s23, 4
        %s354 = scalar_select %p353, %s23, 4
        %s355 = smul.addr %s354, 2
        %s356 = smul.addr %s355, 8
        %s357 = scalar_lea.vmem %s6, %s356
      $region44: #{encoder_fwd.17} parent=15 // pred_fallthru
        _
      // Predicated region
      $region45: #{encoder_fwd.17} parent=15 // pred_check
        %p358 = pneg %p229
      $region46: #{encoder_fwd.17} parent=15 // pred_check_branch
        %360 = sbr.rel (%p358) target = $region48
      $region47: #{encoder_fwd.17} parent=15 // pred_region
        %p361 = scmp.lt.s32.totalorder %s23, 4
        %s362 = scalar_select %p361, %s23, 4
        %s363 = smul.addr %s362, 4
        %s364 = smul.addr %s363, 4
        %s365 = scalar_lea.vmem %s7, %s364
      $region48: #{encoder_fwd.17} parent=15 // pred_fallthru
        _
      // Predicated region
      $region49: #{encoder_fwd.17} parent=15 // pred_check
        %p366 = pneg %p255
      $region50: #{encoder_fwd.17} parent=15 // pred_check_branch
        %368 = sbr.rel (%p366) target = $region52
      $region51: #{encoder_fwd.17} parent=15 // pred_region
        %p369 = scmp.lt.s32.totalorder %s23, 4
        %s370 = scalar_select %p369, %s23, 4
        %s371 = smul.addr %s370, 4
        %s372 = smul.addr %s371, 8
        %s373 = scalar_lea.vmem %s8, %s372
      $region52: #{encoder_fwd.17} parent=15 // pred_fallthru
        _
    $region16: #{encoder_fwd.17} parent=5 // pred_fallthru
      _
    %p374 = scmp.le.s32.totalorder 1, %s15
    %p375 = scmp.lt.s32.totalorder %s15, 11
    %p376 = pnand %p374, %p375
    %p377 = pneg %p376
    // Predicated region
    $region53: #{encoder_fwd.17} parent=5 // pred_check
      _
    $region54: #{encoder_fwd.17} parent=5 // pred_check_branch
      %379 = sbr.rel (%p376) target = $region56
    $region55: #{encoder_fwd.17} parent=5 // pred_region
      %s380 = ssub.s32 %s15, 1
      %p381 = scmp.lt.s32.totalorder %s24, 1
      %s382 = scalar_select %p381, %s24, 1
      %s383 = smul.addr %s382, 4
      %s384 = smul.addr %s383, 4
      %s385 = scalar_lea.vmem %s0, %s384
      %p386 = pneg %p53
      %p387 = pneg %p50
      %p388 = scmp.lt.s32.totalorder %s24, 1
      %s389 = scalar_select %p388, %s24, 1
      %s390 = scalar_lea.vmem %s1, %s389
      %p391 = pneg %p79
      %p392 = pneg %p76
      %p393 = scmp.lt.s32.totalorder %s24, 1
      %s394 = scalar_select %p393, %s24, 1
      %s395 = scalar_lea.vmem %s2, %s394
      %p396 = pneg %p105
      %p397 = pneg %p102
      %p398 = scmp.lt.s32.totalorder %s25, 4
      %s399 = scalar_select %p398, %s25, 4
      %s400 = smul.addr %s399, 2
      %s401 = smul.addr %s400, 4
      %s402 = scalar_lea.vmem %s3, %s401
      %p403 = pneg %p131
      %p404 = pneg %p128
      %p405 = scmp.lt.s32.totalorder %s25, 4
      %s406 = scalar_select %p405, %s25, 4
      %s407 = smul.addr %s406, 2
      %s408 = smul.addr %s407, 8
      %s409 = scalar_lea.vmem %s4, %s408
      %p410 = pneg %p157
      %p411 = pneg %p154
      %p412 = scmp.lt.s32.totalorder %s25, 4
      %s413 = scalar_select %p412, %s25, 4
      %s414 = smul.addr %s413, 4
      %s415 = smul.addr %s414, 4
      %s416 = scalar_lea.vmem %s5, %s415
      %p417 = pneg %p183
      %p418 = pneg %p180
      %p419 = scmp.lt.s32.totalorder %s25, 4
      %s420 = scalar_select %p419, %s25, 4
      %s421 = smul.addr %s420, 2
      %s422 = smul.addr %s421, 8
      %s423 = scalar_lea.vmem %s6, %s422
      %p424 = pneg %p209
      %p425 = pneg %p206
      %p426 = scmp.lt.s32.totalorder %s25, 4
      %s427 = scalar_select %p426, %s25, 4
      %s428 = smul.addr %s427, 4
      %s429 = smul.addr %s428, 4
      %s430 = scalar_lea.vmem %s7, %s429
      %p431 = pneg %p235
      %p432 = pneg %p232
      %p433 = scmp.lt.s32.totalorder %s25, 4
      %s434 = scalar_select %p433, %s25, 4
      %s435 = smul.addr %s434, 4
      %s436 = smul.addr %s435, 8
      %s437 = scalar_lea.vmem %s8, %s436
      %p438 = pneg %p261
      %p439 = pneg %p258
      %p440 = pneg %p287
      %p441 = pneg %p284
      %p442 = scmp.lt.s32.totalorder %s24, 1
      %s443 = scalar_select %p442, %s24, 1
      %s444 = smul.addr %s443, 4
      %s445 = smul.addr %s444, 4
      %s446 = scalar_lea.vmem %s9, %s445
      %p447 = scmp.lt.s32.totalorder %s24, 1
      %s448 = scalar_select %p447, %s24, 1
      %s449 = smul.addr %s448, 4
      %s450 = smul.addr %s449, 4
      %s451 = scalar_lea.vmem %s0, %s450
      %p452 = scmp.lt.s32.totalorder %s24, 1
      %s453 = scalar_select %p452, %s24, 1
      %s454 = scalar_lea.vmem %s1, %s453
      %p455 = scmp.lt.s32.totalorder %s24, 1
      %s456 = scalar_select %p455, %s24, 1
      %s457 = scalar_lea.vmem %s2, %s456
      %p458 = scmp.lt.s32.totalorder %s25, 4
      %s459 = scalar_select %p458, %s25, 4
      %s460 = smul.addr %s459, 2
      %s461 = smul.addr %s460, 4
      %s462 = scalar_lea.vmem %s3, %s461
      %p463 = scmp.lt.s32.totalorder %s25, 4
      %s464 = scalar_select %p463, %s25, 4
      %s465 = smul.addr %s464, 2
      %s466 = smul.addr %s465, 8
      %s467 = scalar_lea.vmem %s4, %s466
      %p468 = scmp.lt.s32.totalorder %s25, 4
      %s469 = scalar_select %p468, %s25, 4
      %s470 = smul.addr %s469, 4
      %s471 = smul.addr %s470, 4
      %s472 = scalar_lea.vmem %s5, %s471
      %p473 = scmp.lt.s32.totalorder %s25, 4
      %s474 = scalar_select %p473, %s25, 4
      %s475 = smul.addr %s474, 2
      %s476 = smul.addr %s475, 8
      %s477 = scalar_lea.vmem %s6, %s476
      %p478 = scmp.lt.s32.totalorder %s25, 4
      %s479 = scalar_select %p478, %s25, 4
      %s480 = smul.addr %s479, 4
      %s481 = smul.addr %s480, 4
      %s482 = scalar_lea.vmem %s7, %s481
      %p483 = scmp.lt.s32.totalorder %s25, 4
      %s484 = scalar_select %p483, %s25, 4
      %s485 = smul.addr %s484, 4
      %s486 = smul.addr %s485, 8
      %s487 = scalar_lea.vmem %s8, %s486
      %p488 = scmp.lt.s32.totalorder %s24, 1
      %s489 = scalar_select %p488, %s24, 1
      %s490 = smul.addr %s489, 4
      %s491 = smul.addr %s490, 4
      %s492 = scalar_lea.vmem %s9, %s491
      %p494 = scmp.eq.s32.totalorder %s25, 0
      // Predicated region
      $region57: #{encoder_fwd.17} parent=55 // pred_check
        %p495 = pneg %p494
      $region58: #{encoder_fwd.17} parent=55 // pred_check_branch
        %497 = sbr.rel (%p495) target = $region60
      $region59: #{encoder_fwd.17} parent=55 // pred_region
        %v498 = vld [vmem:[%s451] sm:$0xf]
        %v499 = vld [vmem:[%s451 + $0x4] sm:$0xf]
        %v500 = vld [vmem:[%s451 + $0x8] sm:$0xf]
        %v501 = vld [vmem:[%s451 + $0xc] sm:$0xf]
        %v502 = vunpack.c.l.bf16 %v498
        %v503 = vunpack.c.l.bf16 %v499
        %v504 = vunpack.c.l.bf16 %v500
        %v505 = vunpack.c.l.bf16 %v501
        %506 = vst [vmem:[#allocation2] sm:$0xff] %v502
        %507 = vst [vmem:[#allocation2 + $0x8] sm:$0xff] %v503
        %508 = vst [vmem:[#allocation2 + $0x10] sm:$0xff] %v504
        %509 = vst [vmem:[#allocation2 + $0x18] sm:$0xff] %v505
      $region60: #{encoder_fwd.17} parent=55 // pred_fallthru
        _
      %v510 = vld [vmem:[#allocation2] sm:$0xff]
      %v511 = vld [vmem:[#allocation2 + $0x8] sm:$0xff]
      %v512 = vld [vmem:[#allocation2 + $0x10] sm:$0xff]
      %v513 = vld [vmem:[#allocation2 + $0x18] sm:$0xff]
      %v514 = vpack.c.bf16 %v511, %v510
      %v515 = vpack.c.bf16 %v513, %v512
      %v516 = vld [vmem:[%s454] sm:$0x1]
      %v517 = vld [vmem:[%s457] sm:$0x1]
      %v518 = vld [vmem:[%s462] sm:$0xf]
      %v519 = vld [vmem:[%s462 + $0x4] sm:$0xf]
      %v520 = vld [vmem:[%s467] sm:$0xff]
      %v521 = vld [vmem:[%s467 + $0x8] sm:$0xff]
      %v522 = vld [vmem:[%s472] sm:$0xff]
      %v523 = vld [vmem:[%s472 + $0x8] sm:$0xff]
      %v524 = vld [vmem:[%s477] sm:$0xff]
      %v525 = vld [vmem:[%s477 + $0x8] sm:$0xff]
      %v526 = vld [vmem:[%s482] sm:$0xf]
      %v527 = vld [vmem:[%s482 + $0x4] sm:$0xf]
      %v528 = vld [vmem:[%s482 + $0x8] sm:$0xf]
      %v529 = vld [vmem:[%s482 + $0xc] sm:$0xf]
      %v530 = vld [vmem:[%s487] sm:$0xff]
      %v531 = vld [vmem:[%s487 + $0x8] sm:$0xff]
      %v532 = vld [vmem:[%s487 + $0x10] sm:$0xff]
      %v533 = vld [vmem:[%s487 + $0x18] sm:$0xff]
      %535 = vset.pattern.permute.xlu0 0
      %536 = vperm.xlu0 %535, %v520
      %v537 = vpop.permute.xlu0 %536
      %540 = vset.pattern.permute.xlu0 0
      %541 = vperm.xlu0 %540, %v521
      %v542 = vpop.permute.xlu0 %541
      %v546 = vunpack.c.l.b16 %v518
      %v547 = vunpack.c.l.b16 %v519
      %v548 = vpack.c.b16 %v547, %v546
      %vm549 = vcmask 261120
      %v551 = vsel %vm549, %v548, 0
      %553 = vmatprep.subr.bf16.mxu0 0
      %554 = vmatpush1.bf16.msra.mxu0 0
      %555 = vmatprep.subr.bf16.mxu0 0
      %556 = vmatpush1.bf16.msra.mxu0 0
      %557 = vmatprep.subr.bf16.mxu0 0
      %558 = vmatpush1.bf16.msra.mxu0 0
      %559 = vmatprep.subr.bf16.mxu0 0
      %560 = vmatpush1.bf16.msra.mxu0 0
      %561 = vmatprep.subr.bf16.mxu0 0
      %562 = vmatpush1.bf16.msra.mxu0 0
      %563 = vmatprep.subr.bf16.mxu0 0
      %564 = vmatpush1.bf16.msra.mxu0 0
      %565 = vmatprep.subr.bf16.mxu0 0
      %566 = vmatpush1.bf16.msra.mxu0 %v515
      %567 = vmatprep.subr.bf16.mxu0 0
      %568 = vmatpush1.bf16.msra.mxu0 %v514
      %569 = vmatprep.subr.bf16.mxu0 0
      %570 = vmatpush2.bf16.msra.mxu0 0
      %571 = vmatprep.subr.bf16.mxu0 0
      %572 = vmatpush2.bf16.msra.mxu0 0
      %573 = vmatprep.subr.bf16.mxu0 0
      %574 = vmatpush2.bf16.msra.mxu0 0
      %575 = vmatprep.subr.bf16.mxu0 0
      %576 = vmatpush2.bf16.msra.mxu0 0
      %577 = vmatprep.subr.bf16.mxu0 0
      %578 = vmatpush2.bf16.msra.mxu0 0
      %579 = vmatprep.subr.bf16.mxu0 0
      %580 = vmatpush2.bf16.msra.mxu0 0
      %581 = vmatprep.subr.bf16.mxu0 0
      %582 = vmatpush2.bf16.msra.mxu0 0
      %583 = vmatprep.subr.bf16.mxu0 0
      %584 = vmatpush2.bf16.msra.mxu0 0
      %585 = vmatprep.mubr.bf16.mxu0 0
      %586 = vmatmul.mubr.bf16.gmra.mxu0 %v551
      %v587 = vpop.f32.mrf.mxu0
      %v588 = vadd.f32 %v537, %v587
      %v589 = vpop.f32.mrf.mxu0
      %v590 = vpop.f32.mrf.mxu0
      %v591 = vadd.f32 %v542, %v590
      %v592 = vpop.f32.mrf.mxu0
      %593 = vdwg.mxu0
      %v594 = vmax.f32 %v588, 0.0
      %v595 = vmax.f32 %v591, 0.0
      %v597 = vlaneseq
      %v598 = vshrl.u32 %v597, 7
      %v599 = vsub.s32 0, %v598
      %v600 = vrot.slane %v516, %v599
      %v602 = vmul.f32 %v594, %v600
      %v603 = vmul.f32 %v595, %v600
      %604 = vrot.lane.b32.xlu0 %v602, 11
      %v605 = vpop.permute.xlu0 %604
      %606 = vrot.lane.b32.xlu0 %v603, 11
      %v607 = vpop.permute.xlu0 %606
      %v608 = vpack.c.bf16 %v607, %v605
      %609 = vrot.lane.b32.xlu0 %v602, 10
      %v610 = vpop.permute.xlu0 %609
      %611 = vrot.lane.b32.xlu0 %v603, 10
      %v612 = vpop.permute.xlu0 %611
      %v613 = vpack.c.bf16 %v612, %v610
      %614 = vrot.lane.b32.xlu0 %v602, 9
      %v615 = vpop.permute.xlu0 %614
      %616 = vrot.lane.b32.xlu0 %v603, 9
      %v617 = vpop.permute.xlu0 %616
      %v618 = vpack.c.bf16 %v617, %v615
      %619 = vrot.lane.b32.xlu0 %v602, 1
      %v620 = vpop.permute.xlu0 %619
      %621 = vrot.lane.b32.xlu0 %v603, 1
      %v622 = vpop.permute.xlu0 %621
      %v623 = vpack.c.bf16 %v622, %v620
      %v624 = vpack.c.bf16 %v603, %v602
      %625 = vrot.lane.b32.xlu0 %v602, 127
      %v626 = vpop.permute.xlu0 %625
      %627 = vrot.lane.b32.xlu0 %v603, 127
      %v628 = vpop.permute.xlu0 %627
      %v629 = vpack.c.bf16 %v628, %v626
      %630 = vrot.lane.b32.xlu0 %v602, 119
      %v631 = vpop.permute.xlu0 %630
      %632 = vrot.lane.b32.xlu0 %v603, 119
      %v633 = vpop.permute.xlu0 %632
      %v634 = vpack.c.bf16 %v633, %v631
      %635 = vrot.lane.b32.xlu0 %v602, 118
      %v636 = vpop.permute.xlu0 %635
      %637 = vrot.lane.b32.xlu0 %v603, 118
      %v638 = vpop.permute.xlu0 %637
      %v639 = vpack.c.bf16 %v638, %v636
      %640 = vrot.lane.b32.xlu0 %v602, 117
      %v641 = vpop.permute.xlu0 %640
      %642 = vrot.lane.b32.xlu0 %v603, 117
      %v643 = vpop.permute.xlu0 %642
      %v644 = vpack.c.bf16 %v643, %v641
      %v647 = vunpack.c.l.b16 %v522
      %v648 = vunpack.c.h.b16 %v522
      %v649 = vunpack.c.l.b16 %v523
      %v650 = vunpack.c.h.b16 %v523
      %v651 = vpack.c.b16 %v649, %v647
      %v652 = vpack.c.b16 %v650, %v648
      %vm654 = vcmask 130048
      %v656 = vsel %vm654, %v652, 0
      %658 = vmatprep.subr.bf16.mxu0 0
      %659 = vmatpush1.bf16.msra.mxu0 %v639
      %660 = vmatprep.subr.bf16.mxu0 0
      %661 = vmatpush1.bf16.msra.mxu0 %v634
      %662 = vmatprep.subr.bf16.mxu0 0
      %663 = vmatpush1.bf16.msra.mxu0 %v629
      %664 = vmatprep.subr.bf16.mxu0 0
      %665 = vmatpush1.bf16.msra.mxu0 %v624
      %666 = vmatprep.subr.bf16.mxu0 0
      %667 = vmatpush1.bf16.msra.mxu0 %v623
      %668 = vmatprep.subr.bf16.mxu0 0
      %669 = vmatpush1.bf16.msra.mxu0 %v618
      %670 = vmatprep.subr.bf16.mxu0 0
      %671 = vmatpush1.bf16.msra.mxu0 %v613
      %672 = vmatprep.subr.bf16.mxu0 0
      %673 = vmatpush1.bf16.msra.mxu0 %v608
      %674 = vmatprep.subr.bf16.mxu0 0
      %675 = vmatpush2.bf16.msra.mxu0 0
      %676 = vmatprep.subr.bf16.mxu0 0
      %677 = vmatpush2.bf16.msra.mxu0 0
      %678 = vmatprep.subr.bf16.mxu0 0
      %679 = vmatpush2.bf16.msra.mxu0 0
      %680 = vmatprep.subr.bf16.mxu0 0
      %681 = vmatpush2.bf16.msra.mxu0 0
      %682 = vmatprep.subr.bf16.mxu0 0
      %683 = vmatpush2.bf16.msra.mxu0 0
      %684 = vmatprep.subr.bf16.mxu0 0
      %685 = vmatpush2.bf16.msra.mxu0 0
      %686 = vmatprep.subr.bf16.mxu0 0
      %687 = vmatpush2.bf16.msra.mxu0 0
      %688 = vmatprep.subr.bf16.mxu0 0
      %689 = vmatpush2.bf16.msra.mxu0 %v644
      %690 = vmatprep.mubr.bf16.mxu0 %v656
      %691 = vmatmul.mubr.bf16.gmra.mxu0 %v651
      %v692 = vpop.f32.mrf.mxu0
      %v693 = vadd.f32 0.0, %v692
      %v694 = vpop.f32.mrf.mxu0
      %v695 = vpop.f32.mrf.mxu0
      %v696 = vadd.f32 0.0, %v695
      %v697 = vpop.f32.mrf.mxu0
      %698 = vdwg.mxu0
      %v700 = vlaneseq
      %v701 = vshrl.u32 %v700, 7
      %v702 = vsub.s32 0, %v701
      %v703 = vrot.slane %v517, %v702
      %v705 = vmul.f32 %v693, %v703
      %v706 = vmul.f32 %v696, %v703
      %708 = vset.pattern.permute.xlu0 0
      %709 = vperm.xlu0 %708, %v524
      %v710 = vpop.permute.xlu0 %709
      %713 = vset.pattern.permute.xlu0 0
      %714 = vperm.xlu0 %713, %v525
      %v715 = vpop.permute.xlu0 %714
      %v717 = vadd.f32 %v705, %v710
      %v718 = vadd.f32 %v706, %v715
      %v719 = vmax.f32 %v717, 0.0
      %v720 = vmax.f32 %v718, 0.0
      %v721 = vpack.c.bf16 %v720, %v719
      %723 = vset.pattern.permute.xlu0 0
      %724 = vperm.xlu0 %723, %v530
      %v725 = vpop.permute.xlu0 %724
      %728 = vset.pattern.permute.xlu0 0
      %729 = vperm.xlu0 %728, %v531
      %v730 = vpop.permute.xlu0 %729
      %733 = vset.pattern.permute.xlu0 0
      %734 = vperm.xlu0 %733, %v532
      %v735 = vpop.permute.xlu0 %734
      %738 = vset.pattern.permute.xlu0 0
      %739 = vperm.xlu0 %738, %v533
      %v740 = vpop.permute.xlu0 %739
      %v746 = vunpack.c.l.b16 %v526
      %v747 = vunpack.c.l.b16 %v527
      %v748 = vunpack.c.l.b16 %v528
      %v749 = vunpack.c.l.b16 %v529
      %v750 = vpack.c.b16 %v747, %v746
      %v751 = vpack.c.b16 %v749, %v748
      %v753 = vsel %vm654, %v750, 0
      %v756 = vsel %vm654, %v751, 0
      %758 = vmatprep.subr.bf16.mxu0 0
      %759 = vmatpush1.bf16.msra.mxu0 0
      %760 = vmatprep.subr.bf16.mxu0 0
      %761 = vmatpush1.bf16.msra.mxu0 0
      %762 = vmatprep.subr.bf16.mxu0 0
      %763 = vmatpush1.bf16.msra.mxu0 0
      %764 = vmatprep.subr.bf16.mxu0 0
      %765 = vmatpush1.bf16.msra.mxu0 0
      %766 = vmatprep.subr.bf16.mxu0 0
      %767 = vmatpush1.bf16.msra.mxu0 0
      %768 = vmatprep.subr.bf16.mxu0 0
      %769 = vmatpush1.bf16.msra.mxu0 0
      %770 = vmatprep.subr.bf16.mxu0 0
      %771 = vmatpush1.bf16.msra.mxu0 0
      %772 = vmatprep.subr.bf16.mxu0 0
      %773 = vmatpush1.bf16.msra.mxu0 %v721
      %774 = vmatprep.subr.bf16.mxu0 0
      %775 = vmatpush2.bf16.msra.mxu0 0
      %776 = vmatprep.subr.bf16.mxu0 0
      %777 = vmatpush2.bf16.msra.mxu0 0
      %778 = vmatprep.subr.bf16.mxu0 0
      %779 = vmatpush2.bf16.msra.mxu0 0
      %780 = vmatprep.subr.bf16.mxu0 0
      %781 = vmatpush2.bf16.msra.mxu0 0
      %782 = vmatprep.subr.bf16.mxu0 0
      %783 = vmatpush2.bf16.msra.mxu0 0
      %784 = vmatprep.subr.bf16.mxu0 0
      %785 = vmatpush2.bf16.msra.mxu0 0
      %786 = vmatprep.subr.bf16.mxu0 0
      %787 = vmatpush2.bf16.msra.mxu0 0
      %788 = vmatprep.subr.bf16.mxu0 0
      %789 = vmatpush2.bf16.msra.mxu0 0
      %790 = vmatprep.mubr.bf16.mxu0 0
      %791 = vmatmul.mubr.bf16.gmra.mxu0 %v753
      %v792 = vpop.f32.mrf.mxu0
      %v793 = vadd.f32 %v725, %v792
      %v794 = vpop.f32.mrf.mxu0
      %v795 = vpop.f32.mrf.mxu0
      %v796 = vadd.f32 %v730, %v795
      %v797 = vpop.f32.mrf.mxu0
      %798 = vmatprep.mubr.bf16.mxu0 0
      %799 = vmatmul.mubr.bf16.gmra.mxu0 %v756
      %v800 = vpop.f32.mrf.mxu0
      %v801 = vadd.f32 %v735, %v800
      %v802 = vpop.f32.mrf.mxu0
      %v803 = vpop.f32.mrf.mxu0
      %v804 = vadd.f32 %v740, %v803
      %v805 = vpop.f32.mrf.mxu0
      %806 = vdwg.mxu0
      %v807 = vadd.f32 %v793, %v510
      %v808 = vadd.f32 %v796, %v511
      %v809 = vadd.f32 %v801, %v512
      %v810 = vadd.f32 %v804, %v513
      %v811 = vmax.f32 %v807, 0.0
      %v812 = vmax.f32 %v808, 0.0
      %v813 = vmax.f32 %v809, 0.0
      %v814 = vmax.f32 %v810, 0.0
      %815 = vst [vmem:[#allocation2] sm:$0xff] %v811
      %816 = vst [vmem:[#allocation2 + $0x8] sm:$0xff] %v812
      %817 = vst [vmem:[#allocation2 + $0x10] sm:$0xff] %v813
      %818 = vst [vmem:[#allocation2 + $0x18] sm:$0xff] %v814
      %p819 = scmp.eq.s32.totalorder %s25, 4
      // Predicated region
      $region61: #{encoder_fwd.17} parent=55 // pred_check
        %p820 = pneg %p819
      $region62: #{encoder_fwd.17} parent=55 // pred_check_branch
        %822 = sbr.rel (%p820) target = $region64
      $region63: #{encoder_fwd.17} parent=55 // pred_region
        %v823 = vpack.c.bf16 %v812, %v811
        %v824 = vpack.c.bf16 %v814, %v813
        %v827 = vunpack.c.l.b16 %v823
        %v828 = vunpack.c.h.b16 %v823
        %v829 = vunpack.c.l.b16 %v824
        %v830 = vunpack.c.h.b16 %v824
        %v831 = vpack.c.b16 %v827, %v827
        %v832 = vpack.c.b16 %v828, %v828
        %v833 = vpack.c.b16 %v829, %v829
        %v834 = vpack.c.b16 %v830, %v830
        %839 = vst [vmem:[%s492] sm:$0xf] %v831
        %840 = vst [vmem:[%s492 + $0x4] sm:$0xf] %v832
        %841 = vst [vmem:[%s492 + $0x8] sm:$0xf] %v833
        %842 = vst [vmem:[%s492 + $0xc] sm:$0xf] %v834
      $region64: #{encoder_fwd.17} parent=55 // pred_fallthru
        _
      %p843 = scmp.lt.s32.totalorder %s24, 1
      %s844 = scalar_select %p843, %s24, 1
      %s845 = smul.addr %s844, 4
      %s846 = smul.addr %s845, 4
      %s847 = scalar_lea.vmem %s9, %s846
      // Predicated region
      $region65: #{encoder_fwd.17} parent=55 // pred_check
        %p848 = pneg %p284
      $region66: #{encoder_fwd.17} parent=55 // pred_check_branch
        %850 = sbr.rel (%p848) target = $region68
      $region67: #{encoder_fwd.17} parent=55 // pred_region
        _
      $region68: #{encoder_fwd.17} parent=55 // pred_fallthru
        _
    $region56: #{encoder_fwd.17} parent=5 // pred_fallthru
      _
    %p851 = scmp.le.s32.totalorder 2, %s15
    // Predicated region
    $region69: #{encoder_fwd.17} parent=5 // pred_check
      %p852 = pneg %p851
    $region70: #{encoder_fwd.17} parent=5 // pred_check_branch
      %854 = sbr.rel (%p852) target = $region72
    $region71: #{encoder_fwd.17} parent=5 // pred_region
      %s855 = ssub.s32 %s15, 2
      // Predicated region
      $region73: #{encoder_fwd.17} parent=71 // pred_check
        %p856 = pneg %p290
      $region74: #{encoder_fwd.17} parent=71 // pred_check_branch
        %858 = sbr.rel (%p856) target = $region76
      $region75: #{encoder_fwd.17} parent=71 // pred_region
        %p859 = scmp.lt.s32.totalorder %s26, 1
        %s860 = scalar_select %p859, %s26, 1
        %s861 = smul.addr %s860, 4
        %s862 = smul.addr %s861, 4
        %s863 = scalar_lea.vmem %s9, %s862
      $region76: #{encoder_fwd.17} parent=71 // pred_fallthru
        _
    $region72: #{encoder_fwd.17} parent=5 // pred_fallthru
      _
  $region6: #{encoder_fwd.17} parent=0 // loop_footer
    %s19 = sadd.s32 1, %s15
  $region7: #{encoder_fwd.17} parent=0 // loop_footer_branch
    %14 = sbr.rel target = $region3
  $region8: #{encoder_fwd.17} parent=0 // loop_exit
    _

// kernel: encoder_fwd.21
$region0: #{encoder_fwd.21}
  #allocation0 [shape = 'u32[]', space=smem, size = 0x4, offset = 0x4, fixed_abs, tag = 'smem constant byte address 0x4 - core index']
  #allocation1 [shape = 'u32[144,128]{1,0:T(1,128)}', space=vmem, size = 0x12000, scoped, tag = 'internal scratch']
  %s0 = inlined_call_operand.vmem [shape: bf16[2,32,128], index: 0, kind: input, shape index: {}]
  %s1 = inlined_call_operand.vmem [shape: f32[2,1,128], index: 1, kind: input, shape index: {}]
  %s2 = inlined_call_operand.vmem [shape: f32[2,1,128], index: 2, kind: input, shape index: {}]
  %s3 = inlined_call_operand.vmem [shape: bf16[32,32], index: 3, kind: input, shape index: {}]
  %s4 = inlined_call_operand.vmem [shape: f32[32,1], index: 4, kind: input, shape index: {}]
  %s5 = inlined_call_operand.vmem [shape: bf16[32,288], index: 5, kind: input, shape index: {}]
  %s6 = inlined_call_operand.vmem [shape: f32[32,1], index: 6, kind: input, shape index: {}]
  %s7 = inlined_call_operand.vmem [shape: bf16[64,32], index: 7, kind: input, shape index: {}]
  %s8 = inlined_call_operand.vmem [shape: f32[64,1], index: 8, kind: input, shape index: {}]
  %s9 = inlined_call_operand.vmem [shape: bf16[64,32], index: 9, kind: input, shape index: {}]
  %s10 = inlined_call_operand.vmem [shape: f32[64,1], index: 10, kind: input, shape index: {}]
  %s11 = inlined_call_operand.vmem [shape: bf16[2,64,128], index: 11, kind: output, shape index: {}]
  %s12 = sld [smem:[#allocation0]]
  $region77: #{encoder_fwd.21} parent=0
    _
  %s14 = ssub.s32 1, %s12
  %s15 = scalar_select 0, %s14, %s12
  loop: start=0, step=1, limit=4
  $region2: #{encoder_fwd.21} parent=0 // loop_pre_header
    _
  $region3: #{encoder_fwd.21} parent=0 // loop_header
    %s17 = sphi 0, %s21
    %p18 = scmp.ge.s32.totalorder %s17, 4
    %s27 = sphi 0, %s29
    %s30 = sphi 0, %s27
    %s31 = sphi 0, %s30
    %s47 = sphi 0, %s31
    %s53 = sphi 0, %s55
    %s56 = sphi 0, %s53
    %s57 = sphi 0, %s56
    %s73 = sphi 0, %s57
    %s79 = sphi 0, %s81
    %s82 = sphi 0, %s79
    %s83 = sphi 0, %s82
    %s99 = sphi 0, %s83
    %s103 = sphi 0, %s103
    %s105 = sphi 0, %s103
    %s106 = sphi 0, %s105
    %s120 = sphi 0, %s106
    %s124 = sphi 0, %s124
    %s126 = sphi 0, %s124
    %s127 = sphi 0, %s126
    %s141 = sphi 0, %s127
    %s145 = sphi 0, %s145
    %s147 = sphi 0, %s145
    %s148 = sphi 0, %s147
    %s162 = sphi 0, %s148
    %s166 = sphi 0, %s166
    %s168 = sphi 0, %s166
    %s169 = sphi 0, %s168
    %s183 = sphi 0, %s169
    %s187 = sphi 0, %s187
    %s189 = sphi 0, %s187
    %s190 = sphi 0, %s189
    %s204 = sphi 0, %s190
    %s208 = sphi 0, %s208
    %s210 = sphi 0, %s208
    %s211 = sphi 0, %s210
    %s225 = sphi 0, %s211
    %s229 = sphi 0, %s229
    %s231 = sphi 0, %s229
    %s232 = sphi 0, %s231
    %s246 = sphi 0, %s232
    %s250 = sphi 0, %s250
    %s252 = sphi 0, %s250
    %s253 = sphi 0, %s252
    %s267 = sphi 0, %s253
    %s273 = sphi 0, %s275
    %s276 = sphi 0, %s273
    %s277 = sphi 0, %s276
    %s293 = sphi 0, %s277
  $region4: #{encoder_fwd.21} parent=0 // loop_header_branch
    %20 = sbr.rel (%p18) target = $region8
  $region5: #{encoder_fwd.21} parent=0 // loop_body
    %s22 = ssub.s32 %s17, 1
    %s23 = ssub.s32 %s17, 2
    %s24 = sadd.s32 %s17, 1
    %s25 = ssub.s32 %s17, %s24
    %p26 = scmp.eq.s32.totalorder %s25, 0
    %s28 = sadd.s32 %s27, 1
    %s29 = scalar_select %p26, %s27, %s28
    %p32 = pneg %p26
    %p33 = scmp.eq.s32.totalorder %s17, 1
    %p34 = por %p32, %p33
    %p35 = scmp.ne.s32.totalorder %s27, %s30
    %p36 = scmp.eq.s32.totalorder %s17, 0
    %p37 = por %p35, %p36
    %p38 = scmp.ne.s32.totalorder %s27, %s30
    %p39 = scmp.eq.s32.totalorder %s22, 1
    %p40 = por %p38, %p39
    %p41 = scmp.ne.s32.totalorder %s30, %s31
    %p42 = scmp.eq.s32.totalorder %s22, 0
    %p43 = por %p41, %p42
    %p44 = scmp.ne.s32.totalorder %s30, %s31
    %p45 = scmp.eq.s32.totalorder %s23, 1
    %p46 = por %p44, %p45
    %p48 = scmp.ne.s32.totalorder %s31, %s47
    %p49 = scmp.eq.s32.totalorder %s23, 0
    %p50 = por %p48, %p49
    %s51 = ssub.s32 %s17, %s24
    %p52 = scmp.eq.s32.totalorder %s51, 0
    %s54 = sadd.s32 %s53, 1
    %s55 = scalar_select %p52, %s53, %s54
    %p58 = pneg %p52
    %p59 = scmp.eq.s32.totalorder %s17, 1
    %p60 = por %p58, %p59
    %p61 = scmp.ne.s32.totalorder %s53, %s56
    %p62 = scmp.eq.s32.totalorder %s17, 0
    %p63 = por %p61, %p62
    %p64 = scmp.ne.s32.totalorder %s53, %s56
    %p65 = scmp.eq.s32.totalorder %s22, 1
    %p66 = por %p64, %p65
    %p67 = scmp.ne.s32.totalorder %s56, %s57
    %p68 = scmp.eq.s32.totalorder %s22, 0
    %p69 = por %p67, %p68
    %p70 = scmp.ne.s32.totalorder %s56, %s57
    %p71 = scmp.eq.s32.totalorder %s23, 1
    %p72 = por %p70, %p71
    %p74 = scmp.ne.s32.totalorder %s57, %s73
    %p75 = scmp.eq.s32.totalorder %s23, 0
    %p76 = por %p74, %p75
    %s77 = ssub.s32 %s17, %s24
    %p78 = scmp.eq.s32.totalorder %s77, 0
    %s80 = sadd.s32 %s79, 1
    %s81 = scalar_select %p78, %s79, %s80
    %p84 = pneg %p78
    %p85 = scmp.eq.s32.totalorder %s17, 1
    %p86 = por %p84, %p85
    %p87 = scmp.ne.s32.totalorder %s79, %s82
    %p88 = scmp.eq.s32.totalorder %s17, 0
    %p89 = por %p87, %p88
    %p90 = scmp.ne.s32.totalorder %s79, %s82
    %p91 = scmp.eq.s32.totalorder %s22, 1
    %p92 = por %p90, %p91
    %p93 = scmp.ne.s32.totalorder %s82, %s83
    %p94 = scmp.eq.s32.totalorder %s22, 0
    %p95 = por %p93, %p94
    %p96 = scmp.ne.s32.totalorder %s82, %s83
    %p97 = scmp.eq.s32.totalorder %s23, 1
    %p98 = por %p96, %p97
    %p100 = scmp.ne.s32.totalorder %s83, %s99
    %p101 = scmp.eq.s32.totalorder %s23, 0
    %p102 = por %p100, %p101
    %s104 = sadd.s32 %s103, 1
    %p107 = scmp.eq.s32.totalorder %s17, 1
    %p108 = scmp.ne.s32.totalorder %s103, %s105
    %p109 = scmp.eq.s32.totalorder %s17, 0
    %p110 = por %p108, %p109
    %p111 = scmp.ne.s32.totalorder %s103, %s105
    %p112 = scmp.eq.s32.totalorder %s22, 1
    %p113 = por %p111, %p112
    %p114 = scmp.ne.s32.totalorder %s105, %s106
    %p115 = scmp.eq.s32.totalorder %s22, 0
    %p116 = por %p114, %p115
    %p117 = scmp.ne.s32.totalorder %s105, %s106
    %p118 = scmp.eq.s32.totalorder %s23, 1
    %p119 = por %p117, %p118
    %p121 = scmp.ne.s32.totalorder %s106, %s120
    %p122 = scmp.eq.s32.totalorder %s23, 0
    %p123 = por %p121, %p122
    %s125 = sadd.s32 %s124, 1
    %p128 = scmp.eq.s32.totalorder %s17, 1
    %p129 = scmp.ne.s32.totalorder %s124, %s126
    %p130 = scmp.eq.s32.totalorder %s17, 0
    %p131 = por %p129, %p130
    %p132 = scmp.ne.s32.totalorder %s124, %s126
    %p133 = scmp.eq.s32.totalorder %s22, 1
    %p134 = por %p132, %p133
    %p135 = scmp.ne.s32.totalorder %s126, %s127
    %p136 = scmp.eq.s32.totalorder %s22, 0
    %p137 = por %p135, %p136
    %p138 = scmp.ne.s32.totalorder %s126, %s127
    %p139 = scmp.eq.s32.totalorder %s23, 1
    %p140 = por %p138, %p139
    %p142 = scmp.ne.s32.totalorder %s127, %s141
    %p143 = scmp.eq.s32.totalorder %s23, 0
    %p144 = por %p142, %p143
    %s146 = sadd.s32 %s145, 1
    %p149 = scmp.eq.s32.totalorder %s17, 1
    %p150 = scmp.ne.s32.totalorder %s145, %s147
    %p151 = scmp.eq.s32.totalorder %s17, 0
    %p152 = por %p150, %p151
    %p153 = scmp.ne.s32.totalorder %s145, %s147
    %p154 = scmp.eq.s32.totalorder %s22, 1
    %p155 = por %p153, %p154
    %p156 = scmp.ne.s32.totalorder %s147, %s148
    %p157 = scmp.eq.s32.totalorder %s22, 0
    %p158 = por %p156, %p157
    %p159 = scmp.ne.s32.totalorder %s147, %s148
    %p160 = scmp.eq.s32.totalorder %s23, 1
    %p161 = por %p159, %p160
    %p163 = scmp.ne.s32.totalorder %s148, %s162
    %p164 = scmp.eq.s32.totalorder %s23, 0
    %p165 = por %p163, %p164
    %s167 = sadd.s32 %s166, 1
    %p170 = scmp.eq.s32.totalorder %s17, 1
    %p171 = scmp.ne.s32.totalorder %s166, %s168
    %p172 = scmp.eq.s32.totalorder %s17, 0
    %p173 = por %p171, %p172
    %p174 = scmp.ne.s32.totalorder %s166, %s168
    %p175 = scmp.eq.s32.totalorder %s22, 1
    %p176 = por %p174, %p175
    %p177 = scmp.ne.s32.totalorder %s168, %s169
    %p178 = scmp.eq.s32.totalorder %s22, 0
    %p179 = por %p177, %p178
    %p180 = scmp.ne.s32.totalorder %s168, %s169
    %p181 = scmp.eq.s32.totalorder %s23, 1
    %p182 = por %p180, %p181
    %p184 = scmp.ne.s32.totalorder %s169, %s183
    %p185 = scmp.eq.s32.totalorder %s23, 0
    %p186 = por %p184, %p185
    %s188 = sadd.s32 %s187, 1
    %p191 = scmp.eq.s32.totalorder %s17, 1
    %p192 = scmp.ne.s32.totalorder %s187, %s189
    %p193 = scmp.eq.s32.totalorder %s17, 0
    %p194 = por %p192, %p193
    %p195 = scmp.ne.s32.totalorder %s187, %s189
    %p196 = scmp.eq.s32.totalorder %s22, 1
    %p197 = por %p195, %p196
    %p198 = scmp.ne.s32.totalorder %s189, %s190
    %p199 = scmp.eq.s32.totalorder %s22, 0
    %p200 = por %p198, %p199
    %p201 = scmp.ne.s32.totalorder %s189, %s190
    %p202 = scmp.eq.s32.totalorder %s23, 1
    %p203 = por %p201, %p202
    %p205 = scmp.ne.s32.totalorder %s190, %s204
    %p206 = scmp.eq.s32.totalorder %s23, 0
    %p207 = por %p205, %p206
    %s209 = sadd.s32 %s208, 1
    %p212 = scmp.eq.s32.totalorder %s17, 1
    %p213 = scmp.ne.s32.totalorder %s208, %s210
    %p214 = scmp.eq.s32.totalorder %s17, 0
    %p215 = por %p213, %p214
    %p216 = scmp.ne.s32.totalorder %s208, %s210
    %p217 = scmp.eq.s32.totalorder %s22, 1
    %p218 = por %p216, %p217
    %p219 = scmp.ne.s32.totalorder %s210, %s211
    %p220 = scmp.eq.s32.totalorder %s22, 0
    %p221 = por %p219, %p220
    %p222 = scmp.ne.s32.totalorder %s210, %s211
    %p223 = scmp.eq.s32.totalorder %s23, 1
    %p224 = por %p222, %p223
    %p226 = scmp.ne.s32.totalorder %s211, %s225
    %p227 = scmp.eq.s32.totalorder %s23, 0
    %p228 = por %p226, %p227
    %s230 = sadd.s32 %s229, 1
    %p233 = scmp.eq.s32.totalorder %s17, 1
    %p234 = scmp.ne.s32.totalorder %s229, %s231
    %p235 = scmp.eq.s32.totalorder %s17, 0
    %p236 = por %p234, %p235
    %p237 = scmp.ne.s32.totalorder %s229, %s231
    %p238 = scmp.eq.s32.totalorder %s22, 1
    %p239 = por %p237, %p238
    %p240 = scmp.ne.s32.totalorder %s231, %s232
    %p241 = scmp.eq.s32.totalorder %s22, 0
    %p242 = por %p240, %p241
    %p243 = scmp.ne.s32.totalorder %s231, %s232
    %p244 = scmp.eq.s32.totalorder %s23, 1
    %p245 = por %p243, %p244
    %p247 = scmp.ne.s32.totalorder %s232, %s246
    %p248 = scmp.eq.s32.totalorder %s23, 0
    %p249 = por %p247, %p248
    %s251 = sadd.s32 %s250, 1
    %p254 = scmp.eq.s32.totalorder %s17, 1
    %p255 = scmp.ne.s32.totalorder %s250, %s252
    %p256 = scmp.eq.s32.totalorder %s17, 0
    %p257 = por %p255, %p256
    %p258 = scmp.ne.s32.totalorder %s250, %s252
    %p259 = scmp.eq.s32.totalorder %s22, 1
    %p260 = por %p258, %p259
    %p261 = scmp.ne.s32.totalorder %s252, %s253
    %p262 = scmp.eq.s32.totalorder %s22, 0
    %p263 = por %p261, %p262
    %p264 = scmp.ne.s32.totalorder %s252, %s253
    %p265 = scmp.eq.s32.totalorder %s23, 1
    %p266 = por %p264, %p265
    %p268 = scmp.ne.s32.totalorder %s253, %s267
    %p269 = scmp.eq.s32.totalorder %s23, 0
    %p270 = por %p268, %p269
    %s271 = ssub.s32 %s17, %s24
    %p272 = scmp.eq.s32.totalorder %s271, 0
    %s274 = sadd.s32 %s273, 1
    %s275 = scalar_select %p272, %s273, %s274
    %p278 = pneg %p272
    %p279 = scmp.eq.s32.totalorder %s17, 1
    %p280 = por %p278, %p279
    %p281 = scmp.ne.s32.totalorder %s273, %s276
    %p282 = scmp.eq.s32.totalorder %s17, 0
    %p283 = por %p281, %p282
    %p284 = scmp.ne.s32.totalorder %s273, %s276
    %p285 = scmp.eq.s32.totalorder %s22, 1
    %p286 = por %p284, %p285
    %p287 = scmp.ne.s32.totalorder %s276, %s277
    %p288 = scmp.eq.s32.totalorder %s22, 0
    %p289 = por %p287, %p288
    %p290 = scmp.ne.s32.totalorder %s276, %s277
    %p291 = scmp.eq.s32.totalorder %s23, 1
    %p292 = por %p290, %p291
    %p294 = scmp.ne.s32.totalorder %s277, %s293
    %p295 = scmp.eq.s32.totalorder %s23, 0
    %p296 = por %p294, %p295
    %p297 = scmp.le.s32.totalorder 1, %s17
    %p298 = scmp.lt.s32.totalorder %s17, 3
    %p299 = pnand %p297, %p298
    %p300 = pneg %p299
    // Predicated region
    $region9: #{encoder_fwd.21} parent=5 // pred_check
      _
    $region10: #{encoder_fwd.21} parent=5 // pred_check_branch
      %302 = sbr.rel (%p299) target = $region12
    $region11: #{encoder_fwd.21} parent=5 // pred_region
      %s303 = ssub.s32 %s17, 1
      // Predicated region
      $region13: #{encoder_fwd.21} parent=11 // pred_check
        %p304 = pneg %p116
      $region14: #{encoder_fwd.21} parent=11 // pred_check_branch
        %306 = sbr.rel (%p304) target = $region16
      $region15: #{encoder_fwd.21} parent=11 // pred_region
        _
      $region16: #{encoder_fwd.21} parent=11 // pred_fallthru
        _
      // Predicated region
      $region17: #{encoder_fwd.21} parent=11 // pred_check
        %p307 = pneg %p137
      $region18: #{encoder_fwd.21} parent=11 // pred_check_branch
        %309 = sbr.rel (%p307) target = $region20
      $region19: #{encoder_fwd.21} parent=11 // pred_region
        _
      $region20: #{encoder_fwd.21} parent=11 // pred_fallthru
        _
      // Predicated region
      $region21: #{encoder_fwd.21} parent=11 // pred_check
        %p310 = pneg %p158
      $region22: #{encoder_fwd.21} parent=11 // pred_check_branch
        %312 = sbr.rel (%p310) target = $region24
      $region23: #{encoder_fwd.21} parent=11 // pred_region
        _
      $region24: #{encoder_fwd.21} parent=11 // pred_fallthru
        _
      // Predicated region
      $region25: #{encoder_fwd.21} parent=11 // pred_check
        %p313 = pneg %p179
      $region26: #{encoder_fwd.21} parent=11 // pred_check_branch
        %315 = sbr.rel (%p313) target = $region28
      $region27: #{encoder_fwd.21} parent=11 // pred_region
        _
      $region28: #{encoder_fwd.21} parent=11 // pred_fallthru
        _
      // Predicated region
      $region29: #{encoder_fwd.21} parent=11 // pred_check
        %p316 = pneg %p200
      $region30: #{encoder_fwd.21} parent=11 // pred_check_branch
        %318 = sbr.rel (%p316) target = $region32
      $region31: #{encoder_fwd.21} parent=11 // pred_region
        _
      $region32: #{encoder_fwd.21} parent=11 // pred_fallthru
        _
      // Predicated region
      $region33: #{encoder_fwd.21} parent=11 // pred_check
        %p319 = pneg %p221
      $region34: #{encoder_fwd.21} parent=11 // pred_check_branch
        %321 = sbr.rel (%p319) target = $region36
      $region35: #{encoder_fwd.21} parent=11 // pred_region
        _
      $region36: #{encoder_fwd.21} parent=11 // pred_fallthru
        _
      // Predicated region
      $region37: #{encoder_fwd.21} parent=11 // pred_check
        %p322 = pneg %p242
      $region38: #{encoder_fwd.21} parent=11 // pred_check_branch
        %324 = sbr.rel (%p322) target = $region40
      $region39: #{encoder_fwd.21} parent=11 // pred_region
        _
      $region40: #{encoder_fwd.21} parent=11 // pred_fallthru
        _
      // Predicated region
      $region41: #{encoder_fwd.21} parent=11 // pred_check
        %p325 = pneg %p263
      $region42: #{encoder_fwd.21} parent=11 // pred_check_branch
        %327 = sbr.rel (%p325) target = $region44
      $region43: #{encoder_fwd.21} parent=11 // pred_region
        _
      $region44: #{encoder_fwd.21} parent=11 // pred_fallthru
        _
    $region12: #{encoder_fwd.21} parent=5 // pred_fallthru
      _
    %p328 = scmp.lt.s32.totalorder %s17, 2
    // Predicated region
    $region45: #{encoder_fwd.21} parent=5 // pred_check
      %p329 = pneg %p328
    $region46: #{encoder_fwd.21} parent=5 // pred_check_branch
      %331 = sbr.rel (%p329) target = $region48
    $region47: #{encoder_fwd.21} parent=5 // pred_region
      // Predicated region
      $region49: #{encoder_fwd.21} parent=47 // pred_check
        %p332 = pneg %p37
      $region50: #{encoder_fwd.21} parent=47 // pred_check_branch
        %334 = sbr.rel (%p332) target = $region52
      $region51: #{encoder_fwd.21} parent=47 // pred_region
        %p335 = scmp.lt.s32.totalorder %s17, 1
        %s336 = scalar_select %p335, %s17, 1
        %s337 = smul.addr %s336, 4
        %s338 = smul.addr %s337, 4
        %s339 = scalar_lea.vmem %s0, %s338
      $region52: #{encoder_fwd.21} parent=47 // pred_fallthru
        _
      // Predicated region
      $region53: #{encoder_fwd.21} parent=47 // pred_check
        %p340 = pneg %p63
      $region54: #{encoder_fwd.21} parent=47 // pred_check_branch
        %342 = sbr.rel (%p340) target = $region56
      $region55: #{encoder_fwd.21} parent=47 // pred_region
        %p343 = scmp.lt.s32.totalorder %s17, 1
        %s344 = scalar_select %p343, %s17, 1
        %s345 = scalar_lea.vmem %s1, %s344
      $region56: #{encoder_fwd.21} parent=47 // pred_fallthru
        _
      // Predicated region
      $region57: #{encoder_fwd.21} parent=47 // pred_check
        %p346 = pneg %p89
      $region58: #{encoder_fwd.21} parent=47 // pred_check_branch
        %348 = sbr.rel (%p346) target = $region60
      $region59: #{encoder_fwd.21} parent=47 // pred_region
        %p349 = scmp.lt.s32.totalorder %s17, 1
        %s350 = scalar_select %p349, %s17, 1
        %s351 = scalar_lea.vmem %s2, %s350
      $region60: #{encoder_fwd.21} parent=47 // pred_fallthru
        _
    $region48: #{encoder_fwd.21} parent=5 // pred_fallthru
      _
    %p352 = scmp.le.s32.totalorder 1, %s17
    %p353 = scmp.lt.s32.totalorder %s17, 3
    %p354 = pnand %p352, %p353
    %p355 = pneg %p354
    // Predicated region
    $region61: #{encoder_fwd.21} parent=5 // pred_check
      _
    $region62: #{encoder_fwd.21} parent=5 // pred_check_branch
      %357 = sbr.rel (%p354) target = $region64
    $region63: #{encoder_fwd.21} parent=5 // pred_region
      %s358 = ssub.s32 %s17, 1
      %p359 = scmp.lt.s32.totalorder %s22, 1
      %s360 = scalar_select %p359, %s22, 1
      %s361 = smul.addr %s360, 4
      %s362 = smul.addr %s361, 4
      %s363 = scalar_lea.vmem %s0, %s362
      %p364 = pneg %p43
      %p365 = pneg %p40
      %p366 = scmp.lt.s32.totalorder %s22, 1
      %s367 = scalar_select %p366, %s22, 1
      %s368 = scalar_lea.vmem %s1, %s367
      %p369 = pneg %p69
      %p370 = pneg %p66
      %p371 = scmp.lt.s32.totalorder %s22, 1
      %s372 = scalar_select %p371, %s22, 1
      %s373 = scalar_lea.vmem %s2, %s372
      %p374 = pneg %p95
      %p375 = pneg %p92
      %p376 = pneg %p116
      %p377 = pneg %p113
      %p378 = pneg %p137
      %p379 = pneg %p134
      %p380 = pneg %p158
      %p381 = pneg %p155
      %p382 = pneg %p179
      %p383 = pneg %p176
      %p384 = pneg %p200
      %p385 = pneg %p197
      %p386 = pneg %p221
      %p387 = pneg %p218
      %p388 = pneg %p242
      %p389 = pneg %p239
      %p390 = pneg %p263
      %p391 = pneg %p260
      %p392 = pneg %p289
      %p393 = pneg %p286
      %p394 = scmp.lt.s32.totalorder %s22, 1
      %s395 = scalar_select %p394, %s22, 1
      %s396 = smul.addr %s395, 8
      %s397 = smul.addr %s396, 4
      %s398 = scalar_lea.vmem %s11, %s397
      %p399 = scmp.lt.s32.totalorder %s22, 1
      %s400 = scalar_select %p399, %s22, 1
      %s401 = smul.addr %s400, 4
      %s402 = smul.addr %s401, 4
      %s403 = scalar_lea.vmem %s0, %s402
      %p404 = scmp.lt.s32.totalorder %s22, 1
      %s405 = scalar_select %p404, %s22, 1
      %s406 = scalar_lea.vmem %s1, %s405
      %p407 = scmp.lt.s32.totalorder %s22, 1
      %s408 = scalar_select %p407, %s22, 1
      %s409 = scalar_lea.vmem %s2, %s408
      %p410 = scmp.lt.s32.totalorder %s22, 1
      %s411 = scalar_select %p410, %s22, 1
      %s412 = smul.addr %s411, 8
      %s413 = smul.addr %s412, 4
      %s414 = scalar_lea.vmem %s11, %s413
      %v416 = vld [vmem:[%s403] sm:$0xf]
      %v417 = vld [vmem:[%s403 + $0x4] sm:$0xf]
      %v418 = vld [vmem:[%s403 + $0x8] sm:$0xf]
      %v419 = vld [vmem:[%s403 + $0xc] sm:$0xf]
      %v420 = vld [vmem:[%s406] sm:$0x1]
      %v421 = vld [vmem:[%s409] sm:$0x1]
      %v422 = vld [vmem:[%s3] sm:$0xf]
      %v423 = vld [vmem:[%s3 + $0x4] sm:$0xf]
      %v424 = vld [vmem:[%s3 + $0x8] sm:$0xf]
      %v425 = vld [vmem:[%s3 + $0xc] sm:$0xf]
      %v426 = vld [vmem:[%s4] sm:$0xff]
      %v427 = vld [vmem:[%s4 + $0x8] sm:$0xff]
      %v428 = vld [vmem:[%s4 + $0x10] sm:$0xff]
      %v429 = vld [vmem:[%s4 + $0x18] sm:$0xff]
      %v430 = vld [vmem:[%s5] sm:$0xff]
      %v431 = vld [vmem:[%s5 + $0x8] sm:$0xf]
      %v432 = vld [vmem:[%s5 + $0xc] sm:$0xff]
      %v433 = vld [vmem:[%s5 + $0x14] sm:$0xf]
      %v434 = vld [vmem:[%s5 + $0x18] sm:$0xff]
      %v435 = vld [vmem:[%s5 + $0x20] sm:$0xf]
      %v436 = vld [vmem:[%s5 + $0x24] sm:$0xff]
      %v437 = vld [vmem:[%s5 + $0x2c] sm:$0xf]
      %v438 = vld [vmem:[%s6] sm:$0xff]
      %v439 = vld [vmem:[%s6 + $0x8] sm:$0xff]
      %v440 = vld [vmem:[%s6 + $0x10] sm:$0xff]
      %v441 = vld [vmem:[%s6 + $0x18] sm:$0xff]
      %v442 = vld [vmem:[%s7] sm:$0xf]
      %v443 = vld [vmem:[%s7 + $0x4] sm:$0xf]
      %v444 = vld [vmem:[%s7 + $0x8] sm:$0xf]
      %v445 = vld [vmem:[%s7 + $0xc] sm:$0xf]
      %v446 = vld [vmem:[%s7 + $0x10] sm:$0xf]
      %v447 = vld [vmem:[%s7 + $0x14] sm:$0xf]
      %v448 = vld [vmem:[%s7 + $0x18] sm:$0xf]
      %v449 = vld [vmem:[%s7 + $0x1c] sm:$0xf]
      %v450 = vld [vmem:[%s8] sm:$0xff]
      %v451 = vld [vmem:[%s8 + $0x8] sm:$0xff]
      %v452 = vld [vmem:[%s8 + $0x10] sm:$0xff]
      %v453 = vld [vmem:[%s8 + $0x18] sm:$0xff]
      %v454 = vld [vmem:[%s8 + $0x20] sm:$0xff]
      %v455 = vld [vmem:[%s8 + $0x28] sm:$0xff]
      %v456 = vld [vmem:[%s8 + $0x30] sm:$0xff]
      %v457 = vld [vmem:[%s8 + $0x38] sm:$0xff]
      %459 = vset.pattern.permute.xlu0 0
      %460 = vperm.xlu0 %459, %v426
      %v461 = vpop.permute.xlu0 %460
      %464 = vset.pattern.permute.xlu0 0
      %465 = vperm.xlu0 %464, %v427
      %v466 = vpop.permute.xlu0 %465
      %469 = vset.pattern.permute.xlu0 0
      %470 = vperm.xlu0 %469, %v428
      %v471 = vpop.permute.xlu0 %470
      %474 = vset.pattern.permute.xlu0 0
      %475 = vperm.xlu0 %474, %v429
      %v476 = vpop.permute.xlu0 %475
      %v482 = vunpack.c.l.b16 %v422
      %v483 = vunpack.c.l.b16 %v423
      %v484 = vunpack.c.l.b16 %v424
      %v485 = vunpack.c.l.b16 %v425
      %v486 = vpack.c.b16 %v483, %v482
      %v487 = vpack.c.b16 %v485, %v484
      %v492 = vunpack.c.l.b16 %v416
      %v493 = vunpack.c.l.b16 %v417
      %v494 = vunpack.c.l.b16 %v418
      %v495 = vunpack.c.l.b16 %v419
      %v496 = vpack.c.b16 %v493, %v492
      %v497 = vpack.c.b16 %v495, %v494
      %vm500 = vcmask 261120
      %v502 = vsel %vm500, %v486, 0
      %v505 = vsel %vm500, %v487, 0
      %507 = vmatprep.subr.bf16.mxu0 0
      %508 = vmatpush1.bf16.msra.mxu0 0
      %509 = vmatprep.subr.bf16.mxu0 0
      %510 = vmatpush1.bf16.msra.mxu0 0
      %511 = vmatprep.subr.bf16.mxu0 0
      %512 = vmatpush1.bf16.msra.mxu0 0
      %513 = vmatprep.subr.bf16.mxu0 0
      %514 = vmatpush1.bf16.msra.mxu0 0
      %515 = vmatprep.subr.bf16.mxu0 0
      %516 = vmatpush1.bf16.msra.mxu0 0
      %517 = vmatprep.subr.bf16.mxu0 0
      %518 = vmatpush1.bf16.msra.mxu0 0
      %519 = vmatprep.subr.bf16.mxu0 0
      %520 = vmatpush1.bf16.msra.mxu0 %v497
      %521 = vmatprep.subr.bf16.mxu0 0
      %522 = vmatpush1.bf16.msra.mxu0 %v496
      %523 = vmatprep.subr.bf16.mxu0 0
      %524 = vmatpush2.bf16.msra.mxu0 0
      %525 = vmatprep.subr.bf16.mxu0 0
      %526 = vmatpush2.bf16.msra.mxu0 0
      %527 = vmatprep.subr.bf16.mxu0 0
      %528 = vmatpush2.bf16.msra.mxu0 0
      %529 = vmatprep.subr.bf16.mxu0 0
      %530 = vmatpush2.bf16.msra.mxu0 0
      %531 = vmatprep.subr.bf16.mxu0 0
      %532 = vmatpush2.bf16.msra.mxu0 0
      %533 = vmatprep.subr.bf16.mxu0 0
      %534 = vmatpush2.bf16.msra.mxu0 0
      %535 = vmatprep.subr.bf16.mxu0 0
      %536 = vmatpush2.bf16.msra.mxu0 0
      %537 = vmatprep.subr.bf16.mxu0 0
      %538 = vmatpush2.bf16.msra.mxu0 0
      %539 = vmatprep.mubr.bf16.mxu0 0
      %540 = vmatmul.mubr.bf16.gmra.mxu0 %v502
      %v541 = vpop.f32.mrf.mxu0
      %v542 = vadd.f32 %v461, %v541
      %v543 = vpop.f32.mrf.mxu0
      %v544 = vpop.f32.mrf.mxu0
      %v545 = vadd.f32 %v466, %v544
      %v546 = vpop.f32.mrf.mxu0
      %547 = vmatprep.mubr.bf16.mxu0 0
      %548 = vmatmul.mubr.bf16.gmra.mxu0 %v505
      %v549 = vpop.f32.mrf.mxu0
      %v550 = vadd.f32 %v471, %v549
      %v551 = vpop.f32.mrf.mxu0
      %v552 = vpop.f32.mrf.mxu0
      %v553 = vadd.f32 %v476, %v552
      %v554 = vpop.f32.mrf.mxu0
      %555 = vdwg.mxu0
      %v556 = vmax.f32 %v542, 0.0
      %v557 = vmax.f32 %v545, 0.0
      %v558 = vmax.f32 %v550, 0.0
      %v559 = vmax.f32 %v553, 0.0
      %v561 = vlaneseq
      %v562 = vshrl.u32 %v561, 7
      %v563 = vsub.s32 0, %v562
      %v564 = vrot.slane %v420, %v563
      %v566 = vmul.f32 %v556, %v564
      %v567 = vmul.f32 %v557, %v564
      %v568 = vmul.f32 %v558, %v564
      %v569 = vmul.f32 %v559, %v564
      %570 = vrot.lane.b32.xlu0 %v566, 11
      %v571 = vpop.permute.xlu0 %570
      %572 = vrot.lane.b32.xlu0 %v567, 11
      %v573 = vpop.permute.xlu0 %572
      %574 = vrot.lane.b32.xlu0 %v568, 11
      %v575 = vpop.permute.xlu0 %574
      %576 = vrot.lane.b32.xlu0 %v569, 11
      %v577 = vpop.permute.xlu0 %576
      %v578 = vpack.c.bf16 %v573, %v571
      %v579 = vpack.c.bf16 %v577, %v575
      %580 = vrot.lane.b32.xlu0 %v566, 10
      %v581 = vpop.permute.xlu0 %580
      %582 = vrot.lane.b32.xlu0 %v567, 10
      %v583 = vpop.permute.xlu0 %582
      %584 = vrot.lane.b32.xlu0 %v568, 10
      %v585 = vpop.permute.xlu0 %584
      %586 = vrot.lane.b32.xlu0 %v569, 10
      %v587 = vpop.permute.xlu0 %586
      %v588 = vpack.c.bf16 %v583, %v581
      %v589 = vpack.c.bf16 %v587, %v585
      %590 = vrot.lane.b32.xlu0 %v566, 9
      %v591 = vpop.permute.xlu0 %590
      %592 = vrot.lane.b32.xlu0 %v567, 9
      %v593 = vpop.permute.xlu0 %592
      %594 = vrot.lane.b32.xlu0 %v568, 9
      %v595 = vpop.permute.xlu0 %594
      %596 = vrot.lane.b32.xlu0 %v569, 9
      %v597 = vpop.permute.xlu0 %596
      %v598 = vpack.c.bf16 %v593, %v591
      %v599 = vpack.c.bf16 %v597, %v595
      %600 = vrot.lane.b32.xlu0 %v566, 1
      %v601 = vpop.permute.xlu0 %600
      %602 = vrot.lane.b32.xlu0 %v567, 1
      %v603 = vpop.permute.xlu0 %602
      %604 = vrot.lane.b32.xlu0 %v568, 1
      %v605 = vpop.permute.xlu0 %604
      %606 = vrot.lane.b32.xlu0 %v569, 1
      %v607 = vpop.permute.xlu0 %606
      %v608 = vpack.c.bf16 %v603, %v601
      %v609 = vpack.c.bf16 %v607, %v605
      %v610 = vpack.c.bf16 %v567, %v566
      %v611 = vpack.c.bf16 %v569, %v568
      %612 = vrot.lane.b32.xlu0 %v566, 127
      %v613 = vpop.permute.xlu0 %612
      %614 = vrot.lane.b32.xlu0 %v567, 127
      %v615 = vpop.permute.xlu0 %614
      %616 = vrot.lane.b32.xlu0 %v568, 127
      %v617 = vpop.permute.xlu0 %616
      %618 = vrot.lane.b32.xlu0 %v569, 127
      %v619 = vpop.permute.xlu0 %618
      %v620 = vpack.c.bf16 %v615, %v613
      %v621 = vpack.c.bf16 %v619, %v617
      %622 = vrot.lane.b32.xlu0 %v566, 119
      %v623 = vpop.permute.xlu0 %622
      %624 = vrot.lane.b32.xlu0 %v567, 119
      %v625 = vpop.permute.xlu0 %624
      %626 = vrot.lane.b32.xlu0 %v568, 119
      %v627 = vpop.permute.xlu0 %626
      %628 = vrot.lane.b32.xlu0 %v569, 119
      %v629 = vpop.permute.xlu0 %628
      %v630 = vpack.c.bf16 %v625, %v623
      %v631 = vpack.c.bf16 %v629, %v627
      %632 = vrot.lane.b32.xlu0 %v566, 118
      %v633 = vpop.permute.xlu0 %632
      %634 = vrot.lane.b32.xlu0 %v567, 118
      %v635 = vpop.permute.xlu0 %634
      %636 = vrot.lane.b32.xlu0 %v568, 118
      %v637 = vpop.permute.xlu0 %636
      %638 = vrot.lane.b32.xlu0 %v569, 118
      %v639 = vpop.permute.xlu0 %638
      %v640 = vpack.c.bf16 %v635, %v633
      %v641 = vpack.c.bf16 %v639, %v637
      %642 = vrot.lane.b32.xlu0 %v566, 117
      %v643 = vpop.permute.xlu0 %642
      %644 = vrot.lane.b32.xlu0 %v567, 117
      %v645 = vpop.permute.xlu0 %644
      %646 = vrot.lane.b32.xlu0 %v568, 117
      %v647 = vpop.permute.xlu0 %646
      %648 = vrot.lane.b32.xlu0 %v569, 117
      %v649 = vpop.permute.xlu0 %648
      %v650 = vpack.c.bf16 %v645, %v643
      %v651 = vpack.c.bf16 %v649, %v647
      %v660 = vunpack.c.l.b16 %v430
      %v661 = vunpack.c.h.b16 %v430
      %v662 = vunpack.c.l.b16 %v431
      %v663 = vunpack.c.l.b16 %v432
      %v664 = vunpack.c.h.b16 %v432
      %v665 = vunpack.c.l.b16 %v433
      %v666 = vunpack.c.l.b16 %v434
      %v667 = vunpack.c.h.b16 %v434
      %v668 = vunpack.c.l.b16 %v435
      %v669 = vunpack.c.l.b16 %v436
      %v670 = vunpack.c.h.b16 %v436
      %v671 = vunpack.c.l.b16 %v437
      %v672 = vpack.c.b16 %v663, %v660
      %v673 = vpack.c.b16 %v664, %v661
      %v674 = vpack.c.b16 %v665, %v662
      %v675 = vpack.c.b16 %v669, %v666
      %v676 = vpack.c.b16 %v670, %v667
      %v677 = vpack.c.b16 %v671, %v668
      %v683 = vsel %vm500, %v674, 0
      %v686 = vsel %vm500, %v677, 0
      %688 = vmatprep.subr.bf16.mxu0 0
      %689 = vmatpush1.bf16.msra.mxu0 %v609
      %690 = vmatprep.subr.bf16.mxu0 0
      %691 = vmatpush1.bf16.msra.mxu0 %v608
      %692 = vmatprep.subr.bf16.mxu0 0
      %693 = vmatpush1.bf16.msra.mxu0 %v599
      %694 = vmatprep.subr.bf16.mxu0 0
      %695 = vmatpush1.bf16.msra.mxu0 %v598
      %696 = vmatprep.subr.bf16.mxu0 0
      %697 = vmatpush1.bf16.msra.mxu0 %v589
      %698 = vmatprep.subr.bf16.mxu0 0
      %699 = vmatpush1.bf16.msra.mxu0 %v588
      %700 = vmatprep.subr.bf16.mxu0 0
      %701 = vmatpush1.bf16.msra.mxu0 %v579
      %702 = vmatprep.subr.bf16.mxu0 0
      %703 = vmatpush1.bf16.msra.mxu0 %v578
      %704 = vmatprep.subr.bf16.mxu0 0
      %705 = vmatpush2.bf16.msra.mxu0 %v641
      %706 = vmatprep.subr.bf16.mxu0 0
      %707 = vmatpush2.bf16.msra.mxu0 %v640
      %708 = vmatprep.subr.bf16.mxu0 0
      %709 = vmatpush2.bf16.msra.mxu0 %v631
      %710 = vmatprep.subr.bf16.mxu0 0
      %711 = vmatpush2.bf16.msra.mxu0 %v630
      %712 = vmatprep.subr.bf16.mxu0 0
      %713 = vmatpush2.bf16.msra.mxu0 %v621
      %714 = vmatprep.subr.bf16.mxu0 0
      %715 = vmatpush2.bf16.msra.mxu0 %v620
      %716 = vmatprep.subr.bf16.mxu0 0
      %717 = vmatpush2.bf16.msra.mxu0 %v611
      %718 = vmatprep.subr.bf16.mxu0 0
      %719 = vmatpush2.bf16.msra.mxu0 %v610
      %720 = vmatprep.mubr.bf16.mxu0 %v673
      %721 = vmatmul.mubr.bf16.gmra.mxu0 %v672
      %v722 = vpop.f32.mrf.mxu0
      %v723 = vadd.f32 0.0, %v722
      %v724 = vpop.f32.mrf.mxu0
      %v725 = vpop.f32.mrf.mxu0
      %v726 = vadd.f32 0.0, %v725
      %v727 = vpop.f32.mrf.mxu0
      %728 = vmatprep.mubr.bf16.mxu0 %v676
      %729 = vmatmul.mubr.bf16.gmra.mxu0 %v675
      %v730 = vpop.f32.mrf.mxu0
      %v731 = vadd.f32 0.0, %v730
      %v732 = vpop.f32.mrf.mxu0
      %v733 = vpop.f32.mrf.mxu0
      %v734 = vadd.f32 0.0, %v733
      %v735 = vpop.f32.mrf.mxu0
      %736 = vdwg.mxu0
      %737 = vmatprep.subr.bf16.mxu0 0
      %738 = vmatpush1.bf16.msra.mxu0 0
      %739 = vmatprep.subr.bf16.mxu0 0
      %740 = vmatpush1.bf16.msra.mxu0 0
      %741 = vmatprep.subr.bf16.mxu0 0
      %742 = vmatpush1.bf16.msra.mxu0 0
      %743 = vmatprep.subr.bf16.mxu0 0
      %744 = vmatpush1.bf16.msra.mxu0 0
      %745 = vmatprep.subr.bf16.mxu0 0
      %746 = vmatpush1.bf16.msra.mxu0 0
      %747 = vmatprep.subr.bf16.mxu0 0
      %748 = vmatpush1.bf16.msra.mxu0 0
      %749 = vmatprep.subr.bf16.mxu0 0
      %750 = vmatpush1.bf16.msra.mxu0 %v651
      %751 = vmatprep.subr.bf16.mxu0 0
      %752 = vmatpush1.bf16.msra.mxu0 %v650
      %753 = vmatprep.subr.bf16.mxu0 0
      %754 = vmatpush2.bf16.msra.mxu0 0
      %755 = vmatprep.subr.bf16.mxu0 0
      %756 = vmatpush2.bf16.msra.mxu0 0
      %757 = vmatprep.subr.bf16.mxu0 0
      %758 = vmatpush2.bf16.msra.mxu0 0
      %759 = vmatprep.subr.bf16.mxu0 0
      %760 = vmatpush2.bf16.msra.mxu0 0
      %761 = vmatprep.subr.bf16.mxu0 0
      %762 = vmatpush2.bf16.msra.mxu0 0
      %763 = vmatprep.subr.bf16.mxu0 0
      %764 = vmatpush2.bf16.msra.mxu0 0
      %765 = vmatprep.subr.bf16.mxu0 0
      %766 = vmatpush2.bf16.msra.mxu0 0
      %767 = vmatprep.subr.bf16.mxu0 0
      %768 = vmatpush2.bf16.msra.mxu0 0
      %769 = vmatprep.mubr.bf16.mxu0 0
      %770 = vmatmul.mubr.bf16.gmra.mxu0 %v683
      %v771 = vpop.f32.mrf.mxu0
      %v772 = vadd.f32 %v723, %v771
      %v773 = vpop.f32.mrf.mxu0
      %v774 = vpop.f32.mrf.mxu0
      %v775 = vadd.f32 %v726, %v774
      %v776 = vpop.f32.mrf.mxu0
      %777 = vmatprep.mubr.bf16.mxu0 0
      %778 = vmatmul.mubr.bf16.gmra.mxu0 %v686
      %v779 = vpop.f32.mrf.mxu0
      %v780 = vadd.f32 %v731, %v779
      %v781 = vpop.f32.mrf.mxu0
      %v782 = vpop.f32.mrf.mxu0
      %v783 = vadd.f32 %v734, %v782
      %v784 = vpop.f32.mrf.mxu0
      %785 = vdwg.mxu0
      %v787 = vlaneseq
      %v788 = vshrl.u32 %v787, 7
      %v789 = vsub.s32 0, %v788
      %v790 = vrot.slane %v421, %v789
      %v792 = vmul.f32 %v772, %v790
      %v793 = vmul.f32 %v775, %v790
      %v794 = vmul.f32 %v780, %v790
      %v795 = vmul.f32 %v783, %v790
      %797 = vset.pattern.permute.xlu0 0
      %798 = vperm.xlu0 %797, %v438
      %v799 = vpop.permute.xlu0 %798
      %802 = vset.pattern.permute.xlu0 0
      %803 = vperm.xlu0 %802, %v439
      %v804 = vpop.permute.xlu0 %803
      %807 = vset.pattern.permute.xlu0 0
      %808 = vperm.xlu0 %807, %v440
      %v809 = vpop.permute.xlu0 %808
      %812 = vset.pattern.permute.xlu0 0
      %813 = vperm.xlu0 %812, %v441
      %v814 = vpop.permute.xlu0 %813
      %v816 = vadd.f32 %v792, %v799
      %v817 = vadd.f32 %v793, %v804
      %v818 = vadd.f32 %v794, %v809
      %v819 = vadd.f32 %v795, %v814
      %v820 = vmax.f32 %v816, 0.0
      %v821 = vmax.f32 %v817, 0.0
      %v822 = vmax.f32 %v818, 0.0
      %v823 = vmax.f32 %v819, 0.0
      %v824 = vpack.c.bf16 %v821, %v820
      %v825 = vpack.c.bf16 %v823, %v822
      %827 = vset.pattern.permute.xlu0 0
      %828 = vperm.xlu0 %827, %v450
      %v829 = vpop.permute.xlu0 %828
      %832 = vset.pattern.permute.xlu0 0
      %833 = vperm.xlu0 %832, %v451
      %v834 = vpop.permute.xlu0 %833
      %837 = vset.pattern.permute.xlu0 0
      %838 = vperm.xlu0 %837, %v452
      %v839 = vpop.permute.xlu0 %838
      %842 = vset.pattern.permute.xlu0 0
      %843 = vperm.xlu0 %842, %v453
      %v844 = vpop.permute.xlu0 %843
      %847 = vset.pattern.permute.xlu0 0
      %848 = vperm.xlu0 %847, %v454
      %v849 = vpop.permute.xlu0 %848
      %852 = vset.pattern.permute.xlu0 0
      %853 = vperm.xlu0 %852, %v455
      %v854 = vpop.permute.xlu0 %853
      %857 = vset.pattern.permute.xlu0 0
      %858 = vperm.xlu0 %857, %v456
      %v859 = vpop.permute.xlu0 %858
      %862 = vset.pattern.permute.xlu0 0
      %863 = vperm.xlu0 %862, %v457
      %v864 = vpop.permute.xlu0 %863
      %v874 = vunpack.c.l.b16 %v442
      %v875 = vunpack.c.l.b16 %v443
      %v876 = vunpack.c.l.b16 %v444
      %v877 = vunpack.c.l.b16 %v445
      %v878 = vunpack.c.l.b16 %v446
      %v879 = vunpack.c.l.b16 %v447
      %v880 = vunpack.c.l.b16 %v448
      %v881 = vunpack.c.l.b16 %v449
      %v882 = vpack.c.b16 %v875, %v874
      %v883 = vpack.c.b16 %v877, %v876
      %v884 = vpack.c.b16 %v879, %v878
      %v885 = vpack.c.b16 %v881, %v880
      %v887 = vsel %vm500, %v882, 0
      %v890 = vsel %vm500, %v883, 0
      %v893 = vsel %vm500, %v884, 0
      %v896 = vsel %vm500, %v885, 0
      %898 = vmatprep.subr.bf16.mxu0 0
      %899 = vmatpush1.bf16.msra.mxu0 0
      %900 = vmatprep.subr.bf16.mxu0 0
      %901 = vmatpush1.bf16.msra.mxu0 0
      %902 = vmatprep.subr.bf16.mxu0 0
      %903 = vmatpush1.bf16.msra.mxu0 0
      %904 = vmatprep.subr.bf16.mxu0 0
      %905 = vmatpush1.bf16.msra.mxu0 0
      %906 = vmatprep.subr.bf16.mxu0 0
      %907 = vmatpush1.bf16.msra.mxu0 0
      %908 = vmatprep.subr.bf16.mxu0 0
      %909 = vmatpush1.bf16.msra.mxu0 0
      %910 = vmatprep.subr.bf16.mxu0 0
      %911 = vmatpush1.bf16.msra.mxu0 %v825
      %912 = vmatprep.subr.bf16.mxu0 0
      %913 = vmatpush1.bf16.msra.mxu0 %v824
      %914 = vmatprep.subr.bf16.mxu0 0
      %915 = vmatpush2.bf16.msra.mxu0 0
      %916 = vmatprep.subr.bf16.mxu0 0
      %917 = vmatpush2.bf16.msra.mxu0 0
      %918 = vmatprep.subr.bf16.mxu0 0
      %919 = vmatpush2.bf16.msra.mxu0 0
      %920 = vmatprep.subr.bf16.mxu0 0
      %921 = vmatpush2.bf16.msra.mxu0 0
      %922 = vmatprep.subr.bf16.mxu0 0
      %923 = vmatpush2.bf16.msra.mxu0 0
      %924 = vmatprep.subr.bf16.mxu0 0
      %925 = vmatpush2.bf16.msra.mxu0 0
      %926 = vmatprep.subr.bf16.mxu0 0
      %927 = vmatpush2.bf16.msra.mxu0 0
      %928 = vmatprep.subr.bf16.mxu0 0
      %929 = vmatpush2.bf16.msra.mxu0 0
      %930 = vmatprep.mubr.bf16.mxu0 0
      %931 = vmatmul.mubr.bf16.gmra.mxu0 %v887
      %v932 = vpop.f32.mrf.mxu0
      %v933 = vadd.f32 %v829, %v932
      %v934 = vpop.f32.mrf.mxu0
      %v935 = vpop.f32.mrf.mxu0
      %v936 = vadd.f32 %v834, %v935
      %v937 = vpop.f32.mrf.mxu0
      %938 = vmatprep.mubr.bf16.mxu0 0
      %939 = vmatmul.mubr.bf16.gmra.mxu0 %v890
      %v940 = vpop.f32.mrf.mxu0
      %v941 = vadd.f32 %v839, %v940
      %v942 = vpop.f32.mrf.mxu0
      %v943 = vpop.f32.mrf.mxu0
      %v944 = vadd.f32 %v844, %v943
      %v945 = vpop.f32.mrf.mxu0
      %946 = vmatprep.mubr.bf16.mxu0 0
      %947 = vmatmul.mubr.bf16.gmra.mxu0 %v893
      %v948 = vpop.f32.mrf.mxu0
      %v949 = vadd.f32 %v849, %v948
      %v950 = vpop.f32.mrf.mxu0
      %v951 = vpop.f32.mrf.mxu0
      %v952 = vadd.f32 %v854, %v951
      %v953 = vpop.f32.mrf.mxu0
      %954 = vmatprep.mubr.bf16.mxu0 0
      %955 = vmatmul.mubr.bf16.gmra.mxu0 %v896
      %v956 = vpop.f32.mrf.mxu0
      %v957 = vadd.f32 %v859, %v956
      %v958 = vpop.f32.mrf.mxu0
      %v959 = vpop.f32.mrf.mxu0
      %v960 = vadd.f32 %v864, %v959
      %v961 = vpop.f32.mrf.mxu0
      %962 = vdwg.mxu0
      %v963 = vld [vmem:[%s9] sm:$0xf]
      %v964 = vld [vmem:[%s9 + $0x4] sm:$0xf]
      %v965 = vld [vmem:[%s9 + $0x8] sm:$0xf]
      %v966 = vld [vmem:[%s9 + $0xc] sm:$0xf]
      %v967 = vld [vmem:[%s9 + $0x10] sm:$0xf]
      %v968 = vld [vmem:[%s9 + $0x14] sm:$0xf]
      %v969 = vld [vmem:[%s9 + $0x18] sm:$0xf]
      %v970 = vld [vmem:[%s9 + $0x1c] sm:$0xf]
      %v971 = vld [vmem:[%s10] sm:$0xff]
      %v972 = vld [vmem:[%s10 + $0x8] sm:$0xff]
      %v973 = vld [vmem:[%s10 + $0x10] sm:$0xff]
      %v974 = vld [vmem:[%s10 + $0x18] sm:$0xff]
      %v975 = vld [vmem:[%s10 + $0x20] sm:$0xff]
      %v976 = vld [vmem:[%s10 + $0x28] sm:$0xff]
      %v977 = vld [vmem:[%s10 + $0x30] sm:$0xff]
      %v978 = vld [vmem:[%s10 + $0x38] sm:$0xff]
      %980 = vset.pattern.permute.xlu0 0
      %981 = vperm.xlu0 %980, %v971
      %v982 = vpop.permute.xlu0 %981
      %985 = vset.pattern.permute.xlu0 0
      %986 = vperm.xlu0 %985, %v972
      %v987 = vpop.permute.xlu0 %986
      %990 = vset.pattern.permute.xlu0 0
      %991 = vperm.xlu0 %990, %v973
      %v992 = vpop.permute.xlu0 %991
      %995 = vset.pattern.permute.xlu0 0
      %996 = vperm.xlu0 %995, %v974
      %v997 = vpop.permute.xlu0 %996
      %1000 = vset.pattern.permute.xlu0 0
      %1001 = vperm.xlu0 %1000, %v975
      %v1002 = vpop.permute.xlu0 %1001
      %1005 = vset.pattern.permute.xlu0 0
      %1006 = vperm.xlu0 %1005, %v976
      %v1007 = vpop.permute.xlu0 %1006
      %1010 = vset.pattern.permute.xlu0 0
      %1011 = vperm.xlu0 %1010, %v977
      %v1012 = vpop.permute.xlu0 %1011
      %1015 = vset.pattern.permute.xlu0 0
      %1016 = vperm.xlu0 %1015, %v978
      %v1017 = vpop.permute.xlu0 %1016
      %v1027 = vunpack.c.l.b16 %v963
      %v1028 = vunpack.c.l.b16 %v964
      %v1029 = vunpack.c.l.b16 %v965
      %v1030 = vunpack.c.l.b16 %v966
      %v1031 = vunpack.c.l.b16 %v967
      %v1032 = vunpack.c.l.b16 %v968
      %v1033 = vunpack.c.l.b16 %v969
      %v1034 = vunpack.c.l.b16 %v970
      %v1035 = vpack.c.b16 %v1028, %v1027
      %v1036 = vpack.c.b16 %v1030, %v1029
      %v1037 = vpack.c.b16 %v1032, %v1031
      %v1038 = vpack.c.b16 %v1034, %v1033
      %v1040 = vsel %vm500, %v1035, 0
      %v1043 = vsel %vm500, %v1036, 0
      %v1046 = vsel %vm500, %v1037, 0
      %v1049 = vsel %vm500, %v1038, 0
      %1051 = vmatprep.subr.bf16.mxu0 0
      %1052 = vmatpush1.bf16.msra.mxu0 0
      %1053 = vmatprep.subr.bf16.mxu0 0
      %1054 = vmatpush1.bf16.msra.mxu0 0
      %1055 = vmatprep.subr.bf16.mxu0 0
      %1056 = vmatpush1.bf16.msra.mxu0 0
      %1057 = vmatprep.subr.bf16.mxu0 0
      %1058 = vmatpush1.bf16.msra.mxu0 0
      %1059 = vmatprep.subr.bf16.mxu0 0
      %1060 = vmatpush1.bf16.msra.mxu0 0
      %1061 = vmatprep.subr.bf16.mxu0 0
      %1062 = vmatpush1.bf16.msra.mxu0 0
      %1063 = vmatprep.subr.bf16.mxu0 0
      %1064 = vmatpush1.bf16.msra.mxu0 %v497
      %1065 = vmatprep.subr.bf16.mxu0 0
      %1066 = vmatpush1.bf16.msra.mxu0 %v496
      %1067 = vmatprep.subr.bf16.mxu0 0
      %1068 = vmatpush2.bf16.msra.mxu0 0
      %1069 = vmatprep.subr.bf16.mxu0 0
      %1070 = vmatpush2.bf16.msra.mxu0 0
      %1071 = vmatprep.subr.bf16.mxu0 0
      %1072 = vmatpush2.bf16.msra.mxu0 0
      %1073 = vmatprep.subr.bf16.mxu0 0
      %1074 = vmatpush2.bf16.msra.mxu0 0
      %1075 = vmatprep.subr.bf16.mxu0 0
      %1076 = vmatpush2.bf16.msra.mxu0 0
      %1077 = vmatprep.subr.bf16.mxu0 0
      %1078 = vmatpush2.bf16.msra.mxu0 0
      %1079 = vmatprep.subr.bf16.mxu0 0
      %1080 = vmatpush2.bf16.msra.mxu0 0
      %1081 = vmatprep.subr.bf16.mxu0 0
      %1082 = vmatpush2.bf16.msra.mxu0 0
      %1083 = vmatprep.mubr.bf16.mxu0 0
      %1084 = vmatmul.mubr.bf16.gmra.mxu0 %v1040
      %v1085 = vpop.f32.mrf.mxu0
      %v1086 = vadd.f32 %v982, %v1085
      %v1087 = vpop.f32.mrf.mxu0
      %v1088 = vpop.f32.mrf.mxu0
      %v1089 = vadd.f32 %v987, %v1088
      %v1090 = vpop.f32.mrf.mxu0
      %1091 = vmatprep.mubr.bf16.mxu0 0
      %1092 = vmatmul.mubr.bf16.gmra.mxu0 %v1043
      %v1093 = vpop.f32.mrf.mxu0
      %v1094 = vadd.f32 %v992, %v1093
      %v1095 = vpop.f32.mrf.mxu0
      %v1096 = vpop.f32.mrf.mxu0
      %v1097 = vadd.f32 %v997, %v1096
      %v1098 = vpop.f32.mrf.mxu0
      %1099 = vmatprep.mubr.bf16.mxu0 0
      %1100 = vmatmul.mubr.bf16.gmra.mxu0 %v1046
      %v1101 = vpop.f32.mrf.mxu0
      %v1102 = vadd.f32 %v1002, %v1101
      %v1103 = vpop.f32.mrf.mxu0
      %v1104 = vpop.f32.mrf.mxu0
      %v1105 = vadd.f32 %v1007, %v1104
      %v1106 = vpop.f32.mrf.mxu0
      %1107 = vmatprep.mubr.bf16.mxu0 0
      %1108 = vmatmul.mubr.bf16.gmra.mxu0 %v1049
      %v1109 = vpop.f32.mrf.mxu0
      %v1110 = vadd.f32 %v1012, %v1109
      %v1111 = vpop.f32.mrf.mxu0
      %v1112 = vpop.f32.mrf.mxu0
      %v1113 = vadd.f32 %v1017, %v1112
      %v1114 = vpop.f32.mrf.mxu0
      %1115 = vdwg.mxu0
      %v1116 = vadd.f32 %v933, %v1086
      %v1117 = vadd.f32 %v936, %v1089
      %v1118 = vadd.f32 %v941, %v1094
      %v1119 = vadd.f32 %v944, %v1097
      %v1120 = vadd.f32 %v949, %v1102
      %v1121 = vadd.f32 %v952, %v1105
      %v1122 = vadd.f32 %v957, %v1110
      %v1123 = vadd.f32 %v960, %v1113
      %v1124 = vmax.f32 %v1116, 0.0
      %v1125 = vmax.f32 %v1117, 0.0
      %v1126 = vmax.f32 %v1118, 0.0
      %v1127 = vmax.f32 %v1119, 0.0
      %v1128 = vmax.f32 %v1120, 0.0
      %v1129 = vmax.f32 %v1121, 0.0
      %v1130 = vmax.f32 %v1122, 0.0
      %v1131 = vmax.f32 %v1123, 0.0
      %v1132 = vpack.c.bf16 %v1125, %v1124
      %v1133 = vpack.c.bf16 %v1127, %v1126
      %v1134 = vpack.c.bf16 %v1129, %v1128
      %v1135 = vpack.c.bf16 %v1131, %v1130
      %v1140 = vunpack.c.l.b16 %v1132
      %v1141 = vunpack.c.h.b16 %v1132
      %v1142 = vunpack.c.l.b16 %v1133
      %v1143 = vunpack.c.h.b16 %v1133
      %v1144 = vunpack.c.l.b16 %v1134
      %v1145 = vunpack.c.h.b16 %v1134
      %v1146 = vunpack.c.l.b16 %v1135
      %v1147 = vunpack.c.h.b16 %v1135
      %v1148 = vpack.c.b16 %v1140, %v1140
      %v1149 = vpack.c.b16 %v1141, %v1141
      %v1150 = vpack.c.b16 %v1142, %v1142
      %v1151 = vpack.c.b16 %v1143, %v1143
      %v1152 = vpack.c.b16 %v1144, %v1144
      %v1153 = vpack.c.b16 %v1145, %v1145
      %v1154 = vpack.c.b16 %v1146, %v1146
      %v1155 = vpack.c.b16 %v1147, %v1147
      %1164 = vst [vmem:[%s414] sm:$0xf] %v1148
      %1165 = vst [vmem:[%s414 + $0x4] sm:$0xf] %v1149
      %1166 = vst [vmem:[%s414 + $0x8] sm:$0xf] %v1150
      %1167 = vst [vmem:[%s414 + $0xc] sm:$0xf] %v1151
      %1168 = vst [vmem:[%s414 + $0x10] sm:$0xf] %v1152
      %1169 = vst [vmem:[%s414 + $0x14] sm:$0xf] %v1153
      %1170 = vst [vmem:[%s414 + $0x18] sm:$0xf] %v1154
      %1171 = vst [vmem:[%s414 + $0x1c] sm:$0xf] %v1155
      %p1172 = scmp.lt.s32.totalorder %s22, 1
      %s1173 = scalar_select %p1172, %s22, 1
      %s1174 = smul.addr %s1173, 8
      %s1175 = smul.addr %s1174, 4
      %s1176 = scalar_lea.vmem %s11, %s1175
      // Predicated region
      $region65: #{encoder_fwd.21} parent=63 // pred_check
        %p1177 = pneg %p286
      $region66: #{encoder_fwd.21} parent=63 // pred_check_branch
        %1179 = sbr.rel (%p1177) target = $region68
      $region67: #{encoder_fwd.21} parent=63 // pred_region
        _
      $region68: #{encoder_fwd.21} parent=63 // pred_fallthru
        _
    $region64: #{encoder_fwd.21} parent=5 // pred_fallthru
      _
    %p1180 = scmp.le.s32.totalorder 2, %s17
    // Predicated region
    $region69: #{encoder_fwd.21} parent=5 // pred_check
      %p1181 = pneg %p1180
    $region70: #{encoder_fwd.21} parent=5 // pred_check_branch
      %1183 = sbr.rel (%p1181) target = $region72
    $region71: #{encoder_fwd.21} parent=5 // pred_region
      %s1184 = ssub.s32 %s17, 2
      // Predicated region
      $region73: #{encoder_fwd.21} parent=71 // pred_check
        %p1185 = pneg %p292
      $region74: #{encoder_fwd.21} parent=71 // pred_check_branch
        %1187 = sbr.rel (%p1185) target = $region76
      $region75: #{encoder_fwd.21} parent=71 // pred_region
        %p1188 = scmp.lt.s32.totalorder %s23, 1
        %s1189 = scalar_select %p1188, %s23, 1
        %s1190 = smul.addr %s1189, 8
        %s1191 = smul.addr %s1190, 4
        %s1192 = scalar_lea.vmem %s11, %s1191
      $region76: #{encoder_fwd.21} parent=71 // pred_fallthru
        _
    $region72: #{encoder_fwd.21} parent=5 // pred_fallthru
      _
  $region6: #{encoder_fwd.21} parent=0 // loop_footer
    %s21 = sadd.s32 1, %s17
  $region7: #{encoder_fwd.21} parent=0 // loop_footer_branch
    %16 = sbr.rel target = $region3
  $region8: #{encoder_fwd.21} parent=0 // loop_exit
    _

// kernel: encoder_fwd.22
$region0: #{encoder_fwd.22}
  #allocation0 [shape = 'u32[]', space=smem, size = 0x4, offset = 0x4, fixed_abs, tag = 'smem constant byte address 0x4 - core index']
  #allocation1 [shape = 'u32[144,128]{1,0:T(1,128)}', space=vmem, size = 0x12000, scoped, tag = 'internal scratch']
  %s0 = inlined_call_operand.vmem [shape: bf16[2,64,128], index: 0, kind: input, shape index: {}]
  %s1 = inlined_call_operand.vmem [shape: bf16[2,64,128], index: 1, kind: input, shape index: {}]
  %s2 = inlined_call_operand.vmem [shape: bf16[2,64,128], index: 2, kind: input, shape index: {}]
  %s3 = inlined_call_operand.vmem [shape: bf16[2,64,128], index: 3, kind: input, shape index: {}]
  %s4 = inlined_call_operand.vmem [shape: f32[2,1,128], index: 4, kind: input, shape index: {}]
  %s5 = inlined_call_operand.vmem [shape: f32[2,1,128], index: 5, kind: input, shape index: {}]
  %s6 = inlined_call_operand.vmem [shape: f32[2,1,128], index: 6, kind: input, shape index: {}]
  %s7 = inlined_call_operand.vmem [shape: f32[2,1,128], index: 7, kind: input, shape index: {}]
  %s8 = inlined_call_operand.vmem [shape: f32[2,1,128], index: 8, kind: input, shape index: {}]
  %s9 = inlined_call_operand.vmem [shape: bf16[64,576], index: 9, kind: input, shape index: {}]
  %s10 = inlined_call_operand.vmem [shape: f32[64,1], index: 10, kind: input, shape index: {}]
  %s11 = inlined_call_operand.vmem [shape: bf16[2,64,128], index: 11, kind: output, shape index: {}]
  %s12 = sld [smem:[#allocation0]]
  $region77: #{encoder_fwd.22} parent=0
    _
  %s14 = ssub.s32 1, %s12
  %s15 = scalar_select 0, %s14, %s12
  loop: start=0, step=1, limit=4
  $region2: #{encoder_fwd.22} parent=0 // loop_pre_header
    _
  $region3: #{encoder_fwd.22} parent=0 // loop_header
    %s17 = sphi 0, %s21
    %p18 = scmp.ge.s32.totalorder %s17, 4
    %s27 = sphi 0, %s29
    %s30 = sphi 0, %s27
    %s31 = sphi 0, %s30
    %s47 = sphi 0, %s31
    %s53 = sphi 0, %s55
    %s56 = sphi 0, %s53
    %s57 = sphi 0, %s56
    %s73 = sphi 0, %s57
    %s79 = sphi 0, %s81
    %s82 = sphi 0, %s79
    %s83 = sphi 0, %s82
    %s99 = sphi 0, %s83
    %s105 = sphi 0, %s107
    %s108 = sphi 0, %s105
    %s109 = sphi 0, %s108
    %s125 = sphi 0, %s109
    %s131 = sphi 0, %s133
    %s134 = sphi 0, %s131
    %s135 = sphi 0, %s134
    %s151 = sphi 0, %s135
    %s157 = sphi 0, %s159
    %s160 = sphi 0, %s157
    %s161 = sphi 0, %s160
    %s177 = sphi 0, %s161
    %s183 = sphi 0, %s185
    %s186 = sphi 0, %s183
    %s187 = sphi 0, %s186
    %s203 = sphi 0, %s187
    %s209 = sphi 0, %s211
    %s212 = sphi 0, %s209
    %s213 = sphi 0, %s212
    %s229 = sphi 0, %s213
    %s235 = sphi 0, %s237
    %s238 = sphi 0, %s235
    %s239 = sphi 0, %s238
    %s255 = sphi 0, %s239
    %s259 = sphi 0, %s259
    %s261 = sphi 0, %s259
    %s262 = sphi 0, %s261
    %s276 = sphi 0, %s262
    %s280 = sphi 0, %s280
    %s282 = sphi 0, %s280
    %s283 = sphi 0, %s282
    %s297 = sphi 0, %s283
    %s303 = sphi 0, %s305
    %s306 = sphi 0, %s303
    %s307 = sphi 0, %s306
    %s323 = sphi 0, %s307
  $region4: #{encoder_fwd.22} parent=0 // loop_header_branch
    %20 = sbr.rel (%p18) target = $region8
  $region5: #{encoder_fwd.22} parent=0 // loop_body
    %s22 = ssub.s32 %s17, 1
    %s23 = ssub.s32 %s17, 2
    %s24 = sadd.s32 %s17, 1
    %s25 = ssub.s32 %s17, %s24
    %p26 = scmp.eq.s32.totalorder %s25, 0
    %s28 = sadd.s32 %s27, 1
    %s29 = scalar_select %p26, %s27, %s28
    %p32 = pneg %p26
    %p33 = scmp.eq.s32.totalorder %s17, 1
    %p34 = por %p32, %p33
    %p35 = scmp.ne.s32.totalorder %s27, %s30
    %p36 = scmp.eq.s32.totalorder %s17, 0
    %p37 = por %p35, %p36
    %p38 = scmp.ne.s32.totalorder %s27, %s30
    %p39 = scmp.eq.s32.totalorder %s22, 1
    %p40 = por %p38, %p39
    %p41 = scmp.ne.s32.totalorder %s30, %s31
    %p42 = scmp.eq.s32.totalorder %s22, 0
    %p43 = por %p41, %p42
    %p44 = scmp.ne.s32.totalorder %s30, %s31
    %p45 = scmp.eq.s32.totalorder %s23, 1
    %p46 = por %p44, %p45
    %p48 = scmp.ne.s32.totalorder %s31, %s47
    %p49 = scmp.eq.s32.totalorder %s23, 0
    %p50 = por %p48, %p49
    %s51 = ssub.s32 %s17, %s24
    %p52 = scmp.eq.s32.totalorder %s51, 0
    %s54 = sadd.s32 %s53, 1
    %s55 = scalar_select %p52, %s53, %s54
    %p58 = pneg %p52
    %p59 = scmp.eq.s32.totalorder %s17, 1
    %p60 = por %p58, %p59
    %p61 = scmp.ne.s32.totalorder %s53, %s56
    %p62 = scmp.eq.s32.totalorder %s17, 0
    %p63 = por %p61, %p62
    %p64 = scmp.ne.s32.totalorder %s53, %s56
    %p65 = scmp.eq.s32.totalorder %s22, 1
    %p66 = por %p64, %p65
    %p67 = scmp.ne.s32.totalorder %s56, %s57
    %p68 = scmp.eq.s32.totalorder %s22, 0
    %p69 = por %p67, %p68
    %p70 = scmp.ne.s32.totalorder %s56, %s57
    %p71 = scmp.eq.s32.totalorder %s23, 1
    %p72 = por %p70, %p71
    %p74 = scmp.ne.s32.totalorder %s57, %s73
    %p75 = scmp.eq.s32.totalorder %s23, 0
    %p76 = por %p74, %p75
    %s77 = ssub.s32 %s17, %s24
    %p78 = scmp.eq.s32.totalorder %s77, 0
    %s80 = sadd.s32 %s79, 1
    %s81 = scalar_select %p78, %s79, %s80
    %p84 = pneg %p78
    %p85 = scmp.eq.s32.totalorder %s17, 1
    %p86 = por %p84, %p85
    %p87 = scmp.ne.s32.totalorder %s79, %s82
    %p88 = scmp.eq.s32.totalorder %s17, 0
    %p89 = por %p87, %p88
    %p90 = scmp.ne.s32.totalorder %s79, %s82
    %p91 = scmp.eq.s32.totalorder %s22, 1
    %p92 = por %p90, %p91
    %p93 = scmp.ne.s32.totalorder %s82, %s83
    %p94 = scmp.eq.s32.totalorder %s22, 0
    %p95 = por %p93, %p94
    %p96 = scmp.ne.s32.totalorder %s82, %s83
    %p97 = scmp.eq.s32.totalorder %s23, 1
    %p98 = por %p96, %p97
    %p100 = scmp.ne.s32.totalorder %s83, %s99
    %p101 = scmp.eq.s32.totalorder %s23, 0
    %p102 = por %p100, %p101
    %s103 = ssub.s32 %s17, %s24
    %p104 = scmp.eq.s32.totalorder %s103, 0
    %s106 = sadd.s32 %s105, 1
    %s107 = scalar_select %p104, %s105, %s106
    %p110 = pneg %p104
    %p111 = scmp.eq.s32.totalorder %s17, 1
    %p112 = por %p110, %p111
    %p113 = scmp.ne.s32.totalorder %s105, %s108
    %p114 = scmp.eq.s32.totalorder %s17, 0
    %p115 = por %p113, %p114
    %p116 = scmp.ne.s32.totalorder %s105, %s108
    %p117 = scmp.eq.s32.totalorder %s22, 1
    %p118 = por %p116, %p117
    %p119 = scmp.ne.s32.totalorder %s108, %s109
    %p120 = scmp.eq.s32.totalorder %s22, 0
    %p121 = por %p119, %p120
    %p122 = scmp.ne.s32.totalorder %s108, %s109
    %p123 = scmp.eq.s32.totalorder %s23, 1
    %p124 = por %p122, %p123
    %p126 = scmp.ne.s32.totalorder %s109, %s125
    %p127 = scmp.eq.s32.totalorder %s23, 0
    %p128 = por %p126, %p127
    %s129 = ssub.s32 %s17, %s24
    %p130 = scmp.eq.s32.totalorder %s129, 0
    %s132 = sadd.s32 %s131, 1
    %s133 = scalar_select %p130, %s131, %s132
    %p136 = pneg %p130
    %p137 = scmp.eq.s32.totalorder %s17, 1
    %p138 = por %p136, %p137
    %p139 = scmp.ne.s32.totalorder %s131, %s134
    %p140 = scmp.eq.s32.totalorder %s17, 0
    %p141 = por %p139, %p140
    %p142 = scmp.ne.s32.totalorder %s131, %s134
    %p143 = scmp.eq.s32.totalorder %s22, 1
    %p144 = por %p142, %p143
    %p145 = scmp.ne.s32.totalorder %s134, %s135
    %p146 = scmp.eq.s32.totalorder %s22, 0
    %p147 = por %p145, %p146
    %p148 = scmp.ne.s32.totalorder %s134, %s135
    %p149 = scmp.eq.s32.totalorder %s23, 1
    %p150 = por %p148, %p149
    %p152 = scmp.ne.s32.totalorder %s135, %s151
    %p153 = scmp.eq.s32.totalorder %s23, 0
    %p154 = por %p152, %p153
    %s155 = ssub.s32 %s17, %s24
    %p156 = scmp.eq.s32.totalorder %s155, 0
    %s158 = sadd.s32 %s157, 1
    %s159 = scalar_select %p156, %s157, %s158
    %p162 = pneg %p156
    %p163 = scmp.eq.s32.totalorder %s17, 1
    %p164 = por %p162, %p163
    %p165 = scmp.ne.s32.totalorder %s157, %s160
    %p166 = scmp.eq.s32.totalorder %s17, 0
    %p167 = por %p165, %p166
    %p168 = scmp.ne.s32.totalorder %s157, %s160
    %p169 = scmp.eq.s32.totalorder %s22, 1
    %p170 = por %p168, %p169
    %p171 = scmp.ne.s32.totalorder %s160, %s161
    %p172 = scmp.eq.s32.totalorder %s22, 0
    %p173 = por %p171, %p172
    %p174 = scmp.ne.s32.totalorder %s160, %s161
    %p175 = scmp.eq.s32.totalorder %s23, 1
    %p176 = por %p174, %p175
    %p178 = scmp.ne.s32.totalorder %s161, %s177
    %p179 = scmp.eq.s32.totalorder %s23, 0
    %p180 = por %p178, %p179
    %s181 = ssub.s32 %s17, %s24
    %p182 = scmp.eq.s32.totalorder %s181, 0
    %s184 = sadd.s32 %s183, 1
    %s185 = scalar_select %p182, %s183, %s184
    %p188 = pneg %p182
    %p189 = scmp.eq.s32.totalorder %s17, 1
    %p190 = por %p188, %p189
    %p191 = scmp.ne.s32.totalorder %s183, %s186
    %p192 = scmp.eq.s32.totalorder %s17, 0
    %p193 = por %p191, %p192
    %p194 = scmp.ne.s32.totalorder %s183, %s186
    %p195 = scmp.eq.s32.totalorder %s22, 1
    %p196 = por %p194, %p195
    %p197 = scmp.ne.s32.totalorder %s186, %s187
    %p198 = scmp.eq.s32.totalorder %s22, 0
    %p199 = por %p197, %p198
    %p200 = scmp.ne.s32.totalorder %s186, %s187
    %p201 = scmp.eq.s32.totalorder %s23, 1
    %p202 = por %p200, %p201
    %p204 = scmp.ne.s32.totalorder %s187, %s203
    %p205 = scmp.eq.s32.totalorder %s23, 0
    %p206 = por %p204, %p205
    %s207 = ssub.s32 %s17, %s24
    %p208 = scmp.eq.s32.totalorder %s207, 0
    %s210 = sadd.s32 %s209, 1
    %s211 = scalar_select %p208, %s209, %s210
    %p214 = pneg %p208
    %p215 = scmp.eq.s32.totalorder %s17, 1
    %p216 = por %p214, %p215
    %p217 = scmp.ne.s32.totalorder %s209, %s212
    %p218 = scmp.eq.s32.totalorder %s17, 0
    %p219 = por %p217, %p218
    %p220 = scmp.ne.s32.totalorder %s209, %s212
    %p221 = scmp.eq.s32.totalorder %s22, 1
    %p222 = por %p220, %p221
    %p223 = scmp.ne.s32.totalorder %s212, %s213
    %p224 = scmp.eq.s32.totalorder %s22, 0
    %p225 = por %p223, %p224
    %p226 = scmp.ne.s32.totalorder %s212, %s213
    %p227 = scmp.eq.s32.totalorder %s23, 1
    %p228 = por %p226, %p227
    %p230 = scmp.ne.s32.totalorder %s213, %s229
    %p231 = scmp.eq.s32.totalorder %s23, 0
    %p232 = por %p230, %p231
    %s233 = ssub.s32 %s17, %s24
    %p234 = scmp.eq.s32.totalorder %s233, 0
    %s236 = sadd.s32 %s235, 1
    %s237 = scalar_select %p234, %s235, %s236
    %p240 = pneg %p234
    %p241 = scmp.eq.s32.totalorder %s17, 1
    %p242 = por %p240, %p241
    %p243 = scmp.ne.s32.totalorder %s235, %s238
    %p244 = scmp.eq.s32.totalorder %s17, 0
    %p245 = por %p243, %p244
    %p246 = scmp.ne.s32.totalorder %s235, %s238
    %p247 = scmp.eq.s32.totalorder %s22, 1
    %p248 = por %p246, %p247
    %p249 = scmp.ne.s32.totalorder %s238, %s239
    %p250 = scmp.eq.s32.totalorder %s22, 0
    %p251 = por %p249, %p250
    %p252 = scmp.ne.s32.totalorder %s238, %s239
    %p253 = scmp.eq.s32.totalorder %s23, 1
    %p254 = por %p252, %p253
    %p256 = scmp.ne.s32.totalorder %s239, %s255
    %p257 = scmp.eq.s32.totalorder %s23, 0
    %p258 = por %p256, %p257
    %s260 = sadd.s32 %s259, 1
    %p263 = scmp.eq.s32.totalorder %s17, 1
    %p264 = scmp.ne.s32.totalorder %s259, %s261
    %p265 = scmp.eq.s32.totalorder %s17, 0
    %p266 = por %p264, %p265
    %p267 = scmp.ne.s32.totalorder %s259, %s261
    %p268 = scmp.eq.s32.totalorder %s22, 1
    %p269 = por %p267, %p268
    %p270 = scmp.ne.s32.totalorder %s261, %s262
    %p271 = scmp.eq.s32.totalorder %s22, 0
    %p272 = por %p270, %p271
    %p273 = scmp.ne.s32.totalorder %s261, %s262
    %p274 = scmp.eq.s32.totalorder %s23, 1
    %p275 = por %p273, %p274
    %p277 = scmp.ne.s32.totalorder %s262, %s276
    %p278 = scmp.eq.s32.totalorder %s23, 0
    %p279 = por %p277, %p278
    %s281 = sadd.s32 %s280, 1
    %p284 = scmp.eq.s32.totalorder %s17, 1
    %p285 = scmp.ne.s32.totalorder %s280, %s282
    %p286 = scmp.eq.s32.totalorder %s17, 0
    %p287 = por %p285, %p286
    %p288 = scmp.ne.s32.totalorder %s280, %s282
    %p289 = scmp.eq.s32.totalorder %s22, 1
    %p290 = por %p288, %p289
    %p291 = scmp.ne.s32.totalorder %s282, %s283
    %p292 = scmp.eq.s32.totalorder %s22, 0
    %p293 = por %p291, %p292
    %p294 = scmp.ne.s32.totalorder %s282, %s283
    %p295 = scmp.eq.s32.totalorder %s23, 1
    %p296 = por %p294, %p295
    %p298 = scmp.ne.s32.totalorder %s283, %s297
    %p299 = scmp.eq.s32.totalorder %s23, 0
    %p300 = por %p298, %p299
    %s301 = ssub.s32 %s17, %s24
    %p302 = scmp.eq.s32.totalorder %s301, 0
    %s304 = sadd.s32 %s303, 1
    %s305 = scalar_select %p302, %s303, %s304
    %p308 = pneg %p302
    %p309 = scmp.eq.s32.totalorder %s17, 1
    %p310 = por %p308, %p309
    %p311 = scmp.ne.s32.totalorder %s303, %s306
    %p312 = scmp.eq.s32.totalorder %s17, 0
    %p313 = por %p311, %p312
    %p314 = scmp.ne.s32.totalorder %s303, %s306
    %p315 = scmp.eq.s32.totalorder %s22, 1
    %p316 = por %p314, %p315
    %p317 = scmp.ne.s32.totalorder %s306, %s307
    %p318 = scmp.eq.s32.totalorder %s22, 0
    %p319 = por %p317, %p318
    %p320 = scmp.ne.s32.totalorder %s306, %s307
    %p321 = scmp.eq.s32.totalorder %s23, 1
    %p322 = por %p320, %p321
    %p324 = scmp.ne.s32.totalorder %s307, %s323
    %p325 = scmp.eq.s32.totalorder %s23, 0
    %p326 = por %p324, %p325
    %p327 = scmp.le.s32.totalorder 1, %s17
    %p328 = scmp.lt.s32.totalorder %s17, 3
    %p329 = pnand %p327, %p328
    %p330 = pneg %p329
    // Predicated region
    $region9: #{encoder_fwd.22} parent=5 // pred_check
      _
    $region10: #{encoder_fwd.22} parent=5 // pred_check_branch
      %332 = sbr.rel (%p329) target = $region12
    $region11: #{encoder_fwd.22} parent=5 // pred_region
      %s333 = ssub.s32 %s17, 1
      // Predicated region
      $region13: #{encoder_fwd.22} parent=11 // pred_check
        %p334 = pneg %p272
      $region14: #{encoder_fwd.22} parent=11 // pred_check_branch
        %336 = sbr.rel (%p334) target = $region16
      $region15: #{encoder_fwd.22} parent=11 // pred_region
        _
      $region16: #{encoder_fwd.22} parent=11 // pred_fallthru
        _
      // Predicated region
      $region17: #{encoder_fwd.22} parent=11 // pred_check
        %p337 = pneg %p293
      $region18: #{encoder_fwd.22} parent=11 // pred_check_branch
        %339 = sbr.rel (%p337) target = $region20
      $region19: #{encoder_fwd.22} parent=11 // pred_region
        _
      $region20: #{encoder_fwd.22} parent=11 // pred_fallthru
        _
    $region12: #{encoder_fwd.22} parent=5 // pred_fallthru
      _
    %p340 = scmp.lt.s32.totalorder %s17, 2
    // Predicated region
    $region21: #{encoder_fwd.22} parent=5 // pred_check
      %p341 = pneg %p340
    $region22: #{encoder_fwd.22} parent=5 // pred_check_branch
      %343 = sbr.rel (%p341) target = $region24
    $region23: #{encoder_fwd.22} parent=5 // pred_region
      // Predicated region
      $region25: #{encoder_fwd.22} parent=23 // pred_check
        %p344 = pneg %p37
      $region26: #{encoder_fwd.22} parent=23 // pred_check_branch
        %346 = sbr.rel (%p344) target = $region28
      $region27: #{encoder_fwd.22} parent=23 // pred_region
        %p347 = scmp.lt.s32.totalorder %s17, 1
        %s348 = scalar_select %p347, %s17, 1
        %s349 = smul.addr %s348, 8
        %s350 = smul.addr %s349, 4
        %s351 = scalar_lea.vmem %s0, %s350
      $region28: #{encoder_fwd.22} parent=23 // pred_fallthru
        _
      // Predicated region
      $region29: #{encoder_fwd.22} parent=23 // pred_check
        %p352 = pneg %p63
      $region30: #{encoder_fwd.22} parent=23 // pred_check_branch
        %354 = sbr.rel (%p352) target = $region32
      $region31: #{encoder_fwd.22} parent=23 // pred_region
        %p355 = scmp.lt.s32.totalorder %s17, 1
        %s356 = scalar_select %p355, %s17, 1
        %s357 = smul.addr %s356, 8
        %s358 = smul.addr %s357, 4
        %s359 = scalar_lea.vmem %s1, %s358
      $region32: #{encoder_fwd.22} parent=23 // pred_fallthru
        _
      // Predicated region
      $region33: #{encoder_fwd.22} parent=23 // pred_check
        %p360 = pneg %p89
      $region34: #{encoder_fwd.22} parent=23 // pred_check_branch
        %362 = sbr.rel (%p360) target = $region36
      $region35: #{encoder_fwd.22} parent=23 // pred_region
        %p363 = scmp.lt.s32.totalorder %s17, 1
        %s364 = scalar_select %p363, %s17, 1
        %s365 = smul.addr %s364, 8
        %s366 = smul.addr %s365, 4
        %s367 = scalar_lea.vmem %s2, %s366
      $region36: #{encoder_fwd.22} parent=23 // pred_fallthru
        _
      // Predicated region
      $region37: #{encoder_fwd.22} parent=23 // pred_check
        %p368 = pneg %p115
      $region38: #{encoder_fwd.22} parent=23 // pred_check_branch
        %370 = sbr.rel (%p368) target = $region40
      $region39: #{encoder_fwd.22} parent=23 // pred_region
        %p371 = scmp.lt.s32.totalorder %s17, 1
        %s372 = scalar_select %p371, %s17, 1
        %s373 = smul.addr %s372, 8
        %s374 = smul.addr %s373, 4
        %s375 = scalar_lea.vmem %s3, %s374
      $region40: #{encoder_fwd.22} parent=23 // pred_fallthru
        _
      // Predicated region
      $region41: #{encoder_fwd.22} parent=23 // pred_check
        %p376 = pneg %p141
      $region42: #{encoder_fwd.22} parent=23 // pred_check_branch
        %378 = sbr.rel (%p376) target = $region44
      $region43: #{encoder_fwd.22} parent=23 // pred_region
        %p379 = scmp.lt.s32.totalorder %s17, 1
        %s380 = scalar_select %p379, %s17, 1
        %s381 = scalar_lea.vmem %s4, %s380
      $region44: #{encoder_fwd.22} parent=23 // pred_fallthru
        _
      // Predicated region
      $region45: #{encoder_fwd.22} parent=23 // pred_check
        %p382 = pneg %p167
      $region46: #{encoder_fwd.22} parent=23 // pred_check_branch
        %384 = sbr.rel (%p382) target = $region48
      $region47: #{encoder_fwd.22} parent=23 // pred_region
        %p385 = scmp.lt.s32.totalorder %s17, 1
        %s386 = scalar_select %p385, %s17, 1
        %s387 = scalar_lea.vmem %s5, %s386
      $region48: #{encoder_fwd.22} parent=23 // pred_fallthru
        _
      // Predicated region
      $region49: #{encoder_fwd.22} parent=23 // pred_check
        %p388 = pneg %p193
      $region50: #{encoder_fwd.22} parent=23 // pred_check_branch
        %390 = sbr.rel (%p388) target = $region52
      $region51: #{encoder_fwd.22} parent=23 // pred_region
        %p391 = scmp.lt.s32.totalorder %s17, 1
        %s392 = scalar_select %p391, %s17, 1
        %s393 = scalar_lea.vmem %s6, %s392
      $region52: #{encoder_fwd.22} parent=23 // pred_fallthru
        _
      // Predicated region
      $region53: #{encoder_fwd.22} parent=23 // pred_check
        %p394 = pneg %p219
      $region54: #{encoder_fwd.22} parent=23 // pred_check_branch
        %396 = sbr.rel (%p394) target = $region56
      $region55: #{encoder_fwd.22} parent=23 // pred_region
        %p397 = scmp.lt.s32.totalorder %s17, 1
        %s398 = scalar_select %p397, %s17, 1
        %s399 = scalar_lea.vmem %s7, %s398
      $region56: #{encoder_fwd.22} parent=23 // pred_fallthru
        _
      // Predicated region
      $region57: #{encoder_fwd.22} parent=23 // pred_check
        %p400 = pneg %p245
      $region58: #{encoder_fwd.22} parent=23 // pred_check_branch
        %402 = sbr.rel (%p400) target = $region60
      $region59: #{encoder_fwd.22} parent=23 // pred_region
        %p403 = scmp.lt.s32.totalorder %s17, 1
        %s404 = scalar_select %p403, %s17, 1
        %s405 = scalar_lea.vmem %s8, %s404
      $region60: #{encoder_fwd.22} parent=23 // pred_fallthru
        _
    $region24: #{encoder_fwd.22} parent=5 // pred_fallthru
      _
    %p406 = scmp.le.s32.totalorder 1, %s17
    %p407 = scmp.lt.s32.totalorder %s17, 3
    %p408 = pnand %p406, %p407
    %p409 = pneg %p408
    // Predicated region
    $region61: #{encoder_fwd.22} parent=5 // pred_check
      _
    $region62: #{encoder_fwd.22} parent=5 // pred_check_branch
      %411 = sbr.rel (%p408) target = $region64
    $region63: #{encoder_fwd.22} parent=5 // pred_region
      %s412 = ssub.s32 %s17, 1
      %p413 = scmp.lt.s32.totalorder %s22, 1
      %s414 = scalar_select %p413, %s22, 1
      %s415 = smul.addr %s414, 8
      %s416 = smul.addr %s415, 4
      %s417 = scalar_lea.vmem %s0, %s416
      %p418 = pneg %p43
      %p419 = pneg %p40
      %p420 = scmp.lt.s32.totalorder %s22, 1
      %s421 = scalar_select %p420, %s22, 1
      %s422 = smul.addr %s421, 8
      %s423 = smul.addr %s422, 4
      %s424 = scalar_lea.vmem %s1, %s423
      %p425 = pneg %p69
      %p426 = pneg %p66
      %p427 = scmp.lt.s32.totalorder %s22, 1
      %s428 = scalar_select %p427, %s22, 1
      %s429 = smul.addr %s428, 8
      %s430 = smul.addr %s429, 4
      %s431 = scalar_lea.vmem %s2, %s430
      %p432 = pneg %p95
      %p433 = pneg %p92
      %p434 = scmp.lt.s32.totalorder %s22, 1
      %s435 = scalar_select %p434, %s22, 1
      %s436 = smul.addr %s435, 8
      %s437 = smul.addr %s436, 4
      %s438 = scalar_lea.vmem %s3, %s437
      %p439 = pneg %p121
      %p440 = pneg %p118
      %p441 = scmp.lt.s32.totalorder %s22, 1
      %s442 = scalar_select %p441, %s22, 1
      %s443 = scalar_lea.vmem %s4, %s442
      %p444 = pneg %p147
      %p445 = pneg %p144
      %p446 = scmp.lt.s32.totalorder %s22, 1
      %s447 = scalar_select %p446, %s22, 1
      %s448 = scalar_lea.vmem %s5, %s447
      %p449 = pneg %p173
      %p450 = pneg %p170
      %p451 = scmp.lt.s32.totalorder %s22, 1
      %s452 = scalar_select %p451, %s22, 1
      %s453 = scalar_lea.vmem %s6, %s452
      %p454 = pneg %p199
      %p455 = pneg %p196
      %p456 = scmp.lt.s32.totalorder %s22, 1
      %s457 = scalar_select %p456, %s22, 1
      %s458 = scalar_lea.vmem %s7, %s457
      %p459 = pneg %p225
      %p460 = pneg %p222
      %p461 = scmp.lt.s32.totalorder %s22, 1
      %s462 = scalar_select %p461, %s22, 1
      %s463 = scalar_lea.vmem %s8, %s462
      %p464 = pneg %p251
      %p465 = pneg %p248
      %p466 = pneg %p272
      %p467 = pneg %p269
      %p468 = pneg %p293
      %p469 = pneg %p290
      %p470 = pneg %p319
      %p471 = pneg %p316
      %p472 = scmp.lt.s32.totalorder %s22, 1
      %s473 = scalar_select %p472, %s22, 1
      %s474 = smul.addr %s473, 8
      %s475 = smul.addr %s474, 4
      %s476 = scalar_lea.vmem %s11, %s475
      %p477 = scmp.lt.s32.totalorder %s22, 1
      %s478 = scalar_select %p477, %s22, 1
      %s479 = smul.addr %s478, 8
      %s480 = smul.addr %s479, 4
      %s481 = scalar_lea.vmem %s0, %s480
      %p482 = scmp.lt.s32.totalorder %s22, 1
      %s483 = scalar_select %p482, %s22, 1
      %s484 = smul.addr %s483, 8
      %s485 = smul.addr %s484, 4
      %s486 = scalar_lea.vmem %s1, %s485
      %p487 = scmp.lt.s32.totalorder %s22, 1
      %s488 = scalar_select %p487, %s22, 1
      %s489 = smul.addr %s488, 8
      %s490 = smul.addr %s489, 4
      %s491 = scalar_lea.vmem %s2, %s490
      %p492 = scmp.lt.s32.totalorder %s22, 1
      %s493 = scalar_select %p492, %s22, 1
      %s494 = smul.addr %s493, 8
      %s495 = smul.addr %s494, 4
      %s496 = scalar_lea.vmem %s3, %s495
      %p497 = scmp.lt.s32.totalorder %s22, 1
      %s498 = scalar_select %p497, %s22, 1
      %s499 = scalar_lea.vmem %s4, %s498
      %p500 = scmp.lt.s32.totalorder %s22, 1
      %s501 = scalar_select %p500, %s22, 1
      %s502 = scalar_lea.vmem %s5, %s501
      %p503 = scmp.lt.s32.totalorder %s22, 1
      %s504 = scalar_select %p503, %s22, 1
      %s505 = scalar_lea.vmem %s6, %s504
      %p506 = scmp.lt.s32.totalorder %s22, 1
      %s507 = scalar_select %p506, %s22, 1
      %s508 = scalar_lea.vmem %s7, %s507
      %p509 = scmp.lt.s32.totalorder %s22, 1
      %s510 = scalar_select %p509, %s22, 1
      %s511 = scalar_lea.vmem %s8, %s510
      %p512 = scmp.lt.s32.totalorder %s22, 1
      %s513 = scalar_select %p512, %s22, 1
      %s514 = smul.addr %s513, 8
      %s515 = smul.addr %s514, 4
      %s516 = scalar_lea.vmem %s11, %s515
      %v518 = vld [vmem:[%s481] sm:$0xf]
      %v519 = vld [vmem:[%s481 + $0x4] sm:$0xf]
      %v520 = vld [vmem:[%s481 + $0x8] sm:$0xf]
      %v521 = vld [vmem:[%s481 + $0xc] sm:$0xf]
      %v522 = vld [vmem:[%s481 + $0x10] sm:$0xf]
      %v523 = vld [vmem:[%s481 + $0x14] sm:$0xf]
      %v524 = vld [vmem:[%s481 + $0x18] sm:$0xf]
      %v525 = vld [vmem:[%s481 + $0x1c] sm:$0xf]
      %v526 = vunpack.c.l.bf16 %v518
      %v527 = vunpack.c.l.bf16 %v519
      %v528 = vunpack.c.l.bf16 %v520
      %v529 = vunpack.c.l.bf16 %v521
      %v530 = vunpack.c.l.bf16 %v522
      %v531 = vunpack.c.l.bf16 %v523
      %v532 = vunpack.c.l.bf16 %v524
      %v533 = vunpack.c.l.bf16 %v525
      %v534 = vld [vmem:[%s499] sm:$0x1]
      %v536 = vlaneseq
      %v537 = vshrl.u32 %v536, 7
      %v538 = vsub.s32 0, %v537
      %v539 = vrot.slane %v534, %v538
      %v541 = vmul.f32 %v526, %v539
      %v542 = vmul.f32 %v527, %v539
      %v543 = vmul.f32 %v528, %v539
      %v544 = vmul.f32 %v529, %v539
      %v545 = vmul.f32 %v530, %v539
      %v546 = vmul.f32 %v531, %v539
      %v547 = vmul.f32 %v532, %v539
      %v548 = vmul.f32 %v533, %v539
      %v549 = vld [vmem:[%s486] sm:$0xf]
      %v550 = vld [vmem:[%s486 + $0x4] sm:$0xf]
      %v551 = vld [vmem:[%s486 + $0x8] sm:$0xf]
      %v552 = vld [vmem:[%s486 + $0xc] sm:$0xf]
      %v553 = vld [vmem:[%s486 + $0x10] sm:$0xf]
      %v554 = vld [vmem:[%s486 + $0x14] sm:$0xf]
      %v555 = vld [vmem:[%s486 + $0x18] sm:$0xf]
      %v556 = vld [vmem:[%s486 + $0x1c] sm:$0xf]
      %v557 = vunpack.c.l.bf16 %v549
      %v558 = vunpack.c.l.bf16 %v550
      %v559 = vunpack.c.l.bf16 %v551
      %v560 = vunpack.c.l.bf16 %v552
      %v561 = vunpack.c.l.bf16 %v553
      %v562 = vunpack.c.l.bf16 %v554
      %v563 = vunpack.c.l.bf16 %v555
      %v564 = vunpack.c.l.bf16 %v556
      %v565 = vld [vmem:[%s502] sm:$0x1]
      %v567 = vlaneseq
      %v568 = vshrl.u32 %v567, 7
      %v569 = vsub.s32 0, %v568
      %v570 = vrot.slane %v565, %v569
      %v572 = vmul.f32 %v557, %v570
      %v573 = vmul.f32 %v558, %v570
      %v574 = vmul.f32 %v559, %v570
      %v575 = vmul.f32 %v560, %v570
      %v576 = vmul.f32 %v561, %v570
      %v577 = vmul.f32 %v562, %v570
      %v578 = vmul.f32 %v563, %v570
      %v579 = vmul.f32 %v564, %v570
      %v580 = vld [vmem:[%s491] sm:$0xf]
      %v581 = vld [vmem:[%s491 + $0x4] sm:$0xf]
      %v582 = vld [vmem:[%s491 + $0x8] sm:$0xf]
      %v583 = vld [vmem:[%s491 + $0xc] sm:$0xf]
      %v584 = vld [vmem:[%s491 + $0x10] sm:$0xf]
      %v585 = vld [vmem:[%s491 + $0x14] sm:$0xf]
      %v586 = vld [vmem:[%s491 + $0x18] sm:$0xf]
      %v587 = vld [vmem:[%s491 + $0x1c] sm:$0xf]
      %v588 = vunpack.c.l.bf16 %v580
      %v589 = vunpack.c.l.bf16 %v581
      %v590 = vunpack.c.l.bf16 %v582
      %v591 = vunpack.c.l.bf16 %v583
      %v592 = vunpack.c.l.bf16 %v584
      %v593 = vunpack.c.l.bf16 %v585
      %v594 = vunpack.c.l.bf16 %v586
      %v595 = vunpack.c.l.bf16 %v587
      %v596 = vld [vmem:[%s505] sm:$0x1]
      %v598 = vlaneseq
      %v599 = vshrl.u32 %v598, 7
      %v600 = vsub.s32 0, %v599
      %v601 = vrot.slane %v596, %v600
      %v603 = vmul.f32 %v588, %v601
      %v604 = vmul.f32 %v589, %v601
      %v605 = vmul.f32 %v590, %v601
      %v606 = vmul.f32 %v591, %v601
      %v607 = vmul.f32 %v592, %v601
      %v608 = vmul.f32 %v593, %v601
      %v609 = vmul.f32 %v594, %v601
      %v610 = vmul.f32 %v595, %v601
      %v611 = vld [vmem:[%s496] sm:$0xf]
      %v612 = vld [vmem:[%s496 + $0x4] sm:$0xf]
      %v613 = vld [vmem:[%s496 + $0x8] sm:$0xf]
      %v614 = vld [vmem:[%s496 + $0xc] sm:$0xf]
      %v615 = vld [vmem:[%s496 + $0x10] sm:$0xf]
      %v616 = vld [vmem:[%s496 + $0x14] sm:$0xf]
      %v617 = vld [vmem:[%s496 + $0x18] sm:$0xf]
      %v618 = vld [vmem:[%s496 + $0x1c] sm:$0xf]
      %v619 = vunpack.c.l.bf16 %v611
      %v620 = vunpack.c.l.bf16 %v612
      %v621 = vunpack.c.l.bf16 %v613
      %v622 = vunpack.c.l.bf16 %v614
      %v623 = vunpack.c.l.bf16 %v615
      %v624 = vunpack.c.l.bf16 %v616
      %v625 = vunpack.c.l.bf16 %v617
      %v626 = vunpack.c.l.bf16 %v618
      %v627 = vld [vmem:[%s508] sm:$0x1]
      %v629 = vlaneseq
      %v630 = vshrl.u32 %v629, 7
      %v631 = vsub.s32 0, %v630
      %v632 = vrot.slane %v627, %v631
      %v634 = vmul.f32 %v619, %v632
      %v635 = vmul.f32 %v620, %v632
      %v636 = vmul.f32 %v621, %v632
      %v637 = vmul.f32 %v622, %v632
      %v638 = vmul.f32 %v623, %v632
      %v639 = vmul.f32 %v624, %v632
      %v640 = vmul.f32 %v625, %v632
      %v641 = vmul.f32 %v626, %v632
      %642 = vrot.lane.b32.xlu0 %v541, 7
      %v643 = vpop.permute.xlu0 %642
      %644 = vrot.lane.b32.xlu0 %v542, 7
      %v645 = vpop.permute.xlu0 %644
      %646 = vrot.lane.b32.xlu0 %v543, 7
      %v647 = vpop.permute.xlu0 %646
      %648 = vrot.lane.b32.xlu0 %v544, 7
      %v649 = vpop.permute.xlu0 %648
      %650 = vrot.lane.b32.xlu0 %v545, 7
      %v651 = vpop.permute.xlu0 %650
      %652 = vrot.lane.b32.xlu0 %v546, 7
      %v653 = vpop.permute.xlu0 %652
      %654 = vrot.lane.b32.xlu0 %v547, 7
      %v655 = vpop.permute.xlu0 %654
      %656 = vrot.lane.b32.xlu0 %v548, 7
      %v657 = vpop.permute.xlu0 %656
      %v658 = vpack.c.bf16 %v645, %v643
      %v659 = vpack.c.bf16 %v649, %v647
      %v660 = vpack.c.bf16 %v653, %v651
      %v661 = vpack.c.bf16 %v657, %v655
      %662 = vrot.lane.b32.xlu0 %v572, 7
      %v663 = vpop.permute.xlu0 %662
      %664 = vrot.lane.b32.xlu0 %v573, 7
      %v665 = vpop.permute.xlu0 %664
      %666 = vrot.lane.b32.xlu0 %v574, 7
      %v667 = vpop.permute.xlu0 %666
      %668 = vrot.lane.b32.xlu0 %v575, 7
      %v669 = vpop.permute.xlu0 %668
      %670 = vrot.lane.b32.xlu0 %v576, 7
      %v671 = vpop.permute.xlu0 %670
      %672 = vrot.lane.b32.xlu0 %v577, 7
      %v673 = vpop.permute.xlu0 %672
      %674 = vrot.lane.b32.xlu0 %v578, 7
      %v675 = vpop.permute.xlu0 %674
      %676 = vrot.lane.b32.xlu0 %v579, 7
      %v677 = vpop.permute.xlu0 %676
      %v678 = vpack.c.bf16 %v665, %v663
      %v679 = vpack.c.bf16 %v669, %v667
      %v680 = vpack.c.bf16 %v673, %v671
      %v681 = vpack.c.bf16 %v677, %v675
      %682 = vrot.lane.b32.xlu0 %v541, 6
      %v683 = vpop.permute.xlu0 %682
      %684 = vrot.lane.b32.xlu0 %v542, 6
      %v685 = vpop.permute.xlu0 %684
      %686 = vrot.lane.b32.xlu0 %v543, 6
      %v687 = vpop.permute.xlu0 %686
      %688 = vrot.lane.b32.xlu0 %v544, 6
      %v689 = vpop.permute.xlu0 %688
      %690 = vrot.lane.b32.xlu0 %v545, 6
      %v691 = vpop.permute.xlu0 %690
      %692 = vrot.lane.b32.xlu0 %v546, 6
      %v693 = vpop.permute.xlu0 %692
      %694 = vrot.lane.b32.xlu0 %v547, 6
      %v695 = vpop.permute.xlu0 %694
      %696 = vrot.lane.b32.xlu0 %v548, 6
      %v697 = vpop.permute.xlu0 %696
      %v698 = vpack.c.bf16 %v685, %v683
      %v699 = vpack.c.bf16 %v689, %v687
      %v700 = vpack.c.bf16 %v693, %v691
      %v701 = vpack.c.bf16 %v697, %v695
      %702 = vrot.lane.b32.xlu0 %v603, 7
      %v703 = vpop.permute.xlu0 %702
      %704 = vrot.lane.b32.xlu0 %v604, 7
      %v705 = vpop.permute.xlu0 %704
      %706 = vrot.lane.b32.xlu0 %v605, 7
      %v707 = vpop.permute.xlu0 %706
      %708 = vrot.lane.b32.xlu0 %v606, 7
      %v709 = vpop.permute.xlu0 %708
      %710 = vrot.lane.b32.xlu0 %v607, 7
      %v711 = vpop.permute.xlu0 %710
      %712 = vrot.lane.b32.xlu0 %v608, 7
      %v713 = vpop.permute.xlu0 %712
      %714 = vrot.lane.b32.xlu0 %v609, 7
      %v715 = vpop.permute.xlu0 %714
      %716 = vrot.lane.b32.xlu0 %v610, 7
      %v717 = vpop.permute.xlu0 %716
      %v718 = vpack.c.bf16 %v705, %v703
      %v719 = vpack.c.bf16 %v709, %v707
      %v720 = vpack.c.bf16 %v713, %v711
      %v721 = vpack.c.bf16 %v717, %v715
      %722 = vrot.lane.b32.xlu0 %v634, 7
      %v723 = vpop.permute.xlu0 %722
      %724 = vrot.lane.b32.xlu0 %v635, 7
      %v725 = vpop.permute.xlu0 %724
      %726 = vrot.lane.b32.xlu0 %v636, 7
      %v727 = vpop.permute.xlu0 %726
      %728 = vrot.lane.b32.xlu0 %v637, 7
      %v729 = vpop.permute.xlu0 %728
      %730 = vrot.lane.b32.xlu0 %v638, 7
      %v731 = vpop.permute.xlu0 %730
      %732 = vrot.lane.b32.xlu0 %v639, 7
      %v733 = vpop.permute.xlu0 %732
      %734 = vrot.lane.b32.xlu0 %v640, 7
      %v735 = vpop.permute.xlu0 %734
      %736 = vrot.lane.b32.xlu0 %v641, 7
      %v737 = vpop.permute.xlu0 %736
      %v738 = vpack.c.bf16 %v725, %v723
      %v739 = vpack.c.bf16 %v729, %v727
      %v740 = vpack.c.bf16 %v733, %v731
      %v741 = vpack.c.bf16 %v737, %v735
      %742 = vrot.lane.b32.xlu0 %v603, 6
      %v743 = vpop.permute.xlu0 %742
      %744 = vrot.lane.b32.xlu0 %v604, 6
      %v745 = vpop.permute.xlu0 %744
      %746 = vrot.lane.b32.xlu0 %v605, 6
      %v747 = vpop.permute.xlu0 %746
      %748 = vrot.lane.b32.xlu0 %v606, 6
      %v749 = vpop.permute.xlu0 %748
      %750 = vrot.lane.b32.xlu0 %v607, 6
      %v751 = vpop.permute.xlu0 %750
      %752 = vrot.lane.b32.xlu0 %v608, 6
      %v753 = vpop.permute.xlu0 %752
      %754 = vrot.lane.b32.xlu0 %v609, 6
      %v755 = vpop.permute.xlu0 %754
      %756 = vrot.lane.b32.xlu0 %v610, 6
      %v757 = vpop.permute.xlu0 %756
      %v758 = vpack.c.bf16 %v745, %v743
      %v759 = vpack.c.bf16 %v749, %v747
      %v760 = vpack.c.bf16 %v753, %v751
      %v761 = vpack.c.bf16 %v757, %v755
      %762 = vrot.lane.b32.xlu0 %v541, 1
      %v763 = vpop.permute.xlu0 %762
      %764 = vrot.lane.b32.xlu0 %v542, 1
      %v765 = vpop.permute.xlu0 %764
      %766 = vrot.lane.b32.xlu0 %v543, 1
      %v767 = vpop.permute.xlu0 %766
      %768 = vrot.lane.b32.xlu0 %v544, 1
      %v769 = vpop.permute.xlu0 %768
      %770 = vrot.lane.b32.xlu0 %v545, 1
      %v771 = vpop.permute.xlu0 %770
      %772 = vrot.lane.b32.xlu0 %v546, 1
      %v773 = vpop.permute.xlu0 %772
      %774 = vrot.lane.b32.xlu0 %v547, 1
      %v775 = vpop.permute.xlu0 %774
      %776 = vrot.lane.b32.xlu0 %v548, 1
      %v777 = vpop.permute.xlu0 %776
      %v778 = vpack.c.bf16 %v765, %v763
      %v779 = vpack.c.bf16 %v769, %v767
      %v780 = vpack.c.bf16 %v773, %v771
      %v781 = vpack.c.bf16 %v777, %v775
      %782 = vrot.lane.b32.xlu0 %v572, 1
      %v783 = vpop.permute.xlu0 %782
      %784 = vrot.lane.b32.xlu0 %v573, 1
      %v785 = vpop.permute.xlu0 %784
      %786 = vrot.lane.b32.xlu0 %v574, 1
      %v787 = vpop.permute.xlu0 %786
      %788 = vrot.lane.b32.xlu0 %v575, 1
      %v789 = vpop.permute.xlu0 %788
      %790 = vrot.lane.b32.xlu0 %v576, 1
      %v791 = vpop.permute.xlu0 %790
      %792 = vrot.lane.b32.xlu0 %v577, 1
      %v793 = vpop.permute.xlu0 %792
      %794 = vrot.lane.b32.xlu0 %v578, 1
      %v795 = vpop.permute.xlu0 %794
      %796 = vrot.lane.b32.xlu0 %v579, 1
      %v797 = vpop.permute.xlu0 %796
      %v798 = vpack.c.bf16 %v785, %v783
      %v799 = vpack.c.bf16 %v789, %v787
      %v800 = vpack.c.bf16 %v793, %v791
      %v801 = vpack.c.bf16 %v797, %v795
      %v802 = vpack.c.bf16 %v542, %v541
      %v803 = vpack.c.bf16 %v544, %v543
      %v804 = vpack.c.bf16 %v546, %v545
      %v805 = vpack.c.bf16 %v548, %v547
      %v806 = vld [vmem:[%s9] sm:$0xff]
      %v807 = vld [vmem:[%s9 + $0x8] sm:$0xff]
      %v808 = vld [vmem:[%s9 + $0x10] sm:$0xf]
      %v809 = vld [vmem:[%s9 + $0x14] sm:$0xff]
      %v810 = vld [vmem:[%s9 + $0x1c] sm:$0xff]
      %v811 = vld [vmem:[%s9 + $0x24] sm:$0xf]
      %v812 = vld [vmem:[%s9 + $0x28] sm:$0xff]
      %v813 = vld [vmem:[%s9 + $0x30] sm:$0xff]
      %v814 = vld [vmem:[%s9 + $0x38] sm:$0xf]
      %v815 = vld [vmem:[%s9 + $0x3c] sm:$0xff]
      %v816 = vld [vmem:[%s9 + $0x44] sm:$0xff]
      %v817 = vld [vmem:[%s9 + $0x4c] sm:$0xf]
      %v818 = vld [vmem:[%s9 + $0x50] sm:$0xff]
      %v819 = vld [vmem:[%s9 + $0x58] sm:$0xff]
      %v820 = vld [vmem:[%s9 + $0x60] sm:$0xf]
      %v821 = vld [vmem:[%s9 + $0x64] sm:$0xff]
      %v822 = vld [vmem:[%s9 + $0x6c] sm:$0xff]
      %v823 = vld [vmem:[%s9 + $0x74] sm:$0xf]
      %v824 = vld [vmem:[%s9 + $0x78] sm:$0xff]
      %v825 = vld [vmem:[%s9 + $0x80] sm:$0xff]
      %v826 = vld [vmem:[%s9 + $0x88] sm:$0xf]
      %v827 = vld [vmem:[%s9 + $0x8c] sm:$0xff]
      %v828 = vld [vmem:[%s9 + $0x94] sm:$0xff]
      %v829 = vld [vmem:[%s9 + $0x9c] sm:$0xf]
      %v854 = vunpack.c.l.b16 %v806
      %v855 = vunpack.c.h.b16 %v806
      %v856 = vunpack.c.l.b16 %v807
      %v857 = vunpack.c.h.b16 %v807
      %v858 = vunpack.c.l.b16 %v808
      %v859 = vunpack.c.l.b16 %v809
      %v860 = vunpack.c.h.b16 %v809
      %v861 = vunpack.c.l.b16 %v810
      %v862 = vunpack.c.h.b16 %v810
      %v863 = vunpack.c.l.b16 %v811
      %v864 = vunpack.c.l.b16 %v812
      %v865 = vunpack.c.h.b16 %v812
      %v866 = vunpack.c.l.b16 %v813
      %v867 = vunpack.c.h.b16 %v813
      %v868 = vunpack.c.l.b16 %v814
      %v869 = vunpack.c.l.b16 %v815
      %v870 = vunpack.c.h.b16 %v815
      %v871 = vunpack.c.l.b16 %v816
      %v872 = vunpack.c.h.b16 %v816
      %v873 = vunpack.c.l.b16 %v817
      %v874 = vunpack.c.l.b16 %v818
      %v875 = vunpack.c.h.b16 %v818
      %v876 = vunpack.c.l.b16 %v819
      %v877 = vunpack.c.h.b16 %v819
      %v878 = vunpack.c.l.b16 %v820
      %v879 = vunpack.c.l.b16 %v821
      %v880 = vunpack.c.h.b16 %v821
      %v881 = vunpack.c.l.b16 %v822
      %v882 = vunpack.c.h.b16 %v822
      %v883 = vunpack.c.l.b16 %v823
      %v884 = vunpack.c.l.b16 %v824
      %v885 = vunpack.c.h.b16 %v824
      %v886 = vunpack.c.l.b16 %v825
      %v887 = vunpack.c.h.b16 %v825
      %v888 = vunpack.c.l.b16 %v826
      %v889 = vunpack.c.l.b16 %v827
      %v890 = vunpack.c.h.b16 %v827
      %v891 = vunpack.c.l.b16 %v828
      %v892 = vunpack.c.h.b16 %v828
      %v893 = vunpack.c.l.b16 %v829
      %v894 = vpack.c.b16 %v859, %v854
      %v895 = vpack.c.b16 %v860, %v855
      %v896 = vpack.c.b16 %v861, %v856
      %v897 = vpack.c.b16 %v862, %v857
      %v898 = vpack.c.b16 %v863, %v858
      %v899 = vpack.c.b16 %v869, %v864
      %v900 = vpack.c.b16 %v870, %v865
      %v901 = vpack.c.b16 %v871, %v866
      %v902 = vpack.c.b16 %v872, %v867
      %v903 = vpack.c.b16 %v873, %v868
      %v904 = vpack.c.b16 %v879, %v874
      %v905 = vpack.c.b16 %v880, %v875
      %v906 = vpack.c.b16 %v881, %v876
      %v907 = vpack.c.b16 %v882, %v877
      %v908 = vpack.c.b16 %v883, %v878
      %v909 = vpack.c.b16 %v889, %v884
      %v910 = vpack.c.b16 %v890, %v885
      %v911 = vpack.c.b16 %v891, %v886
      %v912 = vpack.c.b16 %v892, %v887
      %v913 = vpack.c.b16 %v893, %v888
      %vm930 = vcmask 523264
      %v932 = vsel %vm930, %v898, 0
      %v935 = vsel %vm930, %v903, 0
      %v938 = vsel %vm930, %v908, 0
      %v941 = vsel %vm930, %v913, 0
      %943 = vmatprep.subr.bf16.mxu0 0
      %944 = vmatpush1.bf16.msra.mxu0 %v681
      %945 = vmatprep.subr.bf16.mxu0 0
      %946 = vmatpush1.bf16.msra.mxu0 %v680
      %947 = vmatprep.subr.bf16.mxu0 0
      %948 = vmatpush1.bf16.msra.mxu0 %v679
      %949 = vmatprep.subr.bf16.mxu0 0
      %950 = vmatpush1.bf16.msra.mxu0 %v678
      %951 = vmatprep.subr.bf16.mxu0 0
      %952 = vmatpush1.bf16.msra.mxu0 %v661
      %953 = vmatprep.subr.bf16.mxu0 0
      %954 = vmatpush1.bf16.msra.mxu0 %v660
      %955 = vmatprep.subr.bf16.mxu0 0
      %956 = vmatpush1.bf16.msra.mxu0 %v659
      %957 = vmatprep.subr.bf16.mxu0 0
      %958 = vmatpush1.bf16.msra.mxu0 %v658
      %959 = vmatprep.subr.bf16.mxu0 0
      %960 = vmatpush2.bf16.msra.mxu0 %v721
      %961 = vmatprep.subr.bf16.mxu0 0
      %962 = vmatpush2.bf16.msra.mxu0 %v720
      %963 = vmatprep.subr.bf16.mxu0 0
      %964 = vmatpush2.bf16.msra.mxu0 %v719
      %965 = vmatprep.subr.bf16.mxu0 0
      %966 = vmatpush2.bf16.msra.mxu0 %v718
      %967 = vmatprep.subr.bf16.mxu0 0
      %968 = vmatpush2.bf16.msra.mxu0 %v701
      %969 = vmatprep.subr.bf16.mxu0 0
      %970 = vmatpush2.bf16.msra.mxu0 %v700
      %971 = vmatprep.subr.bf16.mxu0 0
      %972 = vmatpush2.bf16.msra.mxu0 %v699
      %973 = vmatprep.subr.bf16.mxu0 0
      %974 = vmatpush2.bf16.msra.mxu0 %v698
      %975 = vmatprep.mubr.bf16.mxu0 %v895
      %976 = vmatmul.mubr.bf16.gmra.mxu0 %v894
      %v977 = vpop.f32.mrf.mxu0
      %v978 = vadd.f32 0.0, %v977
      %v979 = vpop.f32.mrf.mxu0
      %v980 = vpop.f32.mrf.mxu0
      %v981 = vadd.f32 0.0, %v980
      %v982 = vpop.f32.mrf.mxu0
      %983 = vmatprep.mubr.bf16.mxu0 %v900
      %984 = vmatmul.mubr.bf16.gmra.mxu0 %v899
      %v985 = vpop.f32.mrf.mxu0
      %v986 = vadd.f32 0.0, %v985
      %v987 = vpop.f32.mrf.mxu0
      %v988 = vpop.f32.mrf.mxu0
      %v989 = vadd.f32 0.0, %v988
      %v990 = vpop.f32.mrf.mxu0
      %991 = vmatprep.mubr.bf16.mxu0 %v905
      %992 = vmatmul.mubr.bf16.gmra.mxu0 %v904
      %v993 = vpop.f32.mrf.mxu0
      %v994 = vadd.f32 0.0, %v993
      %v995 = vpop.f32.mrf.mxu0
      %v996 = vpop.f32.mrf.mxu0
      %v997 = vadd.f32 0.0, %v996
      %v998 = vpop.f32.mrf.mxu0
      %999 = vmatprep.mubr.bf16.mxu0 %v910
      %1000 = vmatmul.mubr.bf16.gmra.mxu0 %v909
      %v1001 = vpop.f32.mrf.mxu0
      %v1002 = vadd.f32 0.0, %v1001
      %v1003 = vpop.f32.mrf.mxu0
      %v1004 = vpop.f32.mrf.mxu0
      %v1005 = vadd.f32 0.0, %v1004
      %v1006 = vpop.f32.mrf.mxu0
      %1007 = vdwg.mxu0
      %1008 = vmatprep.subr.bf16.mxu0 0
      %1009 = vmatpush1.bf16.msra.mxu0 %v761
      %1010 = vmatprep.subr.bf16.mxu0 0
      %1011 = vmatpush1.bf16.msra.mxu0 %v760
      %1012 = vmatprep.subr.bf16.mxu0 0
      %1013 = vmatpush1.bf16.msra.mxu0 %v759
      %1014 = vmatprep.subr.bf16.mxu0 0
      %1015 = vmatpush1.bf16.msra.mxu0 %v758
      %1016 = vmatprep.subr.bf16.mxu0 0
      %1017 = vmatpush1.bf16.msra.mxu0 %v741
      %1018 = vmatprep.subr.bf16.mxu0 0
      %1019 = vmatpush1.bf16.msra.mxu0 %v740
      %1020 = vmatprep.subr.bf16.mxu0 0
      %1021 = vmatpush1.bf16.msra.mxu0 %v739
      %1022 = vmatprep.subr.bf16.mxu0 0
      %1023 = vmatpush1.bf16.msra.mxu0 %v738
      %1024 = vmatprep.subr.bf16.mxu0 0
      %1025 = vmatpush2.bf16.msra.mxu0 %v801
      %1026 = vmatprep.subr.bf16.mxu0 0
      %1027 = vmatpush2.bf16.msra.mxu0 %v800
      %1028 = vmatprep.subr.bf16.mxu0 0
      %1029 = vmatpush2.bf16.msra.mxu0 %v799
      %1030 = vmatprep.subr.bf16.mxu0 0
      %1031 = vmatpush2.bf16.msra.mxu0 %v798
      %1032 = vmatprep.subr.bf16.mxu0 0
      %1033 = vmatpush2.bf16.msra.mxu0 %v781
      %1034 = vmatprep.subr.bf16.mxu0 0
      %1035 = vmatpush2.bf16.msra.mxu0 %v780
      %1036 = vmatprep.subr.bf16.mxu0 0
      %1037 = vmatpush2.bf16.msra.mxu0 %v779
      %1038 = vmatprep.subr.bf16.mxu0 0
      %1039 = vmatpush2.bf16.msra.mxu0 %v778
      %1040 = vmatprep.mubr.bf16.mxu0 %v897
      %1041 = vmatmul.mubr.bf16.gmra.mxu0 %v896
      %v1042 = vpop.f32.mrf.mxu0
      %v1043 = vadd.f32 %v978, %v1042
      %v1044 = vpop.f32.mrf.mxu0
      %v1045 = vpop.f32.mrf.mxu0
      %v1046 = vadd.f32 %v981, %v1045
      %v1047 = vpop.f32.mrf.mxu0
      %1048 = vmatprep.mubr.bf16.mxu0 %v902
      %1049 = vmatmul.mubr.bf16.gmra.mxu0 %v901
      %v1050 = vpop.f32.mrf.mxu0
      %v1051 = vadd.f32 %v986, %v1050
      %v1052 = vpop.f32.mrf.mxu0
      %v1053 = vpop.f32.mrf.mxu0
      %v1054 = vadd.f32 %v989, %v1053
      %v1055 = vpop.f32.mrf.mxu0
      %1056 = vmatprep.mubr.bf16.mxu0 %v907
      %1057 = vmatmul.mubr.bf16.gmra.mxu0 %v906
      %v1058 = vpop.f32.mrf.mxu0
      %v1059 = vadd.f32 %v994, %v1058
      %v1060 = vpop.f32.mrf.mxu0
      %v1061 = vpop.f32.mrf.mxu0
      %v1062 = vadd.f32 %v997, %v1061
      %v1063 = vpop.f32.mrf.mxu0
      %1064 = vmatprep.mubr.bf16.mxu0 %v912
      %1065 = vmatmul.mubr.bf16.gmra.mxu0 %v911
      %v1066 = vpop.f32.mrf.mxu0
      %v1067 = vadd.f32 %v1002, %v1066
      %v1068 = vpop.f32.mrf.mxu0
      %v1069 = vpop.f32.mrf.mxu0
      %v1070 = vadd.f32 %v1005, %v1069
      %v1071 = vpop.f32.mrf.mxu0
      %1072 = vdwg.mxu0
      %1073 = vmatprep.subr.bf16.mxu0 0
      %1074 = vmatpush1.bf16.msra.mxu0 0
      %1075 = vmatprep.subr.bf16.mxu0 0
      %1076 = vmatpush1.bf16.msra.mxu0 0
      %1077 = vmatprep.subr.bf16.mxu0 0
      %1078 = vmatpush1.bf16.msra.mxu0 0
      %1079 = vmatprep.subr.bf16.mxu0 0
      %1080 = vmatpush1.bf16.msra.mxu0 0
      %1081 = vmatprep.subr.bf16.mxu0 0
      %1082 = vmatpush1.bf16.msra.mxu0 %v805
      %1083 = vmatprep.subr.bf16.mxu0 0
      %1084 = vmatpush1.bf16.msra.mxu0 %v804
      %1085 = vmatprep.subr.bf16.mxu0 0
      %1086 = vmatpush1.bf16.msra.mxu0 %v803
      %1087 = vmatprep.subr.bf16.mxu0 0
      %1088 = vmatpush1.bf16.msra.mxu0 %v802
      %1089 = vmatprep.subr.bf16.mxu0 0
      %1090 = vmatpush2.bf16.msra.mxu0 0
      %1091 = vmatprep.subr.bf16.mxu0 0
      %1092 = vmatpush2.bf16.msra.mxu0 0
      %1093 = vmatprep.subr.bf16.mxu0 0
      %1094 = vmatpush2.bf16.msra.mxu0 0
      %1095 = vmatprep.subr.bf16.mxu0 0
      %1096 = vmatpush2.bf16.msra.mxu0 0
      %1097 = vmatprep.subr.bf16.mxu0 0
      %1098 = vmatpush2.bf16.msra.mxu0 0
      %1099 = vmatprep.subr.bf16.mxu0 0
      %1100 = vmatpush2.bf16.msra.mxu0 0
      %1101 = vmatprep.subr.bf16.mxu0 0
      %1102 = vmatpush2.bf16.msra.mxu0 0
      %1103 = vmatprep.subr.bf16.mxu0 0
      %1104 = vmatpush2.bf16.msra.mxu0 0
      %1105 = vmatprep.mubr.bf16.mxu0 0
      %1106 = vmatmul.mubr.bf16.gmra.mxu0 %v932
      %v1107 = vpop.f32.mrf.mxu0
      %v1108 = vadd.f32 %v1043, %v1107
      %v1109 = vpop.f32.mrf.mxu0
      %v1110 = vpop.f32.mrf.mxu0
      %v1111 = vadd.f32 %v1046, %v1110
      %v1112 = vpop.f32.mrf.mxu0
      %1113 = vmatprep.mubr.bf16.mxu0 0
      %1114 = vmatmul.mubr.bf16.gmra.mxu0 %v935
      %v1115 = vpop.f32.mrf.mxu0
      %v1116 = vadd.f32 %v1051, %v1115
      %v1117 = vpop.f32.mrf.mxu0
      %v1118 = vpop.f32.mrf.mxu0
      %v1119 = vadd.f32 %v1054, %v1118
      %v1120 = vpop.f32.mrf.mxu0
      %1121 = vmatprep.mubr.bf16.mxu0 0
      %1122 = vmatmul.mubr.bf16.gmra.mxu0 %v938
      %v1123 = vpop.f32.mrf.mxu0
      %v1124 = vadd.f32 %v1059, %v1123
      %v1125 = vpop.f32.mrf.mxu0
      %v1126 = vpop.f32.mrf.mxu0
      %v1127 = vadd.f32 %v1062, %v1126
      %v1128 = vpop.f32.mrf.mxu0
      %1129 = vmatprep.mubr.bf16.mxu0 0
      %1130 = vmatmul.mubr.bf16.gmra.mxu0 %v941
      %v1131 = vpop.f32.mrf.mxu0
      %v1132 = vadd.f32 %v1067, %v1131
      %v1133 = vpop.f32.mrf.mxu0
      %v1134 = vpop.f32.mrf.mxu0
      %v1135 = vadd.f32 %v1070, %v1134
      %v1136 = vpop.f32.mrf.mxu0
      %1137 = vdwg.mxu0
      %v1138 = vld [vmem:[%s511] sm:$0x1]
      %v1140 = vlaneseq
      %v1141 = vshrl.u32 %v1140, 7
      %v1142 = vsub.s32 0, %v1141
      %v1143 = vrot.slane %v1138, %v1142
      %v1145 = vmul.f32 %v1108, %v1143
      %v1146 = vmul.f32 %v1111, %v1143
      %v1147 = vmul.f32 %v1116, %v1143
      %v1148 = vmul.f32 %v1119, %v1143
      %v1149 = vmul.f32 %v1124, %v1143
      %v1150 = vmul.f32 %v1127, %v1143
      %v1151 = vmul.f32 %v1132, %v1143
      %v1152 = vmul.f32 %v1135, %v1143
      %v1153 = vld [vmem:[%s10] sm:$0xff]
      %v1154 = vld [vmem:[%s10 + $0x8] sm:$0xff]
      %v1155 = vld [vmem:[%s10 + $0x10] sm:$0xff]
      %v1156 = vld [vmem:[%s10 + $0x18] sm:$0xff]
      %v1157 = vld [vmem:[%s10 + $0x20] sm:$0xff]
      %v1158 = vld [vmem:[%s10 + $0x28] sm:$0xff]
      %v1159 = vld [vmem:[%s10 + $0x30] sm:$0xff]
      %v1160 = vld [vmem:[%s10 + $0x38] sm:$0xff]
      %1162 = vset.pattern.permute.xlu0 0
      %1163 = vperm.xlu0 %1162, %v1153
      %v1164 = vpop.permute.xlu0 %1163
      %1167 = vset.pattern.permute.xlu0 0
      %1168 = vperm.xlu0 %1167, %v1154
      %v1169 = vpop.permute.xlu0 %1168
      %1172 = vset.pattern.permute.xlu0 0
      %1173 = vperm.xlu0 %1172, %v1155
      %v1174 = vpop.permute.xlu0 %1173
      %1177 = vset.pattern.permute.xlu0 0
      %1178 = vperm.xlu0 %1177, %v1156
      %v1179 = vpop.permute.xlu0 %1178
      %1182 = vset.pattern.permute.xlu0 0
      %1183 = vperm.xlu0 %1182, %v1157
      %v1184 = vpop.permute.xlu0 %1183
      %1187 = vset.pattern.permute.xlu0 0
      %1188 = vperm.xlu0 %1187, %v1158
      %v1189 = vpop.permute.xlu0 %1188
      %1192 = vset.pattern.permute.xlu0 0
      %1193 = vperm.xlu0 %1192, %v1159
      %v1194 = vpop.permute.xlu0 %1193
      %1197 = vset.pattern.permute.xlu0 0
      %1198 = vperm.xlu0 %1197, %v1160
      %v1199 = vpop.permute.xlu0 %1198
      %v1201 = vadd.f32 %v1145, %v1164
      %v1202 = vadd.f32 %v1146, %v1169
      %v1203 = vadd.f32 %v1147, %v1174
      %v1204 = vadd.f32 %v1148, %v1179
      %v1205 = vadd.f32 %v1149, %v1184
      %v1206 = vadd.f32 %v1150, %v1189
      %v1207 = vadd.f32 %v1151, %v1194
      %v1208 = vadd.f32 %v1152, %v1199
      %v1209 = vpack.c.bf16 %v1202, %v1201
      %v1210 = vpack.c.bf16 %v1204, %v1203
      %v1211 = vpack.c.bf16 %v1206, %v1205
      %v1212 = vpack.c.bf16 %v1208, %v1207
      %v1217 = vunpack.c.l.b16 %v1209
      %v1218 = vunpack.c.h.b16 %v1209
      %v1219 = vunpack.c.l.b16 %v1210
      %v1220 = vunpack.c.h.b16 %v1210
      %v1221 = vunpack.c.l.b16 %v1211
      %v1222 = vunpack.c.h.b16 %v1211
      %v1223 = vunpack.c.l.b16 %v1212
      %v1224 = vunpack.c.h.b16 %v1212
      %v1225 = vpack.c.b16 %v1217, %v1217
      %v1226 = vpack.c.b16 %v1218, %v1218
      %v1227 = vpack.c.b16 %v1219, %v1219
      %v1228 = vpack.c.b16 %v1220, %v1220
      %v1229 = vpack.c.b16 %v1221, %v1221
      %v1230 = vpack.c.b16 %v1222, %v1222
      %v1231 = vpack.c.b16 %v1223, %v1223
      %v1232 = vpack.c.b16 %v1224, %v1224
      %1241 = vst [vmem:[%s516] sm:$0xf] %v1225
      %1242 = vst [vmem:[%s516 + $0x4] sm:$0xf] %v1226
      %1243 = vst [vmem:[%s516 + $0x8] sm:$0xf] %v1227
      %1244 = vst [vmem:[%s516 + $0xc] sm:$0xf] %v1228
      %1245 = vst [vmem:[%s516 + $0x10] sm:$0xf] %v1229
      %1246 = vst [vmem:[%s516 + $0x14] sm:$0xf] %v1230
      %1247 = vst [vmem:[%s516 + $0x18] sm:$0xf] %v1231
      %1248 = vst [vmem:[%s516 + $0x1c] sm:$0xf] %v1232
      %p1249 = scmp.lt.s32.totalorder %s22, 1
      %s1250 = scalar_select %p1249, %s22, 1
      %s1251 = smul.addr %s1250, 8
      %s1252 = smul.addr %s1251, 4
      %s1253 = scalar_lea.vmem %s11, %s1252
      // Predicated region
      $region65: #{encoder_fwd.22} parent=63 // pred_check
        %p1254 = pneg %p316
      $region66: #{encoder_fwd.22} parent=63 // pred_check_branch
        %1256 = sbr.rel (%p1254) target = $region68
      $region67: #{encoder_fwd.22} parent=63 // pred_region
        _
      $region68: #{encoder_fwd.22} parent=63 // pred_fallthru
        _
    $region64: #{encoder_fwd.22} parent=5 // pred_fallthru
      _
    %p1257 = scmp.le.s32.totalorder 2, %s17
    // Predicated region
    $region69: #{encoder_fwd.22} parent=5 // pred_check
      %p1258 = pneg %p1257
    $region70: #{encoder_fwd.22} parent=5 // pred_check_branch
      %1260 = sbr.rel (%p1258) target = $region72
    $region71: #{encoder_fwd.22} parent=5 // pred_region
      %s1261 = ssub.s32 %s17, 2
      // Predicated region
      $region73: #{encoder_fwd.22} parent=71 // pred_check
        %p1262 = pneg %p322
      $region74: #{encoder_fwd.22} parent=71 // pred_check_branch
        %1264 = sbr.rel (%p1262) target = $region76
      $region75: #{encoder_fwd.22} parent=71 // pred_region
        %p1265 = scmp.lt.s32.totalorder %s23, 1
        %s1266 = scalar_select %p1265, %s23, 1
        %s1267 = smul.addr %s1266, 8
        %s1268 = smul.addr %s1267, 4
        %s1269 = scalar_lea.vmem %s11, %s1268
      $region76: #{encoder_fwd.22} parent=71 // pred_fallthru
        _
    $region72: #{encoder_fwd.22} parent=5 // pred_fallthru
      _
  $region6: #{encoder_fwd.22} parent=0 // loop_footer
    %s21 = sadd.s32 1, %s17
  $region7: #{encoder_fwd.22} parent=0 // loop_footer_branch
    %16 = sbr.rel target = $region3
  $region8: #{encoder_fwd.22} parent=0 // loop_exit
    _

// kernel: encoder_fwd.23
$region0: #{encoder_fwd.23}
  #allocation0 [shape = 'u32[]', space=smem, size = 0x4, offset = 0x4, fixed_abs, tag = 'smem constant byte address 0x4 - core index']
  #allocation1 [shape = 'u32[144,128]{1,0:T(1,128)}', space=vmem, size = 0x12000, scoped, tag = 'internal scratch']
  #allocation2 [shape = 'f32[64,128]{1,0:T(8,128)}', space=vmem, size = 0x8000, scoped, tag = 'scratch operand']
  %s0 = inlined_call_operand.vmem [shape: bf16[2,64,128], index: 0, kind: input, shape index: {}]
  %s1 = inlined_call_operand.vmem [shape: f32[2,1,128], index: 1, kind: input, shape index: {}]
  %s2 = inlined_call_operand.vmem [shape: f32[2,1,128], index: 2, kind: input, shape index: {}]
  %s3 = inlined_call_operand.vmem [shape: bf16[5,32,64], index: 3, kind: input, shape index: {}]
  %s4 = inlined_call_operand.vmem [shape: f32[5,32,1], index: 4, kind: input, shape index: {}]
  %s5 = inlined_call_operand.vmem [shape: bf16[5,32,288], index: 5, kind: input, shape index: {}]
  %s6 = inlined_call_operand.vmem [shape: f32[5,32,1], index: 6, kind: input, shape index: {}]
  %s7 = inlined_call_operand.vmem [shape: bf16[5,64,32], index: 7, kind: input, shape index: {}]
  %s8 = inlined_call_operand.vmem [shape: f32[5,64,1], index: 8, kind: input, shape index: {}]
  %s9 = inlined_call_operand.vmem [shape: bf16[2,64,128], index: 9, kind: output, shape index: {}]
  %s10 = sld [smem:[#allocation0]]
  $region77: #{encoder_fwd.23} parent=0
    _
  %s12 = ssub.s32 1, %s10
  %s13 = scalar_select 0, %s12, %s10
  loop: start=0, step=1, limit=12
  $region2: #{encoder_fwd.23} parent=0 // loop_pre_header
    _
  $region3: #{encoder_fwd.23} parent=0 // loop_header
    %s15 = sphi 0, %s19
    %p16 = scmp.ge.s32.totalorder %s15, 12
    %s22 = sphi 0, %s34
    %s23 = sphi 0, %s30
    %s24 = sphi 0, %s22
    %s25 = sphi 0, %s23
    %s26 = sphi 0, %s24
    %s27 = sphi 0, %s25
    %s37 = sphi 0, %s39
    %s40 = sphi 0, %s37
    %s41 = sphi 0, %s40
    %s57 = sphi 0, %s41
    %s63 = sphi 0, %s65
    %s66 = sphi 0, %s63
    %s67 = sphi 0, %s66
    %s83 = sphi 0, %s67
    %s89 = sphi 0, %s91
    %s92 = sphi 0, %s89
    %s93 = sphi 0, %s92
    %s109 = sphi 0, %s93
    %s115 = sphi 0, %s117
    %s118 = sphi 0, %s115
    %s119 = sphi 0, %s118
    %s135 = sphi 0, %s119
    %s141 = sphi 0, %s143
    %s144 = sphi 0, %s141
    %s145 = sphi 0, %s144
    %s161 = sphi 0, %s145
    %s167 = sphi 0, %s169
    %s170 = sphi 0, %s167
    %s171 = sphi 0, %s170
    %s187 = sphi 0, %s171
    %s193 = sphi 0, %s195
    %s196 = sphi 0, %s193
    %s197 = sphi 0, %s196
    %s213 = sphi 0, %s197
    %s219 = sphi 0, %s221
    %s222 = sphi 0, %s219
    %s223 = sphi 0, %s222
    %s239 = sphi 0, %s223
    %s245 = sphi 0, %s247
    %s248 = sphi 0, %s245
    %s249 = sphi 0, %s248
    %s265 = sphi 0, %s249
    %s271 = sphi 0, %s273
    %s274 = sphi 0, %s271
    %s275 = sphi 0, %s274
    %s291 = sphi 0, %s275
  $region4: #{encoder_fwd.23} parent=0 // loop_header_branch
    %18 = sbr.rel (%p16) target = $region8
  $region5: #{encoder_fwd.23} parent=0 // loop_body
    %s20 = ssub.s32 %s15, 1
    %s21 = ssub.s32 %s15, 2
    %s28 = sadd.s32 1, %s23
    %p29 = scmp.ge.s32.totalorder %s28, 5
    %s30 = scalar_select %p29, 0, %s28
    %s31 = sadd.s32 1, %s22
    %s32 = scalar_select %p29, %s31, %s22
    %p33 = scmp.ge.s32.totalorder %s32, 2
    %s34 = scalar_select %p33, 0, %s32
    %s35 = ssub.s32 %s22, %s34
    %p36 = scmp.eq.s32.totalorder %s35, 0
    %s38 = sadd.s32 %s37, 1
    %s39 = scalar_select %p36, %s37, %s38
    %p42 = pneg %p36
    %p43 = scmp.eq.s32.totalorder %s15, 9
    %p44 = por %p42, %p43
    %p45 = scmp.ne.s32.totalorder %s37, %s40
    %p46 = scmp.eq.s32.totalorder %s15, 0
    %p47 = por %p45, %p46
    %p48 = scmp.ne.s32.totalorder %s37, %s40
    %p49 = scmp.eq.s32.totalorder %s20, 9
    %p50 = por %p48, %p49
    %p51 = scmp.ne.s32.totalorder %s40, %s41
    %p52 = scmp.eq.s32.totalorder %s20, 0
    %p53 = por %p51, %p52
    %p54 = scmp.ne.s32.totalorder %s40, %s41
    %p55 = scmp.eq.s32.totalorder %s21, 9
    %p56 = por %p54, %p55
    %p58 = scmp.ne.s32.totalorder %s41, %s57
    %p59 = scmp.eq.s32.totalorder %s21, 0
    %p60 = por %p58, %p59
    %s61 = ssub.s32 %s22, %s34
    %p62 = scmp.eq.s32.totalorder %s61, 0
    %s64 = sadd.s32 %s63, 1
    %s65 = scalar_select %p62, %s63, %s64
    %p68 = pneg %p62
    %p69 = scmp.eq.s32.totalorder %s15, 9
    %p70 = por %p68, %p69
    %p71 = scmp.ne.s32.totalorder %s63, %s66
    %p72 = scmp.eq.s32.totalorder %s15, 0
    %p73 = por %p71, %p72
    %p74 = scmp.ne.s32.totalorder %s63, %s66
    %p75 = scmp.eq.s32.totalorder %s20, 9
    %p76 = por %p74, %p75
    %p77 = scmp.ne.s32.totalorder %s66, %s67
    %p78 = scmp.eq.s32.totalorder %s20, 0
    %p79 = por %p77, %p78
    %p80 = scmp.ne.s32.totalorder %s66, %s67
    %p81 = scmp.eq.s32.totalorder %s21, 9
    %p82 = por %p80, %p81
    %p84 = scmp.ne.s32.totalorder %s67, %s83
    %p85 = scmp.eq.s32.totalorder %s21, 0
    %p86 = por %p84, %p85
    %s87 = ssub.s32 %s22, %s34
    %p88 = scmp.eq.s32.totalorder %s87, 0
    %s90 = sadd.s32 %s89, 1
    %s91 = scalar_select %p88, %s89, %s90
    %p94 = pneg %p88
    %p95 = scmp.eq.s32.totalorder %s15, 9
    %p96 = por %p94, %p95
    %p97 = scmp.ne.s32.totalorder %s89, %s92
    %p98 = scmp.eq.s32.totalorder %s15, 0
    %p99 = por %p97, %p98
    %p100 = scmp.ne.s32.totalorder %s89, %s92
    %p101 = scmp.eq.s32.totalorder %s20, 9
    %p102 = por %p100, %p101
    %p103 = scmp.ne.s32.totalorder %s92, %s93
    %p104 = scmp.eq.s32.totalorder %s20, 0
    %p105 = por %p103, %p104
    %p106 = scmp.ne.s32.totalorder %s92, %s93
    %p107 = scmp.eq.s32.totalorder %s21, 9
    %p108 = por %p106, %p107
    %p110 = scmp.ne.s32.totalorder %s93, %s109
    %p111 = scmp.eq.s32.totalorder %s21, 0
    %p112 = por %p110, %p111
    %s113 = ssub.s32 %s23, %s30
    %p114 = scmp.eq.s32.totalorder %s113, 0
    %s116 = sadd.s32 %s115, 1
    %s117 = scalar_select %p114, %s115, %s116
    %p120 = pneg %p114
    %p121 = scmp.eq.s32.totalorder %s15, 9
    %p122 = por %p120, %p121
    %p123 = scmp.ne.s32.totalorder %s115, %s118
    %p124 = scmp.eq.s32.totalorder %s15, 0
    %p125 = por %p123, %p124
    %p126 = scmp.ne.s32.totalorder %s115, %s118
    %p127 = scmp.eq.s32.totalorder %s20, 9
    %p128 = por %p126, %p127
    %p129 = scmp.ne.s32.totalorder %s118, %s119
    %p130 = scmp.eq.s32.totalorder %s20, 0
    %p131 = por %p129, %p130
    %p132 = scmp.ne.s32.totalorder %s118, %s119
    %p133 = scmp.eq.s32.totalorder %s21, 9
    %p134 = por %p132, %p133
    %p136 = scmp.ne.s32.totalorder %s119, %s135
    %p137 = scmp.eq.s32.totalorder %s21, 0
    %p138 = por %p136, %p137
    %s139 = ssub.s32 %s23, %s30
    %p140 = scmp.eq.s32.totalorder %s139, 0
    %s142 = sadd.s32 %s141, 1
    %s143 = scalar_select %p140, %s141, %s142
    %p146 = pneg %p140
    %p147 = scmp.eq.s32.totalorder %s15, 9
    %p148 = por %p146, %p147
    %p149 = scmp.ne.s32.totalorder %s141, %s144
    %p150 = scmp.eq.s32.totalorder %s15, 0
    %p151 = por %p149, %p150
    %p152 = scmp.ne.s32.totalorder %s141, %s144
    %p153 = scmp.eq.s32.totalorder %s20, 9
    %p154 = por %p152, %p153
    %p155 = scmp.ne.s32.totalorder %s144, %s145
    %p156 = scmp.eq.s32.totalorder %s20, 0
    %p157 = por %p155, %p156
    %p158 = scmp.ne.s32.totalorder %s144, %s145
    %p159 = scmp.eq.s32.totalorder %s21, 9
    %p160 = por %p158, %p159
    %p162 = scmp.ne.s32.totalorder %s145, %s161
    %p163 = scmp.eq.s32.totalorder %s21, 0
    %p164 = por %p162, %p163
    %s165 = ssub.s32 %s23, %s30
    %p166 = scmp.eq.s32.totalorder %s165, 0
    %s168 = sadd.s32 %s167, 1
    %s169 = scalar_select %p166, %s167, %s168
    %p172 = pneg %p166
    %p173 = scmp.eq.s32.totalorder %s15, 9
    %p174 = por %p172, %p173
    %p175 = scmp.ne.s32.totalorder %s167, %s170
    %p176 = scmp.eq.s32.totalorder %s15, 0
    %p177 = por %p175, %p176
    %p178 = scmp.ne.s32.totalorder %s167, %s170
    %p179 = scmp.eq.s32.totalorder %s20, 9
    %p180 = por %p178, %p179
    %p181 = scmp.ne.s32.totalorder %s170, %s171
    %p182 = scmp.eq.s32.totalorder %s20, 0
    %p183 = por %p181, %p182
    %p184 = scmp.ne.s32.totalorder %s170, %s171
    %p185 = scmp.eq.s32.totalorder %s21, 9
    %p186 = por %p184, %p185
    %p188 = scmp.ne.s32.totalorder %s171, %s187
    %p189 = scmp.eq.s32.totalorder %s21, 0
    %p190 = por %p188, %p189
    %s191 = ssub.s32 %s23, %s30
    %p192 = scmp.eq.s32.totalorder %s191, 0
    %s194 = sadd.s32 %s193, 1
    %s195 = scalar_select %p192, %s193, %s194
    %p198 = pneg %p192
    %p199 = scmp.eq.s32.totalorder %s15, 9
    %p200 = por %p198, %p199
    %p201 = scmp.ne.s32.totalorder %s193, %s196
    %p202 = scmp.eq.s32.totalorder %s15, 0
    %p203 = por %p201, %p202
    %p204 = scmp.ne.s32.totalorder %s193, %s196
    %p205 = scmp.eq.s32.totalorder %s20, 9
    %p206 = por %p204, %p205
    %p207 = scmp.ne.s32.totalorder %s196, %s197
    %p208 = scmp.eq.s32.totalorder %s20, 0
    %p209 = por %p207, %p208
    %p210 = scmp.ne.s32.totalorder %s196, %s197
    %p211 = scmp.eq.s32.totalorder %s21, 9
    %p212 = por %p210, %p211
    %p214 = scmp.ne.s32.totalorder %s197, %s213
    %p215 = scmp.eq.s32.totalorder %s21, 0
    %p216 = por %p214, %p215
    %s217 = ssub.s32 %s23, %s30
    %p218 = scmp.eq.s32.totalorder %s217, 0
    %s220 = sadd.s32 %s219, 1
    %s221 = scalar_select %p218, %s219, %s220
    %p224 = pneg %p218
    %p225 = scmp.eq.s32.totalorder %s15, 9
    %p226 = por %p224, %p225
    %p227 = scmp.ne.s32.totalorder %s219, %s222
    %p228 = scmp.eq.s32.totalorder %s15, 0
    %p229 = por %p227, %p228
    %p230 = scmp.ne.s32.totalorder %s219, %s222
    %p231 = scmp.eq.s32.totalorder %s20, 9
    %p232 = por %p230, %p231
    %p233 = scmp.ne.s32.totalorder %s222, %s223
    %p234 = scmp.eq.s32.totalorder %s20, 0
    %p235 = por %p233, %p234
    %p236 = scmp.ne.s32.totalorder %s222, %s223
    %p237 = scmp.eq.s32.totalorder %s21, 9
    %p238 = por %p236, %p237
    %p240 = scmp.ne.s32.totalorder %s223, %s239
    %p241 = scmp.eq.s32.totalorder %s21, 0
    %p242 = por %p240, %p241
    %s243 = ssub.s32 %s23, %s30
    %p244 = scmp.eq.s32.totalorder %s243, 0
    %s246 = sadd.s32 %s245, 1
    %s247 = scalar_select %p244, %s245, %s246
    %p250 = pneg %p244
    %p251 = scmp.eq.s32.totalorder %s15, 9
    %p252 = por %p250, %p251
    %p253 = scmp.ne.s32.totalorder %s245, %s248
    %p254 = scmp.eq.s32.totalorder %s15, 0
    %p255 = por %p253, %p254
    %p256 = scmp.ne.s32.totalorder %s245, %s248
    %p257 = scmp.eq.s32.totalorder %s20, 9
    %p258 = por %p256, %p257
    %p259 = scmp.ne.s32.totalorder %s248, %s249
    %p260 = scmp.eq.s32.totalorder %s20, 0
    %p261 = por %p259, %p260
    %p262 = scmp.ne.s32.totalorder %s248, %s249
    %p263 = scmp.eq.s32.totalorder %s21, 9
    %p264 = por %p262, %p263
    %p266 = scmp.ne.s32.totalorder %s249, %s265
    %p267 = scmp.eq.s32.totalorder %s21, 0
    %p268 = por %p266, %p267
    %s269 = ssub.s32 %s22, %s34
    %p270 = scmp.eq.s32.totalorder %s269, 0
    %s272 = sadd.s32 %s271, 1
    %s273 = scalar_select %p270, %s271, %s272
    %p276 = pneg %p270
    %p277 = scmp.eq.s32.totalorder %s15, 9
    %p278 = por %p276, %p277
    %p279 = scmp.ne.s32.totalorder %s271, %s274
    %p280 = scmp.eq.s32.totalorder %s15, 0
    %p281 = por %p279, %p280
    %p282 = scmp.ne.s32.totalorder %s271, %s274
    %p283 = scmp.eq.s32.totalorder %s20, 9
    %p284 = por %p282, %p283
    %p285 = scmp.ne.s32.totalorder %s274, %s275
    %p286 = scmp.eq.s32.totalorder %s20, 0
    %p287 = por %p285, %p286
    %p288 = scmp.ne.s32.totalorder %s274, %s275
    %p289 = scmp.eq.s32.totalorder %s21, 9
    %p290 = por %p288, %p289
    %p292 = scmp.ne.s32.totalorder %s275, %s291
    %p293 = scmp.eq.s32.totalorder %s21, 0
    %p294 = por %p292, %p293
    %p295 = scmp.le.s32.totalorder 1, %s15
    %p296 = scmp.lt.s32.totalorder %s15, 11
    %p297 = pnand %p295, %p296
    %p298 = pneg %p297
    // Predicated region
    $region9: #{encoder_fwd.23} parent=5 // pred_check
      _
    $region10: #{encoder_fwd.23} parent=5 // pred_check_branch
      %300 = sbr.rel (%p297) target = $region12
    $region11: #{encoder_fwd.23} parent=5 // pred_region
      %s301 = ssub.s32 %s15, 1
    $region12: #{encoder_fwd.23} parent=5 // pred_fallthru
      _
    %p302 = scmp.lt.s32.totalorder %s15, 10
    // Predicated region
    $region13: #{encoder_fwd.23} parent=5 // pred_check
      %p303 = pneg %p302
    $region14: #{encoder_fwd.23} parent=5 // pred_check_branch
      %305 = sbr.rel (%p303) target = $region16
    $region15: #{encoder_fwd.23} parent=5 // pred_region
      // Predicated region
      $region17: #{encoder_fwd.23} parent=15 // pred_check
        %p306 = pneg %p47
      $region18: #{encoder_fwd.23} parent=15 // pred_check_branch
        %308 = sbr.rel (%p306) target = $region20
      $region19: #{encoder_fwd.23} parent=15 // pred_region
        %p309 = scmp.lt.s32.totalorder %s22, 1
        %s310 = scalar_select %p309, %s22, 1
        %s311 = smul.addr %s310, 8
        %s312 = smul.addr %s311, 4
        %s313 = scalar_lea.vmem %s0, %s312
      $region20: #{encoder_fwd.23} parent=15 // pred_fallthru
        _
      // Predicated region
      $region21: #{encoder_fwd.23} parent=15 // pred_check
        %p314 = pneg %p73
      $region22: #{encoder_fwd.23} parent=15 // pred_check_branch
        %316 = sbr.rel (%p314) target = $region24
      $region23: #{encoder_fwd.23} parent=15 // pred_region
        %p317 = scmp.lt.s32.totalorder %s22, 1
        %s318 = scalar_select %p317, %s22, 1
        %s319 = scalar_lea.vmem %s1, %s318
      $region24: #{encoder_fwd.23} parent=15 // pred_fallthru
        _
      // Predicated region
      $region25: #{encoder_fwd.23} parent=15 // pred_check
        %p320 = pneg %p99
      $region26: #{encoder_fwd.23} parent=15 // pred_check_branch
        %322 = sbr.rel (%p320) target = $region28
      $region27: #{encoder_fwd.23} parent=15 // pred_region
        %p323 = scmp.lt.s32.totalorder %s22, 1
        %s324 = scalar_select %p323, %s22, 1
        %s325 = scalar_lea.vmem %s2, %s324
      $region28: #{encoder_fwd.23} parent=15 // pred_fallthru
        _
      // Predicated region
      $region29: #{encoder_fwd.23} parent=15 // pred_check
        %p326 = pneg %p125
      $region30: #{encoder_fwd.23} parent=15 // pred_check_branch
        %328 = sbr.rel (%p326) target = $region32
      $region31: #{encoder_fwd.23} parent=15 // pred_region
        %p329 = scmp.lt.s32.totalorder %s23, 4
        %s330 = scalar_select %p329, %s23, 4
        %s331 = smul.addr %s330, 4
        %s332 = smul.addr %s331, 4
        %s333 = scalar_lea.vmem %s3, %s332
      $region32: #{encoder_fwd.23} parent=15 // pred_fallthru
        _
      // Predicated region
      $region33: #{encoder_fwd.23} parent=15 // pred_check
        %p334 = pneg %p151
      $region34: #{encoder_fwd.23} parent=15 // pred_check_branch
        %336 = sbr.rel (%p334) target = $region36
      $region35: #{encoder_fwd.23} parent=15 // pred_region
        %p337 = scmp.lt.s32.totalorder %s23, 4
        %s338 = scalar_select %p337, %s23, 4
        %s339 = smul.addr %s338, 4
        %s340 = smul.addr %s339, 8
        %s341 = scalar_lea.vmem %s4, %s340
      $region36: #{encoder_fwd.23} parent=15 // pred_fallthru
        _
      // Predicated region
      $region37: #{encoder_fwd.23} parent=15 // pred_check
        %p342 = pneg %p177
      $region38: #{encoder_fwd.23} parent=15 // pred_check_branch
        %344 = sbr.rel (%p342) target = $region40
      $region39: #{encoder_fwd.23} parent=15 // pred_region
        %p345 = scmp.lt.s32.totalorder %s23, 4
        %s346 = scalar_select %p345, %s23, 4
        %s347 = smul.addr %s346, 12
        %s348 = smul.addr %s347, 4
        %s349 = scalar_lea.vmem %s5, %s348
      $region40: #{encoder_fwd.23} parent=15 // pred_fallthru
        _
      // Predicated region
      $region41: #{encoder_fwd.23} parent=15 // pred_check
        %p350 = pneg %p203
      $region42: #{encoder_fwd.23} parent=15 // pred_check_branch
        %352 = sbr.rel (%p350) target = $region44
      $region43: #{encoder_fwd.23} parent=15 // pred_region
        %p353 = scmp.lt.s32.totalorder %s23, 4
        %s354 = scalar_select %p353, %s23, 4
        %s355 = smul.addr %s354, 4
        %s356 = smul.addr %s355, 8
        %s357 = scalar_lea.vmem %s6, %s356
      $region44: #{encoder_fwd.23} parent=15 // pred_fallthru
        _
      // Predicated region
      $region45: #{encoder_fwd.23} parent=15 // pred_check
        %p358 = pneg %p229
      $region46: #{encoder_fwd.23} parent=15 // pred_check_branch
        %360 = sbr.rel (%p358) target = $region48
      $region47: #{encoder_fwd.23} parent=15 // pred_region
        %p361 = scmp.lt.s32.totalorder %s23, 4
        %s362 = scalar_select %p361, %s23, 4
        %s363 = smul.addr %s362, 8
        %s364 = smul.addr %s363, 4
        %s365 = scalar_lea.vmem %s7, %s364
      $region48: #{encoder_fwd.23} parent=15 // pred_fallthru
        _
      // Predicated region
      $region49: #{encoder_fwd.23} parent=15 // pred_check
        %p366 = pneg %p255
      $region50: #{encoder_fwd.23} parent=15 // pred_check_branch
        %368 = sbr.rel (%p366) target = $region52
      $region51: #{encoder_fwd.23} parent=15 // pred_region
        %p369 = scmp.lt.s32.totalorder %s23, 4
        %s370 = scalar_select %p369, %s23, 4
        %s371 = smul.addr %s370, 8
        %s372 = smul.addr %s371, 8
        %s373 = scalar_lea.vmem %s8, %s372
      $region52: #{encoder_fwd.23} parent=15 // pred_fallthru
        _
    $region16: #{encoder_fwd.23} parent=5 // pred_fallthru
      _
    %p374 = scmp.le.s32.totalorder 1, %s15
    %p375 = scmp.lt.s32.totalorder %s15, 11
    %p376 = pnand %p374, %p375
    %p377 = pneg %p376
    // Predicated region
    $region53: #{encoder_fwd.23} parent=5 // pred_check
      _
    $region54: #{encoder_fwd.23} parent=5 // pred_check_branch
      %379 = sbr.rel (%p376) target = $region56
    $region55: #{encoder_fwd.23} parent=5 // pred_region
      %s380 = ssub.s32 %s15, 1
      %p381 = scmp.lt.s32.totalorder %s24, 1
      %s382 = scalar_select %p381, %s24, 1
      %s383 = smul.addr %s382, 8
      %s384 = smul.addr %s383, 4
      %s385 = scalar_lea.vmem %s0, %s384
      %p386 = pneg %p53
      %p387 = pneg %p50
      %p388 = scmp.lt.s32.totalorder %s24, 1
      %s389 = scalar_select %p388, %s24, 1
      %s390 = scalar_lea.vmem %s1, %s389
      %p391 = pneg %p79
      %p392 = pneg %p76
      %p393 = scmp.lt.s32.totalorder %s24, 1
      %s394 = scalar_select %p393, %s24, 1
      %s395 = scalar_lea.vmem %s2, %s394
      %p396 = pneg %p105
      %p397 = pneg %p102
      %p398 = scmp.lt.s32.totalorder %s25, 4
      %s399 = scalar_select %p398, %s25, 4
      %s400 = smul.addr %s399, 4
      %s401 = smul.addr %s400, 4
      %s402 = scalar_lea.vmem %s3, %s401
      %p403 = pneg %p131
      %p404 = pneg %p128
      %p405 = scmp.lt.s32.totalorder %s25, 4
      %s406 = scalar_select %p405, %s25, 4
      %s407 = smul.addr %s406, 4
      %s408 = smul.addr %s407, 8
      %s409 = scalar_lea.vmem %s4, %s408
      %p410 = pneg %p157
      %p411 = pneg %p154
      %p412 = scmp.lt.s32.totalorder %s25, 4
      %s413 = scalar_select %p412, %s25, 4
      %s414 = smul.addr %s413, 12
      %s415 = smul.addr %s414, 4
      %s416 = scalar_lea.vmem %s5, %s415
      %p417 = pneg %p183
      %p418 = pneg %p180
      %p419 = scmp.lt.s32.totalorder %s25, 4
      %s420 = scalar_select %p419, %s25, 4
      %s421 = smul.addr %s420, 4
      %s422 = smul.addr %s421, 8
      %s423 = scalar_lea.vmem %s6, %s422
      %p424 = pneg %p209
      %p425 = pneg %p206
      %p426 = scmp.lt.s32.totalorder %s25, 4
      %s427 = scalar_select %p426, %s25, 4
      %s428 = smul.addr %s427, 8
      %s429 = smul.addr %s428, 4
      %s430 = scalar_lea.vmem %s7, %s429
      %p431 = pneg %p235
      %p432 = pneg %p232
      %p433 = scmp.lt.s32.totalorder %s25, 4
      %s434 = scalar_select %p433, %s25, 4
      %s435 = smul.addr %s434, 8
      %s436 = smul.addr %s435, 8
      %s437 = scalar_lea.vmem %s8, %s436
      %p438 = pneg %p261
      %p439 = pneg %p258
      %p440 = pneg %p287
      %p441 = pneg %p284
      %p442 = scmp.lt.s32.totalorder %s24, 1
      %s443 = scalar_select %p442, %s24, 1
      %s444 = smul.addr %s443, 8
      %s445 = smul.addr %s444, 4
      %s446 = scalar_lea.vmem %s9, %s445
      %p447 = scmp.lt.s32.totalorder %s24, 1
      %s448 = scalar_select %p447, %s24, 1
      %s449 = smul.addr %s448, 8
      %s450 = smul.addr %s449, 4
      %s451 = scalar_lea.vmem %s0, %s450
      %p452 = scmp.lt.s32.totalorder %s24, 1
      %s453 = scalar_select %p452, %s24, 1
      %s454 = scalar_lea.vmem %s1, %s453
      %p455 = scmp.lt.s32.totalorder %s24, 1
      %s456 = scalar_select %p455, %s24, 1
      %s457 = scalar_lea.vmem %s2, %s456
      %p458 = scmp.lt.s32.totalorder %s25, 4
      %s459 = scalar_select %p458, %s25, 4
      %s460 = smul.addr %s459, 4
      %s461 = smul.addr %s460, 4
      %s462 = scalar_lea.vmem %s3, %s461
      %p463 = scmp.lt.s32.totalorder %s25, 4
      %s464 = scalar_select %p463, %s25, 4
      %s465 = smul.addr %s464, 4
      %s466 = smul.addr %s465, 8
      %s467 = scalar_lea.vmem %s4, %s466
      %p468 = scmp.lt.s32.totalorder %s25, 4
      %s469 = scalar_select %p468, %s25, 4
      %s470 = smul.addr %s469, 12
      %s471 = smul.addr %s470, 4
      %s472 = scalar_lea.vmem %s5, %s471
      %p473 = scmp.lt.s32.totalorder %s25, 4
      %s474 = scalar_select %p473, %s25, 4
      %s475 = smul.addr %s474, 4
      %s476 = smul.addr %s475, 8
      %s477 = scalar_lea.vmem %s6, %s476
      %p478 = scmp.lt.s32.totalorder %s25, 4
      %s479 = scalar_select %p478, %s25, 4
      %s480 = smul.addr %s479, 8
      %s481 = smul.addr %s480, 4
      %s482 = scalar_lea.vmem %s7, %s481
      %p483 = scmp.lt.s32.totalorder %s25, 4
      %s484 = scalar_select %p483, %s25, 4
      %s485 = smul.addr %s484, 8
      %s486 = smul.addr %s485, 8
      %s487 = scalar_lea.vmem %s8, %s486
      %p488 = scmp.lt.s32.totalorder %s24, 1
      %s489 = scalar_select %p488, %s24, 1
      %s490 = smul.addr %s489, 8
      %s491 = smul.addr %s490, 4
      %s492 = scalar_lea.vmem %s9, %s491
      %p494 = scmp.eq.s32.totalorder %s25, 0
      // Predicated region
      $region57: #{encoder_fwd.23} parent=55 // pred_check
        %p495 = pneg %p494
      $region58: #{encoder_fwd.23} parent=55 // pred_check_branch
        %497 = sbr.rel (%p495) target = $region60
      $region59: #{encoder_fwd.23} parent=55 // pred_region
        %v498 = vld [vmem:[%s451] sm:$0xf]
        %v499 = vld [vmem:[%s451 + $0x4] sm:$0xf]
        %v500 = vld [vmem:[%s451 + $0x8] sm:$0xf]
        %v501 = vld [vmem:[%s451 + $0xc] sm:$0xf]
        %v502 = vld [vmem:[%s451 + $0x10] sm:$0xf]
        %v503 = vld [vmem:[%s451 + $0x14] sm:$0xf]
        %v504 = vld [vmem:[%s451 + $0x18] sm:$0xf]
        %v505 = vld [vmem:[%s451 + $0x1c] sm:$0xf]
        %v506 = vunpack.c.l.bf16 %v498
        %v507 = vunpack.c.l.bf16 %v499
        %v508 = vunpack.c.l.bf16 %v500
        %v509 = vunpack.c.l.bf16 %v501
        %v510 = vunpack.c.l.bf16 %v502
        %v511 = vunpack.c.l.bf16 %v503
        %v512 = vunpack.c.l.bf16 %v504
        %v513 = vunpack.c.l.bf16 %v505
        %514 = vst [vmem:[#allocation2] sm:$0xff] %v506
        %515 = vst [vmem:[#allocation2 + $0x8] sm:$0xff] %v507
        %516 = vst [vmem:[#allocation2 + $0x10] sm:$0xff] %v508
        %517 = vst [vmem:[#allocation2 + $0x18] sm:$0xff] %v509
        %518 = vst [vmem:[#allocation2 + $0x20] sm:$0xff] %v510
        %519 = vst [vmem:[#allocation2 + $0x28] sm:$0xff] %v511
        %520 = vst [vmem:[#allocation2 + $0x30] sm:$0xff] %v512
        %521 = vst [vmem:[#allocation2 + $0x38] sm:$0xff] %v513
      $region60: #{encoder_fwd.23} parent=55 // pred_fallthru
        _
      %v522 = vld [vmem:[#allocation2] sm:$0xff]
      %v523 = vld [vmem:[#allocation2 + $0x8] sm:$0xff]
      %v524 = vld [vmem:[#allocation2 + $0x10] sm:$0xff]
      %v525 = vld [vmem:[#allocation2 + $0x18] sm:$0xff]
      %v526 = vld [vmem:[#allocation2 + $0x20] sm:$0xff]
      %v527 = vld [vmem:[#allocation2 + $0x28] sm:$0xff]
      %v528 = vld [vmem:[#allocation2 + $0x30] sm:$0xff]
      %v529 = vld [vmem:[#allocation2 + $0x38] sm:$0xff]
      %v530 = vpack.c.bf16 %v523, %v522
      %v531 = vpack.c.bf16 %v525, %v524
      %v532 = vpack.c.bf16 %v527, %v526
      %v533 = vpack.c.bf16 %v529, %v528
      %v534 = vld [vmem:[%s454] sm:$0x1]
      %v535 = vld [vmem:[%s457] sm:$0x1]
      %v536 = vld [vmem:[%s462] sm:$0xf]
      %v537 = vld [vmem:[%s462 + $0x4] sm:$0xf]
      %v538 = vld [vmem:[%s462 + $0x8] sm:$0xf]
      %v539 = vld [vmem:[%s462 + $0xc] sm:$0xf]
      %v540 = vld [vmem:[%s467] sm:$0xff]
      %v541 = vld [vmem:[%s467 + $0x8] sm:$0xff]
      %v542 = vld [vmem:[%s467 + $0x10] sm:$0xff]
      %v543 = vld [vmem:[%s467 + $0x18] sm:$0xff]
      %v544 = vld [vmem:[%s472] sm:$0xff]
      %v545 = vld [vmem:[%s472 + $0x8] sm:$0xf]
      %v546 = vld [vmem:[%s472 + $0xc] sm:$0xff]
      %v547 = vld [vmem:[%s472 + $0x14] sm:$0xf]
      %v548 = vld [vmem:[%s472 + $0x18] sm:$0xff]
      %v549 = vld [vmem:[%s472 + $0x20] sm:$0xf]
      %v550 = vld [vmem:[%s472 + $0x24] sm:$0xff]
      %v551 = vld [vmem:[%s472 + $0x2c] sm:$0xf]
      %v552 = vld [vmem:[%s477] sm:$0xff]
      %v553 = vld [vmem:[%s477 + $0x8] sm:$0xff]
      %v554 = vld [vmem:[%s477 + $0x10] sm:$0xff]
      %v555 = vld [vmem:[%s477 + $0x18] sm:$0xff]
      %v556 = vld [vmem:[%s482] sm:$0xf]
      %v557 = vld [vmem:[%s482 + $0x4] sm:$0xf]
      %v558 = vld [vmem:[%s482 + $0x8] sm:$0xf]
      %v559 = vld [vmem:[%s482 + $0xc] sm:$0xf]
      %v560 = vld [vmem:[%s482 + $0x10] sm:$0xf]
      %v561 = vld [vmem:[%s482 + $0x14] sm:$0xf]
      %v562 = vld [vmem:[%s482 + $0x18] sm:$0xf]
      %v563 = vld [vmem:[%s482 + $0x1c] sm:$0xf]
      %v564 = vld [vmem:[%s487] sm:$0xff]
      %v565 = vld [vmem:[%s487 + $0x8] sm:$0xff]
      %v566 = vld [vmem:[%s487 + $0x10] sm:$0xff]
      %v567 = vld [vmem:[%s487 + $0x18] sm:$0xff]
      %v568 = vld [vmem:[%s487 + $0x20] sm:$0xff]
      %v569 = vld [vmem:[%s487 + $0x28] sm:$0xff]
      %v570 = vld [vmem:[%s487 + $0x30] sm:$0xff]
      %v571 = vld [vmem:[%s487 + $0x38] sm:$0xff]
      %573 = vset.pattern.permute.xlu0 0
      %574 = vperm.xlu0 %573, %v540
      %v575 = vpop.permute.xlu0 %574
      %578 = vset.pattern.permute.xlu0 0
      %579 = vperm.xlu0 %578, %v541
      %v580 = vpop.permute.xlu0 %579
      %583 = vset.pattern.permute.xlu0 0
      %584 = vperm.xlu0 %583, %v542
      %v585 = vpop.permute.xlu0 %584
      %588 = vset.pattern.permute.xlu0 0
      %589 = vperm.xlu0 %588, %v543
      %v590 = vpop.permute.xlu0 %589
      %v596 = vunpack.c.l.b16 %v536
      %v597 = vunpack.c.l.b16 %v537
      %v598 = vunpack.c.l.b16 %v538
      %v599 = vunpack.c.l.b16 %v539
      %v600 = vpack.c.b16 %v597, %v596
      %v601 = vpack.c.b16 %v599, %v598
      %vm602 = vcmask 523264
      %v604 = vsel %vm602, %v600, 0
      %v607 = vsel %vm602, %v601, 0
      %609 = vmatprep.subr.bf16.mxu0 0
      %610 = vmatpush1.bf16.msra.mxu0 0
      %611 = vmatprep.subr.bf16.mxu0 0
      %612 = vmatpush1.bf16.msra.mxu0 0
      %613 = vmatprep.subr.bf16.mxu0 0
      %614 = vmatpush1.bf16.msra.mxu0 0
      %615 = vmatprep.subr.bf16.mxu0 0
      %616 = vmatpush1.bf16.msra.mxu0 0
      %617 = vmatprep.subr.bf16.mxu0 0
      %618 = vmatpush1.bf16.msra.mxu0 %v533
      %619 = vmatprep.subr.bf16.mxu0 0
      %620 = vmatpush1.bf16.msra.mxu0 %v532
      %621 = vmatprep.subr.bf16.mxu0 0
      %622 = vmatpush1.bf16.msra.mxu0 %v531
      %623 = vmatprep.subr.bf16.mxu0 0
      %624 = vmatpush1.bf16.msra.mxu0 %v530
      %625 = vmatprep.subr.bf16.mxu0 0
      %626 = vmatpush2.bf16.msra.mxu0 0
      %627 = vmatprep.subr.bf16.mxu0 0
      %628 = vmatpush2.bf16.msra.mxu0 0
      %629 = vmatprep.subr.bf16.mxu0 0
      %630 = vmatpush2.bf16.msra.mxu0 0
      %631 = vmatprep.subr.bf16.mxu0 0
      %632 = vmatpush2.bf16.msra.mxu0 0
      %633 = vmatprep.subr.bf16.mxu0 0
      %634 = vmatpush2.bf16.msra.mxu0 0
      %635 = vmatprep.subr.bf16.mxu0 0
      %636 = vmatpush2.bf16.msra.mxu0 0
      %637 = vmatprep.subr.bf16.mxu0 0
      %638 = vmatpush2.bf16.msra.mxu0 0
      %639 = vmatprep.subr.bf16.mxu0 0
      %640 = vmatpush2.bf16.msra.mxu0 0
      %641 = vmatprep.mubr.bf16.mxu0 0
      %642 = vmatmul.mubr.bf16.gmra.mxu0 %v604
      %v643 = vpop.f32.mrf.mxu0
      %v644 = vadd.f32 %v575, %v643
      %v645 = vpop.f32.mrf.mxu0
      %v646 = vpop.f32.mrf.mxu0
      %v647 = vadd.f32 %v580, %v646
      %v648 = vpop.f32.mrf.mxu0
      %649 = vmatprep.mubr.bf16.mxu0 0
      %650 = vmatmul.mubr.bf16.gmra.mxu0 %v607
      %v651 = vpop.f32.mrf.mxu0
      %v652 = vadd.f32 %v585, %v651
      %v653 = vpop.f32.mrf.mxu0
      %v654 = vpop.f32.mrf.mxu0
      %v655 = vadd.f32 %v590, %v654
      %v656 = vpop.f32.mrf.mxu0
      %657 = vdwg.mxu0
      %v658 = vmax.f32 %v644, 0.0
      %v659 = vmax.f32 %v647, 0.0
      %v660 = vmax.f32 %v652, 0.0
      %v661 = vmax.f32 %v655, 0.0
      %v663 = vlaneseq
      %v664 = vshrl.u32 %v663, 7
      %v665 = vsub.s32 0, %v664
      %v666 = vrot.slane %v534, %v665
      %v668 = vmul.f32 %v658, %v666
      %v669 = vmul.f32 %v659, %v666
      %v670 = vmul.f32 %v660, %v666
      %v671 = vmul.f32 %v661, %v666
      %672 = vrot.lane.b32.xlu0 %v668, 7
      %v673 = vpop.permute.xlu0 %672
      %674 = vrot.lane.b32.xlu0 %v669, 7
      %v675 = vpop.permute.xlu0 %674
      %676 = vrot.lane.b32.xlu0 %v670, 7
      %v677 = vpop.permute.xlu0 %676
      %678 = vrot.lane.b32.xlu0 %v671, 7
      %v679 = vpop.permute.xlu0 %678
      %v680 = vpack.c.bf16 %v675, %v673
      %v681 = vpack.c.bf16 %v679, %v677
      %682 = vrot.lane.b32.xlu0 %v668, 6
      %v683 = vpop.permute.xlu0 %682
      %684 = vrot.lane.b32.xlu0 %v669, 6
      %v685 = vpop.permute.xlu0 %684
      %686 = vrot.lane.b32.xlu0 %v670, 6
      %v687 = vpop.permute.xlu0 %686
      %688 = vrot.lane.b32.xlu0 %v671, 6
      %v689 = vpop.permute.xlu0 %688
      %v690 = vpack.c.bf16 %v685, %v683
      %v691 = vpack.c.bf16 %v689, %v687
      %692 = vrot.lane.b32.xlu0 %v668, 5
      %v693 = vpop.permute.xlu0 %692
      %694 = vrot.lane.b32.xlu0 %v669, 5
      %v695 = vpop.permute.xlu0 %694
      %696 = vrot.lane.b32.xlu0 %v670, 5
      %v697 = vpop.permute.xlu0 %696
      %698 = vrot.lane.b32.xlu0 %v671, 5
      %v699 = vpop.permute.xlu0 %698
      %v700 = vpack.c.bf16 %v695, %v693
      %v701 = vpack.c.bf16 %v699, %v697
      %702 = vrot.lane.b32.xlu0 %v668, 1
      %v703 = vpop.permute.xlu0 %702
      %704 = vrot.lane.b32.xlu0 %v669, 1
      %v705 = vpop.permute.xlu0 %704
      %706 = vrot.lane.b32.xlu0 %v670, 1
      %v707 = vpop.permute.xlu0 %706
      %708 = vrot.lane.b32.xlu0 %v671, 1
      %v709 = vpop.permute.xlu0 %708
      %v710 = vpack.c.bf16 %v705, %v703
      %v711 = vpack.c.bf16 %v709, %v707
      %v712 = vpack.c.bf16 %v669, %v668
      %v713 = vpack.c.bf16 %v671, %v670
      %714 = vrot.lane.b32.xlu0 %v668, 127
      %v715 = vpop.permute.xlu0 %714
      %716 = vrot.lane.b32.xlu0 %v669, 127
      %v717 = vpop.permute.xlu0 %716
      %718 = vrot.lane.b32.xlu0 %v670, 127
      %v719 = vpop.permute.xlu0 %718
      %720 = vrot.lane.b32.xlu0 %v671, 127
      %v721 = vpop.permute.xlu0 %720
      %v722 = vpack.c.bf16 %v717, %v715
      %v723 = vpack.c.bf16 %v721, %v719
      %724 = vrot.lane.b32.xlu0 %v668, 123
      %v725 = vpop.permute.xlu0 %724
      %726 = vrot.lane.b32.xlu0 %v669, 123
      %v727 = vpop.permute.xlu0 %726
      %728 = vrot.lane.b32.xlu0 %v670, 123
      %v729 = vpop.permute.xlu0 %728
      %730 = vrot.lane.b32.xlu0 %v671, 123
      %v731 = vpop.permute.xlu0 %730
      %v732 = vpack.c.bf16 %v727, %v725
      %v733 = vpack.c.bf16 %v731, %v729
      %734 = vrot.lane.b32.xlu0 %v668, 122
      %v735 = vpop.permute.xlu0 %734
      %736 = vrot.lane.b32.xlu0 %v669, 122
      %v737 = vpop.permute.xlu0 %736
      %738 = vrot.lane.b32.xlu0 %v670, 122
      %v739 = vpop.permute.xlu0 %738
      %740 = vrot.lane.b32.xlu0 %v671, 122
      %v741 = vpop.permute.xlu0 %740
      %v742 = vpack.c.bf16 %v737, %v735
      %v743 = vpack.c.bf16 %v741, %v739
      %744 = vrot.lane.b32.xlu0 %v668, 121
      %v745 = vpop.permute.xlu0 %744
      %746 = vrot.lane.b32.xlu0 %v669, 121
      %v747 = vpop.permute.xlu0 %746
      %748 = vrot.lane.b32.xlu0 %v670, 121
      %v749 = vpop.permute.xlu0 %748
      %750 = vrot.lane.b32.xlu0 %v671, 121
      %v751 = vpop.permute.xlu0 %750
      %v752 = vpack.c.bf16 %v747, %v745
      %v753 = vpack.c.bf16 %v751, %v749
      %v762 = vunpack.c.l.b16 %v544
      %v763 = vunpack.c.h.b16 %v544
      %v764 = vunpack.c.l.b16 %v545
      %v765 = vunpack.c.l.b16 %v546
      %v766 = vunpack.c.h.b16 %v546
      %v767 = vunpack.c.l.b16 %v547
      %v768 = vunpack.c.l.b16 %v548
      %v769 = vunpack.c.h.b16 %v548
      %v770 = vunpack.c.l.b16 %v549
      %v771 = vunpack.c.l.b16 %v550
      %v772 = vunpack.c.h.b16 %v550
      %v773 = vunpack.c.l.b16 %v551
      %v774 = vpack.c.b16 %v765, %v762
      %v775 = vpack.c.b16 %v766, %v763
      %v776 = vpack.c.b16 %v767, %v764
      %v777 = vpack.c.b16 %v771, %v768
      %v778 = vpack.c.b16 %v772, %v769
      %v779 = vpack.c.b16 %v773, %v770
      %vm784 = vcmask 261120
      %v786 = vsel %vm784, %v776, 0
      %v789 = vsel %vm784, %v779, 0
      %791 = vmatprep.subr.bf16.mxu0 0
      %792 = vmatpush1.bf16.msra.mxu0 %v711
      %793 = vmatprep.subr.bf16.mxu0 0
      %794 = vmatpush1.bf16.msra.mxu0 %v710
      %795 = vmatprep.subr.bf16.mxu0 0
      %796 = vmatpush1.bf16.msra.mxu0 %v701
      %797 = vmatprep.subr.bf16.mxu0 0
      %798 = vmatpush1.bf16.msra.mxu0 %v700
      %799 = vmatprep.subr.bf16.mxu0 0
      %800 = vmatpush1.bf16.msra.mxu0 %v691
      %801 = vmatprep.subr.bf16.mxu0 0
      %802 = vmatpush1.bf16.msra.mxu0 %v690
      %803 = vmatprep.subr.bf16.mxu0 0
      %804 = vmatpush1.bf16.msra.mxu0 %v681
      %805 = vmatprep.subr.bf16.mxu0 0
      %806 = vmatpush1.bf16.msra.mxu0 %v680
      %807 = vmatprep.subr.bf16.mxu0 0
      %808 = vmatpush2.bf16.msra.mxu0 %v743
      %809 = vmatprep.subr.bf16.mxu0 0
      %810 = vmatpush2.bf16.msra.mxu0 %v742
      %811 = vmatprep.subr.bf16.mxu0 0
      %812 = vmatpush2.bf16.msra.mxu0 %v733
      %813 = vmatprep.subr.bf16.mxu0 0
      %814 = vmatpush2.bf16.msra.mxu0 %v732
      %815 = vmatprep.subr.bf16.mxu0 0
      %816 = vmatpush2.bf16.msra.mxu0 %v723
      %817 = vmatprep.subr.bf16.mxu0 0
      %818 = vmatpush2.bf16.msra.mxu0 %v722
      %819 = vmatprep.subr.bf16.mxu0 0
      %820 = vmatpush2.bf16.msra.mxu0 %v713
      %821 = vmatprep.subr.bf16.mxu0 0
      %822 = vmatpush2.bf16.msra.mxu0 %v712
      %823 = vmatprep.mubr.bf16.mxu0 %v775
      %824 = vmatmul.mubr.bf16.gmra.mxu0 %v774
      %v825 = vpop.f32.mrf.mxu0
      %v826 = vadd.f32 0.0, %v825
      %v827 = vpop.f32.mrf.mxu0
      %v828 = vpop.f32.mrf.mxu0
      %v829 = vadd.f32 0.0, %v828
      %v830 = vpop.f32.mrf.mxu0
      %831 = vmatprep.mubr.bf16.mxu0 %v778
      %832 = vmatmul.mubr.bf16.gmra.mxu0 %v777
      %v833 = vpop.f32.mrf.mxu0
      %v834 = vadd.f32 0.0, %v833
      %v835 = vpop.f32.mrf.mxu0
      %v836 = vpop.f32.mrf.mxu0
      %v837 = vadd.f32 0.0, %v836
      %v838 = vpop.f32.mrf.mxu0
      %839 = vdwg.mxu0
      %840 = vmatprep.subr.bf16.mxu0 0
      %841 = vmatpush1.bf16.msra.mxu0 0
      %842 = vmatprep.subr.bf16.mxu0 0
      %843 = vmatpush1.bf16.msra.mxu0 0
      %844 = vmatprep.subr.bf16.mxu0 0
      %845 = vmatpush1.bf16.msra.mxu0 0
      %846 = vmatprep.subr.bf16.mxu0 0
      %847 = vmatpush1.bf16.msra.mxu0 0
      %848 = vmatprep.subr.bf16.mxu0 0
      %849 = vmatpush1.bf16.msra.mxu0 0
      %850 = vmatprep.subr.bf16.mxu0 0
      %851 = vmatpush1.bf16.msra.mxu0 0
      %852 = vmatprep.subr.bf16.mxu0 0
      %853 = vmatpush1.bf16.msra.mxu0 %v753
      %854 = vmatprep.subr.bf16.mxu0 0
      %855 = vmatpush1.bf16.msra.mxu0 %v752
      %856 = vmatprep.subr.bf16.mxu0 0
      %857 = vmatpush2.bf16.msra.mxu0 0
      %858 = vmatprep.subr.bf16.mxu0 0
      %859 = vmatpush2.bf16.msra.mxu0 0
      %860 = vmatprep.subr.bf16.mxu0 0
      %861 = vmatpush2.bf16.msra.mxu0 0
      %862 = vmatprep.subr.bf16.mxu0 0
      %863 = vmatpush2.bf16.msra.mxu0 0
      %864 = vmatprep.subr.bf16.mxu0 0
      %865 = vmatpush2.bf16.msra.mxu0 0
      %866 = vmatprep.subr.bf16.mxu0 0
      %867 = vmatpush2.bf16.msra.mxu0 0
      %868 = vmatprep.subr.bf16.mxu0 0
      %869 = vmatpush2.bf16.msra.mxu0 0
      %870 = vmatprep.subr.bf16.mxu0 0
      %871 = vmatpush2.bf16.msra.mxu0 0
      %872 = vmatprep.mubr.bf16.mxu0 0
      %873 = vmatmul.mubr.bf16.gmra.mxu0 %v786
      %v874 = vpop.f32.mrf.mxu0
      %v875 = vadd.f32 %v826, %v874
      %v876 = vpop.f32.mrf.mxu0
      %v877 = vpop.f32.mrf.mxu0
      %v878 = vadd.f32 %v829, %v877
      %v879 = vpop.f32.mrf.mxu0
      %880 = vmatprep.mubr.bf16.mxu0 0
      %881 = vmatmul.mubr.bf16.gmra.mxu0 %v789
      %v882 = vpop.f32.mrf.mxu0
      %v883 = vadd.f32 %v834, %v882
      %v884 = vpop.f32.mrf.mxu0
      %v885 = vpop.f32.mrf.mxu0
      %v886 = vadd.f32 %v837, %v885
      %v887 = vpop.f32.mrf.mxu0
      %888 = vdwg.mxu0
      %v890 = vlaneseq
      %v891 = vshrl.u32 %v890, 7
      %v892 = vsub.s32 0, %v891
      %v893 = vrot.slane %v535, %v892
      %v895 = vmul.f32 %v875, %v893
      %v896 = vmul.f32 %v878, %v893
      %v897 = vmul.f32 %v883, %v893
      %v898 = vmul.f32 %v886, %v893
      %900 = vset.pattern.permute.xlu0 0
      %901 = vperm.xlu0 %900, %v552
      %v902 = vpop.permute.xlu0 %901
      %905 = vset.pattern.permute.xlu0 0
      %906 = vperm.xlu0 %905, %v553
      %v907 = vpop.permute.xlu0 %906
      %910 = vset.pattern.permute.xlu0 0
      %911 = vperm.xlu0 %910, %v554
      %v912 = vpop.permute.xlu0 %911
      %915 = vset.pattern.permute.xlu0 0
      %916 = vperm.xlu0 %915, %v555
      %v917 = vpop.permute.xlu0 %916
      %v919 = vadd.f32 %v895, %v902
      %v920 = vadd.f32 %v896, %v907
      %v921 = vadd.f32 %v897, %v912
      %v922 = vadd.f32 %v898, %v917
      %v923 = vmax.f32 %v919, 0.0
      %v924 = vmax.f32 %v920, 0.0
      %v925 = vmax.f32 %v921, 0.0
      %v926 = vmax.f32 %v922, 0.0
      %v927 = vpack.c.bf16 %v924, %v923
      %v928 = vpack.c.bf16 %v926, %v925
      %930 = vset.pattern.permute.xlu0 0
      %931 = vperm.xlu0 %930, %v564
      %v932 = vpop.permute.xlu0 %931
      %935 = vset.pattern.permute.xlu0 0
      %936 = vperm.xlu0 %935, %v565
      %v937 = vpop.permute.xlu0 %936
      %940 = vset.pattern.permute.xlu0 0
      %941 = vperm.xlu0 %940, %v566
      %v942 = vpop.permute.xlu0 %941
      %945 = vset.pattern.permute.xlu0 0
      %946 = vperm.xlu0 %945, %v567
      %v947 = vpop.permute.xlu0 %946
      %950 = vset.pattern.permute.xlu0 0
      %951 = vperm.xlu0 %950, %v568
      %v952 = vpop.permute.xlu0 %951
      %955 = vset.pattern.permute.xlu0 0
      %956 = vperm.xlu0 %955, %v569
      %v957 = vpop.permute.xlu0 %956
      %960 = vset.pattern.permute.xlu0 0
      %961 = vperm.xlu0 %960, %v570
      %v962 = vpop.permute.xlu0 %961
      %965 = vset.pattern.permute.xlu0 0
      %966 = vperm.xlu0 %965, %v571
      %v967 = vpop.permute.xlu0 %966
      %v977 = vunpack.c.l.b16 %v556
      %v978 = vunpack.c.l.b16 %v557
      %v979 = vunpack.c.l.b16 %v558
      %v980 = vunpack.c.l.b16 %v559
      %v981 = vunpack.c.l.b16 %v560
      %v982 = vunpack.c.l.b16 %v561
      %v983 = vunpack.c.l.b16 %v562
      %v984 = vunpack.c.l.b16 %v563
      %v985 = vpack.c.b16 %v978, %v977
      %v986 = vpack.c.b16 %v980, %v979
      %v987 = vpack.c.b16 %v982, %v981
      %v988 = vpack.c.b16 %v984, %v983
      %v990 = vsel %vm784, %v985, 0
      %v993 = vsel %vm784, %v986, 0
      %v996 = vsel %vm784, %v987, 0
      %v999 = vsel %vm784, %v988, 0
      %1001 = vmatprep.subr.bf16.mxu0 0
      %1002 = vmatpush1.bf16.msra.mxu0 0
      %1003 = vmatprep.subr.bf16.mxu0 0
      %1004 = vmatpush1.bf16.msra.mxu0 0
      %1005 = vmatprep.subr.bf16.mxu0 0
      %1006 = vmatpush1.bf16.msra.mxu0 0
      %1007 = vmatprep.subr.bf16.mxu0 0
      %1008 = vmatpush1.bf16.msra.mxu0 0
      %1009 = vmatprep.subr.bf16.mxu0 0
      %1010 = vmatpush1.bf16.msra.mxu0 0
      %1011 = vmatprep.subr.bf16.mxu0 0
      %1012 = vmatpush1.bf16.msra.mxu0 0
      %1013 = vmatprep.subr.bf16.mxu0 0
      %1014 = vmatpush1.bf16.msra.mxu0 %v928
      %1015 = vmatprep.subr.bf16.mxu0 0
      %1016 = vmatpush1.bf16.msra.mxu0 %v927
      %1017 = vmatprep.subr.bf16.mxu0 0
      %1018 = vmatpush2.bf16.msra.mxu0 0
      %1019 = vmatprep.subr.bf16.mxu0 0
      %1020 = vmatpush2.bf16.msra.mxu0 0
      %1021 = vmatprep.subr.bf16.mxu0 0
      %1022 = vmatpush2.bf16.msra.mxu0 0
      %1023 = vmatprep.subr.bf16.mxu0 0
      %1024 = vmatpush2.bf16.msra.mxu0 0
      %1025 = vmatprep.subr.bf16.mxu0 0
      %1026 = vmatpush2.bf16.msra.mxu0 0
      %1027 = vmatprep.subr.bf16.mxu0 0
      %1028 = vmatpush2.bf16.msra.mxu0 0
      %1029 = vmatprep.subr.bf16.mxu0 0
      %1030 = vmatpush2.bf16.msra.mxu0 0
      %1031 = vmatprep.subr.bf16.mxu0 0
      %1032 = vmatpush2.bf16.msra.mxu0 0
      %1033 = vmatprep.mubr.bf16.mxu0 0
      %1034 = vmatmul.mubr.bf16.gmra.mxu0 %v990
      %v1035 = vpop.f32.mrf.mxu0
      %v1036 = vadd.f32 %v932, %v1035
      %v1037 = vpop.f32.mrf.mxu0
      %v1038 = vpop.f32.mrf.mxu0
      %v1039 = vadd.f32 %v937, %v1038
      %v1040 = vpop.f32.mrf.mxu0
      %1041 = vmatprep.mubr.bf16.mxu0 0
      %1042 = vmatmul.mubr.bf16.gmra.mxu0 %v993
      %v1043 = vpop.f32.mrf.mxu0
      %v1044 = vadd.f32 %v942, %v1043
      %v1045 = vpop.f32.mrf.mxu0
      %v1046 = vpop.f32.mrf.mxu0
      %v1047 = vadd.f32 %v947, %v1046
      %v1048 = vpop.f32.mrf.mxu0
      %1049 = vmatprep.mubr.bf16.mxu0 0
      %1050 = vmatmul.mubr.bf16.gmra.mxu0 %v996
      %v1051 = vpop.f32.mrf.mxu0
      %v1052 = vadd.f32 %v952, %v1051
      %v1053 = vpop.f32.mrf.mxu0
      %v1054 = vpop.f32.mrf.mxu0
      %v1055 = vadd.f32 %v957, %v1054
      %v1056 = vpop.f32.mrf.mxu0
      %1057 = vmatprep.mubr.bf16.mxu0 0
      %1058 = vmatmul.mubr.bf16.gmra.mxu0 %v999
      %v1059 = vpop.f32.mrf.mxu0
      %v1060 = vadd.f32 %v962, %v1059
      %v1061 = vpop.f32.mrf.mxu0
      %v1062 = vpop.f32.mrf.mxu0
      %v1063 = vadd.f32 %v967, %v1062
      %v1064 = vpop.f32.mrf.mxu0
      %1065 = vdwg.mxu0
      %v1066 = vadd.f32 %v1036, %v522
      %v1067 = vadd.f32 %v1039, %v523
      %v1068 = vadd.f32 %v1044, %v524
      %v1069 = vadd.f32 %v1047, %v525
      %v1070 = vadd.f32 %v1052, %v526
      %v1071 = vadd.f32 %v1055, %v527
      %v1072 = vadd.f32 %v1060, %v528
      %v1073 = vadd.f32 %v1063, %v529
      %v1074 = vmax.f32 %v1066, 0.0
      %v1075 = vmax.f32 %v1067, 0.0
      %v1076 = vmax.f32 %v1068, 0.0
      %v1077 = vmax.f32 %v1069, 0.0
      %v1078 = vmax.f32 %v1070, 0.0
      %v1079 = vmax.f32 %v1071, 0.0
      %v1080 = vmax.f32 %v1072, 0.0
      %v1081 = vmax.f32 %v1073, 0.0
      %1082 = vst [vmem:[#allocation2] sm:$0xff] %v1074
      %1083 = vst [vmem:[#allocation2 + $0x8] sm:$0xff] %v1075
      %1084 = vst [vmem:[#allocation2 + $0x10] sm:$0xff] %v1076
      %1085 = vst [vmem:[#allocation2 + $0x18] sm:$0xff] %v1077
      %1086 = vst [vmem:[#allocation2 + $0x20] sm:$0xff] %v1078
      %1087 = vst [vmem:[#allocation2 + $0x28] sm:$0xff] %v1079
      %1088 = vst [vmem:[#allocation2 + $0x30] sm:$0xff] %v1080
      %1089 = vst [vmem:[#allocation2 + $0x38] sm:$0xff] %v1081
      %p1090 = scmp.eq.s32.totalorder %s25, 4
      // Predicated region
      $region61: #{encoder_fwd.23} parent=55 // pred_check
        %p1091 = pneg %p1090
      $region62: #{encoder_fwd.23} parent=55 // pred_check_branch
        %1093 = sbr.rel (%p1091) target = $region64
      $region63: #{encoder_fwd.23} parent=55 // pred_region
        %v1094 = vpack.c.bf16 %v1075, %v1074
        %v1095 = vpack.c.bf16 %v1077, %v1076
        %v1096 = vpack.c.bf16 %v1079, %v1078
        %v1097 = vpack.c.bf16 %v1081, %v1080
        %v1102 = vunpack.c.l.b16 %v1094
        %v1103 = vunpack.c.h.b16 %v1094
        %v1104 = vunpack.c.l.b16 %v1095
        %v1105 = vunpack.c.h.b16 %v1095
        %v1106 = vunpack.c.l.b16 %v1096
        %v1107 = vunpack.c.h.b16 %v1096
        %v1108 = vunpack.c.l.b16 %v1097
        %v1109 = vunpack.c.h.b16 %v1097
        %v1110 = vpack.c.b16 %v1102, %v1102
        %v1111 = vpack.c.b16 %v1103, %v1103
        %v1112 = vpack.c.b16 %v1104, %v1104
        %v1113 = vpack.c.b16 %v1105, %v1105
        %v1114 = vpack.c.b16 %v1106, %v1106
        %v1115 = vpack.c.b16 %v1107, %v1107
        %v1116 = vpack.c.b16 %v1108, %v1108
        %v1117 = vpack.c.b16 %v1109, %v1109
        %1126 = vst [vmem:[%s492] sm:$0xf] %v1110
        %1127 = vst [vmem:[%s492 + $0x4] sm:$0xf] %v1111
        %1128 = vst [vmem:[%s492 + $0x8] sm:$0xf] %v1112
        %1129 = vst [vmem:[%s492 + $0xc] sm:$0xf] %v1113
        %1130 = vst [vmem:[%s492 + $0x10] sm:$0xf] %v1114
        %1131 = vst [vmem:[%s492 + $0x14] sm:$0xf] %v1115
        %1132 = vst [vmem:[%s492 + $0x18] sm:$0xf] %v1116
        %1133 = vst [vmem:[%s492 + $0x1c] sm:$0xf] %v1117
      $region64: #{encoder_fwd.23} parent=55 // pred_fallthru
        _
      %p1134 = scmp.lt.s32.totalorder %s24, 1
      %s1135 = scalar_select %p1134, %s24, 1
      %s1136 = smul.addr %s1135, 8
      %s1137 = smul.addr %s1136, 4
      %s1138 = scalar_lea.vmem %s9, %s1137
      // Predicated region
      $region65: #{encoder_fwd.23} parent=55 // pred_check
        %p1139 = pneg %p284
      $region66: #{encoder_fwd.23} parent=55 // pred_check_branch
        %1141 = sbr.rel (%p1139) target = $region68
      $region67: #{encoder_fwd.23} parent=55 // pred_region
        _
      $region68: #{encoder_fwd.23} parent=55 // pred_fallthru
        _
    $region56: #{encoder_fwd.23} parent=5 // pred_fallthru
      _
    %p1142 = scmp.le.s32.totalorder 2, %s15
    // Predicated region
    $region69: #{encoder_fwd.23} parent=5 // pred_check
      %p1143 = pneg %p1142
    $region70: #{encoder_fwd.23} parent=5 // pred_check_branch
      %1145 = sbr.rel (%p1143) target = $region72
    $region71: #{encoder_fwd.23} parent=5 // pred_region
      %s1146 = ssub.s32 %s15, 2
      // Predicated region
      $region73: #{encoder_fwd.23} parent=71 // pred_check
        %p1147 = pneg %p290
      $region74: #{encoder_fwd.23} parent=71 // pred_check_branch
        %1149 = sbr.rel (%p1147) target = $region76
      $region75: #{encoder_fwd.23} parent=71 // pred_region
        %p1150 = scmp.lt.s32.totalorder %s26, 1
        %s1151 = scalar_select %p1150, %s26, 1
        %s1152 = smul.addr %s1151, 8
        %s1153 = smul.addr %s1152, 4
        %s1154 = scalar_lea.vmem %s9, %s1153
      $region76: #{encoder_fwd.23} parent=71 // pred_fallthru
        _
    $region72: #{encoder_fwd.23} parent=5 // pred_fallthru
      _
  $region6: #{encoder_fwd.23} parent=0 // loop_footer
    %s19 = sadd.s32 1, %s15
  $region7: #{encoder_fwd.23} parent=0 // loop_footer_branch
    %14 = sbr.rel target = $region3
  $region8: #{encoder_fwd.23} parent=0 // loop_exit
    _

</llo_original>
